<compile_context>
chip_gen: v7x
topology: tpu7x:2x2x1
jax: 0.10.0
libtpu: 0.0.40
codegen_flags: <defaults>
</compile_context>

<pallas_src>
import jax
import jax.numpy as jnp
from jax.experimental import pallas as pl
from jax.experimental.pallas import tpu as pltpu


def compute_conv_output_size(Lin, kernel_size, stride=1, padding=0, dilation=1):
    return int((Lin + 2 * padding - dilation * (kernel_size - 1) - 1) // stride + 1)


def _round_up(x, m):
    return (x + m - 1) // m * m


def _pad_axis(x, axis, target):
    pad = target - x.shape[axis]
    if pad <= 0:
        return x
    widths = [(0, 0)] * x.ndim
    widths[axis] = (0, pad)
    return jnp.pad(x, widths)


_VMEM_LIMIT = 32 * 1024 * 1024  # explicit scoped-VMEM cap, fits v5e/v6e/v7x


# ---------------------------------------------------------------------------
# Tiled matmul + bias + ReLU  (used by every conv layer via im2col)
# ---------------------------------------------------------------------------
def _matmul_bias_relu_kernel(a_ref, w_ref, b_ref, o_ref):
    acc = jnp.dot(a_ref[...], w_ref[...], preferred_element_type=jnp.float32)
    o_ref[...] = jnp.maximum(acc + b_ref[...], 0.0).astype(o_ref.dtype)


def matmul_bias_relu(a, w, bias, *, out_dtype=jnp.float32, tm=256, tn=256):
    """relu(a @ w + bias) with bf16 MXU operands, f32 accumulate + epilogue.

    M is padded to a sublane/tile multiple and N to a lane-dense multiple of
    128, so every output store is an unmasked full-lane vst.  The (M, N) grid
    is double-buffer pipelined by Pallas and marked "parallel" for megacore.
    """
    M, K = a.shape
    K2, N = w.shape
    assert K == K2

    Np = _round_up(N, 128)
    tn_ = min(tn, Np)
    Np = _round_up(Np, tn_)

    Mp = max(_round_up(M, 8), 8)
    tm_ = min(tm, Mp)
    Mp = _round_up(Mp, tm_)

    a_p = jnp.pad(a.astype(jnp.bfloat16), ((0, Mp - M), (0, 0)))
    w_p = _pad_axis(w.astype(jnp.bfloat16), 1, Np)
    b_p = _pad_axis(bias.astype(jnp.float32).reshape(1, -1), 1, Np)

    out = pl.pallas_call(
        _matmul_bias_relu_kernel,
        grid=(Mp // tm_, Np // tn_),
        in_specs=[
            pl.BlockSpec((tm_, K), lambda i, j: (i, 0)),
            pl.BlockSpec((K, tn_), lambda i, j: (0, j)),
            pl.BlockSpec((1, tn_), lambda i, j: (0, j)),
        ],
        out_specs=pl.BlockSpec((tm_, tn_), lambda i, j: (i, j)),
        out_shape=jax.ShapeDtypeStruct((Mp, Np), out_dtype),
        compiler_params=pltpu.CompilerParams(
            dimension_semantics=("parallel", "parallel"),
            vmem_limit_bytes=_VMEM_LIMIT,
        ),
    )(a_p, w_p, b_p)
    return out[:M, :N]


# ---------------------------------------------------------------------------
# Fused fc1 + fc2: relu(relu(h @ W1 + b1) @ W2 + b2)
# Grid iterates over fc1's output (= fc2's contraction) dim; the 2048-wide
# intermediate never leaves VMEM and both weight matrices are streamed in
# double-buffered tiles.
# ---------------------------------------------------------------------------
def _fc_fused_kernel(h_ref, w1_ref, b1_ref, w2_ref, b2_ref, o_ref, acc_ref):
    k = pl.program_id(0)

    @pl.when(k == 0)
    def _():
        acc_ref[...] = jnp.zeros_like(acc_ref)

    h1 = jnp.dot(h_ref[...], w1_ref[...], preferred_element_type=jnp.float32)
    h1 = jnp.maximum(h1 + b1_ref[...], 0.0).astype(jnp.bfloat16)
    acc_ref[...] += jnp.dot(h1, w2_ref[...], preferred_element_type=jnp.float32)

    @pl.when(k == pl.num_programs(0) - 1)
    def _():
        o_ref[...] = jnp.maximum(acc_ref[...] + b2_ref[...], 0.0)


def fc_fused(h, w1, b1, w2, b2, *, tk=256):
    M, K1 = h.shape
    N1 = w1.shape[1]          # 2048
    N2 = w2.shape[1]          # 1000 -> padded to 1024 (lane dense)
    assert N1 % tk == 0

    Mp = max(_round_up(M, 8), 8)          # batch padded onto full sublanes
    N2p = _round_up(N2, 128)

    h_p = jnp.pad(h.astype(jnp.bfloat16), ((0, Mp - M), (0, 0)))
    w1_b = w1.astype(jnp.bfloat16)
    b1_b = b1.astype(jnp.float32).reshape(1, -1)
    w2_p = _pad_axis(w2.astype(jnp.bfloat16), 1, N2p)
    b2_p = _pad_axis(b2.astype(jnp.float32).reshape(1, -1), 1, N2p)

    out = pl.pallas_call(
        _fc_fused_kernel,
        grid=(N1 // tk,),
        in_specs=[
            pl.BlockSpec((Mp, K1), lambda k: (0, 0)),
            pl.BlockSpec((K1, tk), lambda k: (0, k)),
            pl.BlockSpec((1, tk), lambda k: (0, k)),
            pl.BlockSpec((tk, N2p), lambda k: (k, 0)),
            pl.BlockSpec((1, N2p), lambda k: (0, 0)),
        ],
        out_specs=pl.BlockSpec((Mp, N2p), lambda k: (0, 0)),
        out_shape=jax.ShapeDtypeStruct((Mp, N2p), jnp.float32),
        scratch_shapes=[pltpu.VMEM((Mp, N2p), jnp.float32)],
        compiler_params=pltpu.CompilerParams(
            dimension_semantics=("arbitrary",),
            vmem_limit_bytes=_VMEM_LIMIT,
        ),
    )(h_p, w1_b, b1_b, w2_p, b2_p)
    return out[:M, :N2]


# ---------------------------------------------------------------------------
# MaxPool2d(2): elementwise max of the 4 non-overlapping phases, presented to
# the kernel as lane-dense 2-D slabs (B*Hp, Wp*C) so loads/stores are full-lane.
# ---------------------------------------------------------------------------
def _max4_kernel(a_ref, b_ref, c_ref, d_ref, o_ref):
    o_ref[...] = jnp.maximum(jnp.maximum(a_ref[...], b_ref[...]),
                             jnp.maximum(c_ref[...], d_ref[...]))


def maxpool2x2(x):
    """torch.nn.MaxPool2d(2) on NHWC input (floor division of spatial dims)."""
    B, H, W, C = x.shape
    Hp, Wp = H // 2, W // 2
    xe = x[:, :2 * Hp, :2 * Wp, :]
    # Four phases partition xe exactly once; reshaped to (B*Hp, Wp*C) the lane
    # dim is a multiple of 128 (C is always a 128-multiple in this net).
    views = [xe[:, i::2, j::2, :].reshape(B * Hp, Wp * C)
             for i in (0, 1) for j in (0, 1)]
    spec = pl.BlockSpec((B * Hp, Wp * C), lambda i: (0, 0))
    out = pl.pallas_call(
        _max4_kernel,
        grid=(1,),   # whole pool fits in a few hundred KiB of VMEM
        in_specs=[spec] * 4,
        out_specs=spec,
        out_shape=jax.ShapeDtypeStruct((B * Hp, Wp * C), x.dtype),
        compiler_params=pltpu.CompilerParams(
            dimension_semantics=("arbitrary",),
            vmem_limit_bytes=_VMEM_LIMIT,
        ),
    )(*views)
    return out.reshape(B, Hp, Wp, C)


# ---------------------------------------------------------------------------
# Conv = im2col (bf16 wrapper glue) + tiled Pallas matmul
# ---------------------------------------------------------------------------
def _im2col(x, k):
    B, H, W, C = x.shape
    Ho, Wo = H - k + 1, W - k + 1
    patches = [x[:, i:i + Ho, j:j + Wo, :] for i in range(k) for j in range(k)]
    p = jnp.concatenate(patches, axis=-1)          # (B,Ho,Wo,k*k*C), order (ki,kj,cin)
    return p.reshape(B * Ho * Wo, k * k * C), (B, Ho, Wo)


def conv_relu(x, w, bias):
    """Valid conv, stride 1, fused bias + ReLU. w: (k, k, Cin, Cout)."""
    k, _, _, cout = w.shape
    a, (B, Ho, Wo) = _im2col(x.astype(jnp.bfloat16), k)
    out = matmul_bias_relu(a, w.reshape(-1, cout), bias, out_dtype=jnp.bfloat16)
    return out.reshape(B, Ho, Wo, cout)


# ---------------------------------------------------------------------------
# NET forward (features)
# ---------------------------------------------------------------------------
def net_forward(x_nchw, params):
    x = jnp.transpose(x_nchw, (0, 2, 3, 1)).astype(jnp.bfloat16)   # NCHW -> NHWC

    # Lane-dense channel padding: conv1 Cout 64->128 with zero weight/bias
    # columns; the zero channels flow through ReLU/pool1 and are consumed by
    # zero-padded conv2 Cin rows, so results on the real channels are exact.
    w1 = _pad_axis(params["w1"], 3, 128)
    b1 = _pad_axis(params["b1"], 0, 128)
    w2 = _pad_axis(params["w2"], 2, 128)   # Cin 64 -> 128 (zeros)

    # TODO(synk): Dropout layers (drop1/drop2) are identity here (eval-mode semantics).
    h = maxpool2x2(conv_relu(x, w1, b1))
    h = maxpool2x2(conv_relu(h, w2, params["b2"]))
    h = maxpool2x2(conv_relu(h, params["w3"], params["b3"]))

    B = h.shape[0]
    h = jnp.transpose(h, (0, 3, 1, 2)).reshape(B, -1)   # torch (C,H,W) flatten order
    h = fc_fused(h, params["wf1"], params["bf1"], params["wf2"], params["bf2"])
    return h


def init_params(key, ncha, size):
    k1 = size // 8
    k2 = size // 10
    s = compute_conv_output_size(size, k1) // 2
    s = compute_conv_output_size(s, k2) // 2
    s = compute_conv_output_size(s, 2) // 2
    fc1_in = 256 * s * s

    keys = jax.random.split(key, 10)

    def winit(k, shape, fan_in):
        return jax.random.normal(k, shape, jnp.float32) / jnp.sqrt(float(fan_in))

    return {
        "w1": winit(keys[0], (k1, k1, ncha, 64), k1 * k1 * ncha),
        "b1": winit(keys[1], (64,), k1 * k1 * ncha),
        "w2": winit(keys[2], (k2, k2, 64, 128), k2 * k2 * 64),
        "b2": winit(keys[3], (128,), k2 * k2 * 64),
        "w3": winit(keys[4], (2, 2, 128, 256), 2 * 2 * 128),
        "b3": winit(keys[5], (256,), 2 * 2 * 128),
        "wf1": winit(keys[6], (fc1_in, 2048), fc1_in),
        "bf1": winit(keys[7], (2048,), fc1_in),
        "wf2": winit(keys[8], (2048, 1000), 2048),
        "bf2": winit(keys[9], (1000,), 2048),
    }


if __name__ == "__main__":
    key = jax.random.PRNGKey(0)
    kx, kp = jax.random.split(key)

    # shape = (ncha, size) = (3, 32)  ->  conv kernels 4, 3, 2;  fc1 in = 256*2*2
    B, ncha, size = 2, 3, 32
    x = jax.random.normal(kx, (B, ncha, size, size), jnp.float32)   # NCHW, like torch
    params = init_params(kp, ncha, size)

    out = jax.jit(net_forward)(x, params)
    out = jax.block_until_ready(out)
    assert out.shape == (B, 1000), out.shape
    assert bool(jnp.all(jnp.isfinite(out)))
    print("KERNEL_OK")
</pallas_src>

<mosaic_0001>
module attributes {stable_mosaic.version = 11 : i64} {
  func.func @_matmul_bias_relu_kernel(%arg0: i32, %arg1: i32, %arg2: memref<256x48xbf16, #tpu.memory_space<vmem>>, %arg3: memref<48x128xbf16, #tpu.memory_space<vmem>>, %arg4: memref<1x128xf32, #tpu.memory_space<vmem>>, %arg5: memref<256x128xbf16, #tpu.memory_space<vmem>>) attributes {dimension_semantics = [#tpu.dimension_semantics<parallel>, #tpu.dimension_semantics<parallel>], iteration_bounds = array<i64: 7, 1>, scalar_prefetch = 0 : i64, scratch_operands = 0 : i64, tpu.core_type = #tpu.core_type<tc>, window_params = [{transform_indices = @transform_0, window_bounds = array<i64: 256, 48>}, {transform_indices = @transform_1, window_bounds = array<i64: 48, 128>}, {transform_indices = @transform_2, window_bounds = array<i64: 1, 128>}, {transform_indices = @transform_3, window_bounds = array<i64: 256, 128>}]} {
    %c0 = arith.constant 0 : index
    %c0_0 = arith.constant 0 : index
    %0 = vector.load %arg2[%c0, %c0_0] : memref<256x48xbf16, #tpu.memory_space<vmem>>, vector<256x48xbf16>
    %c0_1 = arith.constant 0 : index
    %c0_2 = arith.constant 0 : index
    %1 = vector.load %arg3[%c0_1, %c0_2] : memref<48x128xbf16, #tpu.memory_space<vmem>>, vector<48x128xbf16>
    %cst = arith.constant dense<0.000000e+00> : vector<256x128xf32>
    %2 = tpu.matmul %0, %1, %cst {dimension_numbers = #tpu.dot_dimension_numbers<[1], [0], [0], [1], [0, 0, 1, 1], [], []>} : vector<256x48xbf16>, vector<48x128xbf16>, vector<256x128xf32> -> vector<256x128xf32>
    %c0_3 = arith.constant 0 : index
    %c0_4 = arith.constant 0 : index
    %3 = vector.load %arg4[%c0_3, %c0_4] : memref<1x128xf32, #tpu.memory_space<vmem>>, vector<1x128xf32>
    %4 = vector.broadcast %3 : vector<1x128xf32> to vector<256x128xf32>
    %5 = arith.addf %2, %4 : vector<256x128xf32>
    %cst_5 = arith.constant 0.000000e+00 : f32
    %6 = vector.broadcast %cst_5 : f32 to vector<256x128xf32>
    %7 = arith.maximumf %5, %6 : vector<256x128xf32>
    %8 = arith.truncf %7 : vector<256x128xf32> to vector<256x128xbf16>
    %c0_6 = arith.constant 0 : index
    %c0_7 = arith.constant 0 : index
    %9 = vector.load %arg5[%c0_6, %c0_7] : memref<256x128xbf16, #tpu.memory_space<vmem>>, vector<256x128xbf16>
    tpu.vector_store %arg5[%c0_6, %c0_7], %8 {strides = array<i32>} : memref<256x128xbf16, #tpu.memory_space<vmem>>, vector<256x128xbf16>,
    return
  }
  func.func @transform_0(%arg0: i32, %arg1: i32) -> (i32, i32) {
    %c0_i32 = arith.constant 0 : i32
    %c0_i32_0 = arith.constant 0 : i32
    return %arg0, %c0_i32 : i32, i32
  }
  func.func @transform_1(%arg0: i32, %arg1: i32) -> (i32, i32) {
    %c0_i32 = arith.constant 0 : i32
    %c0_i32_0 = arith.constant 0 : i32
    return %c0_i32, %arg1 : i32, i32
  }
  func.func @transform_2(%arg0: i32, %arg1: i32) -> (i32, i32) {
    %c0_i32 = arith.constant 0 : i32
    %c0_i32_0 = arith.constant 0 : i32
    return %c0_i32, %arg1 : i32, i32
  }
  func.func @transform_3(%arg0: i32, %arg1: i32) -> (i32, i32) {
    %c0_i32 = arith.constant 0 : i32
    return %arg0, %arg1 : i32, i32
  }
}

module attributes {stable_mosaic.version = 11 : i64} {
  func.func @_max4_kernel(%arg0: i32, %arg1: memref<28x1792xbf16, #tpu.memory_space<vmem>>, %arg2: memref<28x1792xbf16, #tpu.memory_space<vmem>>, %arg3: memref<28x1792xbf16, #tpu.memory_space<vmem>>, %arg4: memref<28x1792xbf16, #tpu.memory_space<vmem>>, %arg5: memref<28x1792xbf16, #tpu.memory_space<vmem>>) attributes {dimension_semantics = [#tpu.dimension_semantics<arbitrary>], iteration_bounds = array<i64: 1>, scalar_prefetch = 0 : i64, scratch_operands = 0 : i64, tpu.core_type = #tpu.core_type<tc>, window_params = [{pipeline_mode = #tpu.pipeline_mode<synchronous>, transform_indices = @transform_0, window_bounds = array<i64: 28, 1792>}, {pipeline_mode = #tpu.pipeline_mode<synchronous>, transform_indices = @transform_1, window_bounds = array<i64: 28, 1792>}, {pipeline_mode = #tpu.pipeline_mode<synchronous>, transform_indices = @transform_2, window_bounds = array<i64: 28, 1792>}, {pipeline_mode = #tpu.pipeline_mode<synchronous>, transform_indices = @transform_3, window_bounds = array<i64: 28, 1792>}, {pipeline_mode = #tpu.pipeline_mode<synchronous>, transform_indices = @transform_4, window_bounds = array<i64: 28, 1792>}]} {
    %c0 = arith.constant 0 : index
    %c0_0 = arith.constant 0 : index
    %0 = vector.load %arg1[%c0, %c0_0] : memref<28x1792xbf16, #tpu.memory_space<vmem>>, vector<28x1792xbf16>
    %c0_1 = arith.constant 0 : index
    %c0_2 = arith.constant 0 : index
    %1 = vector.load %arg2[%c0_1, %c0_2] : memref<28x1792xbf16, #tpu.memory_space<vmem>>, vector<28x1792xbf16>
    %2 = arith.maximumf %0, %1 : vector<28x1792xbf16>
    %c0_3 = arith.constant 0 : index
    %c0_4 = arith.constant 0 : index
    %3 = vector.load %arg3[%c0_3, %c0_4] : memref<28x1792xbf16, #tpu.memory_space<vmem>>, vector<28x1792xbf16>
    %c0_5 = arith.constant 0 : index
    %c0_6 = arith.constant 0 : index
    %4 = vector.load %arg4[%c0_5, %c0_6] : memref<28x1792xbf16, #tpu.memory_space<vmem>>, vector<28x1792xbf16>
    %5 = arith.maximumf %3, %4 : vector<28x1792xbf16>
    %6 = arith.maximumf %2, %5 : vector<28x1792xbf16>
    %c0_7 = arith.constant 0 : index
    %c0_8 = arith.constant 0 : index
    %7 = vector.load %arg5[%c0_7, %c0_8] : memref<28x1792xbf16, #tpu.memory_space<vmem>>, vector<28x1792xbf16>
    tpu.vector_store %arg5[%c0_7, %c0_8], %6 {strides = array<i32>} : memref<28x1792xbf16, #tpu.memory_space<vmem>>, vector<28x1792xbf16>,
    return
  }
  func.func @transform_0(%arg0: i32) -> (i32, i32) {
    %c0_i32 = arith.constant 0 : i32
    %c0_i32_0 = arith.constant 0 : i32
    %c0_i32_1 = arith.constant 0 : i32
    return %c0_i32, %c0_i32_0 : i32, i32
  }
  func.func @transform_1(%arg0: i32) -> (i32, i32) {
    %c0_i32 = arith.constant 0 : i32
    %c0_i32_0 = arith.constant 0 : i32
    %c0_i32_1 = arith.constant 0 : i32
    return %c0_i32, %c0_i32_0 : i32, i32
  }
  func.func @transform_2(%arg0: i32) -> (i32, i32) {
    %c0_i32 = arith.constant 0 : i32
    %c0_i32_0 = arith.constant 0 : i32
    %c0_i32_1 = arith.constant 0 : i32
    return %c0_i32, %c0_i32_0 : i32, i32
  }
  func.func @transform_3(%arg0: i32) -> (i32, i32) {
    %c0_i32 = arith.constant 0 : i32
    %c0_i32_0 = arith.constant 0 : i32
    %c0_i32_1 = arith.constant 0 : i32
    return %c0_i32, %c0_i32_0 : i32, i32
  }
  func.func @transform_4(%arg0: i32) -> (i32, i32) {
    %c0_i32 = arith.constant 0 : i32
    %c0_i32_0 = arith.constant 0 : i32
    %c0_i32_1 = arith.constant 0 : i32
    return %c0_i32, %c0_i32_0 : i32, i32
  }
}

module attributes {stable_mosaic.version = 11 : i64} {
  func.func @_matmul_bias_relu_kernel(%arg0: i32, %arg1: i32, %arg2: memref<256x1152xbf16, #tpu.memory_space<vmem>>, %arg3: memref<1152x128xbf16, #tpu.memory_space<vmem>>, %arg4: memref<1x128xf32, #tpu.memory_space<vmem>>, %arg5: memref<256x128xbf16, #tpu.memory_space<vmem>>) attributes {dimension_semantics = [#tpu.dimension_semantics<parallel>, #tpu.dimension_semantics<parallel>], iteration_bounds = array<i64: 2, 1>, scalar_prefetch = 0 : i64, scratch_operands = 0 : i64, tpu.core_type = #tpu.core_type<tc>, window_params = [{transform_indices = @transform_0, window_bounds = array<i64: 256, 1152>}, {transform_indices = @transform_1, window_bounds = array<i64: 1152, 128>}, {transform_indices = @transform_2, window_bounds = array<i64: 1, 128>}, {transform_indices = @transform_3, window_bounds = array<i64: 256, 128>}]} {
    %c0 = arith.constant 0 : index
    %c0_0 = arith.constant 0 : index
    %0 = vector.load %arg2[%c0, %c0_0] : memref<256x1152xbf16, #tpu.memory_space<vmem>>, vector<256x1152xbf16>
    %c0_1 = arith.constant 0 : index
    %c0_2 = arith.constant 0 : index
    %1 = vector.load %arg3[%c0_1, %c0_2] : memref<1152x128xbf16, #tpu.memory_space<vmem>>, vector<1152x128xbf16>
    %cst = arith.constant dense<0.000000e+00> : vector<256x128xf32>
    %2 = tpu.matmul %0, %1, %cst {dimension_numbers = #tpu.dot_dimension_numbers<[1], [0], [0], [1], [0, 0, 1, 1], [], []>} : vector<256x1152xbf16>, vector<1152x128xbf16>, vector<256x128xf32> -> vector<256x128xf32>
    %c0_3 = arith.constant 0 : index
    %c0_4 = arith.constant 0 : index
    %3 = vector.load %arg4[%c0_3, %c0_4] : memref<1x128xf32, #tpu.memory_space<vmem>>, vector<1x128xf32>
    %4 = vector.broadcast %3 : vector<1x128xf32> to vector<256x128xf32>
    %5 = arith.addf %2, %4 : vector<256x128xf32>
    %cst_5 = arith.constant 0.000000e+00 : f32
    %6 = vector.broadcast %cst_5 : f32 to vector<256x128xf32>
    %7 = arith.maximumf %5, %6 : vector<256x128xf32>
    %8 = arith.truncf %7 : vector<256x128xf32> to vector<256x128xbf16>
    %c0_6 = arith.constant 0 : index
    %c0_7 = arith.constant 0 : index
    %9 = vector.load %arg5[%c0_6, %c0_7] : memref<256x128xbf16, #tpu.memory_space<vmem>>, vector<256x128xbf16>
    tpu.vector_store %arg5[%c0_6, %c0_7], %8 {strides = array<i32>} : memref<256x128xbf16, #tpu.memory_space<vmem>>, vector<256x128xbf16>,
    return
  }
  func.func @transform_0(%arg0: i32, %arg1: i32) -> (i32, i32) {
    %c0_i32 = arith.constant 0 : i32
    %c0_i32_0 = arith.constant 0 : i32
    return %arg0, %c0_i32 : i32, i32
  }
  func.func @transform_1(%arg0: i32, %arg1: i32) -> (i32, i32) {
    %c0_i32 = arith.constant 0 : i32
    %c0_i32_0 = arith.constant 0 : i32
    return %c0_i32, %arg1 : i32, i32
  }
  func.func @transform_2(%arg0: i32, %arg1: i32) -> (i32, i32) {
    %c0_i32 = arith.constant 0 : i32
    %c0_i32_0 = arith.constant 0 : i32
    return %c0_i32, %arg1 : i32, i32
  }
  func.func @transform_3(%arg0: i32, %arg1: i32) -> (i32, i32) {
    %c0_i32 = arith.constant 0 : i32
    return %arg0, %arg1 : i32, i32
  }
}

module attributes {stable_mosaic.version = 11 : i64} {
  func.func @_max4_kernel(%arg0: i32, %arg1: memref<12x768xbf16, #tpu.memory_space<vmem>>, %arg2: memref<12x768xbf16, #tpu.memory_space<vmem>>, %arg3: memref<12x768xbf16, #tpu.memory_space<vmem>>, %arg4: memref<12x768xbf16, #tpu.memory_space<vmem>>, %arg5: memref<12x768xbf16, #tpu.memory_space<vmem>>) attributes {dimension_semantics = [#tpu.dimension_semantics<arbitrary>], iteration_bounds = array<i64: 1>, scalar_prefetch = 0 : i64, scratch_operands = 0 : i64, tpu.core_type = #tpu.core_type<tc>, window_params = [{pipeline_mode = #tpu.pipeline_mode<synchronous>, transform_indices = @transform_0, window_bounds = array<i64: 12, 768>}, {pipeline_mode = #tpu.pipeline_mode<synchronous>, transform_indices = @transform_1, window_bounds = array<i64: 12, 768>}, {pipeline_mode = #tpu.pipeline_mode<synchronous>, transform_indices = @transform_2, window_bounds = array<i64: 12, 768>}, {pipeline_mode = #tpu.pipeline_mode<synchronous>, transform_indices = @transform_3, window_bounds = array<i64: 12, 768>}, {pipeline_mode = #tpu.pipeline_mode<synchronous>, transform_indices = @transform_4, window_bounds = array<i64: 12, 768>}]} {
    %c0 = arith.constant 0 : index
    %c0_0 = arith.constant 0 : index
    %0 = vector.load %arg1[%c0, %c0_0] : memref<12x768xbf16, #tpu.memory_space<vmem>>, vector<12x768xbf16>
    %c0_1 = arith.constant 0 : index
    %c0_2 = arith.constant 0 : index
    %1 = vector.load %arg2[%c0_1, %c0_2] : memref<12x768xbf16, #tpu.memory_space<vmem>>, vector<12x768xbf16>
    %2 = arith.maximumf %0, %1 : vector<12x768xbf16>
    %c0_3 = arith.constant 0 : index
    %c0_4 = arith.constant 0 : index
    %3 = vector.load %arg3[%c0_3, %c0_4] : memref<12x768xbf16, #tpu.memory_space<vmem>>, vector<12x768xbf16>
    %c0_5 = arith.constant 0 : index
    %c0_6 = arith.constant 0 : index
    %4 = vector.load %arg4[%c0_5, %c0_6] : memref<12x768xbf16, #tpu.memory_space<vmem>>, vector<12x768xbf16>
    %5 = arith.maximumf %3, %4 : vector<12x768xbf16>
    %6 = arith.maximumf %2, %5 : vector<12x768xbf16>
    %c0_7 = arith.constant 0 : index
    %c0_8 = arith.constant 0 : index
    %7 = vector.load %arg5[%c0_7, %c0_8] : memref<12x768xbf16, #tpu.memory_space<vmem>>, vector<12x768xbf16>
    tpu.vector_store %arg5[%c0_7, %c0_8], %6 {strides = array<i32>} : memref<12x768xbf16, #tpu.memory_space<vmem>>, vector<12x768xbf16>,
    return
  }
  func.func @transform_0(%arg0: i32) -> (i32, i32) {
    %c0_i32 = arith.constant 0 : i32
    %c0_i32_0 = arith.constant 0 : i32
    %c0_i32_1 = arith.constant 0 : i32
    return %c0_i32, %c0_i32_0 : i32, i32
  }
  func.func @transform_1(%arg0: i32) -> (i32, i32) {
    %c0_i32 = arith.constant 0 : i32
    %c0_i32_0 = arith.constant 0 : i32
    %c0_i32_1 = arith.constant 0 : i32
    return %c0_i32, %c0_i32_0 : i32, i32
  }
  func.func @transform_2(%arg0: i32) -> (i32, i32) {
    %c0_i32 = arith.constant 0 : i32
    %c0_i32_0 = arith.constant 0 : i32
    %c0_i32_1 = arith.constant 0 : i32
    return %c0_i32, %c0_i32_0 : i32, i32
  }
  func.func @transform_3(%arg0: i32) -> (i32, i32) {
    %c0_i32 = arith.constant 0 : i32
    %c0_i32_0 = arith.constant 0 : i32
    %c0_i32_1 = arith.constant 0 : i32
    return %c0_i32, %c0_i32_0 : i32, i32
  }
  func.func @transform_4(%arg0: i32) -> (i32, i32) {
    %c0_i32 = arith.constant 0 : i32
    %c0_i32_0 = arith.constant 0 : i32
    %c0_i32_1 = arith.constant 0 : i32
    return %c0_i32, %c0_i32_0 : i32, i32
  }
}

module attributes {stable_mosaic.version = 11 : i64} {
  func.func @_matmul_bias_relu_kernel(%arg0: i32, %arg1: i32, %arg2: memref<56x512xbf16, #tpu.memory_space<vmem>>, %arg3: memref<512x256xbf16, #tpu.memory_space<vmem>>, %arg4: memref<1x256xf32, #tpu.memory_space<vmem>>, %arg5: memref<56x256xbf16, #tpu.memory_space<vmem>>) attributes {dimension_semantics = [#tpu.dimension_semantics<parallel>, #tpu.dimension_semantics<parallel>], iteration_bounds = array<i64: 1, 1>, scalar_prefetch = 0 : i64, scratch_operands = 0 : i64, tpu.core_type = #tpu.core_type<tc>, window_params = [{transform_indices = @transform_0, window_bounds = array<i64: 56, 512>}, {transform_indices = @transform_1, window_bounds = array<i64: 512, 256>}, {transform_indices = @transform_2, window_bounds = array<i64: 1, 256>}, {transform_indices = @transform_3, window_bounds = array<i64: 56, 256>}]} {
    %c0 = arith.constant 0 : index
    %c0_0 = arith.constant 0 : index
    %0 = vector.load %arg2[%c0, %c0_0] : memref<56x512xbf16, #tpu.memory_space<vmem>>, vector<56x512xbf16>
    %c0_1 = arith.constant 0 : index
    %c0_2 = arith.constant 0 : index
    %1 = vector.load %arg3[%c0_1, %c0_2] : memref<512x256xbf16, #tpu.memory_space<vmem>>, vector<512x256xbf16>
    %cst = arith.constant dense<0.000000e+00> : vector<56x256xf32>
    %2 = tpu.matmul %0, %1, %cst {dimension_numbers = #tpu.dot_dimension_numbers<[1], [0], [0], [1], [0, 0, 1, 1], [], []>} : vector<56x512xbf16>, vector<512x256xbf16>, vector<56x256xf32> -> vector<56x256xf32>
    %c0_3 = arith.constant 0 : index
    %c0_4 = arith.constant 0 : index
    %3 = vector.load %arg4[%c0_3, %c0_4] : memref<1x256xf32, #tpu.memory_space<vmem>>, vector<1x256xf32>
    %4 = vector.broadcast %3 : vector<1x256xf32> to vector<56x256xf32>
    %5 = arith.addf %2, %4 : vector<56x256xf32>
    %cst_5 = arith.constant 0.000000e+00 : f32
    %6 = vector.broadcast %cst_5 : f32 to vector<56x256xf32>
    %7 = arith.maximumf %5, %6 : vector<56x256xf32>
    %8 = arith.truncf %7 : vector<56x256xf32> to vector<56x256xbf16>
    %c0_6 = arith.constant 0 : index
    %c0_7 = arith.constant 0 : index
    %9 = vector.load %arg5[%c0_6, %c0_7] : memref<56x256xbf16, #tpu.memory_space<vmem>>, vector<56x256xbf16>
    tpu.vector_store %arg5[%c0_6, %c0_7], %8 {strides = array<i32>} : memref<56x256xbf16, #tpu.memory_space<vmem>>, vector<56x256xbf16>,
    return
  }
  func.func @transform_0(%arg0: i32, %arg1: i32) -> (i32, i32) {
    %c0_i32 = arith.constant 0 : i32
    %c0_i32_0 = arith.constant 0 : i32
    return %arg0, %c0_i32 : i32, i32
  }
  func.func @transform_1(%arg0: i32, %arg1: i32) -> (i32, i32) {
    %c0_i32 = arith.constant 0 : i32
    %c0_i32_0 = arith.constant 0 : i32
    return %c0_i32, %arg1 : i32, i32
  }
  func.func @transform_2(%arg0: i32, %arg1: i32) -> (i32, i32) {
    %c0_i32 = arith.constant 0 : i32
    %c0_i32_0 = arith.constant 0 : i32
    return %c0_i32, %arg1 : i32, i32
  }
  func.func @transform_3(%arg0: i32, %arg1: i32) -> (i32, i32) {
    %c0_i32 = arith.constant 0 : i32
    return %arg0, %arg1 : i32, i32
  }
}

module attributes {stable_mosaic.version = 11 : i64} {
  func.func @_max4_kernel(%arg0: i32, %arg1: memref<4x512xbf16, #tpu.memory_space<vmem>>, %arg2: memref<4x512xbf16, #tpu.memory_space<vmem>>, %arg3: memref<4x512xbf16, #tpu.memory_space<vmem>>, %arg4: memref<4x512xbf16, #tpu.memory_space<vmem>>, %arg5: memref<4x512xbf16, #tpu.memory_space<vmem>>) attributes {dimension_semantics = [#tpu.dimension_semantics<arbitrary>], iteration_bounds = array<i64: 1>, scalar_prefetch = 0 : i64, scratch_operands = 0 : i64, tpu.core_type = #tpu.core_type<tc>, window_params = [{pipeline_mode = #tpu.pipeline_mode<synchronous>, transform_indices = @transform_0, window_bounds = array<i64: 4, 512>}, {pipeline_mode = #tpu.pipeline_mode<synchronous>, transform_indices = @transform_1, window_bounds = array<i64: 4, 512>}, {pipeline_mode = #tpu.pipeline_mode<synchronous>, transform_indices = @transform_2, window_bounds = array<i64: 4, 512>}, {pipeline_mode = #tpu.pipeline_mode<synchronous>, transform_indices = @transform_3, window_bounds = array<i64: 4, 512>}, {pipeline_mode = #tpu.pipeline_mode<synchronous>, transform_indices = @transform_4, window_bounds = array<i64: 4, 512>}]} {
    %c0 = arith.constant 0 : index
    %c0_0 = arith.constant 0 : index
    %0 = vector.load %arg1[%c0, %c0_0] : memref<4x512xbf16, #tpu.memory_space<vmem>>, vector<4x512xbf16>
    %c0_1 = arith.constant 0 : index
    %c0_2 = arith.constant 0 : index
    %1 = vector.load %arg2[%c0_1, %c0_2] : memref<4x512xbf16, #tpu.memory_space<vmem>>, vector<4x512xbf16>
    %2 = arith.maximumf %0, %1 : vector<4x512xbf16>
    %c0_3 = arith.constant 0 : index
    %c0_4 = arith.constant 0 : index
    %3 = vector.load %arg3[%c0_3, %c0_4] : memref<4x512xbf16, #tpu.memory_space<vmem>>, vector<4x512xbf16>
    %c0_5 = arith.constant 0 : index
    %c0_6 = arith.constant 0 : index
    %4 = vector.load %arg4[%c0_5, %c0_6] : memref<4x512xbf16, #tpu.memory_space<vmem>>, vector<4x512xbf16>
    %5 = arith.maximumf %3, %4 : vector<4x512xbf16>
    %6 = arith.maximumf %2, %5 : vector<4x512xbf16>
    %c0_7 = arith.constant 0 : index
    %c0_8 = arith.constant 0 : index
    %7 = vector.load %arg5[%c0_7, %c0_8] : memref<4x512xbf16, #tpu.memory_space<vmem>>, vector<4x512xbf16>
    tpu.vector_store %arg5[%c0_7, %c0_8], %6 {strides = array<i32>} : memref<4x512xbf16, #tpu.memory_space<vmem>>, vector<4x512xbf16>,
    return
  }
  func.func @transform_0(%arg0: i32) -> (i32, i32) {
    %c0_i32 = arith.constant 0 : i32
    %c0_i32_0 = arith.constant 0 : i32
    %c0_i32_1 = arith.constant 0 : i32
    return %c0_i32, %c0_i32_0 : i32, i32
  }
  func.func @transform_1(%arg0: i32) -> (i32, i32) {
    %c0_i32 = arith.constant 0 : i32
    %c0_i32_0 = arith.constant 0 : i32
    %c0_i32_1 = arith.constant 0 : i32
    return %c0_i32, %c0_i32_0 : i32, i32
  }
  func.func @transform_2(%arg0: i32) -> (i32, i32) {
    %c0_i32 = arith.constant 0 : i32
    %c0_i32_0 = arith.constant 0 : i32
    %c0_i32_1 = arith.constant 0 : i32
    return %c0_i32, %c0_i32_0 : i32, i32
  }
  func.func @transform_3(%arg0: i32) -> (i32, i32) {
    %c0_i32 = arith.constant 0 : i32
    %c0_i32_0 = arith.constant 0 : i32
    %c0_i32_1 = arith.constant 0 : i32
    return %c0_i32, %c0_i32_0 : i32, i32
  }
  func.func @transform_4(%arg0: i32) -> (i32, i32) {
    %c0_i32 = arith.constant 0 : i32
    %c0_i32_0 = arith.constant 0 : i32
    %c0_i32_1 = arith.constant 0 : i32
    return %c0_i32, %c0_i32_0 : i32, i32
  }
}

module attributes {stable_mosaic.version = 11 : i64} {
  func.func @_fc_fused_kernel(%arg0: i32, %arg1: memref<8x1024xbf16, #tpu.memory_space<vmem>>, %arg2: memref<1024x256xbf16, #tpu.memory_space<vmem>>, %arg3: memref<1x256xf32, #tpu.memory_space<vmem>>, %arg4: memref<256x1024xbf16, #tpu.memory_space<vmem>>, %arg5: memref<1x1024xf32, #tpu.memory_space<vmem>>, %arg6: memref<8x1024xf32, #tpu.memory_space<vmem>>, %arg7: memref<8x1024xf32, #tpu.memory_space<vmem>>) attributes {dimension_semantics = [#tpu.dimension_semantics<arbitrary>], iteration_bounds = array<i64: 8>, scalar_prefetch = 0 : i64, scratch_operands = 1 : i64, tpu.core_type = #tpu.core_type<tc>, window_params = [{pipeline_mode = #tpu.pipeline_mode<synchronous>, transform_indices = @transform_0, window_bounds = array<i64: 8, 1024>}, {transform_indices = @transform_1, window_bounds = array<i64: 1024, 256>}, {transform_indices = @transform_2, window_bounds = array<i64: 1, 256>}, {transform_indices = @transform_3, window_bounds = array<i64: 256, 1024>}, {pipeline_mode = #tpu.pipeline_mode<synchronous>, transform_indices = @transform_4, window_bounds = array<i64: 1, 1024>}, {pipeline_mode = #tpu.pipeline_mode<synchronous>, transform_indices = @transform_5, window_bounds = array<i64: 8, 1024>}]} {
    %c0_i32 = arith.constant 0 : i32
    %0 = arith.cmpi eq, %arg0, %c0_i32 : i32
    %1 = arith.extui %0 : i1 to i32
    %c0_i32_0 = arith.constant 0 : i32
    %2 = arith.cmpi ne, %1, %c0_i32_0 : i32
    scf.if %2 {
      %cst_15 = arith.constant 0.000000e+00 : f32
      %20 = vector.broadcast %cst_15 : f32 to vector<8x1024xf32>
      %c0_16 = arith.constant 0 : index
      %c0_17 = arith.constant 0 : index
      %21 = vector.load %arg7[%c0_16, %c0_17] : memref<8x1024xf32, #tpu.memory_space<vmem>>, vector<8x1024xf32>
      tpu.vector_store %arg7[%c0_16, %c0_17], %20 {strides = array<i32>} : memref<8x1024xf32, #tpu.memory_space<vmem>>, vector<8x1024xf32>,
    } else {
    }
    %c0 = arith.constant 0 : index
    %c0_1 = arith.constant 0 : index
    %3 = vector.load %arg1[%c0, %c0_1] : memref<8x1024xbf16, #tpu.memory_space<vmem>>, vector<8x1024xbf16>
    %c0_2 = arith.constant 0 : index
    %c0_3 = arith.constant 0 : index
    %4 = vector.load %arg2[%c0_2, %c0_3] : memref<1024x256xbf16, #tpu.memory_space<vmem>>, vector<1024x256xbf16>
    %cst = arith.constant dense<0.000000e+00> : vector<8x256xf32>
    %5 = tpu.matmul %3, %4, %cst {dimension_numbers = #tpu.dot_dimension_numbers<[1], [0], [0], [1], [0, 0, 1, 1], [], []>} : vector<8x1024xbf16>, vector<1024x256xbf16>, vector<8x256xf32> -> vector<8x256xf32>
    %c0_4 = arith.constant 0 : index
    %c0_5 = arith.constant 0 : index
    %6 = vector.load %arg3[%c0_4, %c0_5] : memref<1x256xf32, #tpu.memory_space<vmem>>, vector<1x256xf32>
    %7 = vector.broadcast %6 : vector<1x256xf32> to vector<8x256xf32>
    %8 = arith.addf %5, %7 : vector<8x256xf32>
    %cst_6 = arith.constant 0.000000e+00 : f32
    %9 = vector.broadcast %cst_6 : f32 to vector<8x256xf32>
    %10 = arith.maximumf %8, %9 : vector<8x256xf32>
    %11 = arith.truncf %10 : vector<8x256xf32> to vector<8x256xbf16>
    %c0_7 = arith.constant 0 : index
    %c0_8 = arith.constant 0 : index
    %12 = vector.load %arg7[%c0_7, %c0_8] : memref<8x1024xf32, #tpu.memory_space<vmem>>, vector<8x1024xf32>
    %c0_9 = arith.constant 0 : index
    %c0_10 = arith.constant 0 : index
    %13 = vector.load %arg4[%c0_9, %c0_10] : memref<256x1024xbf16, #tpu.memory_space<vmem>>, vector<256x1024xbf16>
    %cst_11 = arith.constant dense<0.000000e+00> : vector<8x1024xf32>
    %14 = tpu.matmul %11, %13, %cst_11 {dimension_numbers = #tpu.dot_dimension_numbers<[1], [0], [0], [1], [0, 0, 1, 1], [], []>} : vector<8x256xbf16>, vector<256x1024xbf16>, vector<8x1024xf32> -> vector<8x1024xf32>
    %15 = arith.addf %12, %14 : vector<8x1024xf32>
    %c0_12 = arith.constant 0 : index
    %c0_13 = arith.constant 0 : index
    %16 = vector.load %arg7[%c0_12, %c0_13] : memref<8x1024xf32, #tpu.memory_space<vmem>>, vector<8x1024xf32>
    tpu.vector_store %arg7[%c0_12, %c0_13], %15 {strides = array<i32>} : memref<8x1024xf32, #tpu.memory_space<vmem>>, vector<8x1024xf32>,
    %c7_i32 = arith.constant 7 : i32
    %17 = arith.cmpi eq, %arg0, %c7_i32 : i32
    %18 = arith.extui %17 : i1 to i32
    %c0_i32_14 = arith.constant 0 : i32
    %19 = arith.cmpi ne, %18, %c0_i32_14 : i32
    scf.if %19 {
      %c0_15 = arith.constant 0 : index
      %c0_16 = arith.constant 0 : index
      %20 = vector.load %arg7[%c0_15, %c0_16] : memref<8x1024xf32, #tpu.memory_space<vmem>>, vector<8x1024xf32>
      %c0_17 = arith.constant 0 : index
      %c0_18 = arith.constant 0 : index
      %21 = vector.load %arg5[%c0_17, %c0_18] : memref<1x1024xf32, #tpu.memory_space<vmem>>, vector<1x1024xf32>
      %22 = vector.broadcast %21 : vector<1x1024xf32> to vector<8x1024xf32>
      %23 = arith.addf %20, %22 : vector<8x1024xf32>
      %cst_19 = arith.constant 0.000000e+00 : f32
      %24 = vector.broadcast %cst_19 : f32 to vector<8x1024xf32>
      %25 = arith.maximumf %23, %24 : vector<8x1024xf32>
      %c0_20 = arith.constant 0 : index
      %c0_21 = arith.constant 0 : index
      %26 = vector.load %arg6[%c0_20, %c0_21] : memref<8x1024xf32, #tpu.memory_space<vmem>>, vector<8x1024xf32>
      tpu.vector_store %arg6[%c0_20, %c0_21], %25 {strides = array<i32>} : memref<8x1024xf32, #tpu.memory_space<vmem>>, vector<8x1024xf32>,
    } else {
    }
    return
  }
  func.func @transform_0(%arg0: i32) -> (i32, i32) {
    %c0_i32 = arith.constant 0 : i32
    %c0_i32_0 = arith.constant 0 : i32
    %c0_i32_1 = arith.constant 0 : i32
    return %c0_i32, %c0_i32_0 : i32, i32
  }
  func.func @transform_1(%arg0: i32) -> (i32, i32) {
    %c0_i32 = arith.constant 0 : i32
    %c0_i32_0 = arith.constant 0 : i32
    return %c0_i32, %arg0 : i32, i32
  }
  func.func @transform_2(%arg0: i32) -> (i32, i32) {
    %c0_i32 = arith.constant 0 : i32
    %c0_i32_0 = arith.constant 0 : i32
    return %c0_i32, %arg0 : i32, i32
  }
  func.func @transform_3(%arg0: i32) -> (i32, i32) {
    %c0_i32 = arith.constant 0 : i32
    %c0_i32_0 = arith.constant 0 : i32
    return %arg0, %c0_i32 : i32, i32
  }
  func.func @transform_4(%arg0: i32) -> (i32, i32) {
    %c0_i32 = arith.constant 0 : i32
    %c0_i32_0 = arith.constant 0 : i32
    %c0_i32_1 = arith.constant 0 : i32
    return %c0_i32, %c0_i32_0 : i32, i32
  }
  func.func @transform_5(%arg0: i32) -> (i32, i32) {
    %c0_i32 = arith.constant 0 : i32
    %c0_i32_0 = arith.constant 0 : i32
    %c0_i32_1 = arith.constant 0 : i32
    return %c0_i32, %c0_i32_0 : i32, i32
  }
}

</mosaic_0001>

<llo_original>
// kernel: net_forward.7
$region0: #{net_forward.7}
  #allocation0 [shape = 'u32[]', space=smem, size = 0x4, offset = 0x4, fixed_abs, tag = 'smem constant byte address 0x4 - core index']
  #allocation1 [shape = 'u32[144,128]{1,0:T(1,128)}', space=vmem, size = 0x12000, scoped, tag = 'internal scratch']
  %s0 = inlined_call_operand.vmem [shape: bf16[1792,48], index: 0, kind: input, shape index: {}]
  %s1 = inlined_call_operand.vmem [shape: bf16[48,128], index: 1, kind: input, shape index: {}]
  %s2 = inlined_call_operand.vmem [shape: f32[1,128], index: 2, kind: input, shape index: {}]
  %s3 = inlined_call_operand.vmem [shape: bf16[1792,128], index: 3, kind: output, shape index: {}]
  %s4 = sld [smem:[#allocation0]]
  $region45: #{net_forward.7} parent=0
    _
  %s6 = ssub.s32 1, %s4
  %s7 = scalar_select 0, %s6, %s4
  loop: start=0, step=1, limit=9
  $region2: #{net_forward.7} parent=0 // loop_pre_header
    _
  $region3: #{net_forward.7} parent=0 // loop_header
    %s9 = sphi 0, %s13
    %p10 = scmp.ge.s32.totalorder %s9, 9
    %s16 = sphi 0, %s28
    %s17 = sphi 0, %s24
    %s18 = sphi 0, %s16
    %s19 = sphi 0, %s17
    %s20 = sphi 0, %s18
    %s21 = sphi 0, %s19
    %s31 = sphi 0, %s33
    %s34 = sphi 0, %s31
    %s35 = sphi 0, %s34
    %s51 = sphi 0, %s35
    %s57 = sphi 0, %s59
    %s60 = sphi 0, %s57
    %s61 = sphi 0, %s60
    %s77 = sphi 0, %s61
    %s83 = sphi 0, %s85
    %s86 = sphi 0, %s83
    %s87 = sphi 0, %s86
    %s103 = sphi 0, %s87
    %s111 = sphi 0, %s113
    %s114 = sphi 0, %s111
    %s115 = sphi 0, %s114
    %s131 = sphi 0, %s115
  $region4: #{net_forward.7} parent=0 // loop_header_branch
    %12 = sbr.rel (%p10) target = $region8
  $region5: #{net_forward.7} parent=0 // loop_body
    %s14 = ssub.s32 %s9, 1
    %s15 = ssub.s32 %s9, 2
    %s22 = sadd.s32 1, %s17
    %p23 = scmp.ge.s32.totalorder %s22, 1
    %s24 = scalar_select %p23, 0, %s22
    %s25 = sadd.s32 1, %s16
    %s26 = scalar_select %p23, %s25, %s16
    %p27 = scmp.ge.s32.totalorder %s26, 7
    %s28 = scalar_select %p27, 0, %s26
    %s29 = ssub.s32 %s16, %s28
    %p30 = scmp.eq.s32.totalorder %s29, 0
    %s32 = sadd.s32 %s31, 1
    %s33 = scalar_select %p30, %s31, %s32
    %p36 = pneg %p30
    %p37 = scmp.eq.s32.totalorder %s9, 6
    %p38 = por %p36, %p37
    %p39 = scmp.ne.s32.totalorder %s31, %s34
    %p40 = scmp.eq.s32.totalorder %s9, 0
    %p41 = por %p39, %p40
    %p42 = scmp.ne.s32.totalorder %s31, %s34
    %p43 = scmp.eq.s32.totalorder %s14, 6
    %p44 = por %p42, %p43
    %p45 = scmp.ne.s32.totalorder %s34, %s35
    %p46 = scmp.eq.s32.totalorder %s14, 0
    %p47 = por %p45, %p46
    %p48 = scmp.ne.s32.totalorder %s34, %s35
    %p49 = scmp.eq.s32.totalorder %s15, 6
    %p50 = por %p48, %p49
    %p52 = scmp.ne.s32.totalorder %s35, %s51
    %p53 = scmp.eq.s32.totalorder %s15, 0
    %p54 = por %p52, %p53
    %s55 = ssub.s32 %s17, %s24
    %p56 = scmp.eq.s32.totalorder %s55, 0
    %s58 = sadd.s32 %s57, 1
    %s59 = scalar_select %p56, %s57, %s58
    %p62 = pneg %p56
    %p63 = scmp.eq.s32.totalorder %s9, 6
    %p64 = por %p62, %p63
    %p65 = scmp.ne.s32.totalorder %s57, %s60
    %p66 = scmp.eq.s32.totalorder %s9, 0
    %p67 = por %p65, %p66
    %p68 = scmp.ne.s32.totalorder %s57, %s60
    %p69 = scmp.eq.s32.totalorder %s14, 6
    %p70 = por %p68, %p69
    %p71 = scmp.ne.s32.totalorder %s60, %s61
    %p72 = scmp.eq.s32.totalorder %s14, 0
    %p73 = por %p71, %p72
    %p74 = scmp.ne.s32.totalorder %s60, %s61
    %p75 = scmp.eq.s32.totalorder %s15, 6
    %p76 = por %p74, %p75
    %p78 = scmp.ne.s32.totalorder %s61, %s77
    %p79 = scmp.eq.s32.totalorder %s15, 0
    %p80 = por %p78, %p79
    %s81 = ssub.s32 %s17, %s24
    %p82 = scmp.eq.s32.totalorder %s81, 0
    %s84 = sadd.s32 %s83, 1
    %s85 = scalar_select %p82, %s83, %s84
    %p88 = pneg %p82
    %p89 = scmp.eq.s32.totalorder %s9, 6
    %p90 = por %p88, %p89
    %p91 = scmp.ne.s32.totalorder %s83, %s86
    %p92 = scmp.eq.s32.totalorder %s9, 0
    %p93 = por %p91, %p92
    %p94 = scmp.ne.s32.totalorder %s83, %s86
    %p95 = scmp.eq.s32.totalorder %s14, 6
    %p96 = por %p94, %p95
    %p97 = scmp.ne.s32.totalorder %s86, %s87
    %p98 = scmp.eq.s32.totalorder %s14, 0
    %p99 = por %p97, %p98
    %p100 = scmp.ne.s32.totalorder %s86, %s87
    %p101 = scmp.eq.s32.totalorder %s15, 6
    %p102 = por %p100, %p101
    %p104 = scmp.ne.s32.totalorder %s87, %s103
    %p105 = scmp.eq.s32.totalorder %s15, 0
    %p106 = por %p104, %p105
    %s107 = ssub.s32 %s16, %s28
    %s108 = ssub.s32 %s17, %s24
    %s109 = sor.u32 %s107, %s108
    %p110 = scmp.eq.s32.totalorder %s109, 0
    %s112 = sadd.s32 %s111, 1
    %s113 = scalar_select %p110, %s111, %s112
    %p116 = pneg %p110
    %p117 = scmp.eq.s32.totalorder %s9, 6
    %p118 = por %p116, %p117
    %p119 = scmp.ne.s32.totalorder %s111, %s114
    %p120 = scmp.eq.s32.totalorder %s9, 0
    %p121 = por %p119, %p120
    %p122 = scmp.ne.s32.totalorder %s111, %s114
    %p123 = scmp.eq.s32.totalorder %s14, 6
    %p124 = por %p122, %p123
    %p125 = scmp.ne.s32.totalorder %s114, %s115
    %p126 = scmp.eq.s32.totalorder %s14, 0
    %p127 = por %p125, %p126
    %p128 = scmp.ne.s32.totalorder %s114, %s115
    %p129 = scmp.eq.s32.totalorder %s15, 6
    %p130 = por %p128, %p129
    %p132 = scmp.ne.s32.totalorder %s115, %s131
    %p133 = scmp.eq.s32.totalorder %s15, 0
    %p134 = por %p132, %p133
    %p135 = scmp.le.s32.totalorder 1, %s9
    %p136 = scmp.lt.s32.totalorder %s9, 8
    %p137 = pnand %p135, %p136
    %p138 = pneg %p137
    // Predicated region
    $region9: #{net_forward.7} parent=5 // pred_check
      _
    $region10: #{net_forward.7} parent=5 // pred_check_branch
      %140 = sbr.rel (%p137) target = $region12
    $region11: #{net_forward.7} parent=5 // pred_region
      %s141 = ssub.s32 %s9, 1
      // Predicated region
      $region13: #{net_forward.7} parent=11 // pred_check
        %p142 = pneg %p73
      $region14: #{net_forward.7} parent=11 // pred_check_branch
        %144 = sbr.rel (%p142) target = $region16
      $region15: #{net_forward.7} parent=11 // pred_region
        %p145 = scmp.lt.s32.totalorder %s19, 0
        %s146 = scalar_select %p145, %s19, 0
        %s147 = smul.addr %s146, 4
        %s148 = scalar_lea.vmem %s1, %s147
      $region16: #{net_forward.7} parent=11 // pred_fallthru
        _
      // Predicated region
      $region17: #{net_forward.7} parent=11 // pred_check
        %p149 = pneg %p99
      $region18: #{net_forward.7} parent=11 // pred_check_branch
        %151 = sbr.rel (%p149) target = $region20
      $region19: #{net_forward.7} parent=11 // pred_region
        %p152 = scmp.lt.s32.totalorder %s19, 0
        %s153 = scalar_select %p152, %s19, 0
        %s154 = scalar_lea.vmem %s2, %s153
      $region20: #{net_forward.7} parent=11 // pred_fallthru
        _
    $region12: #{net_forward.7} parent=5 // pred_fallthru
      _
    %p155 = scmp.lt.s32.totalorder %s9, 7
    // Predicated region
    $region21: #{net_forward.7} parent=5 // pred_check
      %p156 = pneg %p155
    $region22: #{net_forward.7} parent=5 // pred_check_branch
      %158 = sbr.rel (%p156) target = $region24
    $region23: #{net_forward.7} parent=5 // pred_region
      // Predicated region
      $region25: #{net_forward.7} parent=23 // pred_check
        %p159 = pneg %p41
      $region26: #{net_forward.7} parent=23 // pred_check_branch
        %161 = sbr.rel (%p159) target = $region28
      $region27: #{net_forward.7} parent=23 // pred_region
        %s162 = smul.u32 32, %s16
        %p163 = scmp.lt.s32.totalorder %s162, 223
        %s164 = scalar_select %p163, %s162, 223
        %s165 = smul.addr %s164, 4
        %s166 = scalar_lea.vmem %s0, %s165
        %s167 = smul.u32 32, %s16
      $region28: #{net_forward.7} parent=23 // pred_fallthru
        _
    $region24: #{net_forward.7} parent=5 // pred_fallthru
      _
    %p168 = scmp.le.s32.totalorder 1, %s9
    %p169 = scmp.lt.s32.totalorder %s9, 8
    %p170 = pnand %p168, %p169
    %p171 = pneg %p170
    // Predicated region
    $region29: #{net_forward.7} parent=5 // pred_check
      _
    $region30: #{net_forward.7} parent=5 // pred_check_branch
      %173 = sbr.rel (%p170) target = $region32
    $region31: #{net_forward.7} parent=5 // pred_region
      %s174 = ssub.s32 %s9, 1
      %s175 = smul.u32 32, %s18
      %p176 = scmp.lt.s32.totalorder %s175, 223
      %s177 = scalar_select %p176, %s175, 223
      %s178 = smul.addr %s177, 4
      %s179 = scalar_lea.vmem %s0, %s178
      %p180 = pneg %p47
      %p181 = pneg %p44
      %p182 = scmp.lt.s32.totalorder %s19, 0
      %s183 = scalar_select %p182, %s19, 0
      %s184 = smul.addr %s183, 4
      %s185 = scalar_lea.vmem %s1, %s184
      %p186 = pneg %p73
      %p187 = pneg %p70
      %p188 = scmp.lt.s32.totalorder %s19, 0
      %s189 = scalar_select %p188, %s19, 0
      %s190 = scalar_lea.vmem %s2, %s189
      %p191 = pneg %p99
      %p192 = pneg %p96
      %p193 = pneg %p127
      %p194 = pneg %p124
      %s195 = smul.u32 32, %s18
      %p196 = scmp.lt.s32.totalorder %s195, 223
      %s197 = scalar_select %p196, %s195, 223
      %p198 = scmp.lt.s32.totalorder %s19, 0
      %s199 = scalar_select %p198, %s19, 0
      %s200 = sadd.s32 %s199, %s197
      %s201 = smul.addr %s200, 4
      %s202 = scalar_lea.vmem %s3, %s201
      %s203 = smul.u32 32, %s18
      %p204 = scmp.lt.s32.totalorder %s203, 223
      %s205 = scalar_select %p204, %s203, 223
      %s206 = smul.addr %s205, 4
      %s207 = scalar_lea.vmem %s0, %s206
      %s208 = smul.u32 32, %s18
      %p209 = scmp.lt.s32.totalorder %s19, 0
      %s210 = scalar_select %p209, %s19, 0
      %s211 = smul.addr %s210, 4
      %s212 = scalar_lea.vmem %s1, %s211
      %p213 = scmp.lt.s32.totalorder %s19, 0
      %s214 = scalar_select %p213, %s19, 0
      %s215 = scalar_lea.vmem %s2, %s214
      %s216 = smul.u32 32, %s18
      %p217 = scmp.lt.s32.totalorder %s216, 223
      %s218 = scalar_select %p217, %s216, 223
      %p219 = scmp.lt.s32.totalorder %s19, 0
      %s220 = scalar_select %p219, %s19, 0
      %s221 = sadd.s32 %s220, %s218
      %s222 = smul.addr %s221, 4
      %s223 = scalar_lea.vmem %s3, %s222
      %s224 = smul.u32 32, %s18
      %v226 = vld [vmem:[%s207] sm:$0xf]
      %v227 = vld [vmem:[%s207 + $0x4] sm:$0xf]
      %v228 = vld [vmem:[%s207 + $0x8] sm:$0xf]
      %v229 = vld [vmem:[%s207 + $0xc] sm:$0xf]
      %v230 = vld [vmem:[%s207 + $0x10] sm:$0xf]
      %v231 = vld [vmem:[%s207 + $0x14] sm:$0xf]
      %v232 = vld [vmem:[%s207 + $0x18] sm:$0xf]
      %v233 = vld [vmem:[%s207 + $0x1c] sm:$0xf]
      %v234 = vld [vmem:[%s207 + $0x20] sm:$0xf]
      %v235 = vld [vmem:[%s207 + $0x24] sm:$0xf]
      %v236 = vld [vmem:[%s207 + $0x28] sm:$0xf]
      %v237 = vld [vmem:[%s207 + $0x2c] sm:$0xf]
      %v238 = vld [vmem:[%s207 + $0x30] sm:$0xf]
      %v239 = vld [vmem:[%s207 + $0x34] sm:$0xf]
      %v240 = vld [vmem:[%s207 + $0x38] sm:$0xf]
      %v241 = vld [vmem:[%s207 + $0x3c] sm:$0xf]
      %v242 = vld [vmem:[%s207 + $0x40] sm:$0xf]
      %v243 = vld [vmem:[%s207 + $0x44] sm:$0xf]
      %v244 = vld [vmem:[%s207 + $0x48] sm:$0xf]
      %v245 = vld [vmem:[%s207 + $0x4c] sm:$0xf]
      %v246 = vld [vmem:[%s207 + $0x50] sm:$0xf]
      %v247 = vld [vmem:[%s207 + $0x54] sm:$0xf]
      %v248 = vld [vmem:[%s207 + $0x58] sm:$0xf]
      %v249 = vld [vmem:[%s207 + $0x5c] sm:$0xf]
      %v250 = vld [vmem:[%s207 + $0x60] sm:$0xf]
      %v251 = vld [vmem:[%s207 + $0x64] sm:$0xf]
      %v252 = vld [vmem:[%s207 + $0x68] sm:$0xf]
      %v253 = vld [vmem:[%s207 + $0x6c] sm:$0xf]
      %v254 = vld [vmem:[%s207 + $0x70] sm:$0xf]
      %v255 = vld [vmem:[%s207 + $0x74] sm:$0xf]
      %v256 = vld [vmem:[%s207 + $0x78] sm:$0xf]
      %v257 = vld [vmem:[%s207 + $0x7c] sm:$0xf]
      %v258 = vld [vmem:[%s212] sm:$0xf]
      %v259 = vld [vmem:[%s212 + $0x4] sm:$0xf]
      %v260 = vld [vmem:[%s212 + $0x8] sm:$0xf]
      %v261 = vld [vmem:[%s212 + $0xc] sm:$0xf]
      %v262 = vld [vmem:[%s212 + $0x10] sm:$0xf]
      %v263 = vld [vmem:[%s212 + $0x14] sm:$0xf]
      %v264 = vld [vmem:[%s215] sm:$0x1]
      %v266 = vlaneseq
      %v267 = vshrl.u32 %v266, 7
      %v268 = vsub.s32 0, %v267
      %v269 = vrot.slane %v264, %v268
      %v303 = vunpack.c.l.b16 %v226
      %v304 = vunpack.c.l.b16 %v227
      %v305 = vunpack.c.l.b16 %v228
      %v306 = vunpack.c.l.b16 %v229
      %v307 = vunpack.c.l.b16 %v230
      %v308 = vunpack.c.l.b16 %v231
      %v309 = vunpack.c.l.b16 %v232
      %v310 = vunpack.c.l.b16 %v233
      %v311 = vunpack.c.l.b16 %v234
      %v312 = vunpack.c.l.b16 %v235
      %v313 = vunpack.c.l.b16 %v236
      %v314 = vunpack.c.l.b16 %v237
      %v315 = vunpack.c.l.b16 %v238
      %v316 = vunpack.c.l.b16 %v239
      %v317 = vunpack.c.l.b16 %v240
      %v318 = vunpack.c.l.b16 %v241
      %v319 = vunpack.c.l.b16 %v242
      %v320 = vunpack.c.l.b16 %v243
      %v321 = vunpack.c.l.b16 %v244
      %v322 = vunpack.c.l.b16 %v245
      %v323 = vunpack.c.l.b16 %v246
      %v324 = vunpack.c.l.b16 %v247
      %v325 = vunpack.c.l.b16 %v248
      %v326 = vunpack.c.l.b16 %v249
      %v327 = vunpack.c.l.b16 %v250
      %v328 = vunpack.c.l.b16 %v251
      %v329 = vunpack.c.l.b16 %v252
      %v330 = vunpack.c.l.b16 %v253
      %v331 = vunpack.c.l.b16 %v254
      %v332 = vunpack.c.l.b16 %v255
      %v333 = vunpack.c.l.b16 %v256
      %v334 = vunpack.c.l.b16 %v257
      %v335 = vpack.c.b16 %v304, %v303
      %v336 = vpack.c.b16 %v306, %v305
      %v337 = vpack.c.b16 %v308, %v307
      %v338 = vpack.c.b16 %v310, %v309
      %v339 = vpack.c.b16 %v312, %v311
      %v340 = vpack.c.b16 %v314, %v313
      %v341 = vpack.c.b16 %v316, %v315
      %v342 = vpack.c.b16 %v318, %v317
      %v343 = vpack.c.b16 %v320, %v319
      %v344 = vpack.c.b16 %v322, %v321
      %v345 = vpack.c.b16 %v324, %v323
      %v346 = vpack.c.b16 %v326, %v325
      %v347 = vpack.c.b16 %v328, %v327
      %v348 = vpack.c.b16 %v330, %v329
      %v349 = vpack.c.b16 %v332, %v331
      %v350 = vpack.c.b16 %v334, %v333
      %v357 = vunpack.c.l.b16 %v258
      %v358 = vunpack.c.l.b16 %v259
      %v359 = vunpack.c.l.b16 %v260
      %v360 = vunpack.c.l.b16 %v261
      %v361 = vunpack.c.l.b16 %v262
      %v362 = vunpack.c.l.b16 %v263
      %v363 = vpack.c.b16 %v358, %v357
      %v364 = vpack.c.b16 %v360, %v359
      %v365 = vpack.c.b16 %v362, %v361
      %vm369 = vcmask 392192
      %v371 = vsel %vm369, %v335, 0
      %v374 = vsel %vm369, %v336, 0
      %v377 = vsel %vm369, %v337, 0
      %v380 = vsel %vm369, %v338, 0
      %v383 = vsel %vm369, %v339, 0
      %v386 = vsel %vm369, %v340, 0
      %v389 = vsel %vm369, %v341, 0
      %v392 = vsel %vm369, %v342, 0
      %v395 = vsel %vm369, %v343, 0
      %v398 = vsel %vm369, %v344, 0
      %v401 = vsel %vm369, %v345, 0
      %v404 = vsel %vm369, %v346, 0
      %v407 = vsel %vm369, %v347, 0
      %v410 = vsel %vm369, %v348, 0
      %v413 = vsel %vm369, %v349, 0
      %v416 = vsel %vm369, %v350, 0
      %418 = vmatprep.subr.bf16.mxu0 0
      %419 = vmatpush1.bf16.msra.mxu0 %v363
      %420 = vmatprep.subr.bf16.mxu0 0
      %421 = vmatpush1.bf16.msra.mxu0 %v364
      %422 = vmatprep.subr.bf16.mxu0 0
      %423 = vmatpush1.bf16.msra.mxu0 %v365
      %424 = vmatprep.subr.bf16.mxu0 0
      %425 = vmatpush1.bf16.msra.mxu0 0
      %426 = vmatprep.subr.bf16.mxu0 0
      %427 = vmatpush1.bf16.msra.mxu0 0
      %428 = vmatprep.subr.bf16.mxu0 0
      %429 = vmatpush1.bf16.msra.mxu0 0
      %430 = vmatprep.subr.bf16.mxu0 0
      %431 = vmatpush1.bf16.msra.mxu0 0
      %432 = vmatprep.subr.bf16.mxu0 0
      %433 = vmatpush1.bf16.msra.mxu0 0
      %434 = vmatprep.subr.bf16.mxu0 0
      %435 = vmatpush1.bf16.msra.mxu0 0
      %436 = vmatprep.subr.bf16.mxu0 0
      %437 = vmatpush1.bf16.msra.mxu0 0
      %438 = vmatprep.subr.bf16.mxu0 0
      %439 = vmatpush1.bf16.msra.mxu0 0
      %440 = vmatprep.subr.bf16.mxu0 0
      %441 = vmatpush1.bf16.msra.mxu0 0
      %442 = vmatprep.subr.bf16.mxu0 0
      %443 = vmatpush1.bf16.msra.mxu0 0
      %444 = vmatprep.subr.bf16.mxu0 0
      %445 = vmatpush1.bf16.msra.mxu0 0
      %446 = vmatprep.subr.bf16.mxu0 0
      %447 = vmatpush1.bf16.msra.mxu0 0
      %448 = vmatprep.subr.bf16.mxu0 0
      %449 = vmatpush1.bf16.msra.mxu0 0
      %450 = vmatprep.mubr.bf16.mxu0 0
      %451 = vmatmul.mubr.bf16.gmra.mrb[0].mxu0 %v371
      %v452 = vpop.f32.mrb[0].mxu0
      %v453 = vadd.f32 %v269, %v452
      %v454 = vpop.f32.mrb[0].mxu0
      %v455 = vpop.f32.mrb[0].mxu0
      %v456 = vadd.f32 %v269, %v455
      %v457 = vpop.f32.mrb[0].mxu0
      %458 = vmatprep.mubr.bf16.mxu0 0
      %459 = vmatmul.mubr.bf16.gmra.mrb[0].mxu0 %v374
      %v460 = vpop.f32.mrb[0].mxu0
      %v461 = vadd.f32 %v269, %v460
      %v462 = vpop.f32.mrb[0].mxu0
      %v463 = vpop.f32.mrb[0].mxu0
      %v464 = vadd.f32 %v269, %v463
      %v465 = vpop.f32.mrb[0].mxu0
      %466 = vmatprep.mubr.bf16.mxu0 0
      %467 = vmatmul.mubr.bf16.gmra.mrb[0].mxu0 %v377
      %v468 = vpop.f32.mrb[0].mxu0
      %v469 = vadd.f32 %v269, %v468
      %v470 = vpop.f32.mrb[0].mxu0
      %v471 = vpop.f32.mrb[0].mxu0
      %v472 = vadd.f32 %v269, %v471
      %v473 = vpop.f32.mrb[0].mxu0
      %474 = vmatprep.mubr.bf16.mxu0 0
      %475 = vmatmul.mubr.bf16.gmra.mrb[0].mxu0 %v380
      %v476 = vpop.f32.mrb[0].mxu0
      %v477 = vadd.f32 %v269, %v476
      %v478 = vpop.f32.mrb[0].mxu0
      %v479 = vpop.f32.mrb[0].mxu0
      %v480 = vadd.f32 %v269, %v479
      %v481 = vpop.f32.mrb[0].mxu0
      %482 = vmatprep.mubr.bf16.mxu0 0
      %483 = vmatmul.mubr.bf16.gmra.mrb[0].mxu0 %v383
      %v484 = vpop.f32.mrb[0].mxu0
      %v485 = vadd.f32 %v269, %v484
      %v486 = vpop.f32.mrb[0].mxu0
      %v487 = vpop.f32.mrb[0].mxu0
      %v488 = vadd.f32 %v269, %v487
      %v489 = vpop.f32.mrb[0].mxu0
      %490 = vmatprep.mubr.bf16.mxu0 0
      %491 = vmatmul.mubr.bf16.gmra.mrb[0].mxu0 %v386
      %v492 = vpop.f32.mrb[0].mxu0
      %v493 = vadd.f32 %v269, %v492
      %v494 = vpop.f32.mrb[0].mxu0
      %v495 = vpop.f32.mrb[0].mxu0
      %v496 = vadd.f32 %v269, %v495
      %v497 = vpop.f32.mrb[0].mxu0
      %498 = vmatprep.mubr.bf16.mxu0 0
      %499 = vmatmul.mubr.bf16.gmra.mrb[0].mxu0 %v389
      %v500 = vpop.f32.mrb[0].mxu0
      %v501 = vadd.f32 %v269, %v500
      %v502 = vpop.f32.mrb[0].mxu0
      %v503 = vpop.f32.mrb[0].mxu0
      %v504 = vadd.f32 %v269, %v503
      %v505 = vpop.f32.mrb[0].mxu0
      %506 = vmatprep.mubr.bf16.mxu0 0
      %507 = vmatmul.mubr.bf16.gmra.mrb[0].mxu0 %v392
      %v508 = vpop.f32.mrb[0].mxu0
      %v509 = vadd.f32 %v269, %v508
      %v510 = vpop.f32.mrb[0].mxu0
      %v511 = vpop.f32.mrb[0].mxu0
      %v512 = vadd.f32 %v269, %v511
      %v513 = vpop.f32.mrb[0].mxu0
      %514 = vmatprep.mubr.bf16.mxu0 0
      %515 = vmatmul.mubr.bf16.gmra.mrb[0].mxu0 %v395
      %v516 = vpop.f32.mrb[0].mxu0
      %v517 = vadd.f32 %v269, %v516
      %v518 = vpop.f32.mrb[0].mxu0
      %v519 = vpop.f32.mrb[0].mxu0
      %v520 = vadd.f32 %v269, %v519
      %v521 = vpop.f32.mrb[0].mxu0
      %522 = vmatprep.mubr.bf16.mxu0 0
      %523 = vmatmul.mubr.bf16.gmra.mrb[0].mxu0 %v398
      %v524 = vpop.f32.mrb[0].mxu0
      %v525 = vadd.f32 %v269, %v524
      %v526 = vpop.f32.mrb[0].mxu0
      %v527 = vpop.f32.mrb[0].mxu0
      %v528 = vadd.f32 %v269, %v527
      %v529 = vpop.f32.mrb[0].mxu0
      %530 = vmatprep.mubr.bf16.mxu0 0
      %531 = vmatmul.mubr.bf16.gmra.mrb[0].mxu0 %v401
      %v532 = vpop.f32.mrb[0].mxu0
      %v533 = vadd.f32 %v269, %v532
      %v534 = vpop.f32.mrb[0].mxu0
      %v535 = vpop.f32.mrb[0].mxu0
      %v536 = vadd.f32 %v269, %v535
      %v537 = vpop.f32.mrb[0].mxu0
      %538 = vmatprep.mubr.bf16.mxu0 0
      %539 = vmatmul.mubr.bf16.gmra.mrb[0].mxu0 %v404
      %v540 = vpop.f32.mrb[0].mxu0
      %v541 = vadd.f32 %v269, %v540
      %v542 = vpop.f32.mrb[0].mxu0
      %v543 = vpop.f32.mrb[0].mxu0
      %v544 = vadd.f32 %v269, %v543
      %v545 = vpop.f32.mrb[0].mxu0
      %546 = vmatprep.mubr.bf16.mxu0 0
      %547 = vmatmul.mubr.bf16.gmra.mrb[0].mxu0 %v407
      %v548 = vpop.f32.mrb[0].mxu0
      %v549 = vadd.f32 %v269, %v548
      %v550 = vpop.f32.mrb[0].mxu0
      %v551 = vpop.f32.mrb[0].mxu0
      %v552 = vadd.f32 %v269, %v551
      %v553 = vpop.f32.mrb[0].mxu0
      %554 = vmatprep.mubr.bf16.mxu0 0
      %555 = vmatmul.mubr.bf16.gmra.mrb[0].mxu0 %v410
      %v556 = vpop.f32.mrb[0].mxu0
      %v557 = vadd.f32 %v269, %v556
      %v558 = vpop.f32.mrb[0].mxu0
      %v559 = vpop.f32.mrb[0].mxu0
      %v560 = vadd.f32 %v269, %v559
      %v561 = vpop.f32.mrb[0].mxu0
      %562 = vmatprep.mubr.bf16.mxu0 0
      %563 = vmatmul.mubr.bf16.gmra.mrb[0].mxu0 %v413
      %v564 = vpop.f32.mrb[0].mxu0
      %v565 = vadd.f32 %v269, %v564
      %v566 = vpop.f32.mrb[0].mxu0
      %v567 = vpop.f32.mrb[0].mxu0
      %v568 = vadd.f32 %v269, %v567
      %v569 = vpop.f32.mrb[0].mxu0
      %570 = vmatprep.mubr.bf16.mxu0 0
      %571 = vmatmul.mubr.bf16.gmra.mrb[0].mxu0 %v416
      %v572 = vpop.f32.mrb[0].mxu0
      %v573 = vadd.f32 %v269, %v572
      %v574 = vpop.f32.mrb[0].mxu0
      %v575 = vpop.f32.mrb[0].mxu0
      %v576 = vadd.f32 %v269, %v575
      %v577 = vpop.f32.mrb[0].mxu0
      %578 = vdwg.mxu0
      %v579 = vmax.f32 %v453, 0.0
      %v580 = vmax.f32 %v456, 0.0
      %v581 = vmax.f32 %v461, 0.0
      %v582 = vmax.f32 %v464, 0.0
      %v583 = vmax.f32 %v469, 0.0
      %v584 = vmax.f32 %v472, 0.0
      %v585 = vmax.f32 %v477, 0.0
      %v586 = vmax.f32 %v480, 0.0
      %v587 = vmax.f32 %v485, 0.0
      %v588 = vmax.f32 %v488, 0.0
      %v589 = vmax.f32 %v493, 0.0
      %v590 = vmax.f32 %v496, 0.0
      %v591 = vmax.f32 %v501, 0.0
      %v592 = vmax.f32 %v504, 0.0
      %v593 = vmax.f32 %v509, 0.0
      %v594 = vmax.f32 %v512, 0.0
      %v595 = vmax.f32 %v517, 0.0
      %v596 = vmax.f32 %v520, 0.0
      %v597 = vmax.f32 %v525, 0.0
      %v598 = vmax.f32 %v528, 0.0
      %v599 = vmax.f32 %v533, 0.0
      %v600 = vmax.f32 %v536, 0.0
      %v601 = vmax.f32 %v541, 0.0
      %v602 = vmax.f32 %v544, 0.0
      %v603 = vmax.f32 %v549, 0.0
      %v604 = vmax.f32 %v552, 0.0
      %v605 = vmax.f32 %v557, 0.0
      %v606 = vmax.f32 %v560, 0.0
      %v607 = vmax.f32 %v565, 0.0
      %v608 = vmax.f32 %v568, 0.0
      %v609 = vmax.f32 %v573, 0.0
      %v610 = vmax.f32 %v576, 0.0
      %v611 = vpack.c.bf16 %v580, %v579
      %v612 = vpack.c.bf16 %v582, %v581
      %v613 = vpack.c.bf16 %v584, %v583
      %v614 = vpack.c.bf16 %v586, %v585
      %v615 = vpack.c.bf16 %v588, %v587
      %v616 = vpack.c.bf16 %v590, %v589
      %v617 = vpack.c.bf16 %v592, %v591
      %v618 = vpack.c.bf16 %v594, %v593
      %v619 = vpack.c.bf16 %v596, %v595
      %v620 = vpack.c.bf16 %v598, %v597
      %v621 = vpack.c.bf16 %v600, %v599
      %v622 = vpack.c.bf16 %v602, %v601
      %v623 = vpack.c.bf16 %v604, %v603
      %v624 = vpack.c.bf16 %v606, %v605
      %v625 = vpack.c.bf16 %v608, %v607
      %v626 = vpack.c.bf16 %v610, %v609
      %v643 = vunpack.c.l.b16 %v611
      %v644 = vunpack.c.h.b16 %v611
      %v645 = vunpack.c.l.b16 %v612
      %v646 = vunpack.c.h.b16 %v612
      %v647 = vunpack.c.l.b16 %v613
      %v648 = vunpack.c.h.b16 %v613
      %v649 = vunpack.c.l.b16 %v614
      %v650 = vunpack.c.h.b16 %v614
      %v651 = vunpack.c.l.b16 %v615
      %v652 = vunpack.c.h.b16 %v615
      %v653 = vunpack.c.l.b16 %v616
      %v654 = vunpack.c.h.b16 %v616
      %v655 = vunpack.c.l.b16 %v617
      %v656 = vunpack.c.h.b16 %v617
      %v657 = vunpack.c.l.b16 %v618
      %v658 = vunpack.c.h.b16 %v618
      %v659 = vunpack.c.l.b16 %v619
      %v660 = vunpack.c.h.b16 %v619
      %v661 = vunpack.c.l.b16 %v620
      %v662 = vunpack.c.h.b16 %v620
      %v663 = vunpack.c.l.b16 %v621
      %v664 = vunpack.c.h.b16 %v621
      %v665 = vunpack.c.l.b16 %v622
      %v666 = vunpack.c.h.b16 %v622
      %v667 = vunpack.c.l.b16 %v623
      %v668 = vunpack.c.h.b16 %v623
      %v669 = vunpack.c.l.b16 %v624
      %v670 = vunpack.c.h.b16 %v624
      %v671 = vunpack.c.l.b16 %v625
      %v672 = vunpack.c.h.b16 %v625
      %v673 = vunpack.c.l.b16 %v626
      %v674 = vunpack.c.h.b16 %v626
      %v675 = vpack.c.b16 %v643, %v643
      %v676 = vpack.c.b16 %v644, %v644
      %v677 = vpack.c.b16 %v645, %v645
      %v678 = vpack.c.b16 %v646, %v646
      %v679 = vpack.c.b16 %v647, %v647
      %v680 = vpack.c.b16 %v648, %v648
      %v681 = vpack.c.b16 %v649, %v649
      %v682 = vpack.c.b16 %v650, %v650
      %v683 = vpack.c.b16 %v651, %v651
      %v684 = vpack.c.b16 %v652, %v652
      %v685 = vpack.c.b16 %v653, %v653
      %v686 = vpack.c.b16 %v654, %v654
      %v687 = vpack.c.b16 %v655, %v655
      %v688 = vpack.c.b16 %v656, %v656
      %v689 = vpack.c.b16 %v657, %v657
      %v690 = vpack.c.b16 %v658, %v658
      %v691 = vpack.c.b16 %v659, %v659
      %v692 = vpack.c.b16 %v660, %v660
      %v693 = vpack.c.b16 %v661, %v661
      %v694 = vpack.c.b16 %v662, %v662
      %v695 = vpack.c.b16 %v663, %v663
      %v696 = vpack.c.b16 %v664, %v664
      %v697 = vpack.c.b16 %v665, %v665
      %v698 = vpack.c.b16 %v666, %v666
      %v699 = vpack.c.b16 %v667, %v667
      %v700 = vpack.c.b16 %v668, %v668
      %v701 = vpack.c.b16 %v669, %v669
      %v702 = vpack.c.b16 %v670, %v670
      %v703 = vpack.c.b16 %v671, %v671
      %v704 = vpack.c.b16 %v672, %v672
      %v705 = vpack.c.b16 %v673, %v673
      %v706 = vpack.c.b16 %v674, %v674
      %739 = vst [vmem:[%s223] sm:$0xf] %v675
      %740 = vst [vmem:[%s223 + $0x4] sm:$0xf] %v676
      %741 = vst [vmem:[%s223 + $0x8] sm:$0xf] %v677
      %742 = vst [vmem:[%s223 + $0xc] sm:$0xf] %v678
      %743 = vst [vmem:[%s223 + $0x10] sm:$0xf] %v679
      %744 = vst [vmem:[%s223 + $0x14] sm:$0xf] %v680
      %745 = vst [vmem:[%s223 + $0x18] sm:$0xf] %v681
      %746 = vst [vmem:[%s223 + $0x1c] sm:$0xf] %v682
      %747 = vst [vmem:[%s223 + $0x20] sm:$0xf] %v683
      %748 = vst [vmem:[%s223 + $0x24] sm:$0xf] %v684
      %749 = vst [vmem:[%s223 + $0x28] sm:$0xf] %v685
      %750 = vst [vmem:[%s223 + $0x2c] sm:$0xf] %v686
      %751 = vst [vmem:[%s223 + $0x30] sm:$0xf] %v687
      %752 = vst [vmem:[%s223 + $0x34] sm:$0xf] %v688
      %753 = vst [vmem:[%s223 + $0x38] sm:$0xf] %v689
      %754 = vst [vmem:[%s223 + $0x3c] sm:$0xf] %v690
      %755 = vst [vmem:[%s223 + $0x40] sm:$0xf] %v691
      %756 = vst [vmem:[%s223 + $0x44] sm:$0xf] %v692
      %757 = vst [vmem:[%s223 + $0x48] sm:$0xf] %v693
      %758 = vst [vmem:[%s223 + $0x4c] sm:$0xf] %v694
      %759 = vst [vmem:[%s223 + $0x50] sm:$0xf] %v695
      %760 = vst [vmem:[%s223 + $0x54] sm:$0xf] %v696
      %761 = vst [vmem:[%s223 + $0x58] sm:$0xf] %v697
      %762 = vst [vmem:[%s223 + $0x5c] sm:$0xf] %v698
      %763 = vst [vmem:[%s223 + $0x60] sm:$0xf] %v699
      %764 = vst [vmem:[%s223 + $0x64] sm:$0xf] %v700
      %765 = vst [vmem:[%s223 + $0x68] sm:$0xf] %v701
      %766 = vst [vmem:[%s223 + $0x6c] sm:$0xf] %v702
      %767 = vst [vmem:[%s223 + $0x70] sm:$0xf] %v703
      %768 = vst [vmem:[%s223 + $0x74] sm:$0xf] %v704
      %769 = vst [vmem:[%s223 + $0x78] sm:$0xf] %v705
      %770 = vst [vmem:[%s223 + $0x7c] sm:$0xf] %v706
      %s771 = smul.u32 32, %s18
      %p772 = scmp.lt.s32.totalorder %s771, 223
      %s773 = scalar_select %p772, %s771, 223
      %p774 = scmp.lt.s32.totalorder %s19, 0
      %s775 = scalar_select %p774, %s19, 0
      %s776 = sadd.s32 %s775, %s773
      %s777 = smul.addr %s776, 4
      %s778 = scalar_lea.vmem %s3, %s777
      // Predicated region
      $region33: #{net_forward.7} parent=31 // pred_check
        %p779 = pneg %p124
      $region34: #{net_forward.7} parent=31 // pred_check_branch
        %781 = sbr.rel (%p779) target = $region36
      $region35: #{net_forward.7} parent=31 // pred_region
        %s782 = smul.u32 32, %s18
      $region36: #{net_forward.7} parent=31 // pred_fallthru
        _
    $region32: #{net_forward.7} parent=5 // pred_fallthru
      _
    %p783 = scmp.le.s32.totalorder 2, %s9
    // Predicated region
    $region37: #{net_forward.7} parent=5 // pred_check
      %p784 = pneg %p783
    $region38: #{net_forward.7} parent=5 // pred_check_branch
      %786 = sbr.rel (%p784) target = $region40
    $region39: #{net_forward.7} parent=5 // pred_region
      %s787 = ssub.s32 %s9, 2
      // Predicated region
      $region41: #{net_forward.7} parent=39 // pred_check
        %p788 = pneg %p130
      $region42: #{net_forward.7} parent=39 // pred_check_branch
        %790 = sbr.rel (%p788) target = $region44
      $region43: #{net_forward.7} parent=39 // pred_region
        %s791 = smul.u32 32, %s20
        %p792 = scmp.lt.s32.totalorder %s791, 223
        %s793 = scalar_select %p792, %s791, 223
        %p794 = scmp.lt.s32.totalorder %s21, 0
        %s795 = scalar_select %p794, %s21, 0
        %s796 = sadd.s32 %s795, %s793
        %s797 = smul.addr %s796, 4
        %s798 = scalar_lea.vmem %s3, %s797
      $region44: #{net_forward.7} parent=39 // pred_fallthru
        _
    $region40: #{net_forward.7} parent=5 // pred_fallthru
      _
  $region6: #{net_forward.7} parent=0 // loop_footer
    %s13 = sadd.s32 1, %s9
  $region7: #{net_forward.7} parent=0 // loop_footer_branch
    %8 = sbr.rel target = $region3
  $region8: #{net_forward.7} parent=0 // loop_exit
    _

// kernel: net_forward.8
$region0: #{net_forward.8}
  #allocation0 [shape = 'u32[]', space=smem, size = 0x4, offset = 0x4, fixed_abs, tag = 'smem constant byte address 0x4 - core index']
  #allocation1 [shape = 'u32[144,128]{1,0:T(1,128)}', space=vmem, size = 0x12000, scoped, tag = 'internal scratch']
  %s0 = inlined_call_operand.vmem [shape: bf16[28,1792], index: 0, kind: input, shape index: {}]
  %s1 = inlined_call_operand.vmem [shape: bf16[28,1792], index: 1, kind: input, shape index: {}]
  %s2 = inlined_call_operand.vmem [shape: bf16[28,1792], index: 2, kind: input, shape index: {}]
  %s3 = inlined_call_operand.vmem [shape: bf16[28,1792], index: 3, kind: input, shape index: {}]
  %s4 = inlined_call_operand.vmem [shape: bf16[28,1792], index: 4, kind: output, shape index: {}]
  %s5 = sld [smem:[#allocation0]]
  $region26: #{net_forward.8} parent=0
    _
  %s7 = ssub.s32 1, %s5
  %s8 = scalar_select 0, %s7, %s5
  // Predicated region
  $region2: #{net_forward.8} parent=0 // pred_check
    _
  $region3: #{net_forward.8} parent=0 // pred_check_branch
    %10 = sbr.rel (0) target = $region5
  $region4: #{net_forward.8} parent=0 // pred_region
    _
  $region5: #{net_forward.8} parent=0 // pred_fallthru
    _
  // Predicated region
  $region6: #{net_forward.8} parent=0 // pred_check
    _
  $region7: #{net_forward.8} parent=0 // pred_check_branch
    %12 = sbr.rel (0) target = $region9
  $region8: #{net_forward.8} parent=0 // pred_region
    _
  $region9: #{net_forward.8} parent=0 // pred_fallthru
    _
  // Predicated region
  $region10: #{net_forward.8} parent=0 // pred_check
    _
  $region11: #{net_forward.8} parent=0 // pred_check_branch
    %14 = sbr.rel (0) target = $region13
  $region12: #{net_forward.8} parent=0 // pred_region
    _
  $region13: #{net_forward.8} parent=0 // pred_fallthru
    _
  // Predicated region
  $region14: #{net_forward.8} parent=0 // pred_check
    _
  $region15: #{net_forward.8} parent=0 // pred_check_branch
    %16 = sbr.rel (0) target = $region17
  $region16: #{net_forward.8} parent=0 // pred_region
    _
  $region17: #{net_forward.8} parent=0 // pred_fallthru
    _
  %v17 = vld [vmem:[%s0] sm:$0xff]
  %v18 = vld [vmem:[%s0 + $0x8] sm:$0xff]
  %v19 = vld [vmem:[%s0 + $0x10] sm:$0xff]
  %v20 = vld [vmem:[%s0 + $0x18] sm:$0xff]
  %v21 = vld [vmem:[%s0 + $0x20] sm:$0xff]
  %v22 = vld [vmem:[%s0 + $0x28] sm:$0xff]
  %v23 = vld [vmem:[%s0 + $0x30] sm:$0xff]
  %v24 = vld [vmem:[%s0 + $0x38] sm:$0xff]
  %v25 = vld [vmem:[%s0 + $0x40] sm:$0xff]
  %v26 = vld [vmem:[%s0 + $0x48] sm:$0xff]
  %v27 = vld [vmem:[%s0 + $0x50] sm:$0xff]
  %v28 = vld [vmem:[%s0 + $0x58] sm:$0xff]
  %v29 = vld [vmem:[%s0 + $0x60] sm:$0xff]
  %v30 = vld [vmem:[%s0 + $0x68] sm:$0xff]
  %v31 = vld [vmem:[%s0 + $0x70] sm:$0xff]
  %v32 = vld [vmem:[%s0 + $0x78] sm:$0xff]
  %v33 = vld [vmem:[%s0 + $0x80] sm:$0xff]
  %v34 = vld [vmem:[%s0 + $0x88] sm:$0xff]
  %v35 = vld [vmem:[%s0 + $0x90] sm:$0xff]
  %v36 = vld [vmem:[%s0 + $0x98] sm:$0xff]
  %v37 = vld [vmem:[%s0 + $0xa0] sm:$0xff]
  %v38 = vld [vmem:[%s0 + $0xa8] sm:$0x33]
  %v39 = vld [vmem:[%s0 + $0xb0] sm:$0x33]
  %v40 = vld [vmem:[%s0 + $0xb8] sm:$0x33]
  %v41 = vld [vmem:[%s0 + $0xc0] sm:$0x33]
  %v42 = vld [vmem:[%s0 + $0xc8] sm:$0x33]
  %v43 = vld [vmem:[%s0 + $0xd0] sm:$0x33]
  %v44 = vld [vmem:[%s0 + $0xd8] sm:$0x33]
  %v45 = vld [vmem:[%s1] sm:$0xff]
  %v46 = vld [vmem:[%s1 + $0x8] sm:$0xff]
  %v47 = vld [vmem:[%s1 + $0x10] sm:$0xff]
  %v48 = vld [vmem:[%s1 + $0x18] sm:$0xff]
  %v49 = vld [vmem:[%s1 + $0x20] sm:$0xff]
  %v50 = vld [vmem:[%s1 + $0x28] sm:$0xff]
  %v51 = vld [vmem:[%s1 + $0x30] sm:$0xff]
  %v52 = vld [vmem:[%s1 + $0x38] sm:$0xff]
  %v53 = vld [vmem:[%s1 + $0x40] sm:$0xff]
  %v54 = vld [vmem:[%s1 + $0x48] sm:$0xff]
  %v55 = vld [vmem:[%s1 + $0x50] sm:$0xff]
  %v56 = vld [vmem:[%s1 + $0x58] sm:$0xff]
  %v57 = vld [vmem:[%s1 + $0x60] sm:$0xff]
  %v58 = vld [vmem:[%s1 + $0x68] sm:$0xff]
  %v59 = vld [vmem:[%s1 + $0x70] sm:$0xff]
  %v60 = vld [vmem:[%s1 + $0x78] sm:$0xff]
  %v61 = vld [vmem:[%s1 + $0x80] sm:$0xff]
  %v62 = vld [vmem:[%s1 + $0x88] sm:$0xff]
  %v63 = vld [vmem:[%s1 + $0x90] sm:$0xff]
  %v64 = vld [vmem:[%s1 + $0x98] sm:$0xff]
  %v65 = vld [vmem:[%s1 + $0xa0] sm:$0xff]
  %v66 = vld [vmem:[%s1 + $0xa8] sm:$0x33]
  %v67 = vld [vmem:[%s1 + $0xb0] sm:$0x33]
  %v68 = vld [vmem:[%s1 + $0xb8] sm:$0x33]
  %v69 = vld [vmem:[%s1 + $0xc0] sm:$0x33]
  %v70 = vld [vmem:[%s1 + $0xc8] sm:$0x33]
  %v71 = vld [vmem:[%s1 + $0xd0] sm:$0x33]
  %v72 = vld [vmem:[%s1 + $0xd8] sm:$0x33]
  %v73 = vmax.bf16 %v17, %v45
  %v74 = vmax.bf16 %v18, %v46
  %v75 = vmax.bf16 %v19, %v47
  %v76 = vmax.bf16 %v20, %v48
  %v77 = vmax.bf16 %v21, %v49
  %v78 = vmax.bf16 %v22, %v50
  %v79 = vmax.bf16 %v23, %v51
  %v80 = vmax.bf16 %v24, %v52
  %v81 = vmax.bf16 %v25, %v53
  %v82 = vmax.bf16 %v26, %v54
  %v83 = vmax.bf16 %v27, %v55
  %v84 = vmax.bf16 %v28, %v56
  %v85 = vmax.bf16 %v29, %v57
  %v86 = vmax.bf16 %v30, %v58
  %v87 = vmax.bf16 %v31, %v59
  %v88 = vmax.bf16 %v32, %v60
  %v89 = vmax.bf16 %v33, %v61
  %v90 = vmax.bf16 %v34, %v62
  %v91 = vmax.bf16 %v35, %v63
  %v92 = vmax.bf16 %v36, %v64
  %v93 = vmax.bf16 %v37, %v65
  %v94 = vmax.bf16 %v38, %v66
  %v95 = vmax.bf16 %v39, %v67
  %v96 = vmax.bf16 %v40, %v68
  %v97 = vmax.bf16 %v41, %v69
  %v98 = vmax.bf16 %v42, %v70
  %v99 = vmax.bf16 %v43, %v71
  %v100 = vmax.bf16 %v44, %v72
  %v101 = vld [vmem:[%s2] sm:$0xff]
  %v102 = vld [vmem:[%s2 + $0x8] sm:$0xff]
  %v103 = vld [vmem:[%s2 + $0x10] sm:$0xff]
  %v104 = vld [vmem:[%s2 + $0x18] sm:$0xff]
  %v105 = vld [vmem:[%s2 + $0x20] sm:$0xff]
  %v106 = vld [vmem:[%s2 + $0x28] sm:$0xff]
  %v107 = vld [vmem:[%s2 + $0x30] sm:$0xff]
  %v108 = vld [vmem:[%s2 + $0x38] sm:$0xff]
  %v109 = vld [vmem:[%s2 + $0x40] sm:$0xff]
  %v110 = vld [vmem:[%s2 + $0x48] sm:$0xff]
  %v111 = vld [vmem:[%s2 + $0x50] sm:$0xff]
  %v112 = vld [vmem:[%s2 + $0x58] sm:$0xff]
  %v113 = vld [vmem:[%s2 + $0x60] sm:$0xff]
  %v114 = vld [vmem:[%s2 + $0x68] sm:$0xff]
  %v115 = vld [vmem:[%s2 + $0x70] sm:$0xff]
  %v116 = vld [vmem:[%s2 + $0x78] sm:$0xff]
  %v117 = vld [vmem:[%s2 + $0x80] sm:$0xff]
  %v118 = vld [vmem:[%s2 + $0x88] sm:$0xff]
  %v119 = vld [vmem:[%s2 + $0x90] sm:$0xff]
  %v120 = vld [vmem:[%s2 + $0x98] sm:$0xff]
  %v121 = vld [vmem:[%s2 + $0xa0] sm:$0xff]
  %v122 = vld [vmem:[%s2 + $0xa8] sm:$0x33]
  %v123 = vld [vmem:[%s2 + $0xb0] sm:$0x33]
  %v124 = vld [vmem:[%s2 + $0xb8] sm:$0x33]
  %v125 = vld [vmem:[%s2 + $0xc0] sm:$0x33]
  %v126 = vld [vmem:[%s2 + $0xc8] sm:$0x33]
  %v127 = vld [vmem:[%s2 + $0xd0] sm:$0x33]
  %v128 = vld [vmem:[%s2 + $0xd8] sm:$0x33]
  %v129 = vld [vmem:[%s3] sm:$0xff]
  %v130 = vld [vmem:[%s3 + $0x8] sm:$0xff]
  %v131 = vld [vmem:[%s3 + $0x10] sm:$0xff]
  %v132 = vld [vmem:[%s3 + $0x18] sm:$0xff]
  %v133 = vld [vmem:[%s3 + $0x20] sm:$0xff]
  %v134 = vld [vmem:[%s3 + $0x28] sm:$0xff]
  %v135 = vld [vmem:[%s3 + $0x30] sm:$0xff]
  %v136 = vld [vmem:[%s3 + $0x38] sm:$0xff]
  %v137 = vld [vmem:[%s3 + $0x40] sm:$0xff]
  %v138 = vld [vmem:[%s3 + $0x48] sm:$0xff]
  %v139 = vld [vmem:[%s3 + $0x50] sm:$0xff]
  %v140 = vld [vmem:[%s3 + $0x58] sm:$0xff]
  %v141 = vld [vmem:[%s3 + $0x60] sm:$0xff]
  %v142 = vld [vmem:[%s3 + $0x68] sm:$0xff]
  %v143 = vld [vmem:[%s3 + $0x70] sm:$0xff]
  %v144 = vld [vmem:[%s3 + $0x78] sm:$0xff]
  %v145 = vld [vmem:[%s3 + $0x80] sm:$0xff]
  %v146 = vld [vmem:[%s3 + $0x88] sm:$0xff]
  %v147 = vld [vmem:[%s3 + $0x90] sm:$0xff]
  %v148 = vld [vmem:[%s3 + $0x98] sm:$0xff]
  %v149 = vld [vmem:[%s3 + $0xa0] sm:$0xff]
  %v150 = vld [vmem:[%s3 + $0xa8] sm:$0x33]
  %v151 = vld [vmem:[%s3 + $0xb0] sm:$0x33]
  %v152 = vld [vmem:[%s3 + $0xb8] sm:$0x33]
  %v153 = vld [vmem:[%s3 + $0xc0] sm:$0x33]
  %v154 = vld [vmem:[%s3 + $0xc8] sm:$0x33]
  %v155 = vld [vmem:[%s3 + $0xd0] sm:$0x33]
  %v156 = vld [vmem:[%s3 + $0xd8] sm:$0x33]
  %v157 = vmax.bf16 %v101, %v129
  %v158 = vmax.bf16 %v102, %v130
  %v159 = vmax.bf16 %v103, %v131
  %v160 = vmax.bf16 %v104, %v132
  %v161 = vmax.bf16 %v105, %v133
  %v162 = vmax.bf16 %v106, %v134
  %v163 = vmax.bf16 %v107, %v135
  %v164 = vmax.bf16 %v108, %v136
  %v165 = vmax.bf16 %v109, %v137
  %v166 = vmax.bf16 %v110, %v138
  %v167 = vmax.bf16 %v111, %v139
  %v168 = vmax.bf16 %v112, %v140
  %v169 = vmax.bf16 %v113, %v141
  %v170 = vmax.bf16 %v114, %v142
  %v171 = vmax.bf16 %v115, %v143
  %v172 = vmax.bf16 %v116, %v144
  %v173 = vmax.bf16 %v117, %v145
  %v174 = vmax.bf16 %v118, %v146
  %v175 = vmax.bf16 %v119, %v147
  %v176 = vmax.bf16 %v120, %v148
  %v177 = vmax.bf16 %v121, %v149
  %v178 = vmax.bf16 %v122, %v150
  %v179 = vmax.bf16 %v123, %v151
  %v180 = vmax.bf16 %v124, %v152
  %v181 = vmax.bf16 %v125, %v153
  %v182 = vmax.bf16 %v126, %v154
  %v183 = vmax.bf16 %v127, %v155
  %v184 = vmax.bf16 %v128, %v156
  %v185 = vmax.bf16 %v73, %v157
  %v186 = vmax.bf16 %v74, %v158
  %v187 = vmax.bf16 %v75, %v159
  %v188 = vmax.bf16 %v76, %v160
  %v189 = vmax.bf16 %v77, %v161
  %v190 = vmax.bf16 %v78, %v162
  %v191 = vmax.bf16 %v79, %v163
  %v192 = vmax.bf16 %v80, %v164
  %v193 = vmax.bf16 %v81, %v165
  %v194 = vmax.bf16 %v82, %v166
  %v195 = vmax.bf16 %v83, %v167
  %v196 = vmax.bf16 %v84, %v168
  %v197 = vmax.bf16 %v85, %v169
  %v198 = vmax.bf16 %v86, %v170
  %v199 = vmax.bf16 %v87, %v171
  %v200 = vmax.bf16 %v88, %v172
  %v201 = vmax.bf16 %v89, %v173
  %v202 = vmax.bf16 %v90, %v174
  %v203 = vmax.bf16 %v91, %v175
  %v204 = vmax.bf16 %v92, %v176
  %v205 = vmax.bf16 %v93, %v177
  %v206 = vmax.bf16 %v94, %v178
  %v207 = vmax.bf16 %v95, %v179
  %v208 = vmax.bf16 %v96, %v180
  %v209 = vmax.bf16 %v97, %v181
  %v210 = vmax.bf16 %v98, %v182
  %v211 = vmax.bf16 %v99, %v183
  %v212 = vmax.bf16 %v100, %v184
  %213 = vst [vmem:[%s4] sm:$0xff] %v185
  %214 = vst [vmem:[%s4 + $0x8] sm:$0xff] %v186
  %215 = vst [vmem:[%s4 + $0x10] sm:$0xff] %v187
  %216 = vst [vmem:[%s4 + $0x18] sm:$0xff] %v188
  %217 = vst [vmem:[%s4 + $0x20] sm:$0xff] %v189
  %218 = vst [vmem:[%s4 + $0x28] sm:$0xff] %v190
  %219 = vst [vmem:[%s4 + $0x30] sm:$0xff] %v191
  %220 = vst [vmem:[%s4 + $0x38] sm:$0xff] %v192
  %221 = vst [vmem:[%s4 + $0x40] sm:$0xff] %v193
  %222 = vst [vmem:[%s4 + $0x48] sm:$0xff] %v194
  %223 = vst [vmem:[%s4 + $0x50] sm:$0xff] %v195
  %224 = vst [vmem:[%s4 + $0x58] sm:$0xff] %v196
  %225 = vst [vmem:[%s4 + $0x60] sm:$0xff] %v197
  %226 = vst [vmem:[%s4 + $0x68] sm:$0xff] %v198
  %227 = vst [vmem:[%s4 + $0x70] sm:$0xff] %v199
  %228 = vst [vmem:[%s4 + $0x78] sm:$0xff] %v200
  %229 = vst [vmem:[%s4 + $0x80] sm:$0xff] %v201
  %230 = vst [vmem:[%s4 + $0x88] sm:$0xff] %v202
  %231 = vst [vmem:[%s4 + $0x90] sm:$0xff] %v203
  %232 = vst [vmem:[%s4 + $0x98] sm:$0xff] %v204
  %233 = vst [vmem:[%s4 + $0xa0] sm:$0xff] %v205
  %234 = vst [vmem:[%s4 + $0xa8] sm:$0x33] %v206
  %235 = vst [vmem:[%s4 + $0xb0] sm:$0x33] %v207
  %236 = vst [vmem:[%s4 + $0xb8] sm:$0x33] %v208
  %237 = vst [vmem:[%s4 + $0xc0] sm:$0x33] %v209
  %238 = vst [vmem:[%s4 + $0xc8] sm:$0x33] %v210
  %239 = vst [vmem:[%s4 + $0xd0] sm:$0x33] %v211
  %240 = vst [vmem:[%s4 + $0xd8] sm:$0x33] %v212
  // Predicated region
  $region18: #{net_forward.8} parent=0 // pred_check
    _
  $region19: #{net_forward.8} parent=0 // pred_check_branch
    %242 = sbr.rel (0) target = $region21
  $region20: #{net_forward.8} parent=0 // pred_region
    _
  $region21: #{net_forward.8} parent=0 // pred_fallthru
    _
  // Predicated region
  $region22: #{net_forward.8} parent=0 // pred_check
    _
  $region23: #{net_forward.8} parent=0 // pred_check_branch
    %244 = sbr.rel (0) target = $region25
  $region24: #{net_forward.8} parent=0 // pred_region
    _
  $region25: #{net_forward.8} parent=0 // pred_fallthru
    _

// kernel: net_forward.9
$region0: #{net_forward.9}
  #allocation0 [shape = 'u32[]', space=smem, size = 0x4, offset = 0x4, fixed_abs, tag = 'smem constant byte address 0x4 - core index']
  #allocation1 [shape = 'u32[144,128]{1,0:T(1,128)}', space=vmem, size = 0x12000, scoped, tag = 'internal scratch']
  %s0 = inlined_call_operand.vmem [shape: bf16[512,1152], index: 0, kind: input, shape index: {}]
  %s1 = inlined_call_operand.vmem [shape: bf16[1152,128], index: 1, kind: input, shape index: {}]
  %s2 = inlined_call_operand.vmem [shape: f32[1,128], index: 2, kind: input, shape index: {}]
  %s3 = inlined_call_operand.vmem [shape: bf16[512,128], index: 3, kind: output, shape index: {}]
  %s4 = sld [smem:[#allocation0]]
  $region45: #{net_forward.9} parent=0
    _
  %s6 = ssub.s32 1, %s4
  %s7 = scalar_select 0, %s6, %s4
  loop: start=0, step=1, limit=4
  $region2: #{net_forward.9} parent=0 // loop_pre_header
    _
  $region3: #{net_forward.9} parent=0 // loop_header
    %s9 = sphi 0, %s13
    %p10 = scmp.ge.s32.totalorder %s9, 4
    %s16 = sphi 0, %s28
    %s17 = sphi 0, %s24
    %s18 = sphi 0, %s16
    %s19 = sphi 0, %s17
    %s20 = sphi 0, %s18
    %s21 = sphi 0, %s19
    %s31 = sphi 0, %s33
    %s34 = sphi 0, %s31
    %s35 = sphi 0, %s34
    %s51 = sphi 0, %s35
    %s57 = sphi 0, %s59
    %s60 = sphi 0, %s57
    %s61 = sphi 0, %s60
    %s77 = sphi 0, %s61
    %s83 = sphi 0, %s85
    %s86 = sphi 0, %s83
    %s87 = sphi 0, %s86
    %s103 = sphi 0, %s87
    %s111 = sphi 0, %s113
    %s114 = sphi 0, %s111
    %s115 = sphi 0, %s114
    %s131 = sphi 0, %s115
  $region4: #{net_forward.9} parent=0 // loop_header_branch
    %12 = sbr.rel (%p10) target = $region8
  $region5: #{net_forward.9} parent=0 // loop_body
    %s14 = ssub.s32 %s9, 1
    %s15 = ssub.s32 %s9, 2
    %s22 = sadd.s32 1, %s17
    %p23 = scmp.ge.s32.totalorder %s22, 1
    %s24 = scalar_select %p23, 0, %s22
    %s25 = sadd.s32 1, %s16
    %s26 = scalar_select %p23, %s25, %s16
    %p27 = scmp.ge.s32.totalorder %s26, 2
    %s28 = scalar_select %p27, 0, %s26
    %s29 = ssub.s32 %s16, %s28
    %p30 = scmp.eq.s32.totalorder %s29, 0
    %s32 = sadd.s32 %s31, 1
    %s33 = scalar_select %p30, %s31, %s32
    %p36 = pneg %p30
    %p37 = scmp.eq.s32.totalorder %s9, 1
    %p38 = por %p36, %p37
    %p39 = scmp.ne.s32.totalorder %s31, %s34
    %p40 = scmp.eq.s32.totalorder %s9, 0
    %p41 = por %p39, %p40
    %p42 = scmp.ne.s32.totalorder %s31, %s34
    %p43 = scmp.eq.s32.totalorder %s14, 1
    %p44 = por %p42, %p43
    %p45 = scmp.ne.s32.totalorder %s34, %s35
    %p46 = scmp.eq.s32.totalorder %s14, 0
    %p47 = por %p45, %p46
    %p48 = scmp.ne.s32.totalorder %s34, %s35
    %p49 = scmp.eq.s32.totalorder %s15, 1
    %p50 = por %p48, %p49
    %p52 = scmp.ne.s32.totalorder %s35, %s51
    %p53 = scmp.eq.s32.totalorder %s15, 0
    %p54 = por %p52, %p53
    %s55 = ssub.s32 %s17, %s24
    %p56 = scmp.eq.s32.totalorder %s55, 0
    %s58 = sadd.s32 %s57, 1
    %s59 = scalar_select %p56, %s57, %s58
    %p62 = pneg %p56
    %p63 = scmp.eq.s32.totalorder %s9, 1
    %p64 = por %p62, %p63
    %p65 = scmp.ne.s32.totalorder %s57, %s60
    %p66 = scmp.eq.s32.totalorder %s9, 0
    %p67 = por %p65, %p66
    %p68 = scmp.ne.s32.totalorder %s57, %s60
    %p69 = scmp.eq.s32.totalorder %s14, 1
    %p70 = por %p68, %p69
    %p71 = scmp.ne.s32.totalorder %s60, %s61
    %p72 = scmp.eq.s32.totalorder %s14, 0
    %p73 = por %p71, %p72
    %p74 = scmp.ne.s32.totalorder %s60, %s61
    %p75 = scmp.eq.s32.totalorder %s15, 1
    %p76 = por %p74, %p75
    %p78 = scmp.ne.s32.totalorder %s61, %s77
    %p79 = scmp.eq.s32.totalorder %s15, 0
    %p80 = por %p78, %p79
    %s81 = ssub.s32 %s17, %s24
    %p82 = scmp.eq.s32.totalorder %s81, 0
    %s84 = sadd.s32 %s83, 1
    %s85 = scalar_select %p82, %s83, %s84
    %p88 = pneg %p82
    %p89 = scmp.eq.s32.totalorder %s9, 1
    %p90 = por %p88, %p89
    %p91 = scmp.ne.s32.totalorder %s83, %s86
    %p92 = scmp.eq.s32.totalorder %s9, 0
    %p93 = por %p91, %p92
    %p94 = scmp.ne.s32.totalorder %s83, %s86
    %p95 = scmp.eq.s32.totalorder %s14, 1
    %p96 = por %p94, %p95
    %p97 = scmp.ne.s32.totalorder %s86, %s87
    %p98 = scmp.eq.s32.totalorder %s14, 0
    %p99 = por %p97, %p98
    %p100 = scmp.ne.s32.totalorder %s86, %s87
    %p101 = scmp.eq.s32.totalorder %s15, 1
    %p102 = por %p100, %p101
    %p104 = scmp.ne.s32.totalorder %s87, %s103
    %p105 = scmp.eq.s32.totalorder %s15, 0
    %p106 = por %p104, %p105
    %s107 = ssub.s32 %s16, %s28
    %s108 = ssub.s32 %s17, %s24
    %s109 = sor.u32 %s107, %s108
    %p110 = scmp.eq.s32.totalorder %s109, 0
    %s112 = sadd.s32 %s111, 1
    %s113 = scalar_select %p110, %s111, %s112
    %p116 = pneg %p110
    %p117 = scmp.eq.s32.totalorder %s9, 1
    %p118 = por %p116, %p117
    %p119 = scmp.ne.s32.totalorder %s111, %s114
    %p120 = scmp.eq.s32.totalorder %s9, 0
    %p121 = por %p119, %p120
    %p122 = scmp.ne.s32.totalorder %s111, %s114
    %p123 = scmp.eq.s32.totalorder %s14, 1
    %p124 = por %p122, %p123
    %p125 = scmp.ne.s32.totalorder %s114, %s115
    %p126 = scmp.eq.s32.totalorder %s14, 0
    %p127 = por %p125, %p126
    %p128 = scmp.ne.s32.totalorder %s114, %s115
    %p129 = scmp.eq.s32.totalorder %s15, 1
    %p130 = por %p128, %p129
    %p132 = scmp.ne.s32.totalorder %s115, %s131
    %p133 = scmp.eq.s32.totalorder %s15, 0
    %p134 = por %p132, %p133
    %p135 = scmp.le.s32.totalorder 1, %s9
    %p136 = scmp.lt.s32.totalorder %s9, 3
    %p137 = pnand %p135, %p136
    %p138 = pneg %p137
    // Predicated region
    $region9: #{net_forward.9} parent=5 // pred_check
      _
    $region10: #{net_forward.9} parent=5 // pred_check_branch
      %140 = sbr.rel (%p137) target = $region12
    $region11: #{net_forward.9} parent=5 // pred_region
      %s141 = ssub.s32 %s9, 1
      // Predicated region
      $region13: #{net_forward.9} parent=11 // pred_check
        %p142 = pneg %p73
      $region14: #{net_forward.9} parent=11 // pred_check_branch
        %144 = sbr.rel (%p142) target = $region16
      $region15: #{net_forward.9} parent=11 // pred_region
        %p145 = scmp.lt.s32.totalorder %s19, 0
        %s146 = scalar_select %p145, %s19, 0
        %s147 = smul.addr %s146, 4
        %s148 = scalar_lea.vmem %s1, %s147
      $region16: #{net_forward.9} parent=11 // pred_fallthru
        _
      // Predicated region
      $region17: #{net_forward.9} parent=11 // pred_check
        %p149 = pneg %p99
      $region18: #{net_forward.9} parent=11 // pred_check_branch
        %151 = sbr.rel (%p149) target = $region20
      $region19: #{net_forward.9} parent=11 // pred_region
        %p152 = scmp.lt.s32.totalorder %s19, 0
        %s153 = scalar_select %p152, %s19, 0
        %s154 = scalar_lea.vmem %s2, %s153
      $region20: #{net_forward.9} parent=11 // pred_fallthru
        _
    $region12: #{net_forward.9} parent=5 // pred_fallthru
      _
    %p155 = scmp.lt.s32.totalorder %s9, 2
    // Predicated region
    $region21: #{net_forward.9} parent=5 // pred_check
      %p156 = pneg %p155
    $region22: #{net_forward.9} parent=5 // pred_check_branch
      %158 = sbr.rel (%p156) target = $region24
    $region23: #{net_forward.9} parent=5 // pred_region
      // Predicated region
      $region25: #{net_forward.9} parent=23 // pred_check
        %p159 = pneg %p41
      $region26: #{net_forward.9} parent=23 // pred_check_branch
        %161 = sbr.rel (%p159) target = $region28
      $region27: #{net_forward.9} parent=23 // pred_region
        %s162 = smul.u32 32, %s16
        %p163 = scmp.lt.s32.totalorder %s162, 63
        %s164 = scalar_select %p163, %s162, 63
        %s165 = smul.addr %s164, 9
        %s166 = smul.addr %s165, 4
        %s167 = scalar_lea.vmem %s0, %s166
        %s168 = smul.u32 32, %s16
      $region28: #{net_forward.9} parent=23 // pred_fallthru
        _
    $region24: #{net_forward.9} parent=5 // pred_fallthru
      _
    %p169 = scmp.le.s32.totalorder 1, %s9
    %p170 = scmp.lt.s32.totalorder %s9, 3
    %p171 = pnand %p169, %p170
    %p172 = pneg %p171
    // Predicated region
    $region29: #{net_forward.9} parent=5 // pred_check
      _
    $region30: #{net_forward.9} parent=5 // pred_check_branch
      %174 = sbr.rel (%p171) target = $region32
    $region31: #{net_forward.9} parent=5 // pred_region
      %s175 = ssub.s32 %s9, 1
      %s176 = smul.u32 32, %s18
      %p177 = scmp.lt.s32.totalorder %s176, 63
      %s178 = scalar_select %p177, %s176, 63
      %s179 = smul.addr %s178, 9
      %s180 = smul.addr %s179, 4
      %s181 = scalar_lea.vmem %s0, %s180
      %p182 = pneg %p47
      %p183 = pneg %p44
      %p184 = scmp.lt.s32.totalorder %s19, 0
      %s185 = scalar_select %p184, %s19, 0
      %s186 = smul.addr %s185, 4
      %s187 = scalar_lea.vmem %s1, %s186
      %p188 = pneg %p73
      %p189 = pneg %p70
      %p190 = scmp.lt.s32.totalorder %s19, 0
      %s191 = scalar_select %p190, %s19, 0
      %s192 = scalar_lea.vmem %s2, %s191
      %p193 = pneg %p99
      %p194 = pneg %p96
      %p195 = pneg %p127
      %p196 = pneg %p124
      %s197 = smul.u32 32, %s18
      %p198 = scmp.lt.s32.totalorder %s197, 63
      %s199 = scalar_select %p198, %s197, 63
      %p200 = scmp.lt.s32.totalorder %s19, 0
      %s201 = scalar_select %p200, %s19, 0
      %s202 = sadd.s32 %s201, %s199
      %s203 = smul.addr %s202, 4
      %s204 = scalar_lea.vmem %s3, %s203
      %s205 = smul.u32 32, %s18
      %p206 = scmp.lt.s32.totalorder %s205, 63
      %s207 = scalar_select %p206, %s205, 63
      %s208 = smul.addr %s207, 9
      %s209 = smul.addr %s208, 4
      %s210 = scalar_lea.vmem %s0, %s209
      %s211 = smul.u32 32, %s18
      %p212 = scmp.lt.s32.totalorder %s19, 0
      %s213 = scalar_select %p212, %s19, 0
      %s214 = smul.addr %s213, 4
      %s215 = scalar_lea.vmem %s1, %s214
      %p216 = scmp.lt.s32.totalorder %s19, 0
      %s217 = scalar_select %p216, %s19, 0
      %s218 = scalar_lea.vmem %s2, %s217
      %s219 = smul.u32 32, %s18
      %p220 = scmp.lt.s32.totalorder %s219, 63
      %s221 = scalar_select %p220, %s219, 63
      %p222 = scmp.lt.s32.totalorder %s19, 0
      %s223 = scalar_select %p222, %s19, 0
      %s224 = sadd.s32 %s223, %s221
      %s225 = smul.addr %s224, 4
      %s226 = scalar_lea.vmem %s3, %s225
      %s227 = smul.u32 32, %s18
      %v229 = vld [vmem:[%s210] sm:$0xff]
      %v230 = vld [vmem:[%s210 + $0x8] sm:$0xff]
      %v231 = vld [vmem:[%s210 + $0x10] sm:$0xff]
      %v232 = vld [vmem:[%s210 + $0x18] sm:$0xff]
      %v233 = vld [vmem:[%s210 + $0x20] sm:$0xf]
      %v234 = vld [vmem:[%s210 + $0x24] sm:$0xff]
      %v235 = vld [vmem:[%s210 + $0x2c] sm:$0xff]
      %v236 = vld [vmem:[%s210 + $0x34] sm:$0xff]
      %v237 = vld [vmem:[%s210 + $0x3c] sm:$0xff]
      %v238 = vld [vmem:[%s210 + $0x44] sm:$0xf]
      %v239 = vld [vmem:[%s210 + $0x48] sm:$0xff]
      %v240 = vld [vmem:[%s210 + $0x50] sm:$0xff]
      %v241 = vld [vmem:[%s210 + $0x58] sm:$0xff]
      %v242 = vld [vmem:[%s210 + $0x60] sm:$0xff]
      %v243 = vld [vmem:[%s210 + $0x68] sm:$0xf]
      %v244 = vld [vmem:[%s210 + $0x6c] sm:$0xff]
      %v245 = vld [vmem:[%s210 + $0x74] sm:$0xff]
      %v246 = vld [vmem:[%s210 + $0x7c] sm:$0xff]
      %v247 = vld [vmem:[%s210 + $0x84] sm:$0xff]
      %v248 = vld [vmem:[%s210 + $0x8c] sm:$0xf]
      %v249 = vld [vmem:[%s210 + $0x90] sm:$0xff]
      %v250 = vld [vmem:[%s210 + $0x98] sm:$0xff]
      %v251 = vld [vmem:[%s210 + $0xa0] sm:$0xff]
      %v252 = vld [vmem:[%s210 + $0xa8] sm:$0xff]
      %v253 = vld [vmem:[%s210 + $0xb0] sm:$0xf]
      %v254 = vld [vmem:[%s210 + $0xb4] sm:$0xff]
      %v255 = vld [vmem:[%s210 + $0xbc] sm:$0xff]
      %v256 = vld [vmem:[%s210 + $0xc4] sm:$0xff]
      %v257 = vld [vmem:[%s210 + $0xcc] sm:$0xff]
      %v258 = vld [vmem:[%s210 + $0xd4] sm:$0xf]
      %v259 = vld [vmem:[%s210 + $0xd8] sm:$0xff]
      %v260 = vld [vmem:[%s210 + $0xe0] sm:$0xff]
      %v261 = vld [vmem:[%s210 + $0xe8] sm:$0xff]
      %v262 = vld [vmem:[%s210 + $0xf0] sm:$0xff]
      %v263 = vld [vmem:[%s210 + $0xf8] sm:$0xf]
      %v264 = vld [vmem:[%s210 + $0xfc] sm:$0xff]
      %v265 = vld [vmem:[%s210 + $0x104] sm:$0xff]
      %v266 = vld [vmem:[%s210 + $0x10c] sm:$0xff]
      %v267 = vld [vmem:[%s210 + $0x114] sm:$0xff]
      %v268 = vld [vmem:[%s210 + $0x11c] sm:$0xf]
      %v269 = vld [vmem:[%s210 + $0x120] sm:$0xff]
      %v270 = vld [vmem:[%s210 + $0x128] sm:$0xff]
      %v271 = vld [vmem:[%s210 + $0x130] sm:$0xff]
      %v272 = vld [vmem:[%s210 + $0x138] sm:$0xff]
      %v273 = vld [vmem:[%s210 + $0x140] sm:$0xf]
      %v274 = vld [vmem:[%s210 + $0x144] sm:$0xff]
      %v275 = vld [vmem:[%s210 + $0x14c] sm:$0xff]
      %v276 = vld [vmem:[%s210 + $0x154] sm:$0xff]
      %v277 = vld [vmem:[%s210 + $0x15c] sm:$0xff]
      %v278 = vld [vmem:[%s210 + $0x164] sm:$0xf]
      %v279 = vld [vmem:[%s210 + $0x168] sm:$0xff]
      %v280 = vld [vmem:[%s210 + $0x170] sm:$0xff]
      %v281 = vld [vmem:[%s210 + $0x178] sm:$0xff]
      %v282 = vld [vmem:[%s210 + $0x180] sm:$0xff]
      %v283 = vld [vmem:[%s210 + $0x188] sm:$0xf]
      %v284 = vld [vmem:[%s210 + $0x18c] sm:$0xff]
      %v285 = vld [vmem:[%s210 + $0x194] sm:$0xff]
      %v286 = vld [vmem:[%s210 + $0x19c] sm:$0xff]
      %v287 = vld [vmem:[%s210 + $0x1a4] sm:$0xff]
      %v288 = vld [vmem:[%s210 + $0x1ac] sm:$0xf]
      %v289 = vld [vmem:[%s210 + $0x1b0] sm:$0xff]
      %v290 = vld [vmem:[%s210 + $0x1b8] sm:$0xff]
      %v291 = vld [vmem:[%s210 + $0x1c0] sm:$0xff]
      %v292 = vld [vmem:[%s210 + $0x1c8] sm:$0xff]
      %v293 = vld [vmem:[%s210 + $0x1d0] sm:$0xf]
      %v294 = vld [vmem:[%s210 + $0x1d4] sm:$0xff]
      %v295 = vld [vmem:[%s210 + $0x1dc] sm:$0xff]
      %v296 = vld [vmem:[%s210 + $0x1e4] sm:$0xff]
      %v297 = vld [vmem:[%s210 + $0x1ec] sm:$0xff]
      %v298 = vld [vmem:[%s210 + $0x1f4] sm:$0xf]
      %v299 = vld [vmem:[%s210 + $0x1f8] sm:$0xff]
      %v300 = vld [vmem:[%s210 + $0x200] sm:$0xff]
      %v301 = vld [vmem:[%s210 + $0x208] sm:$0xff]
      %v302 = vld [vmem:[%s210 + $0x210] sm:$0xff]
      %v303 = vld [vmem:[%s210 + $0x218] sm:$0xf]
      %v304 = vld [vmem:[%s210 + $0x21c] sm:$0xff]
      %v305 = vld [vmem:[%s210 + $0x224] sm:$0xff]
      %v306 = vld [vmem:[%s210 + $0x22c] sm:$0xff]
      %v307 = vld [vmem:[%s210 + $0x234] sm:$0xff]
      %v308 = vld [vmem:[%s210 + $0x23c] sm:$0xf]
      %v309 = vld [vmem:[%s210 + $0x240] sm:$0xff]
      %v310 = vld [vmem:[%s210 + $0x248] sm:$0xff]
      %v311 = vld [vmem:[%s210 + $0x250] sm:$0xff]
      %v312 = vld [vmem:[%s210 + $0x258] sm:$0xff]
      %v313 = vld [vmem:[%s210 + $0x260] sm:$0xf]
      %v314 = vld [vmem:[%s210 + $0x264] sm:$0xff]
      %v315 = vld [vmem:[%s210 + $0x26c] sm:$0xff]
      %v316 = vld [vmem:[%s210 + $0x274] sm:$0xff]
      %v317 = vld [vmem:[%s210 + $0x27c] sm:$0xff]
      %v318 = vld [vmem:[%s210 + $0x284] sm:$0xf]
      %v319 = vld [vmem:[%s210 + $0x288] sm:$0xff]
      %v320 = vld [vmem:[%s210 + $0x290] sm:$0xff]
      %v321 = vld [vmem:[%s210 + $0x298] sm:$0xff]
      %v322 = vld [vmem:[%s210 + $0x2a0] sm:$0xff]
      %v323 = vld [vmem:[%s210 + $0x2a8] sm:$0xf]
      %v324 = vld [vmem:[%s210 + $0x2ac] sm:$0xff]
      %v325 = vld [vmem:[%s210 + $0x2b4] sm:$0xff]
      %v326 = vld [vmem:[%s210 + $0x2bc] sm:$0xff]
      %v327 = vld [vmem:[%s210 + $0x2c4] sm:$0xff]
      %v328 = vld [vmem:[%s210 + $0x2cc] sm:$0xf]
      %v329 = vld [vmem:[%s210 + $0x2d0] sm:$0xff]
      %v330 = vld [vmem:[%s210 + $0x2d8] sm:$0xff]
      %v331 = vld [vmem:[%s210 + $0x2e0] sm:$0xff]
      %v332 = vld [vmem:[%s210 + $0x2e8] sm:$0xff]
      %v333 = vld [vmem:[%s210 + $0x2f0] sm:$0xf]
      %v334 = vld [vmem:[%s210 + $0x2f4] sm:$0xff]
      %v335 = vld [vmem:[%s210 + $0x2fc] sm:$0xff]
      %v336 = vld [vmem:[%s210 + $0x304] sm:$0xff]
      %v337 = vld [vmem:[%s210 + $0x30c] sm:$0xff]
      %v338 = vld [vmem:[%s210 + $0x314] sm:$0xf]
      %v339 = vld [vmem:[%s210 + $0x318] sm:$0xff]
      %v340 = vld [vmem:[%s210 + $0x320] sm:$0xff]
      %v341 = vld [vmem:[%s210 + $0x328] sm:$0xff]
      %v342 = vld [vmem:[%s210 + $0x330] sm:$0xff]
      %v343 = vld [vmem:[%s210 + $0x338] sm:$0xf]
      %v344 = vld [vmem:[%s210 + $0x33c] sm:$0xff]
      %v345 = vld [vmem:[%s210 + $0x344] sm:$0xff]
      %v346 = vld [vmem:[%s210 + $0x34c] sm:$0xff]
      %v347 = vld [vmem:[%s210 + $0x354] sm:$0xff]
      %v348 = vld [vmem:[%s210 + $0x35c] sm:$0xf]
      %v349 = vld [vmem:[%s210 + $0x360] sm:$0xff]
      %v350 = vld [vmem:[%s210 + $0x368] sm:$0xff]
      %v351 = vld [vmem:[%s210 + $0x370] sm:$0xff]
      %v352 = vld [vmem:[%s210 + $0x378] sm:$0xff]
      %v353 = vld [vmem:[%s210 + $0x380] sm:$0xf]
      %v354 = vld [vmem:[%s210 + $0x384] sm:$0xff]
      %v355 = vld [vmem:[%s210 + $0x38c] sm:$0xff]
      %v356 = vld [vmem:[%s210 + $0x394] sm:$0xff]
      %v357 = vld [vmem:[%s210 + $0x39c] sm:$0xff]
      %v358 = vld [vmem:[%s210 + $0x3a4] sm:$0xf]
      %v359 = vld [vmem:[%s210 + $0x3a8] sm:$0xff]
      %v360 = vld [vmem:[%s210 + $0x3b0] sm:$0xff]
      %v361 = vld [vmem:[%s210 + $0x3b8] sm:$0xff]
      %v362 = vld [vmem:[%s210 + $0x3c0] sm:$0xff]
      %v363 = vld [vmem:[%s210 + $0x3c8] sm:$0xf]
      %v364 = vld [vmem:[%s210 + $0x3cc] sm:$0xff]
      %v365 = vld [vmem:[%s210 + $0x3d4] sm:$0xff]
      %v366 = vld [vmem:[%s210 + $0x3dc] sm:$0xff]
      %v367 = vld [vmem:[%s210 + $0x3e4] sm:$0xff]
      %v368 = vld [vmem:[%s210 + $0x3ec] sm:$0xf]
      %v369 = vld [vmem:[%s210 + $0x3f0] sm:$0xff]
      %v370 = vld [vmem:[%s210 + $0x3f8] sm:$0xff]
      %v371 = vld [vmem:[%s210 + $0x400] sm:$0xff]
      %v372 = vld [vmem:[%s210 + $0x408] sm:$0xff]
      %v373 = vld [vmem:[%s210 + $0x410] sm:$0xf]
      %v374 = vld [vmem:[%s210 + $0x414] sm:$0xff]
      %v375 = vld [vmem:[%s210 + $0x41c] sm:$0xff]
      %v376 = vld [vmem:[%s210 + $0x424] sm:$0xff]
      %v377 = vld [vmem:[%s210 + $0x42c] sm:$0xff]
      %v378 = vld [vmem:[%s210 + $0x434] sm:$0xf]
      %v379 = vld [vmem:[%s210 + $0x438] sm:$0xff]
      %v380 = vld [vmem:[%s210 + $0x440] sm:$0xff]
      %v381 = vld [vmem:[%s210 + $0x448] sm:$0xff]
      %v382 = vld [vmem:[%s210 + $0x450] sm:$0xff]
      %v383 = vld [vmem:[%s210 + $0x458] sm:$0xf]
      %v384 = vld [vmem:[%s210 + $0x45c] sm:$0xff]
      %v385 = vld [vmem:[%s210 + $0x464] sm:$0xff]
      %v386 = vld [vmem:[%s210 + $0x46c] sm:$0xff]
      %v387 = vld [vmem:[%s210 + $0x474] sm:$0xff]
      %v388 = vld [vmem:[%s210 + $0x47c] sm:$0xf]
      %v389 = vld [vmem:[%s215] sm:$0xf]
      %v390 = vld [vmem:[%s215 + $0x4] sm:$0xf]
      %v391 = vld [vmem:[%s215 + $0x8] sm:$0xf]
      %v392 = vld [vmem:[%s215 + $0xc] sm:$0xf]
      %v393 = vld [vmem:[%s215 + $0x10] sm:$0xf]
      %v394 = vld [vmem:[%s215 + $0x14] sm:$0xf]
      %v395 = vld [vmem:[%s215 + $0x18] sm:$0xf]
      %v396 = vld [vmem:[%s215 + $0x1c] sm:$0xf]
      %v397 = vld [vmem:[%s215 + $0x20] sm:$0xf]
      %v398 = vld [vmem:[%s215 + $0x24] sm:$0xf]
      %v399 = vld [vmem:[%s215 + $0x28] sm:$0xf]
      %v400 = vld [vmem:[%s215 + $0x2c] sm:$0xf]
      %v401 = vld [vmem:[%s215 + $0x30] sm:$0xf]
      %v402 = vld [vmem:[%s215 + $0x34] sm:$0xf]
      %v403 = vld [vmem:[%s215 + $0x38] sm:$0xf]
      %v404 = vld [vmem:[%s215 + $0x3c] sm:$0xf]
      %v405 = vld [vmem:[%s215 + $0x40] sm:$0xf]
      %v406 = vld [vmem:[%s215 + $0x44] sm:$0xf]
      %v407 = vld [vmem:[%s215 + $0x48] sm:$0xf]
      %v408 = vld [vmem:[%s215 + $0x4c] sm:$0xf]
      %v409 = vld [vmem:[%s215 + $0x50] sm:$0xf]
      %v410 = vld [vmem:[%s215 + $0x54] sm:$0xf]
      %v411 = vld [vmem:[%s215 + $0x58] sm:$0xf]
      %v412 = vld [vmem:[%s215 + $0x5c] sm:$0xf]
      %v413 = vld [vmem:[%s215 + $0x60] sm:$0xf]
      %v414 = vld [vmem:[%s215 + $0x64] sm:$0xf]
      %v415 = vld [vmem:[%s215 + $0x68] sm:$0xf]
      %v416 = vld [vmem:[%s215 + $0x6c] sm:$0xf]
      %v417 = vld [vmem:[%s215 + $0x70] sm:$0xf]
      %v418 = vld [vmem:[%s215 + $0x74] sm:$0xf]
      %v419 = vld [vmem:[%s215 + $0x78] sm:$0xf]
      %v420 = vld [vmem:[%s215 + $0x7c] sm:$0xf]
      %v421 = vld [vmem:[%s215 + $0x80] sm:$0xf]
      %v422 = vld [vmem:[%s215 + $0x84] sm:$0xf]
      %v423 = vld [vmem:[%s215 + $0x88] sm:$0xf]
      %v424 = vld [vmem:[%s215 + $0x8c] sm:$0xf]
      %v425 = vld [vmem:[%s215 + $0x90] sm:$0xf]
      %v426 = vld [vmem:[%s215 + $0x94] sm:$0xf]
      %v427 = vld [vmem:[%s215 + $0x98] sm:$0xf]
      %v428 = vld [vmem:[%s215 + $0x9c] sm:$0xf]
      %v429 = vld [vmem:[%s215 + $0xa0] sm:$0xf]
      %v430 = vld [vmem:[%s215 + $0xa4] sm:$0xf]
      %v431 = vld [vmem:[%s215 + $0xa8] sm:$0xf]
      %v432 = vld [vmem:[%s215 + $0xac] sm:$0xf]
      %v433 = vld [vmem:[%s215 + $0xb0] sm:$0xf]
      %v434 = vld [vmem:[%s215 + $0xb4] sm:$0xf]
      %v435 = vld [vmem:[%s215 + $0xb8] sm:$0xf]
      %v436 = vld [vmem:[%s215 + $0xbc] sm:$0xf]
      %v437 = vld [vmem:[%s215 + $0xc0] sm:$0xf]
      %v438 = vld [vmem:[%s215 + $0xc4] sm:$0xf]
      %v439 = vld [vmem:[%s215 + $0xc8] sm:$0xf]
      %v440 = vld [vmem:[%s215 + $0xcc] sm:$0xf]
      %v441 = vld [vmem:[%s215 + $0xd0] sm:$0xf]
      %v442 = vld [vmem:[%s215 + $0xd4] sm:$0xf]
      %v443 = vld [vmem:[%s215 + $0xd8] sm:$0xf]
      %v444 = vld [vmem:[%s215 + $0xdc] sm:$0xf]
      %v445 = vld [vmem:[%s215 + $0xe0] sm:$0xf]
      %v446 = vld [vmem:[%s215 + $0xe4] sm:$0xf]
      %v447 = vld [vmem:[%s215 + $0xe8] sm:$0xf]
      %v448 = vld [vmem:[%s215 + $0xec] sm:$0xf]
      %v449 = vld [vmem:[%s215 + $0xf0] sm:$0xf]
      %v450 = vld [vmem:[%s215 + $0xf4] sm:$0xf]
      %v451 = vld [vmem:[%s215 + $0xf8] sm:$0xf]
      %v452 = vld [vmem:[%s215 + $0xfc] sm:$0xf]
      %v453 = vld [vmem:[%s215 + $0x100] sm:$0xf]
      %v454 = vld [vmem:[%s215 + $0x104] sm:$0xf]
      %v455 = vld [vmem:[%s215 + $0x108] sm:$0xf]
      %v456 = vld [vmem:[%s215 + $0x10c] sm:$0xf]
      %v457 = vld [vmem:[%s215 + $0x110] sm:$0xf]
      %v458 = vld [vmem:[%s215 + $0x114] sm:$0xf]
      %v459 = vld [vmem:[%s215 + $0x118] sm:$0xf]
      %v460 = vld [vmem:[%s215 + $0x11c] sm:$0xf]
      %v461 = vld [vmem:[%s215 + $0x120] sm:$0xf]
      %v462 = vld [vmem:[%s215 + $0x124] sm:$0xf]
      %v463 = vld [vmem:[%s215 + $0x128] sm:$0xf]
      %v464 = vld [vmem:[%s215 + $0x12c] sm:$0xf]
      %v465 = vld [vmem:[%s215 + $0x130] sm:$0xf]
      %v466 = vld [vmem:[%s215 + $0x134] sm:$0xf]
      %v467 = vld [vmem:[%s215 + $0x138] sm:$0xf]
      %v468 = vld [vmem:[%s215 + $0x13c] sm:$0xf]
      %v469 = vld [vmem:[%s215 + $0x140] sm:$0xf]
      %v470 = vld [vmem:[%s215 + $0x144] sm:$0xf]
      %v471 = vld [vmem:[%s215 + $0x148] sm:$0xf]
      %v472 = vld [vmem:[%s215 + $0x14c] sm:$0xf]
      %v473 = vld [vmem:[%s215 + $0x150] sm:$0xf]
      %v474 = vld [vmem:[%s215 + $0x154] sm:$0xf]
      %v475 = vld [vmem:[%s215 + $0x158] sm:$0xf]
      %v476 = vld [vmem:[%s215 + $0x15c] sm:$0xf]
      %v477 = vld [vmem:[%s215 + $0x160] sm:$0xf]
      %v478 = vld [vmem:[%s215 + $0x164] sm:$0xf]
      %v479 = vld [vmem:[%s215 + $0x168] sm:$0xf]
      %v480 = vld [vmem:[%s215 + $0x16c] sm:$0xf]
      %v481 = vld [vmem:[%s215 + $0x170] sm:$0xf]
      %v482 = vld [vmem:[%s215 + $0x174] sm:$0xf]
      %v483 = vld [vmem:[%s215 + $0x178] sm:$0xf]
      %v484 = vld [vmem:[%s215 + $0x17c] sm:$0xf]
      %v485 = vld [vmem:[%s215 + $0x180] sm:$0xf]
      %v486 = vld [vmem:[%s215 + $0x184] sm:$0xf]
      %v487 = vld [vmem:[%s215 + $0x188] sm:$0xf]
      %v488 = vld [vmem:[%s215 + $0x18c] sm:$0xf]
      %v489 = vld [vmem:[%s215 + $0x190] sm:$0xf]
      %v490 = vld [vmem:[%s215 + $0x194] sm:$0xf]
      %v491 = vld [vmem:[%s215 + $0x198] sm:$0xf]
      %v492 = vld [vmem:[%s215 + $0x19c] sm:$0xf]
      %v493 = vld [vmem:[%s215 + $0x1a0] sm:$0xf]
      %v494 = vld [vmem:[%s215 + $0x1a4] sm:$0xf]
      %v495 = vld [vmem:[%s215 + $0x1a8] sm:$0xf]
      %v496 = vld [vmem:[%s215 + $0x1ac] sm:$0xf]
      %v497 = vld [vmem:[%s215 + $0x1b0] sm:$0xf]
      %v498 = vld [vmem:[%s215 + $0x1b4] sm:$0xf]
      %v499 = vld [vmem:[%s215 + $0x1b8] sm:$0xf]
      %v500 = vld [vmem:[%s215 + $0x1bc] sm:$0xf]
      %v501 = vld [vmem:[%s215 + $0x1c0] sm:$0xf]
      %v502 = vld [vmem:[%s215 + $0x1c4] sm:$0xf]
      %v503 = vld [vmem:[%s215 + $0x1c8] sm:$0xf]
      %v504 = vld [vmem:[%s215 + $0x1cc] sm:$0xf]
      %v505 = vld [vmem:[%s215 + $0x1d0] sm:$0xf]
      %v506 = vld [vmem:[%s215 + $0x1d4] sm:$0xf]
      %v507 = vld [vmem:[%s215 + $0x1d8] sm:$0xf]
      %v508 = vld [vmem:[%s215 + $0x1dc] sm:$0xf]
      %v509 = vld [vmem:[%s215 + $0x1e0] sm:$0xf]
      %v510 = vld [vmem:[%s215 + $0x1e4] sm:$0xf]
      %v511 = vld [vmem:[%s215 + $0x1e8] sm:$0xf]
      %v512 = vld [vmem:[%s215 + $0x1ec] sm:$0xf]
      %v513 = vld [vmem:[%s215 + $0x1f0] sm:$0xf]
      %v514 = vld [vmem:[%s215 + $0x1f4] sm:$0xf]
      %v515 = vld [vmem:[%s215 + $0x1f8] sm:$0xf]
      %v516 = vld [vmem:[%s215 + $0x1fc] sm:$0xf]
      %v517 = vld [vmem:[%s215 + $0x200] sm:$0xf]
      %v518 = vld [vmem:[%s215 + $0x204] sm:$0xf]
      %v519 = vld [vmem:[%s215 + $0x208] sm:$0xf]
      %v520 = vld [vmem:[%s215 + $0x20c] sm:$0xf]
      %v521 = vld [vmem:[%s215 + $0x210] sm:$0xf]
      %v522 = vld [vmem:[%s215 + $0x214] sm:$0xf]
      %v523 = vld [vmem:[%s215 + $0x218] sm:$0xf]
      %v524 = vld [vmem:[%s215 + $0x21c] sm:$0xf]
      %v525 = vld [vmem:[%s215 + $0x220] sm:$0xf]
      %v526 = vld [vmem:[%s215 + $0x224] sm:$0xf]
      %v527 = vld [vmem:[%s215 + $0x228] sm:$0xf]
      %v528 = vld [vmem:[%s215 + $0x22c] sm:$0xf]
      %v529 = vld [vmem:[%s215 + $0x230] sm:$0xf]
      %v530 = vld [vmem:[%s215 + $0x234] sm:$0xf]
      %v531 = vld [vmem:[%s215 + $0x238] sm:$0xf]
      %v532 = vld [vmem:[%s215 + $0x23c] sm:$0xf]
      %v533 = vld [vmem:[%s218] sm:$0x1]
      %v535 = vlaneseq
      %v536 = vshrl.u32 %v535, 7
      %v537 = vsub.s32 0, %v536
      %v538 = vrot.slane %v533, %v537
      %v700 = vunpack.c.l.b16 %v229
      %v701 = vunpack.c.h.b16 %v229
      %v702 = vunpack.c.l.b16 %v230
      %v703 = vunpack.c.h.b16 %v230
      %v704 = vunpack.c.l.b16 %v231
      %v705 = vunpack.c.h.b16 %v231
      %v706 = vunpack.c.l.b16 %v232
      %v707 = vunpack.c.h.b16 %v232
      %v708 = vunpack.c.l.b16 %v233
      %v709 = vunpack.c.l.b16 %v234
      %v710 = vunpack.c.h.b16 %v234
      %v711 = vunpack.c.l.b16 %v235
      %v712 = vunpack.c.h.b16 %v235
      %v713 = vunpack.c.l.b16 %v236
      %v714 = vunpack.c.h.b16 %v236
      %v715 = vunpack.c.l.b16 %v237
      %v716 = vunpack.c.h.b16 %v237
      %v717 = vunpack.c.l.b16 %v238
      %v718 = vunpack.c.l.b16 %v239
      %v719 = vunpack.c.h.b16 %v239
      %v720 = vunpack.c.l.b16 %v240
      %v721 = vunpack.c.h.b16 %v240
      %v722 = vunpack.c.l.b16 %v241
      %v723 = vunpack.c.h.b16 %v241
      %v724 = vunpack.c.l.b16 %v242
      %v725 = vunpack.c.h.b16 %v242
      %v726 = vunpack.c.l.b16 %v243
      %v727 = vunpack.c.l.b16 %v244
      %v728 = vunpack.c.h.b16 %v244
      %v729 = vunpack.c.l.b16 %v245
      %v730 = vunpack.c.h.b16 %v245
      %v731 = vunpack.c.l.b16 %v246
      %v732 = vunpack.c.h.b16 %v246
      %v733 = vunpack.c.l.b16 %v247
      %v734 = vunpack.c.h.b16 %v247
      %v735 = vunpack.c.l.b16 %v248
      %v736 = vunpack.c.l.b16 %v249
      %v737 = vunpack.c.h.b16 %v249
      %v738 = vunpack.c.l.b16 %v250
      %v739 = vunpack.c.h.b16 %v250
      %v740 = vunpack.c.l.b16 %v251
      %v741 = vunpack.c.h.b16 %v251
      %v742 = vunpack.c.l.b16 %v252
      %v743 = vunpack.c.h.b16 %v252
      %v744 = vunpack.c.l.b16 %v253
      %v745 = vunpack.c.l.b16 %v254
      %v746 = vunpack.c.h.b16 %v254
      %v747 = vunpack.c.l.b16 %v255
      %v748 = vunpack.c.h.b16 %v255
      %v749 = vunpack.c.l.b16 %v256
      %v750 = vunpack.c.h.b16 %v256
      %v751 = vunpack.c.l.b16 %v257
      %v752 = vunpack.c.h.b16 %v257
      %v753 = vunpack.c.l.b16 %v258
      %v754 = vunpack.c.l.b16 %v259
      %v755 = vunpack.c.h.b16 %v259
      %v756 = vunpack.c.l.b16 %v260
      %v757 = vunpack.c.h.b16 %v260
      %v758 = vunpack.c.l.b16 %v261
      %v759 = vunpack.c.h.b16 %v261
      %v760 = vunpack.c.l.b16 %v262
      %v761 = vunpack.c.h.b16 %v262
      %v762 = vunpack.c.l.b16 %v263
      %v763 = vunpack.c.l.b16 %v264
      %v764 = vunpack.c.h.b16 %v264
      %v765 = vunpack.c.l.b16 %v265
      %v766 = vunpack.c.h.b16 %v265
      %v767 = vunpack.c.l.b16 %v266
      %v768 = vunpack.c.h.b16 %v266
      %v769 = vunpack.c.l.b16 %v267
      %v770 = vunpack.c.h.b16 %v267
      %v771 = vunpack.c.l.b16 %v268
      %v772 = vunpack.c.l.b16 %v269
      %v773 = vunpack.c.h.b16 %v269
      %v774 = vunpack.c.l.b16 %v270
      %v775 = vunpack.c.h.b16 %v270
      %v776 = vunpack.c.l.b16 %v271
      %v777 = vunpack.c.h.b16 %v271
      %v778 = vunpack.c.l.b16 %v272
      %v779 = vunpack.c.h.b16 %v272
      %v780 = vunpack.c.l.b16 %v273
      %v781 = vunpack.c.l.b16 %v274
      %v782 = vunpack.c.h.b16 %v274
      %v783 = vunpack.c.l.b16 %v275
      %v784 = vunpack.c.h.b16 %v275
      %v785 = vunpack.c.l.b16 %v276
      %v786 = vunpack.c.h.b16 %v276
      %v787 = vunpack.c.l.b16 %v277
      %v788 = vunpack.c.h.b16 %v277
      %v789 = vunpack.c.l.b16 %v278
      %v790 = vunpack.c.l.b16 %v279
      %v791 = vunpack.c.h.b16 %v279
      %v792 = vunpack.c.l.b16 %v280
      %v793 = vunpack.c.h.b16 %v280
      %v794 = vunpack.c.l.b16 %v281
      %v795 = vunpack.c.h.b16 %v281
      %v796 = vunpack.c.l.b16 %v282
      %v797 = vunpack.c.h.b16 %v282
      %v798 = vunpack.c.l.b16 %v283
      %v799 = vunpack.c.l.b16 %v284
      %v800 = vunpack.c.h.b16 %v284
      %v801 = vunpack.c.l.b16 %v285
      %v802 = vunpack.c.h.b16 %v285
      %v803 = vunpack.c.l.b16 %v286
      %v804 = vunpack.c.h.b16 %v286
      %v805 = vunpack.c.l.b16 %v287
      %v806 = vunpack.c.h.b16 %v287
      %v807 = vunpack.c.l.b16 %v288
      %v808 = vunpack.c.l.b16 %v289
      %v809 = vunpack.c.h.b16 %v289
      %v810 = vunpack.c.l.b16 %v290
      %v811 = vunpack.c.h.b16 %v290
      %v812 = vunpack.c.l.b16 %v291
      %v813 = vunpack.c.h.b16 %v291
      %v814 = vunpack.c.l.b16 %v292
      %v815 = vunpack.c.h.b16 %v292
      %v816 = vunpack.c.l.b16 %v293
      %v817 = vunpack.c.l.b16 %v294
      %v818 = vunpack.c.h.b16 %v294
      %v819 = vunpack.c.l.b16 %v295
      %v820 = vunpack.c.h.b16 %v295
      %v821 = vunpack.c.l.b16 %v296
      %v822 = vunpack.c.h.b16 %v296
      %v823 = vunpack.c.l.b16 %v297
      %v824 = vunpack.c.h.b16 %v297
      %v825 = vunpack.c.l.b16 %v298
      %v826 = vunpack.c.l.b16 %v299
      %v827 = vunpack.c.h.b16 %v299
      %v828 = vunpack.c.l.b16 %v300
      %v829 = vunpack.c.h.b16 %v300
      %v830 = vunpack.c.l.b16 %v301
      %v831 = vunpack.c.h.b16 %v301
      %v832 = vunpack.c.l.b16 %v302
      %v833 = vunpack.c.h.b16 %v302
      %v834 = vunpack.c.l.b16 %v303
      %v835 = vunpack.c.l.b16 %v304
      %v836 = vunpack.c.h.b16 %v304
      %v837 = vunpack.c.l.b16 %v305
      %v838 = vunpack.c.h.b16 %v305
      %v839 = vunpack.c.l.b16 %v306
      %v840 = vunpack.c.h.b16 %v306
      %v841 = vunpack.c.l.b16 %v307
      %v842 = vunpack.c.h.b16 %v307
      %v843 = vunpack.c.l.b16 %v308
      %v844 = vunpack.c.l.b16 %v309
      %v845 = vunpack.c.h.b16 %v309
      %v846 = vunpack.c.l.b16 %v310
      %v847 = vunpack.c.h.b16 %v310
      %v848 = vunpack.c.l.b16 %v311
      %v849 = vunpack.c.h.b16 %v311
      %v850 = vunpack.c.l.b16 %v312
      %v851 = vunpack.c.h.b16 %v312
      %v852 = vunpack.c.l.b16 %v313
      %v853 = vunpack.c.l.b16 %v314
      %v854 = vunpack.c.h.b16 %v314
      %v855 = vunpack.c.l.b16 %v315
      %v856 = vunpack.c.h.b16 %v315
      %v857 = vunpack.c.l.b16 %v316
      %v858 = vunpack.c.h.b16 %v316
      %v859 = vunpack.c.l.b16 %v317
      %v860 = vunpack.c.h.b16 %v317
      %v861 = vunpack.c.l.b16 %v318
      %v862 = vunpack.c.l.b16 %v319
      %v863 = vunpack.c.h.b16 %v319
      %v864 = vunpack.c.l.b16 %v320
      %v865 = vunpack.c.h.b16 %v320
      %v866 = vunpack.c.l.b16 %v321
      %v867 = vunpack.c.h.b16 %v321
      %v868 = vunpack.c.l.b16 %v322
      %v869 = vunpack.c.h.b16 %v322
      %v870 = vunpack.c.l.b16 %v323
      %v871 = vunpack.c.l.b16 %v324
      %v872 = vunpack.c.h.b16 %v324
      %v873 = vunpack.c.l.b16 %v325
      %v874 = vunpack.c.h.b16 %v325
      %v875 = vunpack.c.l.b16 %v326
      %v876 = vunpack.c.h.b16 %v326
      %v877 = vunpack.c.l.b16 %v327
      %v878 = vunpack.c.h.b16 %v327
      %v879 = vunpack.c.l.b16 %v328
      %v880 = vunpack.c.l.b16 %v329
      %v881 = vunpack.c.h.b16 %v329
      %v882 = vunpack.c.l.b16 %v330
      %v883 = vunpack.c.h.b16 %v330
      %v884 = vunpack.c.l.b16 %v331
      %v885 = vunpack.c.h.b16 %v331
      %v886 = vunpack.c.l.b16 %v332
      %v887 = vunpack.c.h.b16 %v332
      %v888 = vunpack.c.l.b16 %v333
      %v889 = vunpack.c.l.b16 %v334
      %v890 = vunpack.c.h.b16 %v334
      %v891 = vunpack.c.l.b16 %v335
      %v892 = vunpack.c.h.b16 %v335
      %v893 = vunpack.c.l.b16 %v336
      %v894 = vunpack.c.h.b16 %v336
      %v895 = vunpack.c.l.b16 %v337
      %v896 = vunpack.c.h.b16 %v337
      %v897 = vunpack.c.l.b16 %v338
      %v898 = vunpack.c.l.b16 %v339
      %v899 = vunpack.c.h.b16 %v339
      %v900 = vunpack.c.l.b16 %v340
      %v901 = vunpack.c.h.b16 %v340
      %v902 = vunpack.c.l.b16 %v341
      %v903 = vunpack.c.h.b16 %v341
      %v904 = vunpack.c.l.b16 %v342
      %v905 = vunpack.c.h.b16 %v342
      %v906 = vunpack.c.l.b16 %v343
      %v907 = vunpack.c.l.b16 %v344
      %v908 = vunpack.c.h.b16 %v344
      %v909 = vunpack.c.l.b16 %v345
      %v910 = vunpack.c.h.b16 %v345
      %v911 = vunpack.c.l.b16 %v346
      %v912 = vunpack.c.h.b16 %v346
      %v913 = vunpack.c.l.b16 %v347
      %v914 = vunpack.c.h.b16 %v347
      %v915 = vunpack.c.l.b16 %v348
      %v916 = vunpack.c.l.b16 %v349
      %v917 = vunpack.c.h.b16 %v349
      %v918 = vunpack.c.l.b16 %v350
      %v919 = vunpack.c.h.b16 %v350
      %v920 = vunpack.c.l.b16 %v351
      %v921 = vunpack.c.h.b16 %v351
      %v922 = vunpack.c.l.b16 %v352
      %v923 = vunpack.c.h.b16 %v352
      %v924 = vunpack.c.l.b16 %v353
      %v925 = vunpack.c.l.b16 %v354
      %v926 = vunpack.c.h.b16 %v354
      %v927 = vunpack.c.l.b16 %v355
      %v928 = vunpack.c.h.b16 %v355
      %v929 = vunpack.c.l.b16 %v356
      %v930 = vunpack.c.h.b16 %v356
      %v931 = vunpack.c.l.b16 %v357
      %v932 = vunpack.c.h.b16 %v357
      %v933 = vunpack.c.l.b16 %v358
      %v934 = vunpack.c.l.b16 %v359
      %v935 = vunpack.c.h.b16 %v359
      %v936 = vunpack.c.l.b16 %v360
      %v937 = vunpack.c.h.b16 %v360
      %v938 = vunpack.c.l.b16 %v361
      %v939 = vunpack.c.h.b16 %v361
      %v940 = vunpack.c.l.b16 %v362
      %v941 = vunpack.c.h.b16 %v362
      %v942 = vunpack.c.l.b16 %v363
      %v943 = vunpack.c.l.b16 %v364
      %v944 = vunpack.c.h.b16 %v364
      %v945 = vunpack.c.l.b16 %v365
      %v946 = vunpack.c.h.b16 %v365
      %v947 = vunpack.c.l.b16 %v366
      %v948 = vunpack.c.h.b16 %v366
      %v949 = vunpack.c.l.b16 %v367
      %v950 = vunpack.c.h.b16 %v367
      %v951 = vunpack.c.l.b16 %v368
      %v952 = vunpack.c.l.b16 %v369
      %v953 = vunpack.c.h.b16 %v369
      %v954 = vunpack.c.l.b16 %v370
      %v955 = vunpack.c.h.b16 %v370
      %v956 = vunpack.c.l.b16 %v371
      %v957 = vunpack.c.h.b16 %v371
      %v958 = vunpack.c.l.b16 %v372
      %v959 = vunpack.c.h.b16 %v372
      %v960 = vunpack.c.l.b16 %v373
      %v961 = vunpack.c.l.b16 %v374
      %v962 = vunpack.c.h.b16 %v374
      %v963 = vunpack.c.l.b16 %v375
      %v964 = vunpack.c.h.b16 %v375
      %v965 = vunpack.c.l.b16 %v376
      %v966 = vunpack.c.h.b16 %v376
      %v967 = vunpack.c.l.b16 %v377
      %v968 = vunpack.c.h.b16 %v377
      %v969 = vunpack.c.l.b16 %v378
      %v970 = vunpack.c.l.b16 %v379
      %v971 = vunpack.c.h.b16 %v379
      %v972 = vunpack.c.l.b16 %v380
      %v973 = vunpack.c.h.b16 %v380
      %v974 = vunpack.c.l.b16 %v381
      %v975 = vunpack.c.h.b16 %v381
      %v976 = vunpack.c.l.b16 %v382
      %v977 = vunpack.c.h.b16 %v382
      %v978 = vunpack.c.l.b16 %v383
      %v979 = vunpack.c.l.b16 %v384
      %v980 = vunpack.c.h.b16 %v384
      %v981 = vunpack.c.l.b16 %v385
      %v982 = vunpack.c.h.b16 %v385
      %v983 = vunpack.c.l.b16 %v386
      %v984 = vunpack.c.h.b16 %v386
      %v985 = vunpack.c.l.b16 %v387
      %v986 = vunpack.c.h.b16 %v387
      %v987 = vunpack.c.l.b16 %v388
      %v988 = vpack.c.b16 %v709, %v700
      %v989 = vpack.c.b16 %v710, %v701
      %v990 = vpack.c.b16 %v711, %v702
      %v991 = vpack.c.b16 %v712, %v703
      %v992 = vpack.c.b16 %v713, %v704
      %v993 = vpack.c.b16 %v714, %v705
      %v994 = vpack.c.b16 %v715, %v706
      %v995 = vpack.c.b16 %v716, %v707
      %v996 = vpack.c.b16 %v717, %v708
      %v997 = vpack.c.b16 %v727, %v718
      %v998 = vpack.c.b16 %v728, %v719
      %v999 = vpack.c.b16 %v729, %v720
      %v1000 = vpack.c.b16 %v730, %v721
      %v1001 = vpack.c.b16 %v731, %v722
      %v1002 = vpack.c.b16 %v732, %v723
      %v1003 = vpack.c.b16 %v733, %v724
      %v1004 = vpack.c.b16 %v734, %v725
      %v1005 = vpack.c.b16 %v735, %v726
      %v1006 = vpack.c.b16 %v745, %v736
      %v1007 = vpack.c.b16 %v746, %v737
      %v1008 = vpack.c.b16 %v747, %v738
      %v1009 = vpack.c.b16 %v748, %v739
      %v1010 = vpack.c.b16 %v749, %v740
      %v1011 = vpack.c.b16 %v750, %v741
      %v1012 = vpack.c.b16 %v751, %v742
      %v1013 = vpack.c.b16 %v752, %v743
      %v1014 = vpack.c.b16 %v753, %v744
      %v1015 = vpack.c.b16 %v763, %v754
      %v1016 = vpack.c.b16 %v764, %v755
      %v1017 = vpack.c.b16 %v765, %v756
      %v1018 = vpack.c.b16 %v766, %v757
      %v1019 = vpack.c.b16 %v767, %v758
      %v1020 = vpack.c.b16 %v768, %v759
      %v1021 = vpack.c.b16 %v769, %v760
      %v1022 = vpack.c.b16 %v770, %v761
      %v1023 = vpack.c.b16 %v771, %v762
      %v1024 = vpack.c.b16 %v781, %v772
      %v1025 = vpack.c.b16 %v782, %v773
      %v1026 = vpack.c.b16 %v783, %v774
      %v1027 = vpack.c.b16 %v784, %v775
      %v1028 = vpack.c.b16 %v785, %v776
      %v1029 = vpack.c.b16 %v786, %v777
      %v1030 = vpack.c.b16 %v787, %v778
      %v1031 = vpack.c.b16 %v788, %v779
      %v1032 = vpack.c.b16 %v789, %v780
      %v1033 = vpack.c.b16 %v799, %v790
      %v1034 = vpack.c.b16 %v800, %v791
      %v1035 = vpack.c.b16 %v801, %v792
      %v1036 = vpack.c.b16 %v802, %v793
      %v1037 = vpack.c.b16 %v803, %v794
      %v1038 = vpack.c.b16 %v804, %v795
      %v1039 = vpack.c.b16 %v805, %v796
      %v1040 = vpack.c.b16 %v806, %v797
      %v1041 = vpack.c.b16 %v807, %v798
      %v1042 = vpack.c.b16 %v817, %v808
      %v1043 = vpack.c.b16 %v818, %v809
      %v1044 = vpack.c.b16 %v819, %v810
      %v1045 = vpack.c.b16 %v820, %v811
      %v1046 = vpack.c.b16 %v821, %v812
      %v1047 = vpack.c.b16 %v822, %v813
      %v1048 = vpack.c.b16 %v823, %v814
      %v1049 = vpack.c.b16 %v824, %v815
      %v1050 = vpack.c.b16 %v825, %v816
      %v1051 = vpack.c.b16 %v835, %v826
      %v1052 = vpack.c.b16 %v836, %v827
      %v1053 = vpack.c.b16 %v837, %v828
      %v1054 = vpack.c.b16 %v838, %v829
      %v1055 = vpack.c.b16 %v839, %v830
      %v1056 = vpack.c.b16 %v840, %v831
      %v1057 = vpack.c.b16 %v841, %v832
      %v1058 = vpack.c.b16 %v842, %v833
      %v1059 = vpack.c.b16 %v843, %v834
      %v1060 = vpack.c.b16 %v853, %v844
      %v1061 = vpack.c.b16 %v854, %v845
      %v1062 = vpack.c.b16 %v855, %v846
      %v1063 = vpack.c.b16 %v856, %v847
      %v1064 = vpack.c.b16 %v857, %v848
      %v1065 = vpack.c.b16 %v858, %v849
      %v1066 = vpack.c.b16 %v859, %v850
      %v1067 = vpack.c.b16 %v860, %v851
      %v1068 = vpack.c.b16 %v861, %v852
      %v1069 = vpack.c.b16 %v871, %v862
      %v1070 = vpack.c.b16 %v872, %v863
      %v1071 = vpack.c.b16 %v873, %v864
      %v1072 = vpack.c.b16 %v874, %v865
      %v1073 = vpack.c.b16 %v875, %v866
      %v1074 = vpack.c.b16 %v876, %v867
      %v1075 = vpack.c.b16 %v877, %v868
      %v1076 = vpack.c.b16 %v878, %v869
      %v1077 = vpack.c.b16 %v879, %v870
      %v1078 = vpack.c.b16 %v889, %v880
      %v1079 = vpack.c.b16 %v890, %v881
      %v1080 = vpack.c.b16 %v891, %v882
      %v1081 = vpack.c.b16 %v892, %v883
      %v1082 = vpack.c.b16 %v893, %v884
      %v1083 = vpack.c.b16 %v894, %v885
      %v1084 = vpack.c.b16 %v895, %v886
      %v1085 = vpack.c.b16 %v896, %v887
      %v1086 = vpack.c.b16 %v897, %v888
      %v1087 = vpack.c.b16 %v907, %v898
      %v1088 = vpack.c.b16 %v908, %v899
      %v1089 = vpack.c.b16 %v909, %v900
      %v1090 = vpack.c.b16 %v910, %v901
      %v1091 = vpack.c.b16 %v911, %v902
      %v1092 = vpack.c.b16 %v912, %v903
      %v1093 = vpack.c.b16 %v913, %v904
      %v1094 = vpack.c.b16 %v914, %v905
      %v1095 = vpack.c.b16 %v915, %v906
      %v1096 = vpack.c.b16 %v925, %v916
      %v1097 = vpack.c.b16 %v926, %v917
      %v1098 = vpack.c.b16 %v927, %v918
      %v1099 = vpack.c.b16 %v928, %v919
      %v1100 = vpack.c.b16 %v929, %v920
      %v1101 = vpack.c.b16 %v930, %v921
      %v1102 = vpack.c.b16 %v931, %v922
      %v1103 = vpack.c.b16 %v932, %v923
      %v1104 = vpack.c.b16 %v933, %v924
      %v1105 = vpack.c.b16 %v943, %v934
      %v1106 = vpack.c.b16 %v944, %v935
      %v1107 = vpack.c.b16 %v945, %v936
      %v1108 = vpack.c.b16 %v946, %v937
      %v1109 = vpack.c.b16 %v947, %v938
      %v1110 = vpack.c.b16 %v948, %v939
      %v1111 = vpack.c.b16 %v949, %v940
      %v1112 = vpack.c.b16 %v950, %v941
      %v1113 = vpack.c.b16 %v951, %v942
      %v1114 = vpack.c.b16 %v961, %v952
      %v1115 = vpack.c.b16 %v962, %v953
      %v1116 = vpack.c.b16 %v963, %v954
      %v1117 = vpack.c.b16 %v964, %v955
      %v1118 = vpack.c.b16 %v965, %v956
      %v1119 = vpack.c.b16 %v966, %v957
      %v1120 = vpack.c.b16 %v967, %v958
      %v1121 = vpack.c.b16 %v968, %v959
      %v1122 = vpack.c.b16 %v969, %v960
      %v1123 = vpack.c.b16 %v979, %v970
      %v1124 = vpack.c.b16 %v980, %v971
      %v1125 = vpack.c.b16 %v981, %v972
      %v1126 = vpack.c.b16 %v982, %v973
      %v1127 = vpack.c.b16 %v983, %v974
      %v1128 = vpack.c.b16 %v984, %v975
      %v1129 = vpack.c.b16 %v985, %v976
      %v1130 = vpack.c.b16 %v986, %v977
      %v1131 = vpack.c.b16 %v987, %v978
      %v1420 = vunpack.c.l.b16 %v389
      %v1421 = vunpack.c.l.b16 %v390
      %v1422 = vunpack.c.l.b16 %v391
      %v1423 = vunpack.c.l.b16 %v392
      %v1424 = vunpack.c.l.b16 %v393
      %v1425 = vunpack.c.l.b16 %v394
      %v1426 = vunpack.c.l.b16 %v395
      %v1427 = vunpack.c.l.b16 %v396
      %v1428 = vunpack.c.l.b16 %v397
      %v1429 = vunpack.c.l.b16 %v398
      %v1430 = vunpack.c.l.b16 %v399
      %v1431 = vunpack.c.l.b16 %v400
      %v1432 = vunpack.c.l.b16 %v401
      %v1433 = vunpack.c.l.b16 %v402
      %v1434 = vunpack.c.l.b16 %v403
      %v1435 = vunpack.c.l.b16 %v404
      %v1436 = vunpack.c.l.b16 %v405
      %v1437 = vunpack.c.l.b16 %v406
      %v1438 = vunpack.c.l.b16 %v407
      %v1439 = vunpack.c.l.b16 %v408
      %v1440 = vunpack.c.l.b16 %v409
      %v1441 = vunpack.c.l.b16 %v410
      %v1442 = vunpack.c.l.b16 %v411
      %v1443 = vunpack.c.l.b16 %v412
      %v1444 = vunpack.c.l.b16 %v413
      %v1445 = vunpack.c.l.b16 %v414
      %v1446 = vunpack.c.l.b16 %v415
      %v1447 = vunpack.c.l.b16 %v416
      %v1448 = vunpack.c.l.b16 %v417
      %v1449 = vunpack.c.l.b16 %v418
      %v1450 = vunpack.c.l.b16 %v419
      %v1451 = vunpack.c.l.b16 %v420
      %v1452 = vunpack.c.l.b16 %v421
      %v1453 = vunpack.c.l.b16 %v422
      %v1454 = vunpack.c.l.b16 %v423
      %v1455 = vunpack.c.l.b16 %v424
      %v1456 = vunpack.c.l.b16 %v425
      %v1457 = vunpack.c.l.b16 %v426
      %v1458 = vunpack.c.l.b16 %v427
      %v1459 = vunpack.c.l.b16 %v428
      %v1460 = vunpack.c.l.b16 %v429
      %v1461 = vunpack.c.l.b16 %v430
      %v1462 = vunpack.c.l.b16 %v431
      %v1463 = vunpack.c.l.b16 %v432
      %v1464 = vunpack.c.l.b16 %v433
      %v1465 = vunpack.c.l.b16 %v434
      %v1466 = vunpack.c.l.b16 %v435
      %v1467 = vunpack.c.l.b16 %v436
      %v1468 = vunpack.c.l.b16 %v437
      %v1469 = vunpack.c.l.b16 %v438
      %v1470 = vunpack.c.l.b16 %v439
      %v1471 = vunpack.c.l.b16 %v440
      %v1472 = vunpack.c.l.b16 %v441
      %v1473 = vunpack.c.l.b16 %v442
      %v1474 = vunpack.c.l.b16 %v443
      %v1475 = vunpack.c.l.b16 %v444
      %v1476 = vunpack.c.l.b16 %v445
      %v1477 = vunpack.c.l.b16 %v446
      %v1478 = vunpack.c.l.b16 %v447
      %v1479 = vunpack.c.l.b16 %v448
      %v1480 = vunpack.c.l.b16 %v449
      %v1481 = vunpack.c.l.b16 %v450
      %v1482 = vunpack.c.l.b16 %v451
      %v1483 = vunpack.c.l.b16 %v452
      %v1484 = vunpack.c.l.b16 %v453
      %v1485 = vunpack.c.l.b16 %v454
      %v1486 = vunpack.c.l.b16 %v455
      %v1487 = vunpack.c.l.b16 %v456
      %v1488 = vunpack.c.l.b16 %v457
      %v1489 = vunpack.c.l.b16 %v458
      %v1490 = vunpack.c.l.b16 %v459
      %v1491 = vunpack.c.l.b16 %v460
      %v1492 = vunpack.c.l.b16 %v461
      %v1493 = vunpack.c.l.b16 %v462
      %v1494 = vunpack.c.l.b16 %v463
      %v1495 = vunpack.c.l.b16 %v464
      %v1496 = vunpack.c.l.b16 %v465
      %v1497 = vunpack.c.l.b16 %v466
      %v1498 = vunpack.c.l.b16 %v467
      %v1499 = vunpack.c.l.b16 %v468
      %v1500 = vunpack.c.l.b16 %v469
      %v1501 = vunpack.c.l.b16 %v470
      %v1502 = vunpack.c.l.b16 %v471
      %v1503 = vunpack.c.l.b16 %v472
      %v1504 = vunpack.c.l.b16 %v473
      %v1505 = vunpack.c.l.b16 %v474
      %v1506 = vunpack.c.l.b16 %v475
      %v1507 = vunpack.c.l.b16 %v476
      %v1508 = vunpack.c.l.b16 %v477
      %v1509 = vunpack.c.l.b16 %v478
      %v1510 = vunpack.c.l.b16 %v479
      %v1511 = vunpack.c.l.b16 %v480
      %v1512 = vunpack.c.l.b16 %v481
      %v1513 = vunpack.c.l.b16 %v482
      %v1514 = vunpack.c.l.b16 %v483
      %v1515 = vunpack.c.l.b16 %v484
      %v1516 = vunpack.c.l.b16 %v485
      %v1517 = vunpack.c.l.b16 %v486
      %v1518 = vunpack.c.l.b16 %v487
      %v1519 = vunpack.c.l.b16 %v488
      %v1520 = vunpack.c.l.b16 %v489
      %v1521 = vunpack.c.l.b16 %v490
      %v1522 = vunpack.c.l.b16 %v491
      %v1523 = vunpack.c.l.b16 %v492
      %v1524 = vunpack.c.l.b16 %v493
      %v1525 = vunpack.c.l.b16 %v494
      %v1526 = vunpack.c.l.b16 %v495
      %v1527 = vunpack.c.l.b16 %v496
      %v1528 = vunpack.c.l.b16 %v497
      %v1529 = vunpack.c.l.b16 %v498
      %v1530 = vunpack.c.l.b16 %v499
      %v1531 = vunpack.c.l.b16 %v500
      %v1532 = vunpack.c.l.b16 %v501
      %v1533 = vunpack.c.l.b16 %v502
      %v1534 = vunpack.c.l.b16 %v503
      %v1535 = vunpack.c.l.b16 %v504
      %v1536 = vunpack.c.l.b16 %v505
      %v1537 = vunpack.c.l.b16 %v506
      %v1538 = vunpack.c.l.b16 %v507
      %v1539 = vunpack.c.l.b16 %v508
      %v1540 = vunpack.c.l.b16 %v509
      %v1541 = vunpack.c.l.b16 %v510
      %v1542 = vunpack.c.l.b16 %v511
      %v1543 = vunpack.c.l.b16 %v512
      %v1544 = vunpack.c.l.b16 %v513
      %v1545 = vunpack.c.l.b16 %v514
      %v1546 = vunpack.c.l.b16 %v515
      %v1547 = vunpack.c.l.b16 %v516
      %v1548 = vunpack.c.l.b16 %v517
      %v1549 = vunpack.c.l.b16 %v518
      %v1550 = vunpack.c.l.b16 %v519
      %v1551 = vunpack.c.l.b16 %v520
      %v1552 = vunpack.c.l.b16 %v521
      %v1553 = vunpack.c.l.b16 %v522
      %v1554 = vunpack.c.l.b16 %v523
      %v1555 = vunpack.c.l.b16 %v524
      %v1556 = vunpack.c.l.b16 %v525
      %v1557 = vunpack.c.l.b16 %v526
      %v1558 = vunpack.c.l.b16 %v527
      %v1559 = vunpack.c.l.b16 %v528
      %v1560 = vunpack.c.l.b16 %v529
      %v1561 = vunpack.c.l.b16 %v530
      %v1562 = vunpack.c.l.b16 %v531
      %v1563 = vunpack.c.l.b16 %v532
      %v1564 = vpack.c.b16 %v1421, %v1420
      %v1565 = vpack.c.b16 %v1423, %v1422
      %v1566 = vpack.c.b16 %v1425, %v1424
      %v1567 = vpack.c.b16 %v1427, %v1426
      %v1568 = vpack.c.b16 %v1429, %v1428
      %v1569 = vpack.c.b16 %v1431, %v1430
      %v1570 = vpack.c.b16 %v1433, %v1432
      %v1571 = vpack.c.b16 %v1435, %v1434
      %v1572 = vpack.c.b16 %v1437, %v1436
      %v1573 = vpack.c.b16 %v1439, %v1438
      %v1574 = vpack.c.b16 %v1441, %v1440
      %v1575 = vpack.c.b16 %v1443, %v1442
      %v1576 = vpack.c.b16 %v1445, %v1444
      %v1577 = vpack.c.b16 %v1447, %v1446
      %v1578 = vpack.c.b16 %v1449, %v1448
      %v1579 = vpack.c.b16 %v1451, %v1450
      %v1580 = vpack.c.b16 %v1453, %v1452
      %v1581 = vpack.c.b16 %v1455, %v1454
      %v1582 = vpack.c.b16 %v1457, %v1456
      %v1583 = vpack.c.b16 %v1459, %v1458
      %v1584 = vpack.c.b16 %v1461, %v1460
      %v1585 = vpack.c.b16 %v1463, %v1462
      %v1586 = vpack.c.b16 %v1465, %v1464
      %v1587 = vpack.c.b16 %v1467, %v1466
      %v1588 = vpack.c.b16 %v1469, %v1468
      %v1589 = vpack.c.b16 %v1471, %v1470
      %v1590 = vpack.c.b16 %v1473, %v1472
      %v1591 = vpack.c.b16 %v1475, %v1474
      %v1592 = vpack.c.b16 %v1477, %v1476
      %v1593 = vpack.c.b16 %v1479, %v1478
      %v1594 = vpack.c.b16 %v1481, %v1480
      %v1595 = vpack.c.b16 %v1483, %v1482
      %v1596 = vpack.c.b16 %v1485, %v1484
      %v1597 = vpack.c.b16 %v1487, %v1486
      %v1598 = vpack.c.b16 %v1489, %v1488
      %v1599 = vpack.c.b16 %v1491, %v1490
      %v1600 = vpack.c.b16 %v1493, %v1492
      %v1601 = vpack.c.b16 %v1495, %v1494
      %v1602 = vpack.c.b16 %v1497, %v1496
      %v1603 = vpack.c.b16 %v1499, %v1498
      %v1604 = vpack.c.b16 %v1501, %v1500
      %v1605 = vpack.c.b16 %v1503, %v1502
      %v1606 = vpack.c.b16 %v1505, %v1504
      %v1607 = vpack.c.b16 %v1507, %v1506
      %v1608 = vpack.c.b16 %v1509, %v1508
      %v1609 = vpack.c.b16 %v1511, %v1510
      %v1610 = vpack.c.b16 %v1513, %v1512
      %v1611 = vpack.c.b16 %v1515, %v1514
      %v1612 = vpack.c.b16 %v1517, %v1516
      %v1613 = vpack.c.b16 %v1519, %v1518
      %v1614 = vpack.c.b16 %v1521, %v1520
      %v1615 = vpack.c.b16 %v1523, %v1522
      %v1616 = vpack.c.b16 %v1525, %v1524
      %v1617 = vpack.c.b16 %v1527, %v1526
      %v1618 = vpack.c.b16 %v1529, %v1528
      %v1619 = vpack.c.b16 %v1531, %v1530
      %v1620 = vpack.c.b16 %v1533, %v1532
      %v1621 = vpack.c.b16 %v1535, %v1534
      %v1622 = vpack.c.b16 %v1537, %v1536
      %v1623 = vpack.c.b16 %v1539, %v1538
      %v1624 = vpack.c.b16 %v1541, %v1540
      %v1625 = vpack.c.b16 %v1543, %v1542
      %v1626 = vpack.c.b16 %v1545, %v1544
      %v1627 = vpack.c.b16 %v1547, %v1546
      %v1628 = vpack.c.b16 %v1549, %v1548
      %v1629 = vpack.c.b16 %v1551, %v1550
      %v1630 = vpack.c.b16 %v1553, %v1552
      %v1631 = vpack.c.b16 %v1555, %v1554
      %v1632 = vpack.c.b16 %v1557, %v1556
      %v1633 = vpack.c.b16 %v1559, %v1558
      %v1634 = vpack.c.b16 %v1561, %v1560
      %v1635 = vpack.c.b16 %v1563, %v1562
      %1708 = vmatprep.subr.bf16.mxu0 0
      %1709 = vmatpush1.bf16.msra.mxu0 %v1564
      %1710 = vmatprep.subr.bf16.mxu0 0
      %1711 = vmatpush1.bf16.msra.mxu0 %v1565
      %1712 = vmatprep.subr.bf16.mxu0 0
      %1713 = vmatpush1.bf16.msra.mxu0 %v1566
      %1714 = vmatprep.subr.bf16.mxu0 0
      %1715 = vmatpush1.bf16.msra.mxu0 %v1567
      %1716 = vmatprep.subr.bf16.mxu0 0
      %1717 = vmatpush1.bf16.msra.mxu0 %v1568
      %1718 = vmatprep.subr.bf16.mxu0 0
      %1719 = vmatpush1.bf16.msra.mxu0 %v1569
      %1720 = vmatprep.subr.bf16.mxu0 0
      %1721 = vmatpush1.bf16.msra.mxu0 %v1570
      %1722 = vmatprep.subr.bf16.mxu0 0
      %1723 = vmatpush1.bf16.msra.mxu0 %v1571
      %1724 = vmatprep.subr.bf16.mxu0 0
      %1725 = vmatpush1.bf16.msra.mxu0 %v1572
      %1726 = vmatprep.subr.bf16.mxu0 0
      %1727 = vmatpush1.bf16.msra.mxu0 %v1573
      %1728 = vmatprep.subr.bf16.mxu0 0
      %1729 = vmatpush1.bf16.msra.mxu0 %v1574
      %1730 = vmatprep.subr.bf16.mxu0 0
      %1731 = vmatpush1.bf16.msra.mxu0 %v1575
      %1732 = vmatprep.subr.bf16.mxu0 0
      %1733 = vmatpush1.bf16.msra.mxu0 %v1576
      %1734 = vmatprep.subr.bf16.mxu0 0
      %1735 = vmatpush1.bf16.msra.mxu0 %v1577
      %1736 = vmatprep.subr.bf16.mxu0 0
      %1737 = vmatpush1.bf16.msra.mxu0 %v1578
      %1738 = vmatprep.subr.bf16.mxu0 0
      %1739 = vmatpush1.bf16.msra.mxu0 %v1579
      %1740 = vmatprep.mubr.bf16.mxu0 %v989
      %1741 = vmatmul.mubr.bf16.gmra.mrb[0].mxu0 %v988
      %v1742 = vpop.f32.mrb[0].mxu0
      %v1743 = vadd.f32 %v538, %v1742
      %v1744 = vpop.f32.mrb[0].mxu0
      %v1745 = vpop.f32.mrb[0].mxu0
      %v1746 = vadd.f32 %v538, %v1745
      %v1747 = vpop.f32.mrb[0].mxu0
      %1748 = vmatprep.mubr.bf16.mxu0 %v998
      %1749 = vmatmul.mubr.bf16.gmra.mrb[0].mxu0 %v997
      %v1750 = vpop.f32.mrb[0].mxu0
      %v1751 = vadd.f32 %v538, %v1750
      %v1752 = vpop.f32.mrb[0].mxu0
      %v1753 = vpop.f32.mrb[0].mxu0
      %v1754 = vadd.f32 %v538, %v1753
      %v1755 = vpop.f32.mrb[0].mxu0
      %1756 = vmatprep.mubr.bf16.mxu0 %v1007
      %1757 = vmatmul.mubr.bf16.gmra.mrb[0].mxu0 %v1006
      %v1758 = vpop.f32.mrb[0].mxu0
      %v1759 = vadd.f32 %v538, %v1758
      %v1760 = vpop.f32.mrb[0].mxu0
      %v1761 = vpop.f32.mrb[0].mxu0
      %v1762 = vadd.f32 %v538, %v1761
      %v1763 = vpop.f32.mrb[0].mxu0
      %1764 = vmatprep.mubr.bf16.mxu0 %v1016
      %1765 = vmatmul.mubr.bf16.gmra.mrb[0].mxu0 %v1015
      %v1766 = vpop.f32.mrb[0].mxu0
      %v1767 = vadd.f32 %v538, %v1766
      %v1768 = vpop.f32.mrb[0].mxu0
      %v1769 = vpop.f32.mrb[0].mxu0
      %v1770 = vadd.f32 %v538, %v1769
      %v1771 = vpop.f32.mrb[0].mxu0
      %1772 = vmatprep.mubr.bf16.mxu0 %v1025
      %1773 = vmatmul.mubr.bf16.gmra.mrb[0].mxu0 %v1024
      %v1774 = vpop.f32.mrb[0].mxu0
      %v1775 = vadd.f32 %v538, %v1774
      %v1776 = vpop.f32.mrb[0].mxu0
      %v1777 = vpop.f32.mrb[0].mxu0
      %v1778 = vadd.f32 %v538, %v1777
      %v1779 = vpop.f32.mrb[0].mxu0
      %1780 = vmatprep.mubr.bf16.mxu0 %v1034
      %1781 = vmatmul.mubr.bf16.gmra.mrb[0].mxu0 %v1033
      %v1782 = vpop.f32.mrb[0].mxu0
      %v1783 = vadd.f32 %v538, %v1782
      %v1784 = vpop.f32.mrb[0].mxu0
      %v1785 = vpop.f32.mrb[0].mxu0
      %v1786 = vadd.f32 %v538, %v1785
      %v1787 = vpop.f32.mrb[0].mxu0
      %1788 = vmatprep.mubr.bf16.mxu0 %v1043
      %1789 = vmatmul.mubr.bf16.gmra.mrb[0].mxu0 %v1042
      %v1790 = vpop.f32.mrb[0].mxu0
      %v1791 = vadd.f32 %v538, %v1790
      %v1792 = vpop.f32.mrb[0].mxu0
      %v1793 = vpop.f32.mrb[0].mxu0
      %v1794 = vadd.f32 %v538, %v1793
      %v1795 = vpop.f32.mrb[0].mxu0
      %1796 = vmatprep.mubr.bf16.mxu0 %v1052
      %1797 = vmatmul.mubr.bf16.gmra.mrb[0].mxu0 %v1051
      %v1798 = vpop.f32.mrb[0].mxu0
      %v1799 = vadd.f32 %v538, %v1798
      %v1800 = vpop.f32.mrb[0].mxu0
      %v1801 = vpop.f32.mrb[0].mxu0
      %v1802 = vadd.f32 %v538, %v1801
      %v1803 = vpop.f32.mrb[0].mxu0
      %1804 = vmatprep.mubr.bf16.mxu0 %v1061
      %1805 = vmatmul.mubr.bf16.gmra.mrb[0].mxu0 %v1060
      %v1806 = vpop.f32.mrb[0].mxu0
      %v1807 = vadd.f32 %v538, %v1806
      %v1808 = vpop.f32.mrb[0].mxu0
      %v1809 = vpop.f32.mrb[0].mxu0
      %v1810 = vadd.f32 %v538, %v1809
      %v1811 = vpop.f32.mrb[0].mxu0
      %1812 = vmatprep.mubr.bf16.mxu0 %v1070
      %1813 = vmatmul.mubr.bf16.gmra.mrb[0].mxu0 %v1069
      %v1814 = vpop.f32.mrb[0].mxu0
      %v1815 = vadd.f32 %v538, %v1814
      %v1816 = vpop.f32.mrb[0].mxu0
      %v1817 = vpop.f32.mrb[0].mxu0
      %v1818 = vadd.f32 %v538, %v1817
      %v1819 = vpop.f32.mrb[0].mxu0
      %1820 = vmatprep.mubr.bf16.mxu0 %v1079
      %1821 = vmatmul.mubr.bf16.gmra.mrb[0].mxu0 %v1078
      %v1822 = vpop.f32.mrb[0].mxu0
      %v1823 = vadd.f32 %v538, %v1822
      %v1824 = vpop.f32.mrb[0].mxu0
      %v1825 = vpop.f32.mrb[0].mxu0
      %v1826 = vadd.f32 %v538, %v1825
      %v1827 = vpop.f32.mrb[0].mxu0
      %1828 = vmatprep.mubr.bf16.mxu0 %v1088
      %1829 = vmatmul.mubr.bf16.gmra.mrb[0].mxu0 %v1087
      %v1830 = vpop.f32.mrb[0].mxu0
      %v1831 = vadd.f32 %v538, %v1830
      %v1832 = vpop.f32.mrb[0].mxu0
      %v1833 = vpop.f32.mrb[0].mxu0
      %v1834 = vadd.f32 %v538, %v1833
      %v1835 = vpop.f32.mrb[0].mxu0
      %1836 = vmatprep.mubr.bf16.mxu0 %v1097
      %1837 = vmatmul.mubr.bf16.gmra.mrb[0].mxu0 %v1096
      %v1838 = vpop.f32.mrb[0].mxu0
      %v1839 = vadd.f32 %v538, %v1838
      %v1840 = vpop.f32.mrb[0].mxu0
      %v1841 = vpop.f32.mrb[0].mxu0
      %v1842 = vadd.f32 %v538, %v1841
      %v1843 = vpop.f32.mrb[0].mxu0
      %1844 = vmatprep.mubr.bf16.mxu0 %v1106
      %1845 = vmatmul.mubr.bf16.gmra.mrb[0].mxu0 %v1105
      %v1846 = vpop.f32.mrb[0].mxu0
      %v1847 = vadd.f32 %v538, %v1846
      %v1848 = vpop.f32.mrb[0].mxu0
      %v1849 = vpop.f32.mrb[0].mxu0
      %v1850 = vadd.f32 %v538, %v1849
      %v1851 = vpop.f32.mrb[0].mxu0
      %1852 = vmatprep.mubr.bf16.mxu0 %v1115
      %1853 = vmatmul.mubr.bf16.gmra.mrb[0].mxu0 %v1114
      %v1854 = vpop.f32.mrb[0].mxu0
      %v1855 = vadd.f32 %v538, %v1854
      %v1856 = vpop.f32.mrb[0].mxu0
      %v1857 = vpop.f32.mrb[0].mxu0
      %v1858 = vadd.f32 %v538, %v1857
      %v1859 = vpop.f32.mrb[0].mxu0
      %1860 = vmatprep.mubr.bf16.mxu0 %v1124
      %1861 = vmatmul.mubr.bf16.gmra.mrb[0].mxu0 %v1123
      %v1862 = vpop.f32.mrb[0].mxu0
      %v1863 = vadd.f32 %v538, %v1862
      %v1864 = vpop.f32.mrb[0].mxu0
      %v1865 = vpop.f32.mrb[0].mxu0
      %v1866 = vadd.f32 %v538, %v1865
      %v1867 = vpop.f32.mrb[0].mxu0
      %1868 = vdwg.mxu0
      %1869 = vmatprep.subr.bf16.mxu0 0
      %1870 = vmatpush1.bf16.msra.mxu0 %v1580
      %1871 = vmatprep.subr.bf16.mxu0 0
      %1872 = vmatpush1.bf16.msra.mxu0 %v1581
      %1873 = vmatprep.subr.bf16.mxu0 0
      %1874 = vmatpush1.bf16.msra.mxu0 %v1582
      %1875 = vmatprep.subr.bf16.mxu0 0
      %1876 = vmatpush1.bf16.msra.mxu0 %v1583
      %1877 = vmatprep.subr.bf16.mxu0 0
      %1878 = vmatpush1.bf16.msra.mxu0 %v1584
      %1879 = vmatprep.subr.bf16.mxu0 0
      %1880 = vmatpush1.bf16.msra.mxu0 %v1585
      %1881 = vmatprep.subr.bf16.mxu0 0
      %1882 = vmatpush1.bf16.msra.mxu0 %v1586
      %1883 = vmatprep.subr.bf16.mxu0 0
      %1884 = vmatpush1.bf16.msra.mxu0 %v1587
      %1885 = vmatprep.subr.bf16.mxu0 0
      %1886 = vmatpush1.bf16.msra.mxu0 %v1588
      %1887 = vmatprep.subr.bf16.mxu0 0
      %1888 = vmatpush1.bf16.msra.mxu0 %v1589
      %1889 = vmatprep.subr.bf16.mxu0 0
      %1890 = vmatpush1.bf16.msra.mxu0 %v1590
      %1891 = vmatprep.subr.bf16.mxu0 0
      %1892 = vmatpush1.bf16.msra.mxu0 %v1591
      %1893 = vmatprep.subr.bf16.mxu0 0
      %1894 = vmatpush1.bf16.msra.mxu0 %v1592
      %1895 = vmatprep.subr.bf16.mxu0 0
      %1896 = vmatpush1.bf16.msra.mxu0 %v1593
      %1897 = vmatprep.subr.bf16.mxu0 0
      %1898 = vmatpush1.bf16.msra.mxu0 %v1594
      %1899 = vmatprep.subr.bf16.mxu0 0
      %1900 = vmatpush1.bf16.msra.mxu0 %v1595
      %1901 = vmatprep.mubr.bf16.mxu0 %v991
      %1902 = vmatmul.mubr.bf16.gmra.mrb[0].mxu0 %v990
      %v1903 = vpop.f32.mrb[0].mxu0
      %v1904 = vadd.f32 %v1743, %v1903
      %v1905 = vpop.f32.mrb[0].mxu0
      %v1906 = vpop.f32.mrb[0].mxu0
      %v1907 = vadd.f32 %v1746, %v1906
      %v1908 = vpop.f32.mrb[0].mxu0
      %1909 = vmatprep.mubr.bf16.mxu0 %v1000
      %1910 = vmatmul.mubr.bf16.gmra.mrb[0].mxu0 %v999
      %v1911 = vpop.f32.mrb[0].mxu0
      %v1912 = vadd.f32 %v1751, %v1911
      %v1913 = vpop.f32.mrb[0].mxu0
      %v1914 = vpop.f32.mrb[0].mxu0
      %v1915 = vadd.f32 %v1754, %v1914
      %v1916 = vpop.f32.mrb[0].mxu0
      %1917 = vmatprep.mubr.bf16.mxu0 %v1009
      %1918 = vmatmul.mubr.bf16.gmra.mrb[0].mxu0 %v1008
      %v1919 = vpop.f32.mrb[0].mxu0
      %v1920 = vadd.f32 %v1759, %v1919
      %v1921 = vpop.f32.mrb[0].mxu0
      %v1922 = vpop.f32.mrb[0].mxu0
      %v1923 = vadd.f32 %v1762, %v1922
      %v1924 = vpop.f32.mrb[0].mxu0
      %1925 = vmatprep.mubr.bf16.mxu0 %v1018
      %1926 = vmatmul.mubr.bf16.gmra.mrb[0].mxu0 %v1017
      %v1927 = vpop.f32.mrb[0].mxu0
      %v1928 = vadd.f32 %v1767, %v1927
      %v1929 = vpop.f32.mrb[0].mxu0
      %v1930 = vpop.f32.mrb[0].mxu0
      %v1931 = vadd.f32 %v1770, %v1930
      %v1932 = vpop.f32.mrb[0].mxu0
      %1933 = vmatprep.mubr.bf16.mxu0 %v1027
      %1934 = vmatmul.mubr.bf16.gmra.mrb[0].mxu0 %v1026
      %v1935 = vpop.f32.mrb[0].mxu0
      %v1936 = vadd.f32 %v1775, %v1935
      %v1937 = vpop.f32.mrb[0].mxu0
      %v1938 = vpop.f32.mrb[0].mxu0
      %v1939 = vadd.f32 %v1778, %v1938
      %v1940 = vpop.f32.mrb[0].mxu0
      %1941 = vmatprep.mubr.bf16.mxu0 %v1036
      %1942 = vmatmul.mubr.bf16.gmra.mrb[0].mxu0 %v1035
      %v1943 = vpop.f32.mrb[0].mxu0
      %v1944 = vadd.f32 %v1783, %v1943
      %v1945 = vpop.f32.mrb[0].mxu0
      %v1946 = vpop.f32.mrb[0].mxu0
      %v1947 = vadd.f32 %v1786, %v1946
      %v1948 = vpop.f32.mrb[0].mxu0
      %1949 = vmatprep.mubr.bf16.mxu0 %v1045
      %1950 = vmatmul.mubr.bf16.gmra.mrb[0].mxu0 %v1044
      %v1951 = vpop.f32.mrb[0].mxu0
      %v1952 = vadd.f32 %v1791, %v1951
      %v1953 = vpop.f32.mrb[0].mxu0
      %v1954 = vpop.f32.mrb[0].mxu0
      %v1955 = vadd.f32 %v1794, %v1954
      %v1956 = vpop.f32.mrb[0].mxu0
      %1957 = vmatprep.mubr.bf16.mxu0 %v1054
      %1958 = vmatmul.mubr.bf16.gmra.mrb[0].mxu0 %v1053
      %v1959 = vpop.f32.mrb[0].mxu0
      %v1960 = vadd.f32 %v1799, %v1959
      %v1961 = vpop.f32.mrb[0].mxu0
      %v1962 = vpop.f32.mrb[0].mxu0
      %v1963 = vadd.f32 %v1802, %v1962
      %v1964 = vpop.f32.mrb[0].mxu0
      %1965 = vmatprep.mubr.bf16.mxu0 %v1063
      %1966 = vmatmul.mubr.bf16.gmra.mrb[0].mxu0 %v1062
      %v1967 = vpop.f32.mrb[0].mxu0
      %v1968 = vadd.f32 %v1807, %v1967
      %v1969 = vpop.f32.mrb[0].mxu0
      %v1970 = vpop.f32.mrb[0].mxu0
      %v1971 = vadd.f32 %v1810, %v1970
      %v1972 = vpop.f32.mrb[0].mxu0
      %1973 = vmatprep.mubr.bf16.mxu0 %v1072
      %1974 = vmatmul.mubr.bf16.gmra.mrb[0].mxu0 %v1071
      %v1975 = vpop.f32.mrb[0].mxu0
      %v1976 = vadd.f32 %v1815, %v1975
      %v1977 = vpop.f32.mrb[0].mxu0
      %v1978 = vpop.f32.mrb[0].mxu0
      %v1979 = vadd.f32 %v1818, %v1978
      %v1980 = vpop.f32.mrb[0].mxu0
      %1981 = vmatprep.mubr.bf16.mxu0 %v1081
      %1982 = vmatmul.mubr.bf16.gmra.mrb[0].mxu0 %v1080
      %v1983 = vpop.f32.mrb[0].mxu0
      %v1984 = vadd.f32 %v1823, %v1983
      %v1985 = vpop.f32.mrb[0].mxu0
      %v1986 = vpop.f32.mrb[0].mxu0
      %v1987 = vadd.f32 %v1826, %v1986
      %v1988 = vpop.f32.mrb[0].mxu0
      %1989 = vmatprep.mubr.bf16.mxu0 %v1090
      %1990 = vmatmul.mubr.bf16.gmra.mrb[0].mxu0 %v1089
      %v1991 = vpop.f32.mrb[0].mxu0
      %v1992 = vadd.f32 %v1831, %v1991
      %v1993 = vpop.f32.mrb[0].mxu0
      %v1994 = vpop.f32.mrb[0].mxu0
      %v1995 = vadd.f32 %v1834, %v1994
      %v1996 = vpop.f32.mrb[0].mxu0
      %1997 = vmatprep.mubr.bf16.mxu0 %v1099
      %1998 = vmatmul.mubr.bf16.gmra.mrb[0].mxu0 %v1098
      %v1999 = vpop.f32.mrb[0].mxu0
      %v2000 = vadd.f32 %v1839, %v1999
      %v2001 = vpop.f32.mrb[0].mxu0
      %v2002 = vpop.f32.mrb[0].mxu0
      %v2003 = vadd.f32 %v1842, %v2002
      %v2004 = vpop.f32.mrb[0].mxu0
      %2005 = vmatprep.mubr.bf16.mxu0 %v1108
      %2006 = vmatmul.mubr.bf16.gmra.mrb[0].mxu0 %v1107
      %v2007 = vpop.f32.mrb[0].mxu0
      %v2008 = vadd.f32 %v1847, %v2007
      %v2009 = vpop.f32.mrb[0].mxu0
      %v2010 = vpop.f32.mrb[0].mxu0
      %v2011 = vadd.f32 %v1850, %v2010
      %v2012 = vpop.f32.mrb[0].mxu0
      %2013 = vmatprep.mubr.bf16.mxu0 %v1117
      %2014 = vmatmul.mubr.bf16.gmra.mrb[0].mxu0 %v1116
      %v2015 = vpop.f32.mrb[0].mxu0
      %v2016 = vadd.f32 %v1855, %v2015
      %v2017 = vpop.f32.mrb[0].mxu0
      %v2018 = vpop.f32.mrb[0].mxu0
      %v2019 = vadd.f32 %v1858, %v2018
      %v2020 = vpop.f32.mrb[0].mxu0
      %2021 = vmatprep.mubr.bf16.mxu0 %v1126
      %2022 = vmatmul.mubr.bf16.gmra.mrb[0].mxu0 %v1125
      %v2023 = vpop.f32.mrb[0].mxu0
      %v2024 = vadd.f32 %v1863, %v2023
      %v2025 = vpop.f32.mrb[0].mxu0
      %v2026 = vpop.f32.mrb[0].mxu0
      %v2027 = vadd.f32 %v1866, %v2026
      %v2028 = vpop.f32.mrb[0].mxu0
      %2029 = vdwg.mxu0
      %2030 = vmatprep.subr.bf16.mxu0 0
      %2031 = vmatpush1.bf16.msra.mxu0 %v1596
      %2032 = vmatprep.subr.bf16.mxu0 0
      %2033 = vmatpush1.bf16.msra.mxu0 %v1597
      %2034 = vmatprep.subr.bf16.mxu0 0
      %2035 = vmatpush1.bf16.msra.mxu0 %v1598
      %2036 = vmatprep.subr.bf16.mxu0 0
      %2037 = vmatpush1.bf16.msra.mxu0 %v1599
      %2038 = vmatprep.subr.bf16.mxu0 0
      %2039 = vmatpush1.bf16.msra.mxu0 %v1600
      %2040 = vmatprep.subr.bf16.mxu0 0
      %2041 = vmatpush1.bf16.msra.mxu0 %v1601
      %2042 = vmatprep.subr.bf16.mxu0 0
      %2043 = vmatpush1.bf16.msra.mxu0 %v1602
      %2044 = vmatprep.subr.bf16.mxu0 0
      %2045 = vmatpush1.bf16.msra.mxu0 %v1603
      %2046 = vmatprep.subr.bf16.mxu0 0
      %2047 = vmatpush1.bf16.msra.mxu0 %v1604
      %2048 = vmatprep.subr.bf16.mxu0 0
      %2049 = vmatpush1.bf16.msra.mxu0 %v1605
      %2050 = vmatprep.subr.bf16.mxu0 0
      %2051 = vmatpush1.bf16.msra.mxu0 %v1606
      %2052 = vmatprep.subr.bf16.mxu0 0
      %2053 = vmatpush1.bf16.msra.mxu0 %v1607
      %2054 = vmatprep.subr.bf16.mxu0 0
      %2055 = vmatpush1.bf16.msra.mxu0 %v1608
      %2056 = vmatprep.subr.bf16.mxu0 0
      %2057 = vmatpush1.bf16.msra.mxu0 %v1609
      %2058 = vmatprep.subr.bf16.mxu0 0
      %2059 = vmatpush1.bf16.msra.mxu0 %v1610
      %2060 = vmatprep.subr.bf16.mxu0 0
      %2061 = vmatpush1.bf16.msra.mxu0 %v1611
      %2062 = vmatprep.mubr.bf16.mxu0 %v993
      %2063 = vmatmul.mubr.bf16.gmra.mrb[0].mxu0 %v992
      %v2064 = vpop.f32.mrb[0].mxu0
      %v2065 = vadd.f32 %v1904, %v2064
      %v2066 = vpop.f32.mrb[0].mxu0
      %v2067 = vpop.f32.mrb[0].mxu0
      %v2068 = vadd.f32 %v1907, %v2067
      %v2069 = vpop.f32.mrb[0].mxu0
      %2070 = vmatprep.mubr.bf16.mxu0 %v1002
      %2071 = vmatmul.mubr.bf16.gmra.mrb[0].mxu0 %v1001
      %v2072 = vpop.f32.mrb[0].mxu0
      %v2073 = vadd.f32 %v1912, %v2072
      %v2074 = vpop.f32.mrb[0].mxu0
      %v2075 = vpop.f32.mrb[0].mxu0
      %v2076 = vadd.f32 %v1915, %v2075
      %v2077 = vpop.f32.mrb[0].mxu0
      %2078 = vmatprep.mubr.bf16.mxu0 %v1011
      %2079 = vmatmul.mubr.bf16.gmra.mrb[0].mxu0 %v1010
      %v2080 = vpop.f32.mrb[0].mxu0
      %v2081 = vadd.f32 %v1920, %v2080
      %v2082 = vpop.f32.mrb[0].mxu0
      %v2083 = vpop.f32.mrb[0].mxu0
      %v2084 = vadd.f32 %v1923, %v2083
      %v2085 = vpop.f32.mrb[0].mxu0
      %2086 = vmatprep.mubr.bf16.mxu0 %v1020
      %2087 = vmatmul.mubr.bf16.gmra.mrb[0].mxu0 %v1019
      %v2088 = vpop.f32.mrb[0].mxu0
      %v2089 = vadd.f32 %v1928, %v2088
      %v2090 = vpop.f32.mrb[0].mxu0
      %v2091 = vpop.f32.mrb[0].mxu0
      %v2092 = vadd.f32 %v1931, %v2091
      %v2093 = vpop.f32.mrb[0].mxu0
      %2094 = vmatprep.mubr.bf16.mxu0 %v1029
      %2095 = vmatmul.mubr.bf16.gmra.mrb[0].mxu0 %v1028
      %v2096 = vpop.f32.mrb[0].mxu0
      %v2097 = vadd.f32 %v1936, %v2096
      %v2098 = vpop.f32.mrb[0].mxu0
      %v2099 = vpop.f32.mrb[0].mxu0
      %v2100 = vadd.f32 %v1939, %v2099
      %v2101 = vpop.f32.mrb[0].mxu0
      %2102 = vmatprep.mubr.bf16.mxu0 %v1038
      %2103 = vmatmul.mubr.bf16.gmra.mrb[0].mxu0 %v1037
      %v2104 = vpop.f32.mrb[0].mxu0
      %v2105 = vadd.f32 %v1944, %v2104
      %v2106 = vpop.f32.mrb[0].mxu0
      %v2107 = vpop.f32.mrb[0].mxu0
      %v2108 = vadd.f32 %v1947, %v2107
      %v2109 = vpop.f32.mrb[0].mxu0
      %2110 = vmatprep.mubr.bf16.mxu0 %v1047
      %2111 = vmatmul.mubr.bf16.gmra.mrb[0].mxu0 %v1046
      %v2112 = vpop.f32.mrb[0].mxu0
      %v2113 = vadd.f32 %v1952, %v2112
      %v2114 = vpop.f32.mrb[0].mxu0
      %v2115 = vpop.f32.mrb[0].mxu0
      %v2116 = vadd.f32 %v1955, %v2115
      %v2117 = vpop.f32.mrb[0].mxu0
      %2118 = vmatprep.mubr.bf16.mxu0 %v1056
      %2119 = vmatmul.mubr.bf16.gmra.mrb[0].mxu0 %v1055
      %v2120 = vpop.f32.mrb[0].mxu0
      %v2121 = vadd.f32 %v1960, %v2120
      %v2122 = vpop.f32.mrb[0].mxu0
      %v2123 = vpop.f32.mrb[0].mxu0
      %v2124 = vadd.f32 %v1963, %v2123
      %v2125 = vpop.f32.mrb[0].mxu0
      %2126 = vmatprep.mubr.bf16.mxu0 %v1065
      %2127 = vmatmul.mubr.bf16.gmra.mrb[0].mxu0 %v1064
      %v2128 = vpop.f32.mrb[0].mxu0
      %v2129 = vadd.f32 %v1968, %v2128
      %v2130 = vpop.f32.mrb[0].mxu0
      %v2131 = vpop.f32.mrb[0].mxu0
      %v2132 = vadd.f32 %v1971, %v2131
      %v2133 = vpop.f32.mrb[0].mxu0
      %2134 = vmatprep.mubr.bf16.mxu0 %v1074
      %2135 = vmatmul.mubr.bf16.gmra.mrb[0].mxu0 %v1073
      %v2136 = vpop.f32.mrb[0].mxu0
      %v2137 = vadd.f32 %v1976, %v2136
      %v2138 = vpop.f32.mrb[0].mxu0
      %v2139 = vpop.f32.mrb[0].mxu0
      %v2140 = vadd.f32 %v1979, %v2139
      %v2141 = vpop.f32.mrb[0].mxu0
      %2142 = vmatprep.mubr.bf16.mxu0 %v1083
      %2143 = vmatmul.mubr.bf16.gmra.mrb[0].mxu0 %v1082
      %v2144 = vpop.f32.mrb[0].mxu0
      %v2145 = vadd.f32 %v1984, %v2144
      %v2146 = vpop.f32.mrb[0].mxu0
      %v2147 = vpop.f32.mrb[0].mxu0
      %v2148 = vadd.f32 %v1987, %v2147
      %v2149 = vpop.f32.mrb[0].mxu0
      %2150 = vmatprep.mubr.bf16.mxu0 %v1092
      %2151 = vmatmul.mubr.bf16.gmra.mrb[0].mxu0 %v1091
      %v2152 = vpop.f32.mrb[0].mxu0
      %v2153 = vadd.f32 %v1992, %v2152
      %v2154 = vpop.f32.mrb[0].mxu0
      %v2155 = vpop.f32.mrb[0].mxu0
      %v2156 = vadd.f32 %v1995, %v2155
      %v2157 = vpop.f32.mrb[0].mxu0
      %2158 = vmatprep.mubr.bf16.mxu0 %v1101
      %2159 = vmatmul.mubr.bf16.gmra.mrb[0].mxu0 %v1100
      %v2160 = vpop.f32.mrb[0].mxu0
      %v2161 = vadd.f32 %v2000, %v2160
      %v2162 = vpop.f32.mrb[0].mxu0
      %v2163 = vpop.f32.mrb[0].mxu0
      %v2164 = vadd.f32 %v2003, %v2163
      %v2165 = vpop.f32.mrb[0].mxu0
      %2166 = vmatprep.mubr.bf16.mxu0 %v1110
      %2167 = vmatmul.mubr.bf16.gmra.mrb[0].mxu0 %v1109
      %v2168 = vpop.f32.mrb[0].mxu0
      %v2169 = vadd.f32 %v2008, %v2168
      %v2170 = vpop.f32.mrb[0].mxu0
      %v2171 = vpop.f32.mrb[0].mxu0
      %v2172 = vadd.f32 %v2011, %v2171
      %v2173 = vpop.f32.mrb[0].mxu0
      %2174 = vmatprep.mubr.bf16.mxu0 %v1119
      %2175 = vmatmul.mubr.bf16.gmra.mrb[0].mxu0 %v1118
      %v2176 = vpop.f32.mrb[0].mxu0
      %v2177 = vadd.f32 %v2016, %v2176
      %v2178 = vpop.f32.mrb[0].mxu0
      %v2179 = vpop.f32.mrb[0].mxu0
      %v2180 = vadd.f32 %v2019, %v2179
      %v2181 = vpop.f32.mrb[0].mxu0
      %2182 = vmatprep.mubr.bf16.mxu0 %v1128
      %2183 = vmatmul.mubr.bf16.gmra.mrb[0].mxu0 %v1127
      %v2184 = vpop.f32.mrb[0].mxu0
      %v2185 = vadd.f32 %v2024, %v2184
      %v2186 = vpop.f32.mrb[0].mxu0
      %v2187 = vpop.f32.mrb[0].mxu0
      %v2188 = vadd.f32 %v2027, %v2187
      %v2189 = vpop.f32.mrb[0].mxu0
      %2190 = vdwg.mxu0
      %2191 = vmatprep.subr.bf16.mxu0 0
      %2192 = vmatpush1.bf16.msra.mxu0 %v1612
      %2193 = vmatprep.subr.bf16.mxu0 0
      %2194 = vmatpush1.bf16.msra.mxu0 %v1613
      %2195 = vmatprep.subr.bf16.mxu0 0
      %2196 = vmatpush1.bf16.msra.mxu0 %v1614
      %2197 = vmatprep.subr.bf16.mxu0 0
      %2198 = vmatpush1.bf16.msra.mxu0 %v1615
      %2199 = vmatprep.subr.bf16.mxu0 0
      %2200 = vmatpush1.bf16.msra.mxu0 %v1616
      %2201 = vmatprep.subr.bf16.mxu0 0
      %2202 = vmatpush1.bf16.msra.mxu0 %v1617
      %2203 = vmatprep.subr.bf16.mxu0 0
      %2204 = vmatpush1.bf16.msra.mxu0 %v1618
      %2205 = vmatprep.subr.bf16.mxu0 0
      %2206 = vmatpush1.bf16.msra.mxu0 %v1619
      %2207 = vmatprep.subr.bf16.mxu0 0
      %2208 = vmatpush1.bf16.msra.mxu0 %v1620
      %2209 = vmatprep.subr.bf16.mxu0 0
      %2210 = vmatpush1.bf16.msra.mxu0 %v1621
      %2211 = vmatprep.subr.bf16.mxu0 0
      %2212 = vmatpush1.bf16.msra.mxu0 %v1622
      %2213 = vmatprep.subr.bf16.mxu0 0
      %2214 = vmatpush1.bf16.msra.mxu0 %v1623
      %2215 = vmatprep.subr.bf16.mxu0 0
      %2216 = vmatpush1.bf16.msra.mxu0 %v1624
      %2217 = vmatprep.subr.bf16.mxu0 0
      %2218 = vmatpush1.bf16.msra.mxu0 %v1625
      %2219 = vmatprep.subr.bf16.mxu0 0
      %2220 = vmatpush1.bf16.msra.mxu0 %v1626
      %2221 = vmatprep.subr.bf16.mxu0 0
      %2222 = vmatpush1.bf16.msra.mxu0 %v1627
      %2223 = vmatprep.mubr.bf16.mxu0 %v995
      %2224 = vmatmul.mubr.bf16.gmra.mrb[0].mxu0 %v994
      %v2225 = vpop.f32.mrb[0].mxu0
      %v2226 = vadd.f32 %v2065, %v2225
      %v2227 = vpop.f32.mrb[0].mxu0
      %v2228 = vpop.f32.mrb[0].mxu0
      %v2229 = vadd.f32 %v2068, %v2228
      %v2230 = vpop.f32.mrb[0].mxu0
      %2231 = vmatprep.mubr.bf16.mxu0 %v1004
      %2232 = vmatmul.mubr.bf16.gmra.mrb[0].mxu0 %v1003
      %v2233 = vpop.f32.mrb[0].mxu0
      %v2234 = vadd.f32 %v2073, %v2233
      %v2235 = vpop.f32.mrb[0].mxu0
      %v2236 = vpop.f32.mrb[0].mxu0
      %v2237 = vadd.f32 %v2076, %v2236
      %v2238 = vpop.f32.mrb[0].mxu0
      %2239 = vmatprep.mubr.bf16.mxu0 %v1013
      %2240 = vmatmul.mubr.bf16.gmra.mrb[0].mxu0 %v1012
      %v2241 = vpop.f32.mrb[0].mxu0
      %v2242 = vadd.f32 %v2081, %v2241
      %v2243 = vpop.f32.mrb[0].mxu0
      %v2244 = vpop.f32.mrb[0].mxu0
      %v2245 = vadd.f32 %v2084, %v2244
      %v2246 = vpop.f32.mrb[0].mxu0
      %2247 = vmatprep.mubr.bf16.mxu0 %v1022
      %2248 = vmatmul.mubr.bf16.gmra.mrb[0].mxu0 %v1021
      %v2249 = vpop.f32.mrb[0].mxu0
      %v2250 = vadd.f32 %v2089, %v2249
      %v2251 = vpop.f32.mrb[0].mxu0
      %v2252 = vpop.f32.mrb[0].mxu0
      %v2253 = vadd.f32 %v2092, %v2252
      %v2254 = vpop.f32.mrb[0].mxu0
      %2255 = vmatprep.mubr.bf16.mxu0 %v1031
      %2256 = vmatmul.mubr.bf16.gmra.mrb[0].mxu0 %v1030
      %v2257 = vpop.f32.mrb[0].mxu0
      %v2258 = vadd.f32 %v2097, %v2257
      %v2259 = vpop.f32.mrb[0].mxu0
      %v2260 = vpop.f32.mrb[0].mxu0
      %v2261 = vadd.f32 %v2100, %v2260
      %v2262 = vpop.f32.mrb[0].mxu0
      %2263 = vmatprep.mubr.bf16.mxu0 %v1040
      %2264 = vmatmul.mubr.bf16.gmra.mrb[0].mxu0 %v1039
      %v2265 = vpop.f32.mrb[0].mxu0
      %v2266 = vadd.f32 %v2105, %v2265
      %v2267 = vpop.f32.mrb[0].mxu0
      %v2268 = vpop.f32.mrb[0].mxu0
      %v2269 = vadd.f32 %v2108, %v2268
      %v2270 = vpop.f32.mrb[0].mxu0
      %2271 = vmatprep.mubr.bf16.mxu0 %v1049
      %2272 = vmatmul.mubr.bf16.gmra.mrb[0].mxu0 %v1048
      %v2273 = vpop.f32.mrb[0].mxu0
      %v2274 = vadd.f32 %v2113, %v2273
      %v2275 = vpop.f32.mrb[0].mxu0
      %v2276 = vpop.f32.mrb[0].mxu0
      %v2277 = vadd.f32 %v2116, %v2276
      %v2278 = vpop.f32.mrb[0].mxu0
      %2279 = vmatprep.mubr.bf16.mxu0 %v1058
      %2280 = vmatmul.mubr.bf16.gmra.mrb[0].mxu0 %v1057
      %v2281 = vpop.f32.mrb[0].mxu0
      %v2282 = vadd.f32 %v2121, %v2281
      %v2283 = vpop.f32.mrb[0].mxu0
      %v2284 = vpop.f32.mrb[0].mxu0
      %v2285 = vadd.f32 %v2124, %v2284
      %v2286 = vpop.f32.mrb[0].mxu0
      %2287 = vmatprep.mubr.bf16.mxu0 %v1067
      %2288 = vmatmul.mubr.bf16.gmra.mrb[0].mxu0 %v1066
      %v2289 = vpop.f32.mrb[0].mxu0
      %v2290 = vadd.f32 %v2129, %v2289
      %v2291 = vpop.f32.mrb[0].mxu0
      %v2292 = vpop.f32.mrb[0].mxu0
      %v2293 = vadd.f32 %v2132, %v2292
      %v2294 = vpop.f32.mrb[0].mxu0
      %2295 = vmatprep.mubr.bf16.mxu0 %v1076
      %2296 = vmatmul.mubr.bf16.gmra.mrb[0].mxu0 %v1075
      %v2297 = vpop.f32.mrb[0].mxu0
      %v2298 = vadd.f32 %v2137, %v2297
      %v2299 = vpop.f32.mrb[0].mxu0
      %v2300 = vpop.f32.mrb[0].mxu0
      %v2301 = vadd.f32 %v2140, %v2300
      %v2302 = vpop.f32.mrb[0].mxu0
      %2303 = vmatprep.mubr.bf16.mxu0 %v1085
      %2304 = vmatmul.mubr.bf16.gmra.mrb[0].mxu0 %v1084
      %v2305 = vpop.f32.mrb[0].mxu0
      %v2306 = vadd.f32 %v2145, %v2305
      %v2307 = vpop.f32.mrb[0].mxu0
      %v2308 = vpop.f32.mrb[0].mxu0
      %v2309 = vadd.f32 %v2148, %v2308
      %v2310 = vpop.f32.mrb[0].mxu0
      %2311 = vmatprep.mubr.bf16.mxu0 %v1094
      %2312 = vmatmul.mubr.bf16.gmra.mrb[0].mxu0 %v1093
      %v2313 = vpop.f32.mrb[0].mxu0
      %v2314 = vadd.f32 %v2153, %v2313
      %v2315 = vpop.f32.mrb[0].mxu0
      %v2316 = vpop.f32.mrb[0].mxu0
      %v2317 = vadd.f32 %v2156, %v2316
      %v2318 = vpop.f32.mrb[0].mxu0
      %2319 = vmatprep.mubr.bf16.mxu0 %v1103
      %2320 = vmatmul.mubr.bf16.gmra.mrb[0].mxu0 %v1102
      %v2321 = vpop.f32.mrb[0].mxu0
      %v2322 = vadd.f32 %v2161, %v2321
      %v2323 = vpop.f32.mrb[0].mxu0
      %v2324 = vpop.f32.mrb[0].mxu0
      %v2325 = vadd.f32 %v2164, %v2324
      %v2326 = vpop.f32.mrb[0].mxu0
      %2327 = vmatprep.mubr.bf16.mxu0 %v1112
      %2328 = vmatmul.mubr.bf16.gmra.mrb[0].mxu0 %v1111
      %v2329 = vpop.f32.mrb[0].mxu0
      %v2330 = vadd.f32 %v2169, %v2329
      %v2331 = vpop.f32.mrb[0].mxu0
      %v2332 = vpop.f32.mrb[0].mxu0
      %v2333 = vadd.f32 %v2172, %v2332
      %v2334 = vpop.f32.mrb[0].mxu0
      %2335 = vmatprep.mubr.bf16.mxu0 %v1121
      %2336 = vmatmul.mubr.bf16.gmra.mrb[0].mxu0 %v1120
      %v2337 = vpop.f32.mrb[0].mxu0
      %v2338 = vadd.f32 %v2177, %v2337
      %v2339 = vpop.f32.mrb[0].mxu0
      %v2340 = vpop.f32.mrb[0].mxu0
      %v2341 = vadd.f32 %v2180, %v2340
      %v2342 = vpop.f32.mrb[0].mxu0
      %2343 = vmatprep.mubr.bf16.mxu0 %v1130
      %2344 = vmatmul.mubr.bf16.gmra.mrb[0].mxu0 %v1129
      %v2345 = vpop.f32.mrb[0].mxu0
      %v2346 = vadd.f32 %v2185, %v2345
      %v2347 = vpop.f32.mrb[0].mxu0
      %v2348 = vpop.f32.mrb[0].mxu0
      %v2349 = vadd.f32 %v2188, %v2348
      %v2350 = vpop.f32.mrb[0].mxu0
      %2351 = vdwg.mxu0
      %2352 = vmatprep.subr.bf16.mxu0 0
      %2353 = vmatpush1.bf16.msra.mxu0 %v1628
      %2354 = vmatprep.subr.bf16.mxu0 0
      %2355 = vmatpush1.bf16.msra.mxu0 %v1629
      %2356 = vmatprep.subr.bf16.mxu0 0
      %2357 = vmatpush1.bf16.msra.mxu0 %v1630
      %2358 = vmatprep.subr.bf16.mxu0 0
      %2359 = vmatpush1.bf16.msra.mxu0 %v1631
      %2360 = vmatprep.subr.bf16.mxu0 0
      %2361 = vmatpush1.bf16.msra.mxu0 %v1632
      %2362 = vmatprep.subr.bf16.mxu0 0
      %2363 = vmatpush1.bf16.msra.mxu0 %v1633
      %2364 = vmatprep.subr.bf16.mxu0 0
      %2365 = vmatpush1.bf16.msra.mxu0 %v1634
      %2366 = vmatprep.subr.bf16.mxu0 0
      %2367 = vmatpush1.bf16.msra.mxu0 %v1635
      %2368 = vmatprep.subr.bf16.mxu0 0
      %2369 = vmatpush1.bf16.msra.mxu0 0
      %2370 = vmatprep.subr.bf16.mxu0 0
      %2371 = vmatpush1.bf16.msra.mxu0 0
      %2372 = vmatprep.subr.bf16.mxu0 0
      %2373 = vmatpush1.bf16.msra.mxu0 0
      %2374 = vmatprep.subr.bf16.mxu0 0
      %2375 = vmatpush1.bf16.msra.mxu0 0
      %2376 = vmatprep.subr.bf16.mxu0 0
      %2377 = vmatpush1.bf16.msra.mxu0 0
      %2378 = vmatprep.subr.bf16.mxu0 0
      %2379 = vmatpush1.bf16.msra.mxu0 0
      %2380 = vmatprep.subr.bf16.mxu0 0
      %2381 = vmatpush1.bf16.msra.mxu0 0
      %2382 = vmatprep.subr.bf16.mxu0 0
      %2383 = vmatpush1.bf16.msra.mxu0 0
      %2384 = vmatprep.mubr.bf16.mxu0 0
      %2385 = vmatmul.mubr.bf16.gmra.mrb[0].mxu0 %v996
      %v2386 = vpop.f32.mrb[0].mxu0
      %v2387 = vadd.f32 %v2226, %v2386
      %v2388 = vpop.f32.mrb[0].mxu0
      %v2389 = vpop.f32.mrb[0].mxu0
      %v2390 = vadd.f32 %v2229, %v2389
      %v2391 = vpop.f32.mrb[0].mxu0
      %2392 = vmatprep.mubr.bf16.mxu0 0
      %2393 = vmatmul.mubr.bf16.gmra.mrb[0].mxu0 %v1005
      %v2394 = vpop.f32.mrb[0].mxu0
      %v2395 = vadd.f32 %v2234, %v2394
      %v2396 = vpop.f32.mrb[0].mxu0
      %v2397 = vpop.f32.mrb[0].mxu0
      %v2398 = vadd.f32 %v2237, %v2397
      %v2399 = vpop.f32.mrb[0].mxu0
      %2400 = vmatprep.mubr.bf16.mxu0 0
      %2401 = vmatmul.mubr.bf16.gmra.mrb[0].mxu0 %v1014
      %v2402 = vpop.f32.mrb[0].mxu0
      %v2403 = vadd.f32 %v2242, %v2402
      %v2404 = vpop.f32.mrb[0].mxu0
      %v2405 = vpop.f32.mrb[0].mxu0
      %v2406 = vadd.f32 %v2245, %v2405
      %v2407 = vpop.f32.mrb[0].mxu0
      %2408 = vmatprep.mubr.bf16.mxu0 0
      %2409 = vmatmul.mubr.bf16.gmra.mrb[0].mxu0 %v1023
      %v2410 = vpop.f32.mrb[0].mxu0
      %v2411 = vadd.f32 %v2250, %v2410
      %v2412 = vpop.f32.mrb[0].mxu0
      %v2413 = vpop.f32.mrb[0].mxu0
      %v2414 = vadd.f32 %v2253, %v2413
      %v2415 = vpop.f32.mrb[0].mxu0
      %2416 = vmatprep.mubr.bf16.mxu0 0
      %2417 = vmatmul.mubr.bf16.gmra.mrb[0].mxu0 %v1032
      %v2418 = vpop.f32.mrb[0].mxu0
      %v2419 = vadd.f32 %v2258, %v2418
      %v2420 = vpop.f32.mrb[0].mxu0
      %v2421 = vpop.f32.mrb[0].mxu0
      %v2422 = vadd.f32 %v2261, %v2421
      %v2423 = vpop.f32.mrb[0].mxu0
      %2424 = vmatprep.mubr.bf16.mxu0 0
      %2425 = vmatmul.mubr.bf16.gmra.mrb[0].mxu0 %v1041
      %v2426 = vpop.f32.mrb[0].mxu0
      %v2427 = vadd.f32 %v2266, %v2426
      %v2428 = vpop.f32.mrb[0].mxu0
      %v2429 = vpop.f32.mrb[0].mxu0
      %v2430 = vadd.f32 %v2269, %v2429
      %v2431 = vpop.f32.mrb[0].mxu0
      %2432 = vmatprep.mubr.bf16.mxu0 0
      %2433 = vmatmul.mubr.bf16.gmra.mrb[0].mxu0 %v1050
      %v2434 = vpop.f32.mrb[0].mxu0
      %v2435 = vadd.f32 %v2274, %v2434
      %v2436 = vpop.f32.mrb[0].mxu0
      %v2437 = vpop.f32.mrb[0].mxu0
      %v2438 = vadd.f32 %v2277, %v2437
      %v2439 = vpop.f32.mrb[0].mxu0
      %2440 = vmatprep.mubr.bf16.mxu0 0
      %2441 = vmatmul.mubr.bf16.gmra.mrb[0].mxu0 %v1059
      %v2442 = vpop.f32.mrb[0].mxu0
      %v2443 = vadd.f32 %v2282, %v2442
      %v2444 = vpop.f32.mrb[0].mxu0
      %v2445 = vpop.f32.mrb[0].mxu0
      %v2446 = vadd.f32 %v2285, %v2445
      %v2447 = vpop.f32.mrb[0].mxu0
      %2448 = vmatprep.mubr.bf16.mxu0 0
      %2449 = vmatmul.mubr.bf16.gmra.mrb[0].mxu0 %v1068
      %v2450 = vpop.f32.mrb[0].mxu0
      %v2451 = vadd.f32 %v2290, %v2450
      %v2452 = vpop.f32.mrb[0].mxu0
      %v2453 = vpop.f32.mrb[0].mxu0
      %v2454 = vadd.f32 %v2293, %v2453
      %v2455 = vpop.f32.mrb[0].mxu0
      %2456 = vmatprep.mubr.bf16.mxu0 0
      %2457 = vmatmul.mubr.bf16.gmra.mrb[0].mxu0 %v1077
      %v2458 = vpop.f32.mrb[0].mxu0
      %v2459 = vadd.f32 %v2298, %v2458
      %v2460 = vpop.f32.mrb[0].mxu0
      %v2461 = vpop.f32.mrb[0].mxu0
      %v2462 = vadd.f32 %v2301, %v2461
      %v2463 = vpop.f32.mrb[0].mxu0
      %2464 = vmatprep.mubr.bf16.mxu0 0
      %2465 = vmatmul.mubr.bf16.gmra.mrb[0].mxu0 %v1086
      %v2466 = vpop.f32.mrb[0].mxu0
      %v2467 = vadd.f32 %v2306, %v2466
      %v2468 = vpop.f32.mrb[0].mxu0
      %v2469 = vpop.f32.mrb[0].mxu0
      %v2470 = vadd.f32 %v2309, %v2469
      %v2471 = vpop.f32.mrb[0].mxu0
      %2472 = vmatprep.mubr.bf16.mxu0 0
      %2473 = vmatmul.mubr.bf16.gmra.mrb[0].mxu0 %v1095
      %v2474 = vpop.f32.mrb[0].mxu0
      %v2475 = vadd.f32 %v2314, %v2474
      %v2476 = vpop.f32.mrb[0].mxu0
      %v2477 = vpop.f32.mrb[0].mxu0
      %v2478 = vadd.f32 %v2317, %v2477
      %v2479 = vpop.f32.mrb[0].mxu0
      %2480 = vmatprep.mubr.bf16.mxu0 0
      %2481 = vmatmul.mubr.bf16.gmra.mrb[0].mxu0 %v1104
      %v2482 = vpop.f32.mrb[0].mxu0
      %v2483 = vadd.f32 %v2322, %v2482
      %v2484 = vpop.f32.mrb[0].mxu0
      %v2485 = vpop.f32.mrb[0].mxu0
      %v2486 = vadd.f32 %v2325, %v2485
      %v2487 = vpop.f32.mrb[0].mxu0
      %2488 = vmatprep.mubr.bf16.mxu0 0
      %2489 = vmatmul.mubr.bf16.gmra.mrb[0].mxu0 %v1113
      %v2490 = vpop.f32.mrb[0].mxu0
      %v2491 = vadd.f32 %v2330, %v2490
      %v2492 = vpop.f32.mrb[0].mxu0
      %v2493 = vpop.f32.mrb[0].mxu0
      %v2494 = vadd.f32 %v2333, %v2493
      %v2495 = vpop.f32.mrb[0].mxu0
      %2496 = vmatprep.mubr.bf16.mxu0 0
      %2497 = vmatmul.mubr.bf16.gmra.mrb[0].mxu0 %v1122
      %v2498 = vpop.f32.mrb[0].mxu0
      %v2499 = vadd.f32 %v2338, %v2498
      %v2500 = vpop.f32.mrb[0].mxu0
      %v2501 = vpop.f32.mrb[0].mxu0
      %v2502 = vadd.f32 %v2341, %v2501
      %v2503 = vpop.f32.mrb[0].mxu0
      %2504 = vmatprep.mubr.bf16.mxu0 0
      %2505 = vmatmul.mubr.bf16.gmra.mrb[0].mxu0 %v1131
      %v2506 = vpop.f32.mrb[0].mxu0
      %v2507 = vadd.f32 %v2346, %v2506
      %v2508 = vpop.f32.mrb[0].mxu0
      %v2509 = vpop.f32.mrb[0].mxu0
      %v2510 = vadd.f32 %v2349, %v2509
      %v2511 = vpop.f32.mrb[0].mxu0
      %2512 = vdwg.mxu0
      %v2513 = vmax.f32 %v2387, 0.0
      %v2514 = vmax.f32 %v2390, 0.0
      %v2515 = vmax.f32 %v2395, 0.0
      %v2516 = vmax.f32 %v2398, 0.0
      %v2517 = vmax.f32 %v2403, 0.0
      %v2518 = vmax.f32 %v2406, 0.0
      %v2519 = vmax.f32 %v2411, 0.0
      %v2520 = vmax.f32 %v2414, 0.0
      %v2521 = vmax.f32 %v2419, 0.0
      %v2522 = vmax.f32 %v2422, 0.0
      %v2523 = vmax.f32 %v2427, 0.0
      %v2524 = vmax.f32 %v2430, 0.0
      %v2525 = vmax.f32 %v2435, 0.0
      %v2526 = vmax.f32 %v2438, 0.0
      %v2527 = vmax.f32 %v2443, 0.0
      %v2528 = vmax.f32 %v2446, 0.0
      %v2529 = vmax.f32 %v2451, 0.0
      %v2530 = vmax.f32 %v2454, 0.0
      %v2531 = vmax.f32 %v2459, 0.0
      %v2532 = vmax.f32 %v2462, 0.0
      %v2533 = vmax.f32 %v2467, 0.0
      %v2534 = vmax.f32 %v2470, 0.0
      %v2535 = vmax.f32 %v2475, 0.0
      %v2536 = vmax.f32 %v2478, 0.0
      %v2537 = vmax.f32 %v2483, 0.0
      %v2538 = vmax.f32 %v2486, 0.0
      %v2539 = vmax.f32 %v2491, 0.0
      %v2540 = vmax.f32 %v2494, 0.0
      %v2541 = vmax.f32 %v2499, 0.0
      %v2542 = vmax.f32 %v2502, 0.0
      %v2543 = vmax.f32 %v2507, 0.0
      %v2544 = vmax.f32 %v2510, 0.0
      %v2545 = vpack.c.bf16 %v2514, %v2513
      %v2546 = vpack.c.bf16 %v2516, %v2515
      %v2547 = vpack.c.bf16 %v2518, %v2517
      %v2548 = vpack.c.bf16 %v2520, %v2519
      %v2549 = vpack.c.bf16 %v2522, %v2521
      %v2550 = vpack.c.bf16 %v2524, %v2523
      %v2551 = vpack.c.bf16 %v2526, %v2525
      %v2552 = vpack.c.bf16 %v2528, %v2527
      %v2553 = vpack.c.bf16 %v2530, %v2529
      %v2554 = vpack.c.bf16 %v2532, %v2531
      %v2555 = vpack.c.bf16 %v2534, %v2533
      %v2556 = vpack.c.bf16 %v2536, %v2535
      %v2557 = vpack.c.bf16 %v2538, %v2537
      %v2558 = vpack.c.bf16 %v2540, %v2539
      %v2559 = vpack.c.bf16 %v2542, %v2541
      %v2560 = vpack.c.bf16 %v2544, %v2543
      %v2577 = vunpack.c.l.b16 %v2545
      %v2578 = vunpack.c.h.b16 %v2545
      %v2579 = vunpack.c.l.b16 %v2546
      %v2580 = vunpack.c.h.b16 %v2546
      %v2581 = vunpack.c.l.b16 %v2547
      %v2582 = vunpack.c.h.b16 %v2547
      %v2583 = vunpack.c.l.b16 %v2548
      %v2584 = vunpack.c.h.b16 %v2548
      %v2585 = vunpack.c.l.b16 %v2549
      %v2586 = vunpack.c.h.b16 %v2549
      %v2587 = vunpack.c.l.b16 %v2550
      %v2588 = vunpack.c.h.b16 %v2550
      %v2589 = vunpack.c.l.b16 %v2551
      %v2590 = vunpack.c.h.b16 %v2551
      %v2591 = vunpack.c.l.b16 %v2552
      %v2592 = vunpack.c.h.b16 %v2552
      %v2593 = vunpack.c.l.b16 %v2553
      %v2594 = vunpack.c.h.b16 %v2553
      %v2595 = vunpack.c.l.b16 %v2554
      %v2596 = vunpack.c.h.b16 %v2554
      %v2597 = vunpack.c.l.b16 %v2555
      %v2598 = vunpack.c.h.b16 %v2555
      %v2599 = vunpack.c.l.b16 %v2556
      %v2600 = vunpack.c.h.b16 %v2556
      %v2601 = vunpack.c.l.b16 %v2557
      %v2602 = vunpack.c.h.b16 %v2557
      %v2603 = vunpack.c.l.b16 %v2558
      %v2604 = vunpack.c.h.b16 %v2558
      %v2605 = vunpack.c.l.b16 %v2559
      %v2606 = vunpack.c.h.b16 %v2559
      %v2607 = vunpack.c.l.b16 %v2560
      %v2608 = vunpack.c.h.b16 %v2560
      %v2609 = vpack.c.b16 %v2577, %v2577
      %v2610 = vpack.c.b16 %v2578, %v2578
      %v2611 = vpack.c.b16 %v2579, %v2579
      %v2612 = vpack.c.b16 %v2580, %v2580
      %v2613 = vpack.c.b16 %v2581, %v2581
      %v2614 = vpack.c.b16 %v2582, %v2582
      %v2615 = vpack.c.b16 %v2583, %v2583
      %v2616 = vpack.c.b16 %v2584, %v2584
      %v2617 = vpack.c.b16 %v2585, %v2585
      %v2618 = vpack.c.b16 %v2586, %v2586
      %v2619 = vpack.c.b16 %v2587, %v2587
      %v2620 = vpack.c.b16 %v2588, %v2588
      %v2621 = vpack.c.b16 %v2589, %v2589
      %v2622 = vpack.c.b16 %v2590, %v2590
      %v2623 = vpack.c.b16 %v2591, %v2591
      %v2624 = vpack.c.b16 %v2592, %v2592
      %v2625 = vpack.c.b16 %v2593, %v2593
      %v2626 = vpack.c.b16 %v2594, %v2594
      %v2627 = vpack.c.b16 %v2595, %v2595
      %v2628 = vpack.c.b16 %v2596, %v2596
      %v2629 = vpack.c.b16 %v2597, %v2597
      %v2630 = vpack.c.b16 %v2598, %v2598
      %v2631 = vpack.c.b16 %v2599, %v2599
      %v2632 = vpack.c.b16 %v2600, %v2600
      %v2633 = vpack.c.b16 %v2601, %v2601
      %v2634 = vpack.c.b16 %v2602, %v2602
      %v2635 = vpack.c.b16 %v2603, %v2603
      %v2636 = vpack.c.b16 %v2604, %v2604
      %v2637 = vpack.c.b16 %v2605, %v2605
      %v2638 = vpack.c.b16 %v2606, %v2606
      %v2639 = vpack.c.b16 %v2607, %v2607
      %v2640 = vpack.c.b16 %v2608, %v2608
      %2673 = vst [vmem:[%s226] sm:$0xf] %v2609
      %2674 = vst [vmem:[%s226 + $0x4] sm:$0xf] %v2610
      %2675 = vst [vmem:[%s226 + $0x8] sm:$0xf] %v2611
      %2676 = vst [vmem:[%s226 + $0xc] sm:$0xf] %v2612
      %2677 = vst [vmem:[%s226 + $0x10] sm:$0xf] %v2613
      %2678 = vst [vmem:[%s226 + $0x14] sm:$0xf] %v2614
      %2679 = vst [vmem:[%s226 + $0x18] sm:$0xf] %v2615
      %2680 = vst [vmem:[%s226 + $0x1c] sm:$0xf] %v2616
      %2681 = vst [vmem:[%s226 + $0x20] sm:$0xf] %v2617
      %2682 = vst [vmem:[%s226 + $0x24] sm:$0xf] %v2618
      %2683 = vst [vmem:[%s226 + $0x28] sm:$0xf] %v2619
      %2684 = vst [vmem:[%s226 + $0x2c] sm:$0xf] %v2620
      %2685 = vst [vmem:[%s226 + $0x30] sm:$0xf] %v2621
      %2686 = vst [vmem:[%s226 + $0x34] sm:$0xf] %v2622
      %2687 = vst [vmem:[%s226 + $0x38] sm:$0xf] %v2623
      %2688 = vst [vmem:[%s226 + $0x3c] sm:$0xf] %v2624
      %2689 = vst [vmem:[%s226 + $0x40] sm:$0xf] %v2625
      %2690 = vst [vmem:[%s226 + $0x44] sm:$0xf] %v2626
      %2691 = vst [vmem:[%s226 + $0x48] sm:$0xf] %v2627
      %2692 = vst [vmem:[%s226 + $0x4c] sm:$0xf] %v2628
      %2693 = vst [vmem:[%s226 + $0x50] sm:$0xf] %v2629
      %2694 = vst [vmem:[%s226 + $0x54] sm:$0xf] %v2630
      %2695 = vst [vmem:[%s226 + $0x58] sm:$0xf] %v2631
      %2696 = vst [vmem:[%s226 + $0x5c] sm:$0xf] %v2632
      %2697 = vst [vmem:[%s226 + $0x60] sm:$0xf] %v2633
      %2698 = vst [vmem:[%s226 + $0x64] sm:$0xf] %v2634
      %2699 = vst [vmem:[%s226 + $0x68] sm:$0xf] %v2635
      %2700 = vst [vmem:[%s226 + $0x6c] sm:$0xf] %v2636
      %2701 = vst [vmem:[%s226 + $0x70] sm:$0xf] %v2637
      %2702 = vst [vmem:[%s226 + $0x74] sm:$0xf] %v2638
      %2703 = vst [vmem:[%s226 + $0x78] sm:$0xf] %v2639
      %2704 = vst [vmem:[%s226 + $0x7c] sm:$0xf] %v2640
      %s2705 = smul.u32 32, %s18
      %p2706 = scmp.lt.s32.totalorder %s2705, 63
      %s2707 = scalar_select %p2706, %s2705, 63
      %p2708 = scmp.lt.s32.totalorder %s19, 0
      %s2709 = scalar_select %p2708, %s19, 0
      %s2710 = sadd.s32 %s2709, %s2707
      %s2711 = smul.addr %s2710, 4
      %s2712 = scalar_lea.vmem %s3, %s2711
      // Predicated region
      $region33: #{net_forward.9} parent=31 // pred_check
        %p2713 = pneg %p124
      $region34: #{net_forward.9} parent=31 // pred_check_branch
        %2715 = sbr.rel (%p2713) target = $region36
      $region35: #{net_forward.9} parent=31 // pred_region
        %s2716 = smul.u32 32, %s18
      $region36: #{net_forward.9} parent=31 // pred_fallthru
        _
    $region32: #{net_forward.9} parent=5 // pred_fallthru
      _
    %p2717 = scmp.le.s32.totalorder 2, %s9
    // Predicated region
    $region37: #{net_forward.9} parent=5 // pred_check
      %p2718 = pneg %p2717
    $region38: #{net_forward.9} parent=5 // pred_check_branch
      %2720 = sbr.rel (%p2718) target = $region40
    $region39: #{net_forward.9} parent=5 // pred_region
      %s2721 = ssub.s32 %s9, 2
      // Predicated region
      $region41: #{net_forward.9} parent=39 // pred_check
        %p2722 = pneg %p130
      $region42: #{net_forward.9} parent=39 // pred_check_branch
        %2724 = sbr.rel (%p2722) target = $region44
      $region43: #{net_forward.9} parent=39 // pred_region
        %s2725 = smul.u32 32, %s20
        %p2726 = scmp.lt.s32.totalorder %s2725, 63
        %s2727 = scalar_select %p2726, %s2725, 63
        %p2728 = scmp.lt.s32.totalorder %s21, 0
        %s2729 = scalar_select %p2728, %s21, 0
        %s2730 = sadd.s32 %s2729, %s2727
        %s2731 = smul.addr %s2730, 4
        %s2732 = scalar_lea.vmem %s3, %s2731
      $region44: #{net_forward.9} parent=39 // pred_fallthru
        _
    $region40: #{net_forward.9} parent=5 // pred_fallthru
      _
  $region6: #{net_forward.9} parent=0 // loop_footer
    %s13 = sadd.s32 1, %s9
  $region7: #{net_forward.9} parent=0 // loop_footer_branch
    %8 = sbr.rel target = $region3
  $region8: #{net_forward.9} parent=0 // loop_exit
    _

// kernel: net_forward.10
$region0: #{net_forward.10}
  #allocation0 [shape = 'u32[]', space=smem, size = 0x4, offset = 0x4, fixed_abs, tag = 'smem constant byte address 0x4 - core index']
  #allocation1 [shape = 'u32[144,128]{1,0:T(1,128)}', space=vmem, size = 0x12000, scoped, tag = 'internal scratch']
  %s0 = inlined_call_operand.vmem [shape: bf16[12,768], index: 0, kind: input, shape index: {}]
  %s1 = inlined_call_operand.vmem [shape: bf16[12,768], index: 1, kind: input, shape index: {}]
  %s2 = inlined_call_operand.vmem [shape: bf16[12,768], index: 2, kind: input, shape index: {}]
  %s3 = inlined_call_operand.vmem [shape: bf16[12,768], index: 3, kind: input, shape index: {}]
  %s4 = inlined_call_operand.vmem [shape: bf16[12,768], index: 4, kind: output, shape index: {}]
  %s5 = sld [smem:[#allocation0]]
  $region26: #{net_forward.10} parent=0
    _
  %s7 = ssub.s32 1, %s5
  %s8 = scalar_select 0, %s7, %s5
  // Predicated region
  $region2: #{net_forward.10} parent=0 // pred_check
    _
  $region3: #{net_forward.10} parent=0 // pred_check_branch
    %10 = sbr.rel (0) target = $region5
  $region4: #{net_forward.10} parent=0 // pred_region
    _
  $region5: #{net_forward.10} parent=0 // pred_fallthru
    _
  // Predicated region
  $region6: #{net_forward.10} parent=0 // pred_check
    _
  $region7: #{net_forward.10} parent=0 // pred_check_branch
    %12 = sbr.rel (0) target = $region9
  $region8: #{net_forward.10} parent=0 // pred_region
    _
  $region9: #{net_forward.10} parent=0 // pred_fallthru
    _
  // Predicated region
  $region10: #{net_forward.10} parent=0 // pred_check
    _
  $region11: #{net_forward.10} parent=0 // pred_check_branch
    %14 = sbr.rel (0) target = $region13
  $region12: #{net_forward.10} parent=0 // pred_region
    _
  $region13: #{net_forward.10} parent=0 // pred_fallthru
    _
  // Predicated region
  $region14: #{net_forward.10} parent=0 // pred_check
    _
  $region15: #{net_forward.10} parent=0 // pred_check_branch
    %16 = sbr.rel (0) target = $region17
  $region16: #{net_forward.10} parent=0 // pred_region
    _
  $region17: #{net_forward.10} parent=0 // pred_fallthru
    _
  %v17 = vld [vmem:[%s0] sm:$0xff]
  %v18 = vld [vmem:[%s0 + $0x8] sm:$0xff]
  %v19 = vld [vmem:[%s0 + $0x10] sm:$0xff]
  %v20 = vld [vmem:[%s0 + $0x18] sm:$0x33]
  %v21 = vld [vmem:[%s0 + $0x20] sm:$0x33]
  %v22 = vld [vmem:[%s0 + $0x28] sm:$0x33]
  %v23 = vld [vmem:[%s1] sm:$0xff]
  %v24 = vld [vmem:[%s1 + $0x8] sm:$0xff]
  %v25 = vld [vmem:[%s1 + $0x10] sm:$0xff]
  %v26 = vld [vmem:[%s1 + $0x18] sm:$0x33]
  %v27 = vld [vmem:[%s1 + $0x20] sm:$0x33]
  %v28 = vld [vmem:[%s1 + $0x28] sm:$0x33]
  %v29 = vmax.bf16 %v17, %v23
  %v30 = vmax.bf16 %v18, %v24
  %v31 = vmax.bf16 %v19, %v25
  %v32 = vmax.bf16 %v20, %v26
  %v33 = vmax.bf16 %v21, %v27
  %v34 = vmax.bf16 %v22, %v28
  %v35 = vld [vmem:[%s2] sm:$0xff]
  %v36 = vld [vmem:[%s2 + $0x8] sm:$0xff]
  %v37 = vld [vmem:[%s2 + $0x10] sm:$0xff]
  %v38 = vld [vmem:[%s2 + $0x18] sm:$0x33]
  %v39 = vld [vmem:[%s2 + $0x20] sm:$0x33]
  %v40 = vld [vmem:[%s2 + $0x28] sm:$0x33]
  %v41 = vld [vmem:[%s3] sm:$0xff]
  %v42 = vld [vmem:[%s3 + $0x8] sm:$0xff]
  %v43 = vld [vmem:[%s3 + $0x10] sm:$0xff]
  %v44 = vld [vmem:[%s3 + $0x18] sm:$0x33]
  %v45 = vld [vmem:[%s3 + $0x20] sm:$0x33]
  %v46 = vld [vmem:[%s3 + $0x28] sm:$0x33]
  %v47 = vmax.bf16 %v35, %v41
  %v48 = vmax.bf16 %v36, %v42
  %v49 = vmax.bf16 %v37, %v43
  %v50 = vmax.bf16 %v38, %v44
  %v51 = vmax.bf16 %v39, %v45
  %v52 = vmax.bf16 %v40, %v46
  %v53 = vmax.bf16 %v29, %v47
  %v54 = vmax.bf16 %v30, %v48
  %v55 = vmax.bf16 %v31, %v49
  %v56 = vmax.bf16 %v32, %v50
  %v57 = vmax.bf16 %v33, %v51
  %v58 = vmax.bf16 %v34, %v52
  %59 = vst [vmem:[%s4] sm:$0xff] %v53
  %60 = vst [vmem:[%s4 + $0x8] sm:$0xff] %v54
  %61 = vst [vmem:[%s4 + $0x10] sm:$0xff] %v55
  %62 = vst [vmem:[%s4 + $0x18] sm:$0x33] %v56
  %63 = vst [vmem:[%s4 + $0x20] sm:$0x33] %v57
  %64 = vst [vmem:[%s4 + $0x28] sm:$0x33] %v58
  // Predicated region
  $region18: #{net_forward.10} parent=0 // pred_check
    _
  $region19: #{net_forward.10} parent=0 // pred_check_branch
    %66 = sbr.rel (0) target = $region21
  $region20: #{net_forward.10} parent=0 // pred_region
    _
  $region21: #{net_forward.10} parent=0 // pred_fallthru
    _
  // Predicated region
  $region22: #{net_forward.10} parent=0 // pred_check
    _
  $region23: #{net_forward.10} parent=0 // pred_check_branch
    %68 = sbr.rel (0) target = $region25
  $region24: #{net_forward.10} parent=0 // pred_region
    _
  $region25: #{net_forward.10} parent=0 // pred_fallthru
    _

// kernel: net_forward.12
$region0: #{net_forward.12}
  #allocation0 [shape = 'u32[]', space=smem, size = 0x4, offset = 0x4, fixed_abs, tag = 'smem constant byte address 0x4 - core index']
  #allocation1 [shape = 'u32[144,128]{1,0:T(1,128)}', space=vmem, size = 0x12000, scoped, tag = 'internal scratch']
  %s0 = inlined_call_operand.vmem [shape: bf16[4,512], index: 0, kind: input, shape index: {}]
  %s1 = inlined_call_operand.vmem [shape: bf16[4,512], index: 1, kind: input, shape index: {}]
  %s2 = inlined_call_operand.vmem [shape: bf16[4,512], index: 2, kind: input, shape index: {}]
  %s3 = inlined_call_operand.vmem [shape: bf16[4,512], index: 3, kind: input, shape index: {}]
  %s4 = inlined_call_operand.vmem [shape: bf16[4,512], index: 4, kind: output, shape index: {}]
  %s5 = sld [smem:[#allocation0]]
  $region26: #{net_forward.12} parent=0
    _
  %s7 = ssub.s32 1, %s5
  %s8 = scalar_select 0, %s7, %s5
  // Predicated region
  $region2: #{net_forward.12} parent=0 // pred_check
    _
  $region3: #{net_forward.12} parent=0 // pred_check_branch
    %10 = sbr.rel (0) target = $region5
  $region4: #{net_forward.12} parent=0 // pred_region
    _
  $region5: #{net_forward.12} parent=0 // pred_fallthru
    _
  // Predicated region
  $region6: #{net_forward.12} parent=0 // pred_check
    _
  $region7: #{net_forward.12} parent=0 // pred_check_branch
    %12 = sbr.rel (0) target = $region9
  $region8: #{net_forward.12} parent=0 // pred_region
    _
  $region9: #{net_forward.12} parent=0 // pred_fallthru
    _
  // Predicated region
  $region10: #{net_forward.12} parent=0 // pred_check
    _
  $region11: #{net_forward.12} parent=0 // pred_check_branch
    %14 = sbr.rel (0) target = $region13
  $region12: #{net_forward.12} parent=0 // pred_region
    _
  $region13: #{net_forward.12} parent=0 // pred_fallthru
    _
  // Predicated region
  $region14: #{net_forward.12} parent=0 // pred_check
    _
  $region15: #{net_forward.12} parent=0 // pred_check_branch
    %16 = sbr.rel (0) target = $region17
  $region16: #{net_forward.12} parent=0 // pred_region
    _
  $region17: #{net_forward.12} parent=0 // pred_fallthru
    _
  %v17 = vld [vmem:[%s0] sm:$0xff]
  %v18 = vld [vmem:[%s1] sm:$0xff]
  %v19 = vmax.bf16 %v17, %v18
  %v20 = vld [vmem:[%s2] sm:$0xff]
  %v21 = vld [vmem:[%s3] sm:$0xff]
  %v22 = vmax.bf16 %v20, %v21
  %v23 = vmax.bf16 %v19, %v22
  %24 = vst [vmem:[%s4] sm:$0xff] %v23
  // Predicated region
  $region18: #{net_forward.12} parent=0 // pred_check
    _
  $region19: #{net_forward.12} parent=0 // pred_check_branch
    %26 = sbr.rel (0) target = $region21
  $region20: #{net_forward.12} parent=0 // pred_region
    _
  $region21: #{net_forward.12} parent=0 // pred_fallthru
    _
  // Predicated region
  $region22: #{net_forward.12} parent=0 // pred_check
    _
  $region23: #{net_forward.12} parent=0 // pred_check_branch
    %28 = sbr.rel (0) target = $region25
  $region24: #{net_forward.12} parent=0 // pred_region
    _
  $region25: #{net_forward.12} parent=0 // pred_fallthru
    _

// kernel: net_forward.11
$region0: #{net_forward.11}
  #allocation0 [shape = 'u32[]', space=smem, size = 0x4, offset = 0x4, fixed_abs, tag = 'smem constant byte address 0x4 - core index']
  #allocation1 [shape = 'u32[144,128]{1,0:T(1,128)}', space=vmem, size = 0x12000, scoped, tag = 'internal scratch']
  %s0 = inlined_call_operand.vmem [shape: bf16[56,512], index: 0, kind: input, shape index: {}]
  %s1 = inlined_call_operand.vmem [shape: bf16[512,256], index: 1, kind: input, shape index: {}]
  %s2 = inlined_call_operand.vmem [shape: f32[1,256], index: 2, kind: input, shape index: {}]
  %s3 = inlined_call_operand.vmem [shape: bf16[56,256], index: 3, kind: output, shape index: {}]
  %s4 = sld [smem:[#allocation0]]
  $region22: #{net_forward.11} parent=0
    _
  %s6 = ssub.s32 1, %s4
  %s7 = scalar_select 0, %s6, %s4
  // Predicated region
  $region2: #{net_forward.11} parent=0 // pred_check
    _
  $region3: #{net_forward.11} parent=0 // pred_check_branch
    %9 = sbr.rel (0) target = $region5
  $region4: #{net_forward.11} parent=0 // pred_region
    _
  $region5: #{net_forward.11} parent=0 // pred_fallthru
    _
  // Predicated region
  $region6: #{net_forward.11} parent=0 // pred_check
    _
  $region7: #{net_forward.11} parent=0 // pred_check_branch
    %11 = sbr.rel (0) target = $region9
  $region8: #{net_forward.11} parent=0 // pred_region
    _
  $region9: #{net_forward.11} parent=0 // pred_fallthru
    _
  // Predicated region
  $region10: #{net_forward.11} parent=0 // pred_check
    _
  $region11: #{net_forward.11} parent=0 // pred_check_branch
    %13 = sbr.rel (0) target = $region13
  $region12: #{net_forward.11} parent=0 // pred_region
    _
  $region13: #{net_forward.11} parent=0 // pred_fallthru
    _
  %v14 = vld [vmem:[%s0] sm:$0xff]
  %v15 = vld [vmem:[%s0 + $0x8] sm:$0xff]
  %v16 = vld [vmem:[%s0 + $0x10] sm:$0xff]
  %v17 = vld [vmem:[%s0 + $0x18] sm:$0xff]
  %v18 = vld [vmem:[%s0 + $0x20] sm:$0xff]
  %v19 = vld [vmem:[%s0 + $0x28] sm:$0xff]
  %v20 = vld [vmem:[%s0 + $0x30] sm:$0xff]
  %v21 = vld [vmem:[%s0 + $0x38] sm:$0xff]
  %v22 = vld [vmem:[%s0 + $0x40] sm:$0xff]
  %v23 = vld [vmem:[%s0 + $0x48] sm:$0xff]
  %v24 = vld [vmem:[%s0 + $0x50] sm:$0xff]
  %v25 = vld [vmem:[%s0 + $0x58] sm:$0xff]
  %v26 = vld [vmem:[%s0 + $0x60] sm:$0xff]
  %v27 = vld [vmem:[%s0 + $0x68] sm:$0xff]
  %v28 = vld [vmem:[%s1] sm:$0xff]
  %v29 = vld [vmem:[%s1 + $0x8] sm:$0xff]
  %v30 = vld [vmem:[%s1 + $0x10] sm:$0xff]
  %v31 = vld [vmem:[%s1 + $0x18] sm:$0xff]
  %v32 = vld [vmem:[%s1 + $0x20] sm:$0xff]
  %v33 = vld [vmem:[%s1 + $0x28] sm:$0xff]
  %v34 = vld [vmem:[%s1 + $0x30] sm:$0xff]
  %v35 = vld [vmem:[%s1 + $0x38] sm:$0xff]
  %v36 = vld [vmem:[%s1 + $0x40] sm:$0xff]
  %v37 = vld [vmem:[%s1 + $0x48] sm:$0xff]
  %v38 = vld [vmem:[%s1 + $0x50] sm:$0xff]
  %v39 = vld [vmem:[%s1 + $0x58] sm:$0xff]
  %v40 = vld [vmem:[%s1 + $0x60] sm:$0xff]
  %v41 = vld [vmem:[%s1 + $0x68] sm:$0xff]
  %v42 = vld [vmem:[%s1 + $0x70] sm:$0xff]
  %v43 = vld [vmem:[%s1 + $0x78] sm:$0xff]
  %v44 = vld [vmem:[%s1 + $0x80] sm:$0xff]
  %v45 = vld [vmem:[%s1 + $0x88] sm:$0xff]
  %v46 = vld [vmem:[%s1 + $0x90] sm:$0xff]
  %v47 = vld [vmem:[%s1 + $0x98] sm:$0xff]
  %v48 = vld [vmem:[%s1 + $0xa0] sm:$0xff]
  %v49 = vld [vmem:[%s1 + $0xa8] sm:$0xff]
  %v50 = vld [vmem:[%s1 + $0xb0] sm:$0xff]
  %v51 = vld [vmem:[%s1 + $0xb8] sm:$0xff]
  %v52 = vld [vmem:[%s1 + $0xc0] sm:$0xff]
  %v53 = vld [vmem:[%s1 + $0xc8] sm:$0xff]
  %v54 = vld [vmem:[%s1 + $0xd0] sm:$0xff]
  %v55 = vld [vmem:[%s1 + $0xd8] sm:$0xff]
  %v56 = vld [vmem:[%s1 + $0xe0] sm:$0xff]
  %v57 = vld [vmem:[%s1 + $0xe8] sm:$0xff]
  %v58 = vld [vmem:[%s1 + $0xf0] sm:$0xff]
  %v59 = vld [vmem:[%s1 + $0xf8] sm:$0xff]
  %v60 = vld [vmem:[%s1 + $0x100] sm:$0xff]
  %v61 = vld [vmem:[%s1 + $0x108] sm:$0xff]
  %v62 = vld [vmem:[%s1 + $0x110] sm:$0xff]
  %v63 = vld [vmem:[%s1 + $0x118] sm:$0xff]
  %v64 = vld [vmem:[%s1 + $0x120] sm:$0xff]
  %v65 = vld [vmem:[%s1 + $0x128] sm:$0xff]
  %v66 = vld [vmem:[%s1 + $0x130] sm:$0xff]
  %v67 = vld [vmem:[%s1 + $0x138] sm:$0xff]
  %v68 = vld [vmem:[%s1 + $0x140] sm:$0xff]
  %v69 = vld [vmem:[%s1 + $0x148] sm:$0xff]
  %v70 = vld [vmem:[%s1 + $0x150] sm:$0xff]
  %v71 = vld [vmem:[%s1 + $0x158] sm:$0xff]
  %v72 = vld [vmem:[%s1 + $0x160] sm:$0xff]
  %v73 = vld [vmem:[%s1 + $0x168] sm:$0xff]
  %v74 = vld [vmem:[%s1 + $0x170] sm:$0xff]
  %v75 = vld [vmem:[%s1 + $0x178] sm:$0xff]
  %v76 = vld [vmem:[%s1 + $0x180] sm:$0xff]
  %v77 = vld [vmem:[%s1 + $0x188] sm:$0xff]
  %v78 = vld [vmem:[%s1 + $0x190] sm:$0xff]
  %v79 = vld [vmem:[%s1 + $0x198] sm:$0xff]
  %v80 = vld [vmem:[%s1 + $0x1a0] sm:$0xff]
  %v81 = vld [vmem:[%s1 + $0x1a8] sm:$0xff]
  %v82 = vld [vmem:[%s1 + $0x1b0] sm:$0xff]
  %v83 = vld [vmem:[%s1 + $0x1b8] sm:$0xff]
  %v84 = vld [vmem:[%s1 + $0x1c0] sm:$0xff]
  %v85 = vld [vmem:[%s1 + $0x1c8] sm:$0xff]
  %v86 = vld [vmem:[%s1 + $0x1d0] sm:$0xff]
  %v87 = vld [vmem:[%s1 + $0x1d8] sm:$0xff]
  %v88 = vld [vmem:[%s1 + $0x1e0] sm:$0xff]
  %v89 = vld [vmem:[%s1 + $0x1e8] sm:$0xff]
  %v90 = vld [vmem:[%s1 + $0x1f0] sm:$0xff]
  %v91 = vld [vmem:[%s1 + $0x1f8] sm:$0xff]
  %v92 = vld [vmem:[%s2] sm:$0x3]
  %v94 = vlaneseq
  %v95 = vshrl.u32 %v94, 7
  %v96 = vsub.s32 0, %v95
  %v97 = vrot.slane %v92, %v96
  %v98 = vlaneseq
  %v99 = vshrl.u32 %v98, 7
  %v100 = vsub.s32 1, %v99
  %v101 = vrot.slane %v92, %v100
  %v118 = vunpack.c.l.b16 %v14
  %v119 = vunpack.c.h.b16 %v14
  %v120 = vunpack.c.l.b16 %v15
  %v121 = vunpack.c.h.b16 %v15
  %v122 = vunpack.c.l.b16 %v16
  %v123 = vunpack.c.h.b16 %v16
  %v124 = vunpack.c.l.b16 %v17
  %v125 = vunpack.c.h.b16 %v17
  %v126 = vunpack.c.l.b16 %v18
  %v127 = vunpack.c.h.b16 %v18
  %v128 = vunpack.c.l.b16 %v19
  %v129 = vunpack.c.h.b16 %v19
  %v130 = vunpack.c.l.b16 %v20
  %v131 = vunpack.c.h.b16 %v20
  %v132 = vunpack.c.l.b16 %v21
  %v133 = vunpack.c.h.b16 %v21
  %v134 = vunpack.c.l.b16 %v22
  %v135 = vunpack.c.h.b16 %v22
  %v136 = vunpack.c.l.b16 %v23
  %v137 = vunpack.c.h.b16 %v23
  %v138 = vunpack.c.l.b16 %v24
  %v139 = vunpack.c.h.b16 %v24
  %v140 = vunpack.c.l.b16 %v25
  %v141 = vunpack.c.h.b16 %v25
  %v142 = vunpack.c.l.b16 %v26
  %v143 = vunpack.c.h.b16 %v26
  %v144 = vunpack.c.l.b16 %v27
  %v145 = vunpack.c.h.b16 %v27
  %v146 = vpack.c.b16 %v122, %v118
  %v147 = vpack.c.b16 %v123, %v119
  %v148 = vpack.c.b16 %v124, %v120
  %v149 = vpack.c.b16 %v125, %v121
  %v150 = vpack.c.b16 %v130, %v126
  %v151 = vpack.c.b16 %v131, %v127
  %v152 = vpack.c.b16 %v132, %v128
  %v153 = vpack.c.b16 %v133, %v129
  %v154 = vpack.c.b16 %v138, %v134
  %v155 = vpack.c.b16 %v139, %v135
  %v156 = vpack.c.b16 %v140, %v136
  %v157 = vpack.c.b16 %v141, %v137
  %v158 = vpack.c.b16 %v142, %v142
  %v159 = vpack.c.b16 %v143, %v143
  %v160 = vpack.c.b16 %v144, %v144
  %v161 = vpack.c.b16 %v145, %v145
  %v242 = vunpack.c.l.b16 %v28
  %v243 = vunpack.c.h.b16 %v28
  %v244 = vunpack.c.l.b16 %v29
  %v245 = vunpack.c.h.b16 %v29
  %v246 = vunpack.c.l.b16 %v30
  %v247 = vunpack.c.h.b16 %v30
  %v248 = vunpack.c.l.b16 %v31
  %v249 = vunpack.c.h.b16 %v31
  %v250 = vunpack.c.l.b16 %v32
  %v251 = vunpack.c.h.b16 %v32
  %v252 = vunpack.c.l.b16 %v33
  %v253 = vunpack.c.h.b16 %v33
  %v254 = vunpack.c.l.b16 %v34
  %v255 = vunpack.c.h.b16 %v34
  %v256 = vunpack.c.l.b16 %v35
  %v257 = vunpack.c.h.b16 %v35
  %v258 = vunpack.c.l.b16 %v36
  %v259 = vunpack.c.h.b16 %v36
  %v260 = vunpack.c.l.b16 %v37
  %v261 = vunpack.c.h.b16 %v37
  %v262 = vunpack.c.l.b16 %v38
  %v263 = vunpack.c.h.b16 %v38
  %v264 = vunpack.c.l.b16 %v39
  %v265 = vunpack.c.h.b16 %v39
  %v266 = vunpack.c.l.b16 %v40
  %v267 = vunpack.c.h.b16 %v40
  %v268 = vunpack.c.l.b16 %v41
  %v269 = vunpack.c.h.b16 %v41
  %v270 = vunpack.c.l.b16 %v42
  %v271 = vunpack.c.h.b16 %v42
  %v272 = vunpack.c.l.b16 %v43
  %v273 = vunpack.c.h.b16 %v43
  %v274 = vunpack.c.l.b16 %v44
  %v275 = vunpack.c.h.b16 %v44
  %v276 = vunpack.c.l.b16 %v45
  %v277 = vunpack.c.h.b16 %v45
  %v278 = vunpack.c.l.b16 %v46
  %v279 = vunpack.c.h.b16 %v46
  %v280 = vunpack.c.l.b16 %v47
  %v281 = vunpack.c.h.b16 %v47
  %v282 = vunpack.c.l.b16 %v48
  %v283 = vunpack.c.h.b16 %v48
  %v284 = vunpack.c.l.b16 %v49
  %v285 = vunpack.c.h.b16 %v49
  %v286 = vunpack.c.l.b16 %v50
  %v287 = vunpack.c.h.b16 %v50
  %v288 = vunpack.c.l.b16 %v51
  %v289 = vunpack.c.h.b16 %v51
  %v290 = vunpack.c.l.b16 %v52
  %v291 = vunpack.c.h.b16 %v52
  %v292 = vunpack.c.l.b16 %v53
  %v293 = vunpack.c.h.b16 %v53
  %v294 = vunpack.c.l.b16 %v54
  %v295 = vunpack.c.h.b16 %v54
  %v296 = vunpack.c.l.b16 %v55
  %v297 = vunpack.c.h.b16 %v55
  %v298 = vunpack.c.l.b16 %v56
  %v299 = vunpack.c.h.b16 %v56
  %v300 = vunpack.c.l.b16 %v57
  %v301 = vunpack.c.h.b16 %v57
  %v302 = vunpack.c.l.b16 %v58
  %v303 = vunpack.c.h.b16 %v58
  %v304 = vunpack.c.l.b16 %v59
  %v305 = vunpack.c.h.b16 %v59
  %v306 = vunpack.c.l.b16 %v60
  %v307 = vunpack.c.h.b16 %v60
  %v308 = vunpack.c.l.b16 %v61
  %v309 = vunpack.c.h.b16 %v61
  %v310 = vunpack.c.l.b16 %v62
  %v311 = vunpack.c.h.b16 %v62
  %v312 = vunpack.c.l.b16 %v63
  %v313 = vunpack.c.h.b16 %v63
  %v314 = vunpack.c.l.b16 %v64
  %v315 = vunpack.c.h.b16 %v64
  %v316 = vunpack.c.l.b16 %v65
  %v317 = vunpack.c.h.b16 %v65
  %v318 = vunpack.c.l.b16 %v66
  %v319 = vunpack.c.h.b16 %v66
  %v320 = vunpack.c.l.b16 %v67
  %v321 = vunpack.c.h.b16 %v67
  %v322 = vunpack.c.l.b16 %v68
  %v323 = vunpack.c.h.b16 %v68
  %v324 = vunpack.c.l.b16 %v69
  %v325 = vunpack.c.h.b16 %v69
  %v326 = vunpack.c.l.b16 %v70
  %v327 = vunpack.c.h.b16 %v70
  %v328 = vunpack.c.l.b16 %v71
  %v329 = vunpack.c.h.b16 %v71
  %v330 = vunpack.c.l.b16 %v72
  %v331 = vunpack.c.h.b16 %v72
  %v332 = vunpack.c.l.b16 %v73
  %v333 = vunpack.c.h.b16 %v73
  %v334 = vunpack.c.l.b16 %v74
  %v335 = vunpack.c.h.b16 %v74
  %v336 = vunpack.c.l.b16 %v75
  %v337 = vunpack.c.h.b16 %v75
  %v338 = vunpack.c.l.b16 %v76
  %v339 = vunpack.c.h.b16 %v76
  %v340 = vunpack.c.l.b16 %v77
  %v341 = vunpack.c.h.b16 %v77
  %v342 = vunpack.c.l.b16 %v78
  %v343 = vunpack.c.h.b16 %v78
  %v344 = vunpack.c.l.b16 %v79
  %v345 = vunpack.c.h.b16 %v79
  %v346 = vunpack.c.l.b16 %v80
  %v347 = vunpack.c.h.b16 %v80
  %v348 = vunpack.c.l.b16 %v81
  %v349 = vunpack.c.h.b16 %v81
  %v350 = vunpack.c.l.b16 %v82
  %v351 = vunpack.c.h.b16 %v82
  %v352 = vunpack.c.l.b16 %v83
  %v353 = vunpack.c.h.b16 %v83
  %v354 = vunpack.c.l.b16 %v84
  %v355 = vunpack.c.h.b16 %v84
  %v356 = vunpack.c.l.b16 %v85
  %v357 = vunpack.c.h.b16 %v85
  %v358 = vunpack.c.l.b16 %v86
  %v359 = vunpack.c.h.b16 %v86
  %v360 = vunpack.c.l.b16 %v87
  %v361 = vunpack.c.h.b16 %v87
  %v362 = vunpack.c.l.b16 %v88
  %v363 = vunpack.c.h.b16 %v88
  %v364 = vunpack.c.l.b16 %v89
  %v365 = vunpack.c.h.b16 %v89
  %v366 = vunpack.c.l.b16 %v90
  %v367 = vunpack.c.h.b16 %v90
  %v368 = vunpack.c.l.b16 %v91
  %v369 = vunpack.c.h.b16 %v91
  %v370 = vpack.c.b16 %v244, %v242
  %v371 = vpack.c.b16 %v245, %v243
  %v372 = vpack.c.b16 %v248, %v246
  %v373 = vpack.c.b16 %v249, %v247
  %v374 = vpack.c.b16 %v252, %v250
  %v375 = vpack.c.b16 %v253, %v251
  %v376 = vpack.c.b16 %v256, %v254
  %v377 = vpack.c.b16 %v257, %v255
  %v378 = vpack.c.b16 %v260, %v258
  %v379 = vpack.c.b16 %v261, %v259
  %v380 = vpack.c.b16 %v264, %v262
  %v381 = vpack.c.b16 %v265, %v263
  %v382 = vpack.c.b16 %v268, %v266
  %v383 = vpack.c.b16 %v269, %v267
  %v384 = vpack.c.b16 %v272, %v270
  %v385 = vpack.c.b16 %v273, %v271
  %v386 = vpack.c.b16 %v276, %v274
  %v387 = vpack.c.b16 %v277, %v275
  %v388 = vpack.c.b16 %v280, %v278
  %v389 = vpack.c.b16 %v281, %v279
  %v390 = vpack.c.b16 %v284, %v282
  %v391 = vpack.c.b16 %v285, %v283
  %v392 = vpack.c.b16 %v288, %v286
  %v393 = vpack.c.b16 %v289, %v287
  %v394 = vpack.c.b16 %v292, %v290
  %v395 = vpack.c.b16 %v293, %v291
  %v396 = vpack.c.b16 %v296, %v294
  %v397 = vpack.c.b16 %v297, %v295
  %v398 = vpack.c.b16 %v300, %v298
  %v399 = vpack.c.b16 %v301, %v299
  %v400 = vpack.c.b16 %v304, %v302
  %v401 = vpack.c.b16 %v305, %v303
  %v402 = vpack.c.b16 %v308, %v306
  %v403 = vpack.c.b16 %v309, %v307
  %v404 = vpack.c.b16 %v312, %v310
  %v405 = vpack.c.b16 %v313, %v311
  %v406 = vpack.c.b16 %v316, %v314
  %v407 = vpack.c.b16 %v317, %v315
  %v408 = vpack.c.b16 %v320, %v318
  %v409 = vpack.c.b16 %v321, %v319
  %v410 = vpack.c.b16 %v324, %v322
  %v411 = vpack.c.b16 %v325, %v323
  %v412 = vpack.c.b16 %v328, %v326
  %v413 = vpack.c.b16 %v329, %v327
  %v414 = vpack.c.b16 %v332, %v330
  %v415 = vpack.c.b16 %v333, %v331
  %v416 = vpack.c.b16 %v336, %v334
  %v417 = vpack.c.b16 %v337, %v335
  %v418 = vpack.c.b16 %v340, %v338
  %v419 = vpack.c.b16 %v341, %v339
  %v420 = vpack.c.b16 %v344, %v342
  %v421 = vpack.c.b16 %v345, %v343
  %v422 = vpack.c.b16 %v348, %v346
  %v423 = vpack.c.b16 %v349, %v347
  %v424 = vpack.c.b16 %v352, %v350
  %v425 = vpack.c.b16 %v353, %v351
  %v426 = vpack.c.b16 %v356, %v354
  %v427 = vpack.c.b16 %v357, %v355
  %v428 = vpack.c.b16 %v360, %v358
  %v429 = vpack.c.b16 %v361, %v359
  %v430 = vpack.c.b16 %v364, %v362
  %v431 = vpack.c.b16 %v365, %v363
  %v432 = vpack.c.b16 %v368, %v366
  %v433 = vpack.c.b16 %v369, %v367
  %498 = vmatprep.subr.bf16.mxu0 %v371
  %499 = vmatpush1.bf16.msra.mxu0 %v370
  %500 = vmatprep.subr.bf16.mxu0 %v373
  %501 = vmatpush1.bf16.msra.mxu0 %v372
  %502 = vmatprep.subr.bf16.mxu0 %v375
  %503 = vmatpush1.bf16.msra.mxu0 %v374
  %504 = vmatprep.subr.bf16.mxu0 %v377
  %505 = vmatpush1.bf16.msra.mxu0 %v376
  %506 = vmatprep.subr.bf16.mxu0 %v379
  %507 = vmatpush1.bf16.msra.mxu0 %v378
  %508 = vmatprep.subr.bf16.mxu0 %v381
  %509 = vmatpush1.bf16.msra.mxu0 %v380
  %510 = vmatprep.subr.bf16.mxu0 %v383
  %511 = vmatpush1.bf16.msra.mxu0 %v382
  %512 = vmatprep.subr.bf16.mxu0 %v385
  %513 = vmatpush1.bf16.msra.mxu0 %v384
  %514 = vmatprep.subr.bf16.mxu0 %v387
  %515 = vmatpush1.bf16.msra.mxu0 %v386
  %516 = vmatprep.subr.bf16.mxu0 %v389
  %517 = vmatpush1.bf16.msra.mxu0 %v388
  %518 = vmatprep.subr.bf16.mxu0 %v391
  %519 = vmatpush1.bf16.msra.mxu0 %v390
  %520 = vmatprep.subr.bf16.mxu0 %v393
  %521 = vmatpush1.bf16.msra.mxu0 %v392
  %522 = vmatprep.subr.bf16.mxu0 %v395
  %523 = vmatpush1.bf16.msra.mxu0 %v394
  %524 = vmatprep.subr.bf16.mxu0 %v397
  %525 = vmatpush1.bf16.msra.mxu0 %v396
  %526 = vmatprep.subr.bf16.mxu0 %v399
  %527 = vmatpush1.bf16.msra.mxu0 %v398
  %528 = vmatprep.subr.bf16.mxu0 %v401
  %529 = vmatpush1.bf16.msra.mxu0 %v400
  %530 = vmatprep.mubr.bf16.mxu0 %v147
  %531 = vmatmul.mubr.bf16.gmra.mrb[0].mxu0 %v146
  %v532 = vpop.f32.mrb[0].mxu0
  %v533 = vadd.f32 %v97, %v532
  %v534 = vpop.f32.mrb[0].mxu0
  %v535 = vadd.f32 %v101, %v534
  %v536 = vpop.f32.mrb[0].mxu0
  %v537 = vadd.f32 %v97, %v536
  %v538 = vpop.f32.mrb[0].mxu0
  %v539 = vadd.f32 %v101, %v538
  %540 = vmatprep.mubr.bf16.mxu0 %v151
  %541 = vmatmul.mubr.bf16.gmra.mrb[0].mxu0 %v150
  %v542 = vpop.f32.mrb[0].mxu0
  %v543 = vadd.f32 %v97, %v542
  %v544 = vpop.f32.mrb[0].mxu0
  %v545 = vadd.f32 %v101, %v544
  %v546 = vpop.f32.mrb[0].mxu0
  %v547 = vadd.f32 %v97, %v546
  %v548 = vpop.f32.mrb[0].mxu0
  %v549 = vadd.f32 %v101, %v548
  %550 = vmatprep.mubr.bf16.mxu0 %v155
  %551 = vmatmul.mubr.bf16.gmra.mrb[0].mxu0 %v154
  %v552 = vpop.f32.mrb[0].mxu0
  %v553 = vadd.f32 %v97, %v552
  %v554 = vpop.f32.mrb[0].mxu0
  %v555 = vadd.f32 %v101, %v554
  %v556 = vpop.f32.mrb[0].mxu0
  %v557 = vadd.f32 %v97, %v556
  %v558 = vpop.f32.mrb[0].mxu0
  %v559 = vadd.f32 %v101, %v558
  %560 = vmatprep.mubr.bf16.mxu0 %v159
  %561 = vmatmul.mubr.bf16.gmra.mrb[0].mxu0 %v158
  %v562 = vpop.f32.mrb[0].mxu0
  %v563 = vadd.f32 %v97, %v562
  %v564 = vpop.f32.mrb[0].mxu0
  %v565 = vadd.f32 %v101, %v564
  %v566 = vpop.f32.mrb[0].mxu0
  %v567 = vpop.f32.mrb[0].mxu0
  %568 = vdwg.mxu0
  %569 = vmatprep.subr.bf16.mxu0 %v403
  %570 = vmatpush1.bf16.msra.mxu0 %v402
  %571 = vmatprep.subr.bf16.mxu0 %v405
  %572 = vmatpush1.bf16.msra.mxu0 %v404
  %573 = vmatprep.subr.bf16.mxu0 %v407
  %574 = vmatpush1.bf16.msra.mxu0 %v406
  %575 = vmatprep.subr.bf16.mxu0 %v409
  %576 = vmatpush1.bf16.msra.mxu0 %v408
  %577 = vmatprep.subr.bf16.mxu0 %v411
  %578 = vmatpush1.bf16.msra.mxu0 %v410
  %579 = vmatprep.subr.bf16.mxu0 %v413
  %580 = vmatpush1.bf16.msra.mxu0 %v412
  %581 = vmatprep.subr.bf16.mxu0 %v415
  %582 = vmatpush1.bf16.msra.mxu0 %v414
  %583 = vmatprep.subr.bf16.mxu0 %v417
  %584 = vmatpush1.bf16.msra.mxu0 %v416
  %585 = vmatprep.subr.bf16.mxu0 %v419
  %586 = vmatpush1.bf16.msra.mxu0 %v418
  %587 = vmatprep.subr.bf16.mxu0 %v421
  %588 = vmatpush1.bf16.msra.mxu0 %v420
  %589 = vmatprep.subr.bf16.mxu0 %v423
  %590 = vmatpush1.bf16.msra.mxu0 %v422
  %591 = vmatprep.subr.bf16.mxu0 %v425
  %592 = vmatpush1.bf16.msra.mxu0 %v424
  %593 = vmatprep.subr.bf16.mxu0 %v427
  %594 = vmatpush1.bf16.msra.mxu0 %v426
  %595 = vmatprep.subr.bf16.mxu0 %v429
  %596 = vmatpush1.bf16.msra.mxu0 %v428
  %597 = vmatprep.subr.bf16.mxu0 %v431
  %598 = vmatpush1.bf16.msra.mxu0 %v430
  %599 = vmatprep.subr.bf16.mxu0 %v433
  %600 = vmatpush1.bf16.msra.mxu0 %v432
  %601 = vmatprep.mubr.bf16.mxu0 %v149
  %602 = vmatmul.mubr.bf16.gmra.mrb[0].mxu0 %v148
  %v603 = vpop.f32.mrb[0].mxu0
  %v604 = vadd.f32 %v533, %v603
  %v605 = vpop.f32.mrb[0].mxu0
  %v606 = vadd.f32 %v535, %v605
  %v607 = vpop.f32.mrb[0].mxu0
  %v608 = vadd.f32 %v537, %v607
  %v609 = vpop.f32.mrb[0].mxu0
  %v610 = vadd.f32 %v539, %v609
  %611 = vmatprep.mubr.bf16.mxu0 %v153
  %612 = vmatmul.mubr.bf16.gmra.mrb[0].mxu0 %v152
  %v613 = vpop.f32.mrb[0].mxu0
  %v614 = vadd.f32 %v543, %v613
  %v615 = vpop.f32.mrb[0].mxu0
  %v616 = vadd.f32 %v545, %v615
  %v617 = vpop.f32.mrb[0].mxu0
  %v618 = vadd.f32 %v547, %v617
  %v619 = vpop.f32.mrb[0].mxu0
  %v620 = vadd.f32 %v549, %v619
  %621 = vmatprep.mubr.bf16.mxu0 %v157
  %622 = vmatmul.mubr.bf16.gmra.mrb[0].mxu0 %v156
  %v623 = vpop.f32.mrb[0].mxu0
  %v624 = vadd.f32 %v553, %v623
  %v625 = vpop.f32.mrb[0].mxu0
  %v626 = vadd.f32 %v555, %v625
  %v627 = vpop.f32.mrb[0].mxu0
  %v628 = vadd.f32 %v557, %v627
  %v629 = vpop.f32.mrb[0].mxu0
  %v630 = vadd.f32 %v559, %v629
  %631 = vmatprep.mubr.bf16.mxu0 %v161
  %632 = vmatmul.mubr.bf16.gmra.mrb[0].mxu0 %v160
  %v633 = vpop.f32.mrb[0].mxu0
  %v634 = vadd.f32 %v563, %v633
  %v635 = vpop.f32.mrb[0].mxu0
  %v636 = vadd.f32 %v565, %v635
  %v637 = vpop.f32.mrb[0].mxu0
  %v638 = vpop.f32.mrb[0].mxu0
  %639 = vdwg.mxu0
  %v640 = vmax.f32 %v604, 0.0
  %v641 = vmax.f32 %v606, 0.0
  %v642 = vmax.f32 %v608, 0.0
  %v643 = vmax.f32 %v610, 0.0
  %v644 = vmax.f32 %v614, 0.0
  %v645 = vmax.f32 %v616, 0.0
  %v646 = vmax.f32 %v618, 0.0
  %v647 = vmax.f32 %v620, 0.0
  %v648 = vmax.f32 %v624, 0.0
  %v649 = vmax.f32 %v626, 0.0
  %v650 = vmax.f32 %v628, 0.0
  %v651 = vmax.f32 %v630, 0.0
  %v652 = vmax.f32 %v634, 0.0
  %v653 = vmax.f32 %v636, 0.0
  %v654 = vpack.c.bf16 %v642, %v640
  %v655 = vpack.c.bf16 %v643, %v641
  %v656 = vpack.c.bf16 %v646, %v644
  %v657 = vpack.c.bf16 %v647, %v645
  %v658 = vpack.c.bf16 %v650, %v648
  %v659 = vpack.c.bf16 %v651, %v649
  %v660 = vpack.c.bf16 %v652, %v652
  %v661 = vpack.c.bf16 %v653, %v653
  %v670 = vunpack.c.l.b16 %v654
  %v671 = vunpack.c.l.b16 %v655
  %v672 = vunpack.c.h.b16 %v654
  %v673 = vunpack.c.h.b16 %v655
  %v674 = vunpack.c.l.b16 %v656
  %v675 = vunpack.c.l.b16 %v657
  %v676 = vunpack.c.h.b16 %v656
  %v677 = vunpack.c.h.b16 %v657
  %v678 = vunpack.c.l.b16 %v658
  %v679 = vunpack.c.l.b16 %v659
  %v680 = vunpack.c.h.b16 %v658
  %v681 = vunpack.c.h.b16 %v659
  %v682 = vunpack.c.l.b16 %v660
  %v683 = vunpack.c.l.b16 %v661
  %v684 = vpack.c.b16 %v671, %v670
  %v685 = vpack.c.b16 %v673, %v672
  %v686 = vpack.c.b16 %v675, %v674
  %v687 = vpack.c.b16 %v677, %v676
  %v688 = vpack.c.b16 %v679, %v678
  %v689 = vpack.c.b16 %v681, %v680
  %v690 = vpack.c.b16 %v683, %v682
  %698 = vst [vmem:[%s3] sm:$0xff] %v684
  %699 = vst [vmem:[%s3 + $0x8] sm:$0xff] %v685
  %700 = vst [vmem:[%s3 + $0x10] sm:$0xff] %v686
  %701 = vst [vmem:[%s3 + $0x18] sm:$0xff] %v687
  %702 = vst [vmem:[%s3 + $0x20] sm:$0xff] %v688
  %703 = vst [vmem:[%s3 + $0x28] sm:$0xff] %v689
  %704 = vst [vmem:[%s3 + $0x30] sm:$0xff] %v690
  // Predicated region
  $region14: #{net_forward.11} parent=0 // pred_check
    _
  $region15: #{net_forward.11} parent=0 // pred_check_branch
    %706 = sbr.rel (0) target = $region17
  $region16: #{net_forward.11} parent=0 // pred_region
    _
  $region17: #{net_forward.11} parent=0 // pred_fallthru
    _
  // Predicated region
  $region18: #{net_forward.11} parent=0 // pred_check
    _
  $region19: #{net_forward.11} parent=0 // pred_check_branch
    %708 = sbr.rel (0) target = $region21
  $region20: #{net_forward.11} parent=0 // pred_region
    _
  $region21: #{net_forward.11} parent=0 // pred_fallthru
    _

// kernel: net_forward.13
$region0: #{net_forward.13}
  #allocation0 [shape = 'u32[]', space=smem, size = 0x4, offset = 0x4, fixed_abs, tag = 'smem constant byte address 0x4 - core index']
  #allocation1 [shape = 'u32[144,128]{1,0:T(1,128)}', space=vmem, size = 0x12000, scoped, tag = 'internal scratch']
  #allocation2 [shape = 'f32[8,1024]{1,0:T(8,128)}', space=vmem, size = 0x8000, scoped, tag = 'scratch operand']
  %s0 = inlined_call_operand.vmem [shape: bf16[8,1024], index: 0, kind: input, shape index: {}]
  %s1 = inlined_call_operand.vmem [shape: bf16[1024,2048], index: 1, kind: input, shape index: {}]
  %s2 = inlined_call_operand.vmem [shape: f32[1,2048], index: 2, kind: input, shape index: {}]
  %s3 = inlined_call_operand.vmem [shape: bf16[2048,1024], index: 3, kind: input, shape index: {}]
  %s4 = inlined_call_operand.vmem [shape: f32[1,1024], index: 4, kind: input, shape index: {}]
  %s5 = inlined_call_operand.vmem [shape: f32[8,1024], index: 5, kind: output, shape index: {}]
  %s6 = sld [smem:[#allocation0]]
  $region99: #{net_forward.13} parent=0
    _
  %s8 = ssub.s32 1, %s6
  %s9 = scalar_select 0, %s8, %s6
  $region1: #{net_forward.13} parent=0
    #allocation3 [shape = 'u8[1048576]{0}', space=vmem, size = 0x100000, scoped, tag = 'input window, operand 1']
    loop: start=0, step=1, limit=10
    $region2: #{net_forward.13} parent=1 // loop_pre_header
      _
    $region3: #{net_forward.13} parent=1 // loop_header
      %s11 = sphi 0, %s15
      %p12 = scmp.ge.s32.totalorder %s11, 10
      %s19 = sphi 0, %s19
      %s21 = sphi 0, %s19
      %s22 = sphi 0, %s21
      %s36 = sphi 0, %s22
      %s42 = sphi 0, %s44
      %s45 = sphi 0, %s42
      %s46 = sphi 0, %s45
      %s62 = sphi 0, %s46
      %s68 = sphi 0, %s70
      %s71 = sphi 0, %s68
      %s72 = sphi 0, %s71
      %s88 = sphi 0, %s72
      %s94 = sphi 0, %s96
      %s97 = sphi 0, %s94
      %s98 = sphi 0, %s97
      %s114 = sphi 0, %s98
      %s118 = sphi 0, %s118
      %s120 = sphi 0, %s118
      %s121 = sphi 0, %s120
      %s135 = sphi 0, %s121
      %s139 = sphi 0, %s139
      %s141 = sphi 0, %s139
      %s142 = sphi 0, %s141
      %s156 = sphi 0, %s142
    $region4: #{net_forward.13} parent=1 // loop_header_branch
      %14 = sbr.rel (%p12) target = $region8
    $region5: #{net_forward.13} parent=1 // loop_body
      %s16 = ssub.s32 %s11, 1
      %s17 = ssub.s32 %s11, 2
      %s18 = sadd.s32 %s11, 1
      %s20 = sadd.s32 %s19, 1
      %p23 = scmp.eq.s32.totalorder %s11, 7
      %p24 = scmp.ne.s32.totalorder %s19, %s21
      %p25 = scmp.eq.s32.totalorder %s11, 0
      %p26 = por %p24, %p25
      %p27 = scmp.ne.s32.totalorder %s19, %s21
      %p28 = scmp.eq.s32.totalorder %s16, 7
      %p29 = por %p27, %p28
      %p30 = scmp.ne.s32.totalorder %s21, %s22
      %p31 = scmp.eq.s32.totalorder %s16, 0
      %p32 = por %p30, %p31
      %p33 = scmp.ne.s32.totalorder %s21, %s22
      %p34 = scmp.eq.s32.totalorder %s17, 7
      %p35 = por %p33, %p34
      %p37 = scmp.ne.s32.totalorder %s22, %s36
      %p38 = scmp.eq.s32.totalorder %s17, 0
      %p39 = por %p37, %p38
      %s40 = ssub.s32 %s11, %s18
      %p41 = scmp.eq.s32.totalorder %s40, 0
      %s43 = sadd.s32 %s42, 1
      %s44 = scalar_select %p41, %s42, %s43
      %p47 = pneg %p41
      %p48 = scmp.eq.s32.totalorder %s11, 7
      %p49 = por %p47, %p48
      %p50 = scmp.ne.s32.totalorder %s42, %s45
      %p51 = scmp.eq.s32.totalorder %s11, 0
      %p52 = por %p50, %p51
      %p53 = scmp.ne.s32.totalorder %s42, %s45
      %p54 = scmp.eq.s32.totalorder %s16, 7
      %p55 = por %p53, %p54
      %p56 = scmp.ne.s32.totalorder %s45, %s46
      %p57 = scmp.eq.s32.totalorder %s16, 0
      %p58 = por %p56, %p57
      %p59 = scmp.ne.s32.totalorder %s45, %s46
      %p60 = scmp.eq.s32.totalorder %s17, 7
      %p61 = por %p59, %p60
      %p63 = scmp.ne.s32.totalorder %s46, %s62
      %p64 = scmp.eq.s32.totalorder %s17, 0
      %p65 = por %p63, %p64
      %s66 = ssub.s32 %s11, %s18
      %p67 = scmp.eq.s32.totalorder %s66, 0
      %s69 = sadd.s32 %s68, 1
      %s70 = scalar_select %p67, %s68, %s69
      %p73 = pneg %p67
      %p74 = scmp.eq.s32.totalorder %s11, 7
      %p75 = por %p73, %p74
      %p76 = scmp.ne.s32.totalorder %s68, %s71
      %p77 = scmp.eq.s32.totalorder %s11, 0
      %p78 = por %p76, %p77
      %p79 = scmp.ne.s32.totalorder %s68, %s71
      %p80 = scmp.eq.s32.totalorder %s16, 7
      %p81 = por %p79, %p80
      %p82 = scmp.ne.s32.totalorder %s71, %s72
      %p83 = scmp.eq.s32.totalorder %s16, 0
      %p84 = por %p82, %p83
      %p85 = scmp.ne.s32.totalorder %s71, %s72
      %p86 = scmp.eq.s32.totalorder %s17, 7
      %p87 = por %p85, %p86
      %p89 = scmp.ne.s32.totalorder %s72, %s88
      %p90 = scmp.eq.s32.totalorder %s17, 0
      %p91 = por %p89, %p90
      %s92 = ssub.s32 %s11, %s18
      %p93 = scmp.eq.s32.totalorder %s92, 0
      %s95 = sadd.s32 %s94, 1
      %s96 = scalar_select %p93, %s94, %s95
      %p99 = pneg %p93
      %p100 = scmp.eq.s32.totalorder %s11, 7
      %p101 = por %p99, %p100
      %p102 = scmp.ne.s32.totalorder %s94, %s97
      %p103 = scmp.eq.s32.totalorder %s11, 0
      %p104 = por %p102, %p103
      %p105 = scmp.ne.s32.totalorder %s94, %s97
      %p106 = scmp.eq.s32.totalorder %s16, 7
      %p107 = por %p105, %p106
      %p108 = scmp.ne.s32.totalorder %s97, %s98
      %p109 = scmp.eq.s32.totalorder %s16, 0
      %p110 = por %p108, %p109
      %p111 = scmp.ne.s32.totalorder %s97, %s98
      %p112 = scmp.eq.s32.totalorder %s17, 7
      %p113 = por %p111, %p112
      %p115 = scmp.ne.s32.totalorder %s98, %s114
      %p116 = scmp.eq.s32.totalorder %s17, 0
      %p117 = por %p115, %p116
      %s119 = sadd.s32 %s118, 1
      %p122 = scmp.eq.s32.totalorder %s11, 7
      %p123 = scmp.ne.s32.totalorder %s118, %s120
      %p124 = scmp.eq.s32.totalorder %s11, 0
      %p125 = por %p123, %p124
      %p126 = scmp.ne.s32.totalorder %s118, %s120
      %p127 = scmp.eq.s32.totalorder %s16, 7
      %p128 = por %p126, %p127
      %p129 = scmp.ne.s32.totalorder %s120, %s121
      %p130 = scmp.eq.s32.totalorder %s16, 0
      %p131 = por %p129, %p130
      %p132 = scmp.ne.s32.totalorder %s120, %s121
      %p133 = scmp.eq.s32.totalorder %s17, 7
      %p134 = por %p132, %p133
      %p136 = scmp.ne.s32.totalorder %s121, %s135
      %p137 = scmp.eq.s32.totalorder %s17, 0
      %p138 = por %p136, %p137
      %s140 = sadd.s32 %s139, 1
      %p143 = scmp.eq.s32.totalorder %s11, 7
      %p144 = scmp.ne.s32.totalorder %s139, %s141
      %p145 = scmp.eq.s32.totalorder %s11, 0
      %p146 = por %p144, %p145
      %p147 = scmp.ne.s32.totalorder %s139, %s141
      %p148 = scmp.eq.s32.totalorder %s16, 7
      %p149 = por %p147, %p148
      %p150 = scmp.ne.s32.totalorder %s141, %s142
      %p151 = scmp.eq.s32.totalorder %s16, 0
      %p152 = por %p150, %p151
      %p153 = scmp.ne.s32.totalorder %s141, %s142
      %p154 = scmp.eq.s32.totalorder %s17, 7
      %p155 = por %p153, %p154
      %p157 = scmp.ne.s32.totalorder %s142, %s156
      %p158 = scmp.eq.s32.totalorder %s17, 0
      %p159 = por %p157, %p158
      %p160 = scmp.le.s32.totalorder 1, %s11
      %p161 = scmp.lt.s32.totalorder %s11, 9
      %p162 = pnand %p160, %p161
      %p163 = pneg %p162
      // Predicated region
      $region9: #{net_forward.13} parent=5 // pred_check
        _
      $region10: #{net_forward.13} parent=5 // pred_check_branch
        %165 = sbr.rel (%p162) target = $region12
      $region11: #{net_forward.13} parent=5 // pred_region
        %s166 = ssub.s32 %s11, 1
        // Predicated region
        $region13: #{net_forward.13} parent=11 // pred_check
          %p167 = pneg %p32
        $region14: #{net_forward.13} parent=11 // pred_check_branch
          %169 = sbr.rel (%p167) target = $region16
        $region15: #{net_forward.13} parent=11 // pred_region
          _
        $region16: #{net_forward.13} parent=11 // pred_fallthru
          _
        // Predicated region
        $region17: #{net_forward.13} parent=11 // pred_check
          %p170 = pneg %p131
        $region18: #{net_forward.13} parent=11 // pred_check_branch
          %172 = sbr.rel (%p170) target = $region20
        $region19: #{net_forward.13} parent=11 // pred_region
          _
        $region20: #{net_forward.13} parent=11 // pred_fallthru
          _
      $region12: #{net_forward.13} parent=5 // pred_fallthru
        _
      %p173 = scmp.lt.s32.totalorder %s11, 8
      // Predicated region
      $region21: #{net_forward.13} parent=5 // pred_check
        %p174 = pneg %p173
      $region22: #{net_forward.13} parent=5 // pred_check_branch
        %176 = sbr.rel (%p174) target = $region24
      $region23: #{net_forward.13} parent=5 // pred_region
        // Predicated region
        $region25: #{net_forward.13} parent=23 // pred_check
          %p177 = pneg %p52
        $region26: #{net_forward.13} parent=23 // pred_check_branch
          %179 = sbr.rel (%p177) target = $region28
        $region27: #{net_forward.13} parent=23 // pred_region
          %s180 = sand.u32 %s42, 1
          %s181 = sand.u32 %s42, 1
          %s182 = smul.addr %s181, 1024
          %s183 = scalar_lea.vmem [#allocation3], %s182
          %s184 = smul.u32 2, %s11
          %s185 = smul.addr %s184, 4
          %s186 = scalar_lea.vmem %s1, %s185
          // Predicated region
          $region29: #{net_forward.13} parent=27 // pred_check
            _
          $region30: #{net_forward.13} parent=27 // pred_check_branch
            %188 = sbr.rel (0) target = $region32
          $region31: #{net_forward.13} parent=27 // pred_region
            // Predicated region
            $region33: #{net_forward.13} parent=31 // pred_check
              _
            $region34: #{net_forward.13} parent=31 // pred_check_branch
              %190 = sbr.rel (0) target = $region36
            $region35: #{net_forward.13} parent=31 // pred_region
              // Predicated region
              $region48: #{net_forward.13} parent=35 // pred_check
                _
              $region49: #{net_forward.13} parent=35 // pred_check_branch
                %459 = sbr.rel (0) target = $region51
              $region50: #{net_forward.13} parent=35 // pred_region
                loop: start=0, step=1, limit=1
                $region52: #{net_forward.13} parent=50 // loop_pre_header
                  _
                $region53: #{net_forward.13} parent=50 // loop_header
                  %s461 = sphi 0, %s465
                  %p462 = scmp.ge.s32.totalorder %s461, 1
                  %s466 = sphi %s186, %s186
                  %s467 = sphi %s183, %s183
                $region54: #{net_forward.13} parent=50 // loop_header_branch
                  %464 = sbr.rel (%p462) target = $region58
                $region55: #{net_forward.13} parent=50 // loop_body
                  %v468 = vld [vmem:[%s466] sm:$0xff]
                  %469 = vst [vmem:[%s467] sm:$0xff] %v468
                  %v470 = vld [vmem:[%s466 + $0x40] sm:$0xff]
                  %471 = vst [vmem:[%s467 + $0x8] sm:$0xff] %v470
                  %v472 = vld [vmem:[%s466 + $0x80] sm:$0xff]
                  %473 = vst [vmem:[%s467 + $0x10] sm:$0xff] %v472
                  %v474 = vld [vmem:[%s466 + $0xc0] sm:$0xff]
                  %475 = vst [vmem:[%s467 + $0x18] sm:$0xff] %v474
                  %v476 = vld [vmem:[%s466 + $0x100] sm:$0xff]
                  %477 = vst [vmem:[%s467 + $0x20] sm:$0xff] %v476
                  %v478 = vld [vmem:[%s466 + $0x140] sm:$0xff]
                  %479 = vst [vmem:[%s467 + $0x28] sm:$0xff] %v478
                  %v480 = vld [vmem:[%s466 + $0x180] sm:$0xff]
                  %481 = vst [vmem:[%s467 + $0x30] sm:$0xff] %v480
                  %v482 = vld [vmem:[%s466 + $0x1c0] sm:$0xff]
                  %483 = vst [vmem:[%s467 + $0x38] sm:$0xff] %v482
                  %v484 = vld [vmem:[%s466 + $0x200] sm:$0xff]
                  %485 = vst [vmem:[%s467 + $0x40] sm:$0xff] %v484
                  %v486 = vld [vmem:[%s466 + $0x240] sm:$0xff]
                  %487 = vst [vmem:[%s467 + $0x48] sm:$0xff] %v486
                  %v488 = vld [vmem:[%s466 + $0x280] sm:$0xff]
                  %489 = vst [vmem:[%s467 + $0x50] sm:$0xff] %v488
                  %v490 = vld [vmem:[%s466 + $0x2c0] sm:$0xff]
                  %491 = vst [vmem:[%s467 + $0x58] sm:$0xff] %v490
                  %v492 = vld [vmem:[%s466 + $0x300] sm:$0xff]
                  %493 = vst [vmem:[%s467 + $0x60] sm:$0xff] %v492
                  %v494 = vld [vmem:[%s466 + $0x340] sm:$0xff]
                  %495 = vst [vmem:[%s467 + $0x68] sm:$0xff] %v494
                  %v496 = vld [vmem:[%s466 + $0x380] sm:$0xff]
                  %497 = vst [vmem:[%s467 + $0x70] sm:$0xff] %v496
                  %v498 = vld [vmem:[%s466 + $0x3c0] sm:$0xff]
                  %499 = vst [vmem:[%s467 + $0x78] sm:$0xff] %v498
                  %v500 = vld [vmem:[%s466 + $0x400] sm:$0xff]
                  %501 = vst [vmem:[%s467 + $0x80] sm:$0xff] %v500
                  %v502 = vld [vmem:[%s466 + $0x440] sm:$0xff]
                  %503 = vst [vmem:[%s467 + $0x88] sm:$0xff] %v502
                  %v504 = vld [vmem:[%s466 + $0x480] sm:$0xff]
                  %505 = vst [vmem:[%s467 + $0x90] sm:$0xff] %v504
                  %v506 = vld [vmem:[%s466 + $0x4c0] sm:$0xff]
                  %507 = vst [vmem:[%s467 + $0x98] sm:$0xff] %v506
                  %v508 = vld [vmem:[%s466 + $0x500] sm:$0xff]
                  %509 = vst [vmem:[%s467 + $0xa0] sm:$0xff] %v508
                  %v510 = vld [vmem:[%s466 + $0x540] sm:$0xff]
                  %511 = vst [vmem:[%s467 + $0xa8] sm:$0xff] %v510
                  %v512 = vld [vmem:[%s466 + $0x580] sm:$0xff]
                  %513 = vst [vmem:[%s467 + $0xb0] sm:$0xff] %v512
                  %v514 = vld [vmem:[%s466 + $0x5c0] sm:$0xff]
                  %515 = vst [vmem:[%s467 + $0xb8] sm:$0xff] %v514
                  %v516 = vld [vmem:[%s466 + $0x600] sm:$0xff]
                  %517 = vst [vmem:[%s467 + $0xc0] sm:$0xff] %v516
                  %v518 = vld [vmem:[%s466 + $0x640] sm:$0xff]
                  %519 = vst [vmem:[%s467 + $0xc8] sm:$0xff] %v518
                  %v520 = vld [vmem:[%s466 + $0x680] sm:$0xff]
                  %521 = vst [vmem:[%s467 + $0xd0] sm:$0xff] %v520
                  %v522 = vld [vmem:[%s466 + $0x6c0] sm:$0xff]
                  %523 = vst [vmem:[%s467 + $0xd8] sm:$0xff] %v522
                  %v524 = vld [vmem:[%s466 + $0x700] sm:$0xff]
                  %525 = vst [vmem:[%s467 + $0xe0] sm:$0xff] %v524
                  %v526 = vld [vmem:[%s466 + $0x740] sm:$0xff]
                  %527 = vst [vmem:[%s467 + $0xe8] sm:$0xff] %v526
                  %v528 = vld [vmem:[%s466 + $0x780] sm:$0xff]
                  %529 = vst [vmem:[%s467 + $0xf0] sm:$0xff] %v528
                  %v530 = vld [vmem:[%s466 + $0x7c0] sm:$0xff]
                  %531 = vst [vmem:[%s467 + $0xf8] sm:$0xff] %v530
                  %v532 = vld [vmem:[%s466 + $0x800] sm:$0xff]
                  %533 = vst [vmem:[%s467 + $0x100] sm:$0xff] %v532
                  %v534 = vld [vmem:[%s466 + $0x840] sm:$0xff]
                  %535 = vst [vmem:[%s467 + $0x108] sm:$0xff] %v534
                  %v536 = vld [vmem:[%s466 + $0x880] sm:$0xff]
                  %537 = vst [vmem:[%s467 + $0x110] sm:$0xff] %v536
                  %v538 = vld [vmem:[%s466 + $0x8c0] sm:$0xff]
                  %539 = vst [vmem:[%s467 + $0x118] sm:$0xff] %v538
                  %v540 = vld [vmem:[%s466 + $0x900] sm:$0xff]
                  %541 = vst [vmem:[%s467 + $0x120] sm:$0xff] %v540
                  %v542 = vld [vmem:[%s466 + $0x940] sm:$0xff]
                  %543 = vst [vmem:[%s467 + $0x128] sm:$0xff] %v542
                  %v544 = vld [vmem:[%s466 + $0x980] sm:$0xff]
                  %545 = vst [vmem:[%s467 + $0x130] sm:$0xff] %v544
                  %v546 = vld [vmem:[%s466 + $0x9c0] sm:$0xff]
                  %547 = vst [vmem:[%s467 + $0x138] sm:$0xff] %v546
                  %v548 = vld [vmem:[%s466 + $0xa00] sm:$0xff]
                  %549 = vst [vmem:[%s467 + $0x140] sm:$0xff] %v548
                  %v550 = vld [vmem:[%s466 + $0xa40] sm:$0xff]
                  %551 = vst [vmem:[%s467 + $0x148] sm:$0xff] %v550
                  %v552 = vld [vmem:[%s466 + $0xa80] sm:$0xff]
                  %553 = vst [vmem:[%s467 + $0x150] sm:$0xff] %v552
                  %v554 = vld [vmem:[%s466 + $0xac0] sm:$0xff]
                  %555 = vst [vmem:[%s467 + $0x158] sm:$0xff] %v554
                  %v556 = vld [vmem:[%s466 + $0xb00] sm:$0xff]
                  %557 = vst [vmem:[%s467 + $0x160] sm:$0xff] %v556
                  %v558 = vld [vmem:[%s466 + $0xb40] sm:$0xff]
                  %559 = vst [vmem:[%s467 + $0x168] sm:$0xff] %v558
                  %v560 = vld [vmem:[%s466 + $0xb80] sm:$0xff]
                  %561 = vst [vmem:[%s467 + $0x170] sm:$0xff] %v560
                  %v562 = vld [vmem:[%s466 + $0xbc0] sm:$0xff]
                  %563 = vst [vmem:[%s467 + $0x178] sm:$0xff] %v562
                  %v564 = vld [vmem:[%s466 + $0xc00] sm:$0xff]
                  %565 = vst [vmem:[%s467 + $0x180] sm:$0xff] %v564
                  %v566 = vld [vmem:[%s466 + $0xc40] sm:$0xff]
                  %567 = vst [vmem:[%s467 + $0x188] sm:$0xff] %v566
                  %v568 = vld [vmem:[%s466 + $0xc80] sm:$0xff]
                  %569 = vst [vmem:[%s467 + $0x190] sm:$0xff] %v568
                  %v570 = vld [vmem:[%s466 + $0xcc0] sm:$0xff]
                  %571 = vst [vmem:[%s467 + $0x198] sm:$0xff] %v570
                  %v572 = vld [vmem:[%s466 + $0xd00] sm:$0xff]
                  %573 = vst [vmem:[%s467 + $0x1a0] sm:$0xff] %v572
                  %v574 = vld [vmem:[%s466 + $0xd40] sm:$0xff]
                  %575 = vst [vmem:[%s467 + $0x1a8] sm:$0xff] %v574
                  %v576 = vld [vmem:[%s466 + $0xd80] sm:$0xff]
                  %577 = vst [vmem:[%s467 + $0x1b0] sm:$0xff] %v576
                  %v578 = vld [vmem:[%s466 + $0xdc0] sm:$0xff]
                  %579 = vst [vmem:[%s467 + $0x1b8] sm:$0xff] %v578
                  %v580 = vld [vmem:[%s466 + $0xe00] sm:$0xff]
                  %581 = vst [vmem:[%s467 + $0x1c0] sm:$0xff] %v580
                  %v582 = vld [vmem:[%s466 + $0xe40] sm:$0xff]
                  %583 = vst [vmem:[%s467 + $0x1c8] sm:$0xff] %v582
                  %v584 = vld [vmem:[%s466 + $0xe80] sm:$0xff]
                  %585 = vst [vmem:[%s467 + $0x1d0] sm:$0xff] %v584
                  %v586 = vld [vmem:[%s466 + $0xec0] sm:$0xff]
                  %587 = vst [vmem:[%s467 + $0x1d8] sm:$0xff] %v586
                  %v588 = vld [vmem:[%s466 + $0xf00] sm:$0xff]
                  %589 = vst [vmem:[%s467 + $0x1e0] sm:$0xff] %v588
                  %v590 = vld [vmem:[%s466 + $0xf40] sm:$0xff]
                  %591 = vst [vmem:[%s467 + $0x1e8] sm:$0xff] %v590
                  %v592 = vld [vmem:[%s466 + $0xf80] sm:$0xff]
                  %593 = vst [vmem:[%s467 + $0x1f0] sm:$0xff] %v592
                  %v594 = vld [vmem:[%s466 + $0xfc0] sm:$0xff]
                  %595 = vst [vmem:[%s467 + $0x1f8] sm:$0xff] %v594
                  %v596 = vld [vmem:[%s466 + $0x1000] sm:$0xff]
                  %597 = vst [vmem:[%s467 + $0x200] sm:$0xff] %v596
                  %v598 = vld [vmem:[%s466 + $0x1040] sm:$0xff]
                  %599 = vst [vmem:[%s467 + $0x208] sm:$0xff] %v598
                  %v600 = vld [vmem:[%s466 + $0x1080] sm:$0xff]
                  %601 = vst [vmem:[%s467 + $0x210] sm:$0xff] %v600
                  %v602 = vld [vmem:[%s466 + $0x10c0] sm:$0xff]
                  %603 = vst [vmem:[%s467 + $0x218] sm:$0xff] %v602
                  %v604 = vld [vmem:[%s466 + $0x1100] sm:$0xff]
                  %605 = vst [vmem:[%s467 + $0x220] sm:$0xff] %v604
                  %v606 = vld [vmem:[%s466 + $0x1140] sm:$0xff]
                  %607 = vst [vmem:[%s467 + $0x228] sm:$0xff] %v606
                  %v608 = vld [vmem:[%s466 + $0x1180] sm:$0xff]
                  %609 = vst [vmem:[%s467 + $0x230] sm:$0xff] %v608
                  %v610 = vld [vmem:[%s466 + $0x11c0] sm:$0xff]
                  %611 = vst [vmem:[%s467 + $0x238] sm:$0xff] %v610
                  %v612 = vld [vmem:[%s466 + $0x1200] sm:$0xff]
                  %613 = vst [vmem:[%s467 + $0x240] sm:$0xff] %v612
                  %v614 = vld [vmem:[%s466 + $0x1240] sm:$0xff]
                  %615 = vst [vmem:[%s467 + $0x248] sm:$0xff] %v614
                  %v616 = vld [vmem:[%s466 + $0x1280] sm:$0xff]
                  %617 = vst [vmem:[%s467 + $0x250] sm:$0xff] %v616
                  %v618 = vld [vmem:[%s466 + $0x12c0] sm:$0xff]
                  %619 = vst [vmem:[%s467 + $0x258] sm:$0xff] %v618
                  %v620 = vld [vmem:[%s466 + $0x1300] sm:$0xff]
                  %621 = vst [vmem:[%s467 + $0x260] sm:$0xff] %v620
                  %v622 = vld [vmem:[%s466 + $0x1340] sm:$0xff]
                  %623 = vst [vmem:[%s467 + $0x268] sm:$0xff] %v622
                  %v624 = vld [vmem:[%s466 + $0x1380] sm:$0xff]
                  %625 = vst [vmem:[%s467 + $0x270] sm:$0xff] %v624
                  %v626 = vld [vmem:[%s466 + $0x13c0] sm:$0xff]
                  %627 = vst [vmem:[%s467 + $0x278] sm:$0xff] %v626
                  %v628 = vld [vmem:[%s466 + $0x1400] sm:$0xff]
                  %629 = vst [vmem:[%s467 + $0x280] sm:$0xff] %v628
                  %v630 = vld [vmem:[%s466 + $0x1440] sm:$0xff]
                  %631 = vst [vmem:[%s467 + $0x288] sm:$0xff] %v630
                  %v632 = vld [vmem:[%s466 + $0x1480] sm:$0xff]
                  %633 = vst [vmem:[%s467 + $0x290] sm:$0xff] %v632
                  %v634 = vld [vmem:[%s466 + $0x14c0] sm:$0xff]
                  %635 = vst [vmem:[%s467 + $0x298] sm:$0xff] %v634
                  %v636 = vld [vmem:[%s466 + $0x1500] sm:$0xff]
                  %637 = vst [vmem:[%s467 + $0x2a0] sm:$0xff] %v636
                  %v638 = vld [vmem:[%s466 + $0x1540] sm:$0xff]
                  %639 = vst [vmem:[%s467 + $0x2a8] sm:$0xff] %v638
                  %v640 = vld [vmem:[%s466 + $0x1580] sm:$0xff]
                  %641 = vst [vmem:[%s467 + $0x2b0] sm:$0xff] %v640
                  %v642 = vld [vmem:[%s466 + $0x15c0] sm:$0xff]
                  %643 = vst [vmem:[%s467 + $0x2b8] sm:$0xff] %v642
                  %v644 = vld [vmem:[%s466 + $0x1600] sm:$0xff]
                  %645 = vst [vmem:[%s467 + $0x2c0] sm:$0xff] %v644
                  %v646 = vld [vmem:[%s466 + $0x1640] sm:$0xff]
                  %647 = vst [vmem:[%s467 + $0x2c8] sm:$0xff] %v646
                  %v648 = vld [vmem:[%s466 + $0x1680] sm:$0xff]
                  %649 = vst [vmem:[%s467 + $0x2d0] sm:$0xff] %v648
                  %v650 = vld [vmem:[%s466 + $0x16c0] sm:$0xff]
                  %651 = vst [vmem:[%s467 + $0x2d8] sm:$0xff] %v650
                  %v652 = vld [vmem:[%s466 + $0x1700] sm:$0xff]
                  %653 = vst [vmem:[%s467 + $0x2e0] sm:$0xff] %v652
                  %v654 = vld [vmem:[%s466 + $0x1740] sm:$0xff]
                  %655 = vst [vmem:[%s467 + $0x2e8] sm:$0xff] %v654
                  %v656 = vld [vmem:[%s466 + $0x1780] sm:$0xff]
                  %657 = vst [vmem:[%s467 + $0x2f0] sm:$0xff] %v656
                  %v658 = vld [vmem:[%s466 + $0x17c0] sm:$0xff]
                  %659 = vst [vmem:[%s467 + $0x2f8] sm:$0xff] %v658
                  %v660 = vld [vmem:[%s466 + $0x1800] sm:$0xff]
                  %661 = vst [vmem:[%s467 + $0x300] sm:$0xff] %v660
                  %v662 = vld [vmem:[%s466 + $0x1840] sm:$0xff]
                  %663 = vst [vmem:[%s467 + $0x308] sm:$0xff] %v662
                  %v664 = vld [vmem:[%s466 + $0x1880] sm:$0xff]
                  %665 = vst [vmem:[%s467 + $0x310] sm:$0xff] %v664
                  %v666 = vld [vmem:[%s466 + $0x18c0] sm:$0xff]
                  %667 = vst [vmem:[%s467 + $0x318] sm:$0xff] %v666
                  %v668 = vld [vmem:[%s466 + $0x1900] sm:$0xff]
                  %669 = vst [vmem:[%s467 + $0x320] sm:$0xff] %v668
                  %v670 = vld [vmem:[%s466 + $0x1940] sm:$0xff]
                  %671 = vst [vmem:[%s467 + $0x328] sm:$0xff] %v670
                  %v672 = vld [vmem:[%s466 + $0x1980] sm:$0xff]
                  %673 = vst [vmem:[%s467 + $0x330] sm:$0xff] %v672
                  %v674 = vld [vmem:[%s466 + $0x19c0] sm:$0xff]
                  %675 = vst [vmem:[%s467 + $0x338] sm:$0xff] %v674
                  %v676 = vld [vmem:[%s466 + $0x1a00] sm:$0xff]
                  %677 = vst [vmem:[%s467 + $0x340] sm:$0xff] %v676
                  %v678 = vld [vmem:[%s466 + $0x1a40] sm:$0xff]
                  %679 = vst [vmem:[%s467 + $0x348] sm:$0xff] %v678
                  %v680 = vld [vmem:[%s466 + $0x1a80] sm:$0xff]
                  %681 = vst [vmem:[%s467 + $0x350] sm:$0xff] %v680
                  %v682 = vld [vmem:[%s466 + $0x1ac0] sm:$0xff]
                  %683 = vst [vmem:[%s467 + $0x358] sm:$0xff] %v682
                  %v684 = vld [vmem:[%s466 + $0x1b00] sm:$0xff]
                  %685 = vst [vmem:[%s467 + $0x360] sm:$0xff] %v684
                  %v686 = vld [vmem:[%s466 + $0x1b40] sm:$0xff]
                  %687 = vst [vmem:[%s467 + $0x368] sm:$0xff] %v686
                  %v688 = vld [vmem:[%s466 + $0x1b80] sm:$0xff]
                  %689 = vst [vmem:[%s467 + $0x370] sm:$0xff] %v688
                  %v690 = vld [vmem:[%s466 + $0x1bc0] sm:$0xff]
                  %691 = vst [vmem:[%s467 + $0x378] sm:$0xff] %v690
                  %v692 = vld [vmem:[%s466 + $0x1c00] sm:$0xff]
                  %693 = vst [vmem:[%s467 + $0x380] sm:$0xff] %v692
                  %v694 = vld [vmem:[%s466 + $0x1c40] sm:$0xff]
                  %695 = vst [vmem:[%s467 + $0x388] sm:$0xff] %v694
                  %v696 = vld [vmem:[%s466 + $0x1c80] sm:$0xff]
                  %697 = vst [vmem:[%s467 + $0x390] sm:$0xff] %v696
                  %v698 = vld [vmem:[%s466 + $0x1cc0] sm:$0xff]
                  %699 = vst [vmem:[%s467 + $0x398] sm:$0xff] %v698
                  %v700 = vld [vmem:[%s466 + $0x1d00] sm:$0xff]
                  %701 = vst [vmem:[%s467 + $0x3a0] sm:$0xff] %v700
                  %v702 = vld [vmem:[%s466 + $0x1d40] sm:$0xff]
                  %703 = vst [vmem:[%s467 + $0x3a8] sm:$0xff] %v702
                  %v704 = vld [vmem:[%s466 + $0x1d80] sm:$0xff]
                  %705 = vst [vmem:[%s467 + $0x3b0] sm:$0xff] %v704
                  %v706 = vld [vmem:[%s466 + $0x1dc0] sm:$0xff]
                  %707 = vst [vmem:[%s467 + $0x3b8] sm:$0xff] %v706
                  %v708 = vld [vmem:[%s466 + $0x1e00] sm:$0xff]
                  %709 = vst [vmem:[%s467 + $0x3c0] sm:$0xff] %v708
                  %v710 = vld [vmem:[%s466 + $0x1e40] sm:$0xff]
                  %711 = vst [vmem:[%s467 + $0x3c8] sm:$0xff] %v710
                  %v712 = vld [vmem:[%s466 + $0x1e80] sm:$0xff]
                  %713 = vst [vmem:[%s467 + $0x3d0] sm:$0xff] %v712
                  %v714 = vld [vmem:[%s466 + $0x1ec0] sm:$0xff]
                  %715 = vst [vmem:[%s467 + $0x3d8] sm:$0xff] %v714
                  %v716 = vld [vmem:[%s466 + $0x1f00] sm:$0xff]
                  %717 = vst [vmem:[%s467 + $0x3e0] sm:$0xff] %v716
                  %v718 = vld [vmem:[%s466 + $0x1f40] sm:$0xff]
                  %719 = vst [vmem:[%s467 + $0x3e8] sm:$0xff] %v718
                  %v720 = vld [vmem:[%s466 + $0x1f80] sm:$0xff]
                  %721 = vst [vmem:[%s467 + $0x3f0] sm:$0xff] %v720
                  %v722 = vld [vmem:[%s466 + $0x1fc0] sm:$0xff]
                  %723 = vst [vmem:[%s467 + $0x3f8] sm:$0xff] %v722
                $region56: #{net_forward.13} parent=50 // loop_footer
                  %s465 = sadd.s32 1, %s461
                $region57: #{net_forward.13} parent=50 // loop_footer_branch
                  %460 = sbr.rel target = $region53
                $region58: #{net_forward.13} parent=50 // loop_exit
                  _
              $region51: #{net_forward.13} parent=35 // pred_fallthru
                _
              // Predicated region
              $region59: #{net_forward.13} parent=35 // pred_check
                _
              $region60: #{net_forward.13} parent=35 // pred_check_branch
                %725 = sbr.rel target = $region62
              $region61: #{net_forward.13} parent=35 // pred_region
                _
              $region62: #{net_forward.13} parent=35 // pred_fallthru
                _
            $region36: #{net_forward.13} parent=31 // pred_fallthru
              _
            // Predicated region
            $region37: #{net_forward.13} parent=31 // pred_check
              _
            $region38: #{net_forward.13} parent=31 // pred_check_branch
              %192 = sbr.rel target = $region40
            $region39: #{net_forward.13} parent=31 // pred_region
              loop: start=0, step=1, limit=1
              $region41: #{net_forward.13} parent=39 // loop_pre_header
                _
              $region42: #{net_forward.13} parent=39 // loop_header
                %s195 = sphi 0, %s199
                %p196 = scmp.ge.s32.totalorder %s195, 1
                %s200 = sphi %s186, %s186
                %s201 = sphi %s183, %s183
              $region43: #{net_forward.13} parent=39 // loop_header_branch
                %198 = sbr.rel (%p196) target = $region47
              $region44: #{net_forward.13} parent=39 // loop_body
                %v202 = vld [vmem:[%s200] sm:$0xff]
                %203 = vst [vmem:[%s201] sm:$0xff] %v202
                %v204 = vld [vmem:[%s200 + $0x40] sm:$0xff]
                %205 = vst [vmem:[%s201 + $0x8] sm:$0xff] %v204
                %v206 = vld [vmem:[%s200 + $0x80] sm:$0xff]
                %207 = vst [vmem:[%s201 + $0x10] sm:$0xff] %v206
                %v208 = vld [vmem:[%s200 + $0xc0] sm:$0xff]
                %209 = vst [vmem:[%s201 + $0x18] sm:$0xff] %v208
                %v210 = vld [vmem:[%s200 + $0x100] sm:$0xff]
                %211 = vst [vmem:[%s201 + $0x20] sm:$0xff] %v210
                %v212 = vld [vmem:[%s200 + $0x140] sm:$0xff]
                %213 = vst [vmem:[%s201 + $0x28] sm:$0xff] %v212
                %v214 = vld [vmem:[%s200 + $0x180] sm:$0xff]
                %215 = vst [vmem:[%s201 + $0x30] sm:$0xff] %v214
                %v216 = vld [vmem:[%s200 + $0x1c0] sm:$0xff]
                %217 = vst [vmem:[%s201 + $0x38] sm:$0xff] %v216
                %v218 = vld [vmem:[%s200 + $0x200] sm:$0xff]
                %219 = vst [vmem:[%s201 + $0x40] sm:$0xff] %v218
                %v220 = vld [vmem:[%s200 + $0x240] sm:$0xff]
                %221 = vst [vmem:[%s201 + $0x48] sm:$0xff] %v220
                %v222 = vld [vmem:[%s200 + $0x280] sm:$0xff]
                %223 = vst [vmem:[%s201 + $0x50] sm:$0xff] %v222
                %v224 = vld [vmem:[%s200 + $0x2c0] sm:$0xff]
                %225 = vst [vmem:[%s201 + $0x58] sm:$0xff] %v224
                %v226 = vld [vmem:[%s200 + $0x300] sm:$0xff]
                %227 = vst [vmem:[%s201 + $0x60] sm:$0xff] %v226
                %v228 = vld [vmem:[%s200 + $0x340] sm:$0xff]
                %229 = vst [vmem:[%s201 + $0x68] sm:$0xff] %v228
                %v230 = vld [vmem:[%s200 + $0x380] sm:$0xff]
                %231 = vst [vmem:[%s201 + $0x70] sm:$0xff] %v230
                %v232 = vld [vmem:[%s200 + $0x3c0] sm:$0xff]
                %233 = vst [vmem:[%s201 + $0x78] sm:$0xff] %v232
                %v234 = vld [vmem:[%s200 + $0x400] sm:$0xff]
                %235 = vst [vmem:[%s201 + $0x80] sm:$0xff] %v234
                %v236 = vld [vmem:[%s200 + $0x440] sm:$0xff]
                %237 = vst [vmem:[%s201 + $0x88] sm:$0xff] %v236
                %v238 = vld [vmem:[%s200 + $0x480] sm:$0xff]
                %239 = vst [vmem:[%s201 + $0x90] sm:$0xff] %v238
                %v240 = vld [vmem:[%s200 + $0x4c0] sm:$0xff]
                %241 = vst [vmem:[%s201 + $0x98] sm:$0xff] %v240
                %v242 = vld [vmem:[%s200 + $0x500] sm:$0xff]
                %243 = vst [vmem:[%s201 + $0xa0] sm:$0xff] %v242
                %v244 = vld [vmem:[%s200 + $0x540] sm:$0xff]
                %245 = vst [vmem:[%s201 + $0xa8] sm:$0xff] %v244
                %v246 = vld [vmem:[%s200 + $0x580] sm:$0xff]
                %247 = vst [vmem:[%s201 + $0xb0] sm:$0xff] %v246
                %v248 = vld [vmem:[%s200 + $0x5c0] sm:$0xff]
                %249 = vst [vmem:[%s201 + $0xb8] sm:$0xff] %v248
                %v250 = vld [vmem:[%s200 + $0x600] sm:$0xff]
                %251 = vst [vmem:[%s201 + $0xc0] sm:$0xff] %v250
                %v252 = vld [vmem:[%s200 + $0x640] sm:$0xff]
                %253 = vst [vmem:[%s201 + $0xc8] sm:$0xff] %v252
                %v254 = vld [vmem:[%s200 + $0x680] sm:$0xff]
                %255 = vst [vmem:[%s201 + $0xd0] sm:$0xff] %v254
                %v256 = vld [vmem:[%s200 + $0x6c0] sm:$0xff]
                %257 = vst [vmem:[%s201 + $0xd8] sm:$0xff] %v256
                %v258 = vld [vmem:[%s200 + $0x700] sm:$0xff]
                %259 = vst [vmem:[%s201 + $0xe0] sm:$0xff] %v258
                %v260 = vld [vmem:[%s200 + $0x740] sm:$0xff]
                %261 = vst [vmem:[%s201 + $0xe8] sm:$0xff] %v260
                %v262 = vld [vmem:[%s200 + $0x780] sm:$0xff]
                %263 = vst [vmem:[%s201 + $0xf0] sm:$0xff] %v262
                %v264 = vld [vmem:[%s200 + $0x7c0] sm:$0xff]
                %265 = vst [vmem:[%s201 + $0xf8] sm:$0xff] %v264
                %v266 = vld [vmem:[%s200 + $0x800] sm:$0xff]
                %267 = vst [vmem:[%s201 + $0x100] sm:$0xff] %v266
                %v268 = vld [vmem:[%s200 + $0x840] sm:$0xff]
                %269 = vst [vmem:[%s201 + $0x108] sm:$0xff] %v268
                %v270 = vld [vmem:[%s200 + $0x880] sm:$0xff]
                %271 = vst [vmem:[%s201 + $0x110] sm:$0xff] %v270
                %v272 = vld [vmem:[%s200 + $0x8c0] sm:$0xff]
                %273 = vst [vmem:[%s201 + $0x118] sm:$0xff] %v272
                %v274 = vld [vmem:[%s200 + $0x900] sm:$0xff]
                %275 = vst [vmem:[%s201 + $0x120] sm:$0xff] %v274
                %v276 = vld [vmem:[%s200 + $0x940] sm:$0xff]
                %277 = vst [vmem:[%s201 + $0x128] sm:$0xff] %v276
                %v278 = vld [vmem:[%s200 + $0x980] sm:$0xff]
                %279 = vst [vmem:[%s201 + $0x130] sm:$0xff] %v278
                %v280 = vld [vmem:[%s200 + $0x9c0] sm:$0xff]
                %281 = vst [vmem:[%s201 + $0x138] sm:$0xff] %v280
                %v282 = vld [vmem:[%s200 + $0xa00] sm:$0xff]
                %283 = vst [vmem:[%s201 + $0x140] sm:$0xff] %v282
                %v284 = vld [vmem:[%s200 + $0xa40] sm:$0xff]
                %285 = vst [vmem:[%s201 + $0x148] sm:$0xff] %v284
                %v286 = vld [vmem:[%s200 + $0xa80] sm:$0xff]
                %287 = vst [vmem:[%s201 + $0x150] sm:$0xff] %v286
                %v288 = vld [vmem:[%s200 + $0xac0] sm:$0xff]
                %289 = vst [vmem:[%s201 + $0x158] sm:$0xff] %v288
                %v290 = vld [vmem:[%s200 + $0xb00] sm:$0xff]
                %291 = vst [vmem:[%s201 + $0x160] sm:$0xff] %v290
                %v292 = vld [vmem:[%s200 + $0xb40] sm:$0xff]
                %293 = vst [vmem:[%s201 + $0x168] sm:$0xff] %v292
                %v294 = vld [vmem:[%s200 + $0xb80] sm:$0xff]
                %295 = vst [vmem:[%s201 + $0x170] sm:$0xff] %v294
                %v296 = vld [vmem:[%s200 + $0xbc0] sm:$0xff]
                %297 = vst [vmem:[%s201 + $0x178] sm:$0xff] %v296
                %v298 = vld [vmem:[%s200 + $0xc00] sm:$0xff]
                %299 = vst [vmem:[%s201 + $0x180] sm:$0xff] %v298
                %v300 = vld [vmem:[%s200 + $0xc40] sm:$0xff]
                %301 = vst [vmem:[%s201 + $0x188] sm:$0xff] %v300
                %v302 = vld [vmem:[%s200 + $0xc80] sm:$0xff]
                %303 = vst [vmem:[%s201 + $0x190] sm:$0xff] %v302
                %v304 = vld [vmem:[%s200 + $0xcc0] sm:$0xff]
                %305 = vst [vmem:[%s201 + $0x198] sm:$0xff] %v304
                %v306 = vld [vmem:[%s200 + $0xd00] sm:$0xff]
                %307 = vst [vmem:[%s201 + $0x1a0] sm:$0xff] %v306
                %v308 = vld [vmem:[%s200 + $0xd40] sm:$0xff]
                %309 = vst [vmem:[%s201 + $0x1a8] sm:$0xff] %v308
                %v310 = vld [vmem:[%s200 + $0xd80] sm:$0xff]
                %311 = vst [vmem:[%s201 + $0x1b0] sm:$0xff] %v310
                %v312 = vld [vmem:[%s200 + $0xdc0] sm:$0xff]
                %313 = vst [vmem:[%s201 + $0x1b8] sm:$0xff] %v312
                %v314 = vld [vmem:[%s200 + $0xe00] sm:$0xff]
                %315 = vst [vmem:[%s201 + $0x1c0] sm:$0xff] %v314
                %v316 = vld [vmem:[%s200 + $0xe40] sm:$0xff]
                %317 = vst [vmem:[%s201 + $0x1c8] sm:$0xff] %v316
                %v318 = vld [vmem:[%s200 + $0xe80] sm:$0xff]
                %319 = vst [vmem:[%s201 + $0x1d0] sm:$0xff] %v318
                %v320 = vld [vmem:[%s200 + $0xec0] sm:$0xff]
                %321 = vst [vmem:[%s201 + $0x1d8] sm:$0xff] %v320
                %v322 = vld [vmem:[%s200 + $0xf00] sm:$0xff]
                %323 = vst [vmem:[%s201 + $0x1e0] sm:$0xff] %v322
                %v324 = vld [vmem:[%s200 + $0xf40] sm:$0xff]
                %325 = vst [vmem:[%s201 + $0x1e8] sm:$0xff] %v324
                %v326 = vld [vmem:[%s200 + $0xf80] sm:$0xff]
                %327 = vst [vmem:[%s201 + $0x1f0] sm:$0xff] %v326
                %v328 = vld [vmem:[%s200 + $0xfc0] sm:$0xff]
                %329 = vst [vmem:[%s201 + $0x1f8] sm:$0xff] %v328
                %v330 = vld [vmem:[%s200 + $0x1000] sm:$0xff]
                %331 = vst [vmem:[%s201 + $0x200] sm:$0xff] %v330
                %v332 = vld [vmem:[%s200 + $0x1040] sm:$0xff]
                %333 = vst [vmem:[%s201 + $0x208] sm:$0xff] %v332
                %v334 = vld [vmem:[%s200 + $0x1080] sm:$0xff]
                %335 = vst [vmem:[%s201 + $0x210] sm:$0xff] %v334
                %v336 = vld [vmem:[%s200 + $0x10c0] sm:$0xff]
                %337 = vst [vmem:[%s201 + $0x218] sm:$0xff] %v336
                %v338 = vld [vmem:[%s200 + $0x1100] sm:$0xff]
                %339 = vst [vmem:[%s201 + $0x220] sm:$0xff] %v338
                %v340 = vld [vmem:[%s200 + $0x1140] sm:$0xff]
                %341 = vst [vmem:[%s201 + $0x228] sm:$0xff] %v340
                %v342 = vld [vmem:[%s200 + $0x1180] sm:$0xff]
                %343 = vst [vmem:[%s201 + $0x230] sm:$0xff] %v342
                %v344 = vld [vmem:[%s200 + $0x11c0] sm:$0xff]
                %345 = vst [vmem:[%s201 + $0x238] sm:$0xff] %v344
                %v346 = vld [vmem:[%s200 + $0x1200] sm:$0xff]
                %347 = vst [vmem:[%s201 + $0x240] sm:$0xff] %v346
                %v348 = vld [vmem:[%s200 + $0x1240] sm:$0xff]
                %349 = vst [vmem:[%s201 + $0x248] sm:$0xff] %v348
                %v350 = vld [vmem:[%s200 + $0x1280] sm:$0xff]
                %351 = vst [vmem:[%s201 + $0x250] sm:$0xff] %v350
                %v352 = vld [vmem:[%s200 + $0x12c0] sm:$0xff]
                %353 = vst [vmem:[%s201 + $0x258] sm:$0xff] %v352
                %v354 = vld [vmem:[%s200 + $0x1300] sm:$0xff]
                %355 = vst [vmem:[%s201 + $0x260] sm:$0xff] %v354
                %v356 = vld [vmem:[%s200 + $0x1340] sm:$0xff]
                %357 = vst [vmem:[%s201 + $0x268] sm:$0xff] %v356
                %v358 = vld [vmem:[%s200 + $0x1380] sm:$0xff]
                %359 = vst [vmem:[%s201 + $0x270] sm:$0xff] %v358
                %v360 = vld [vmem:[%s200 + $0x13c0] sm:$0xff]
                %361 = vst [vmem:[%s201 + $0x278] sm:$0xff] %v360
                %v362 = vld [vmem:[%s200 + $0x1400] sm:$0xff]
                %363 = vst [vmem:[%s201 + $0x280] sm:$0xff] %v362
                %v364 = vld [vmem:[%s200 + $0x1440] sm:$0xff]
                %365 = vst [vmem:[%s201 + $0x288] sm:$0xff] %v364
                %v366 = vld [vmem:[%s200 + $0x1480] sm:$0xff]
                %367 = vst [vmem:[%s201 + $0x290] sm:$0xff] %v366
                %v368 = vld [vmem:[%s200 + $0x14c0] sm:$0xff]
                %369 = vst [vmem:[%s201 + $0x298] sm:$0xff] %v368
                %v370 = vld [vmem:[%s200 + $0x1500] sm:$0xff]
                %371 = vst [vmem:[%s201 + $0x2a0] sm:$0xff] %v370
                %v372 = vld [vmem:[%s200 + $0x1540] sm:$0xff]
                %373 = vst [vmem:[%s201 + $0x2a8] sm:$0xff] %v372
                %v374 = vld [vmem:[%s200 + $0x1580] sm:$0xff]
                %375 = vst [vmem:[%s201 + $0x2b0] sm:$0xff] %v374
                %v376 = vld [vmem:[%s200 + $0x15c0] sm:$0xff]
                %377 = vst [vmem:[%s201 + $0x2b8] sm:$0xff] %v376
                %v378 = vld [vmem:[%s200 + $0x1600] sm:$0xff]
                %379 = vst [vmem:[%s201 + $0x2c0] sm:$0xff] %v378
                %v380 = vld [vmem:[%s200 + $0x1640] sm:$0xff]
                %381 = vst [vmem:[%s201 + $0x2c8] sm:$0xff] %v380
                %v382 = vld [vmem:[%s200 + $0x1680] sm:$0xff]
                %383 = vst [vmem:[%s201 + $0x2d0] sm:$0xff] %v382
                %v384 = vld [vmem:[%s200 + $0x16c0] sm:$0xff]
                %385 = vst [vmem:[%s201 + $0x2d8] sm:$0xff] %v384
                %v386 = vld [vmem:[%s200 + $0x1700] sm:$0xff]
                %387 = vst [vmem:[%s201 + $0x2e0] sm:$0xff] %v386
                %v388 = vld [vmem:[%s200 + $0x1740] sm:$0xff]
                %389 = vst [vmem:[%s201 + $0x2e8] sm:$0xff] %v388
                %v390 = vld [vmem:[%s200 + $0x1780] sm:$0xff]
                %391 = vst [vmem:[%s201 + $0x2f0] sm:$0xff] %v390
                %v392 = vld [vmem:[%s200 + $0x17c0] sm:$0xff]
                %393 = vst [vmem:[%s201 + $0x2f8] sm:$0xff] %v392
                %v394 = vld [vmem:[%s200 + $0x1800] sm:$0xff]
                %395 = vst [vmem:[%s201 + $0x300] sm:$0xff] %v394
                %v396 = vld [vmem:[%s200 + $0x1840] sm:$0xff]
                %397 = vst [vmem:[%s201 + $0x308] sm:$0xff] %v396
                %v398 = vld [vmem:[%s200 + $0x1880] sm:$0xff]
                %399 = vst [vmem:[%s201 + $0x310] sm:$0xff] %v398
                %v400 = vld [vmem:[%s200 + $0x18c0] sm:$0xff]
                %401 = vst [vmem:[%s201 + $0x318] sm:$0xff] %v400
                %v402 = vld [vmem:[%s200 + $0x1900] sm:$0xff]
                %403 = vst [vmem:[%s201 + $0x320] sm:$0xff] %v402
                %v404 = vld [vmem:[%s200 + $0x1940] sm:$0xff]
                %405 = vst [vmem:[%s201 + $0x328] sm:$0xff] %v404
                %v406 = vld [vmem:[%s200 + $0x1980] sm:$0xff]
                %407 = vst [vmem:[%s201 + $0x330] sm:$0xff] %v406
                %v408 = vld [vmem:[%s200 + $0x19c0] sm:$0xff]
                %409 = vst [vmem:[%s201 + $0x338] sm:$0xff] %v408
                %v410 = vld [vmem:[%s200 + $0x1a00] sm:$0xff]
                %411 = vst [vmem:[%s201 + $0x340] sm:$0xff] %v410
                %v412 = vld [vmem:[%s200 + $0x1a40] sm:$0xff]
                %413 = vst [vmem:[%s201 + $0x348] sm:$0xff] %v412
                %v414 = vld [vmem:[%s200 + $0x1a80] sm:$0xff]
                %415 = vst [vmem:[%s201 + $0x350] sm:$0xff] %v414
                %v416 = vld [vmem:[%s200 + $0x1ac0] sm:$0xff]
                %417 = vst [vmem:[%s201 + $0x358] sm:$0xff] %v416
                %v418 = vld [vmem:[%s200 + $0x1b00] sm:$0xff]
                %419 = vst [vmem:[%s201 + $0x360] sm:$0xff] %v418
                %v420 = vld [vmem:[%s200 + $0x1b40] sm:$0xff]
                %421 = vst [vmem:[%s201 + $0x368] sm:$0xff] %v420
                %v422 = vld [vmem:[%s200 + $0x1b80] sm:$0xff]
                %423 = vst [vmem:[%s201 + $0x370] sm:$0xff] %v422
                %v424 = vld [vmem:[%s200 + $0x1bc0] sm:$0xff]
                %425 = vst [vmem:[%s201 + $0x378] sm:$0xff] %v424
                %v426 = vld [vmem:[%s200 + $0x1c00] sm:$0xff]
                %427 = vst [vmem:[%s201 + $0x380] sm:$0xff] %v426
                %v428 = vld [vmem:[%s200 + $0x1c40] sm:$0xff]
                %429 = vst [vmem:[%s201 + $0x388] sm:$0xff] %v428
                %v430 = vld [vmem:[%s200 + $0x1c80] sm:$0xff]
                %431 = vst [vmem:[%s201 + $0x390] sm:$0xff] %v430
                %v432 = vld [vmem:[%s200 + $0x1cc0] sm:$0xff]
                %433 = vst [vmem:[%s201 + $0x398] sm:$0xff] %v432
                %v434 = vld [vmem:[%s200 + $0x1d00] sm:$0xff]
                %435 = vst [vmem:[%s201 + $0x3a0] sm:$0xff] %v434
                %v436 = vld [vmem:[%s200 + $0x1d40] sm:$0xff]
                %437 = vst [vmem:[%s201 + $0x3a8] sm:$0xff] %v436
                %v438 = vld [vmem:[%s200 + $0x1d80] sm:$0xff]
                %439 = vst [vmem:[%s201 + $0x3b0] sm:$0xff] %v438
                %v440 = vld [vmem:[%s200 + $0x1dc0] sm:$0xff]
                %441 = vst [vmem:[%s201 + $0x3b8] sm:$0xff] %v440
                %v442 = vld [vmem:[%s200 + $0x1e00] sm:$0xff]
                %443 = vst [vmem:[%s201 + $0x3c0] sm:$0xff] %v442
                %v444 = vld [vmem:[%s200 + $0x1e40] sm:$0xff]
                %445 = vst [vmem:[%s201 + $0x3c8] sm:$0xff] %v444
                %v446 = vld [vmem:[%s200 + $0x1e80] sm:$0xff]
                %447 = vst [vmem:[%s201 + $0x3d0] sm:$0xff] %v446
                %v448 = vld [vmem:[%s200 + $0x1ec0] sm:$0xff]
                %449 = vst [vmem:[%s201 + $0x3d8] sm:$0xff] %v448
                %v450 = vld [vmem:[%s200 + $0x1f00] sm:$0xff]
                %451 = vst [vmem:[%s201 + $0x3e0] sm:$0xff] %v450
                %v452 = vld [vmem:[%s200 + $0x1f40] sm:$0xff]
                %453 = vst [vmem:[%s201 + $0x3e8] sm:$0xff] %v452
                %v454 = vld [vmem:[%s200 + $0x1f80] sm:$0xff]
                %455 = vst [vmem:[%s201 + $0x3f0] sm:$0xff] %v454
                %v456 = vld [vmem:[%s200 + $0x1fc0] sm:$0xff]
                %457 = vst [vmem:[%s201 + $0x3f8] sm:$0xff] %v456
              $region45: #{net_forward.13} parent=39 // loop_footer
                %s199 = sadd.s32 1, %s195
              $region46: #{net_forward.13} parent=39 // loop_footer_branch
                %194 = sbr.rel target = $region42
              $region47: #{net_forward.13} parent=39 // loop_exit
                _
            $region40: #{net_forward.13} parent=31 // pred_fallthru
              _
          $region32: #{net_forward.13} parent=27 // pred_fallthru
            _
          %726 = vnop
        $region28: #{net_forward.13} parent=23 // pred_fallthru
          _
        // Predicated region
        $region63: #{net_forward.13} parent=23 // pred_check
          %p727 = pneg %p78
        $region64: #{net_forward.13} parent=23 // pred_check_branch
          %729 = sbr.rel (%p727) target = $region66
        $region65: #{net_forward.13} parent=23 // pred_region
          %s730 = smul.u32 2, %s11
          %p731 = scmp.lt.s32.totalorder %s730, 15
          %s732 = scalar_select %p731, %s730, 15
          %s733 = scalar_lea.vmem %s2, %s732
          %s734 = smul.u32 2, %s11
        $region66: #{net_forward.13} parent=23 // pred_fallthru
          _
        // Predicated region
        $region67: #{net_forward.13} parent=23 // pred_check
          %p735 = pneg %p104
        $region68: #{net_forward.13} parent=23 // pred_check_branch
          %737 = sbr.rel (%p735) target = $region70
        $region69: #{net_forward.13} parent=23 // pred_region
          %s738 = smul.u32 32, %s11
          %p739 = scmp.lt.s32.totalorder %s738, 255
          %s740 = scalar_select %p739, %s738, 255
          %s741 = smul.addr %s740, 8
          %s742 = smul.addr %s741, 4
          %s743 = scalar_lea.vmem %s3, %s742
          %s744 = smul.u32 32, %s11
        $region70: #{net_forward.13} parent=23 // pred_fallthru
          _
      $region24: #{net_forward.13} parent=5 // pred_fallthru
        _
      %p745 = scmp.le.s32.totalorder 1, %s11
      %p746 = scmp.lt.s32.totalorder %s11, 9
      %p747 = pnand %p745, %p746
      %p748 = pneg %p747
      // Predicated region
      $region71: #{net_forward.13} parent=5 // pred_check
        _
      $region72: #{net_forward.13} parent=5 // pred_check_branch
        %750 = sbr.rel (%p747) target = $region74
      $region73: #{net_forward.13} parent=5 // pred_region
        %s751 = ssub.s32 %s11, 1
        %s752 = sand.u32 %s45, 1
        %s753 = sand.u32 %s45, 1
        %s754 = smul.addr %s753, 1024
        %s755 = scalar_lea.vmem [#allocation3], %s754
        // Predicated region
        $region75: #{net_forward.13} parent=73 // pred_check
          %p756 = pneg %p58
        $region76: #{net_forward.13} parent=73 // pred_check_branch
          %758 = sbr.rel (%p756) target = $region78
        $region77: #{net_forward.13} parent=73 // pred_region
          _
        $region78: #{net_forward.13} parent=73 // pred_fallthru
          _
        %p759 = pneg %p32
        %p760 = pneg %p29
        %s761 = sand.u32 %s45, 1
        %s762 = sand.u32 %s45, 1
        %s763 = smul.addr %s762, 1024
        %s764 = scalar_lea.vmem [#allocation3], %s763
        %p765 = pneg %p58
        %p766 = pneg %p55
        %s767 = smul.u32 2, %s16
        %p768 = scmp.lt.s32.totalorder %s767, 15
        %s769 = scalar_select %p768, %s767, 15
        %s770 = scalar_lea.vmem %s2, %s769
        %p771 = pneg %p84
        %p772 = pneg %p81
        %s773 = smul.u32 32, %s16
        %p774 = scmp.lt.s32.totalorder %s773, 255
        %s775 = scalar_select %p774, %s773, 255
        %s776 = smul.addr %s775, 8
        %s777 = smul.addr %s776, 4
        %s778 = scalar_lea.vmem %s3, %s777
        %p779 = pneg %p110
        %p780 = pneg %p107
        %p781 = pneg %p131
        %p782 = pneg %p128
        %p783 = pneg %p152
        %p784 = pneg %p149
        %s785 = smul.u32 2, %s16
        %s786 = smul.u32 2, %s16
        %p787 = scmp.lt.s32.totalorder %s786, 15
        %s788 = scalar_select %p787, %s786, 15
        %s789 = scalar_lea.vmem %s2, %s788
        %s790 = smul.u32 2, %s16
        %s791 = smul.u32 32, %s16
        %p792 = scmp.lt.s32.totalorder %s791, 255
        %s793 = scalar_select %p792, %s791, 255
        %s794 = smul.addr %s793, 8
        %s795 = smul.addr %s794, 4
        %s796 = scalar_lea.vmem %s3, %s795
        %s797 = smul.u32 32, %s16
        %p798 = scmp.eq.s32.totalorder %s16, 0
        // Predicated region
        $region79: #{net_forward.13} parent=73 // pred_check
          %p799 = pneg %p798
        $region80: #{net_forward.13} parent=73 // pred_check_branch
          %801 = sbr.rel (%p799) target = $region82
        $region81: #{net_forward.13} parent=73 // pred_region
          %802 = vst [vmem:[#allocation2] sm:$0xff] 0.0
          %803 = vst [vmem:[#allocation2 + $0x8] sm:$0xff] 0.0
          %804 = vst [vmem:[#allocation2 + $0x10] sm:$0xff] 0.0
          %805 = vst [vmem:[#allocation2 + $0x18] sm:$0xff] 0.0
          %806 = vst [vmem:[#allocation2 + $0x20] sm:$0xff] 0.0
          %807 = vst [vmem:[#allocation2 + $0x28] sm:$0xff] 0.0
          %808 = vst [vmem:[#allocation2 + $0x30] sm:$0xff] 0.0
          %809 = vst [vmem:[#allocation2 + $0x38] sm:$0xff] 0.0
        $region82: #{net_forward.13} parent=73 // pred_fallthru
          _
        %v810 = vld [vmem:[%s0] sm:$0xff]
        %v811 = vld [vmem:[%s0 + $0x8] sm:$0xff]
        %v812 = vld [vmem:[%s0 + $0x10] sm:$0xff]
        %v813 = vld [vmem:[%s0 + $0x18] sm:$0xff]
        %v814 = vld [vmem:[%s755] sm:$0xff]
        %v815 = vld [vmem:[%s755 + $0x8] sm:$0xff]
        %v816 = vld [vmem:[%s755 + $0x10] sm:$0xff]
        %v817 = vld [vmem:[%s755 + $0x18] sm:$0xff]
        %v818 = vld [vmem:[%s755 + $0x20] sm:$0xff]
        %v819 = vld [vmem:[%s755 + $0x28] sm:$0xff]
        %v820 = vld [vmem:[%s755 + $0x30] sm:$0xff]
        %v821 = vld [vmem:[%s755 + $0x38] sm:$0xff]
        %v822 = vld [vmem:[%s755 + $0x40] sm:$0xff]
        %v823 = vld [vmem:[%s755 + $0x48] sm:$0xff]
        %v824 = vld [vmem:[%s755 + $0x50] sm:$0xff]
        %v825 = vld [vmem:[%s755 + $0x58] sm:$0xff]
        %v826 = vld [vmem:[%s755 + $0x60] sm:$0xff]
        %v827 = vld [vmem:[%s755 + $0x68] sm:$0xff]
        %v828 = vld [vmem:[%s755 + $0x70] sm:$0xff]
        %v829 = vld [vmem:[%s755 + $0x78] sm:$0xff]
        %v830 = vld [vmem:[%s755 + $0x80] sm:$0xff]
        %v831 = vld [vmem:[%s755 + $0x88] sm:$0xff]
        %v832 = vld [vmem:[%s755 + $0x90] sm:$0xff]
        %v833 = vld [vmem:[%s755 + $0x98] sm:$0xff]
        %v834 = vld [vmem:[%s755 + $0xa0] sm:$0xff]
        %v835 = vld [vmem:[%s755 + $0xa8] sm:$0xff]
        %v836 = vld [vmem:[%s755 + $0xb0] sm:$0xff]
        %v837 = vld [vmem:[%s755 + $0xb8] sm:$0xff]
        %v838 = vld [vmem:[%s755 + $0xc0] sm:$0xff]
        %v839 = vld [vmem:[%s755 + $0xc8] sm:$0xff]
        %v840 = vld [vmem:[%s755 + $0xd0] sm:$0xff]
        %v841 = vld [vmem:[%s755 + $0xd8] sm:$0xff]
        %v842 = vld [vmem:[%s755 + $0xe0] sm:$0xff]
        %v843 = vld [vmem:[%s755 + $0xe8] sm:$0xff]
        %v844 = vld [vmem:[%s755 + $0xf0] sm:$0xff]
        %v845 = vld [vmem:[%s755 + $0xf8] sm:$0xff]
        %v846 = vld [vmem:[%s755 + $0x100] sm:$0xff]
        %v847 = vld [vmem:[%s755 + $0x108] sm:$0xff]
        %v848 = vld [vmem:[%s755 + $0x110] sm:$0xff]
        %v849 = vld [vmem:[%s755 + $0x118] sm:$0xff]
        %v850 = vld [vmem:[%s755 + $0x120] sm:$0xff]
        %v851 = vld [vmem:[%s755 + $0x128] sm:$0xff]
        %v852 = vld [vmem:[%s755 + $0x130] sm:$0xff]
        %v853 = vld [vmem:[%s755 + $0x138] sm:$0xff]
        %v854 = vld [vmem:[%s755 + $0x140] sm:$0xff]
        %v855 = vld [vmem:[%s755 + $0x148] sm:$0xff]
        %v856 = vld [vmem:[%s755 + $0x150] sm:$0xff]
        %v857 = vld [vmem:[%s755 + $0x158] sm:$0xff]
        %v858 = vld [vmem:[%s755 + $0x160] sm:$0xff]
        %v859 = vld [vmem:[%s755 + $0x168] sm:$0xff]
        %v860 = vld [vmem:[%s755 + $0x170] sm:$0xff]
        %v861 = vld [vmem:[%s755 + $0x178] sm:$0xff]
        %v862 = vld [vmem:[%s755 + $0x180] sm:$0xff]
        %v863 = vld [vmem:[%s755 + $0x188] sm:$0xff]
        %v864 = vld [vmem:[%s755 + $0x190] sm:$0xff]
        %v865 = vld [vmem:[%s755 + $0x198] sm:$0xff]
        %v866 = vld [vmem:[%s755 + $0x1a0] sm:$0xff]
        %v867 = vld [vmem:[%s755 + $0x1a8] sm:$0xff]
        %v868 = vld [vmem:[%s755 + $0x1b0] sm:$0xff]
        %v869 = vld [vmem:[%s755 + $0x1b8] sm:$0xff]
        %v870 = vld [vmem:[%s755 + $0x1c0] sm:$0xff]
        %v871 = vld [vmem:[%s755 + $0x1c8] sm:$0xff]
        %v872 = vld [vmem:[%s755 + $0x1d0] sm:$0xff]
        %v873 = vld [vmem:[%s755 + $0x1d8] sm:$0xff]
        %v874 = vld [vmem:[%s755 + $0x1e0] sm:$0xff]
        %v875 = vld [vmem:[%s755 + $0x1e8] sm:$0xff]
        %v876 = vld [vmem:[%s755 + $0x1f0] sm:$0xff]
        %v877 = vld [vmem:[%s755 + $0x1f8] sm:$0xff]
        %v878 = vld [vmem:[%s755 + $0x200] sm:$0xff]
        %v879 = vld [vmem:[%s755 + $0x208] sm:$0xff]
        %v880 = vld [vmem:[%s755 + $0x210] sm:$0xff]
        %v881 = vld [vmem:[%s755 + $0x218] sm:$0xff]
        %v882 = vld [vmem:[%s755 + $0x220] sm:$0xff]
        %v883 = vld [vmem:[%s755 + $0x228] sm:$0xff]
        %v884 = vld [vmem:[%s755 + $0x230] sm:$0xff]
        %v885 = vld [vmem:[%s755 + $0x238] sm:$0xff]
        %v886 = vld [vmem:[%s755 + $0x240] sm:$0xff]
        %v887 = vld [vmem:[%s755 + $0x248] sm:$0xff]
        %v888 = vld [vmem:[%s755 + $0x250] sm:$0xff]
        %v889 = vld [vmem:[%s755 + $0x258] sm:$0xff]
        %v890 = vld [vmem:[%s755 + $0x260] sm:$0xff]
        %v891 = vld [vmem:[%s755 + $0x268] sm:$0xff]
        %v892 = vld [vmem:[%s755 + $0x270] sm:$0xff]
        %v893 = vld [vmem:[%s755 + $0x278] sm:$0xff]
        %v894 = vld [vmem:[%s755 + $0x280] sm:$0xff]
        %v895 = vld [vmem:[%s755 + $0x288] sm:$0xff]
        %v896 = vld [vmem:[%s755 + $0x290] sm:$0xff]
        %v897 = vld [vmem:[%s755 + $0x298] sm:$0xff]
        %v898 = vld [vmem:[%s755 + $0x2a0] sm:$0xff]
        %v899 = vld [vmem:[%s755 + $0x2a8] sm:$0xff]
        %v900 = vld [vmem:[%s755 + $0x2b0] sm:$0xff]
        %v901 = vld [vmem:[%s755 + $0x2b8] sm:$0xff]
        %v902 = vld [vmem:[%s755 + $0x2c0] sm:$0xff]
        %v903 = vld [vmem:[%s755 + $0x2c8] sm:$0xff]
        %v904 = vld [vmem:[%s755 + $0x2d0] sm:$0xff]
        %v905 = vld [vmem:[%s755 + $0x2d8] sm:$0xff]
        %v906 = vld [vmem:[%s755 + $0x2e0] sm:$0xff]
        %v907 = vld [vmem:[%s755 + $0x2e8] sm:$0xff]
        %v908 = vld [vmem:[%s755 + $0x2f0] sm:$0xff]
        %v909 = vld [vmem:[%s755 + $0x2f8] sm:$0xff]
        %v910 = vld [vmem:[%s755 + $0x300] sm:$0xff]
        %v911 = vld [vmem:[%s755 + $0x308] sm:$0xff]
        %v912 = vld [vmem:[%s755 + $0x310] sm:$0xff]
        %v913 = vld [vmem:[%s755 + $0x318] sm:$0xff]
        %v914 = vld [vmem:[%s755 + $0x320] sm:$0xff]
        %v915 = vld [vmem:[%s755 + $0x328] sm:$0xff]
        %v916 = vld [vmem:[%s755 + $0x330] sm:$0xff]
        %v917 = vld [vmem:[%s755 + $0x338] sm:$0xff]
        %v918 = vld [vmem:[%s755 + $0x340] sm:$0xff]
        %v919 = vld [vmem:[%s755 + $0x348] sm:$0xff]
        %v920 = vld [vmem:[%s755 + $0x350] sm:$0xff]
        %v921 = vld [vmem:[%s755 + $0x358] sm:$0xff]
        %v922 = vld [vmem:[%s755 + $0x360] sm:$0xff]
        %v923 = vld [vmem:[%s755 + $0x368] sm:$0xff]
        %v924 = vld [vmem:[%s755 + $0x370] sm:$0xff]
        %v925 = vld [vmem:[%s755 + $0x378] sm:$0xff]
        %v926 = vld [vmem:[%s755 + $0x380] sm:$0xff]
        %v927 = vld [vmem:[%s755 + $0x388] sm:$0xff]
        %v928 = vld [vmem:[%s755 + $0x390] sm:$0xff]
        %v929 = vld [vmem:[%s755 + $0x398] sm:$0xff]
        %v930 = vld [vmem:[%s755 + $0x3a0] sm:$0xff]
        %v931 = vld [vmem:[%s755 + $0x3a8] sm:$0xff]
        %v932 = vld [vmem:[%s755 + $0x3b0] sm:$0xff]
        %v933 = vld [vmem:[%s755 + $0x3b8] sm:$0xff]
        %v934 = vld [vmem:[%s755 + $0x3c0] sm:$0xff]
        %v935 = vld [vmem:[%s755 + $0x3c8] sm:$0xff]
        %v936 = vld [vmem:[%s755 + $0x3d0] sm:$0xff]
        %v937 = vld [vmem:[%s755 + $0x3d8] sm:$0xff]
        %v938 = vld [vmem:[%s755 + $0x3e0] sm:$0xff]
        %v939 = vld [vmem:[%s755 + $0x3e8] sm:$0xff]
        %v940 = vld [vmem:[%s755 + $0x3f0] sm:$0xff]
        %v941 = vld [vmem:[%s755 + $0x3f8] sm:$0xff]
        %v942 = vld [vmem:[%s789] sm:$0x3]
        %v944 = vlaneseq
        %v945 = vshrl.u32 %v944, 7
        %v946 = vsub.s32 0, %v945
        %v947 = vrot.slane %v942, %v946
        %v948 = vlaneseq
        %v949 = vshrl.u32 %v948, 7
        %v950 = vsub.s32 1, %v949
        %v951 = vrot.slane %v942, %v950
        %v958 = vunpack.c.l.b16 %v810
        %v959 = vunpack.c.h.b16 %v810
        %v960 = vunpack.c.l.b16 %v811
        %v961 = vunpack.c.h.b16 %v811
        %v962 = vunpack.c.l.b16 %v812
        %v963 = vunpack.c.h.b16 %v812
        %v964 = vunpack.c.l.b16 %v813
        %v965 = vunpack.c.h.b16 %v813
        %v966 = vpack.c.b16 %v958, %v958
        %v967 = vpack.c.b16 %v959, %v959
        %v968 = vpack.c.b16 %v960, %v960
        %v969 = vpack.c.b16 %v961, %v961
        %v970 = vpack.c.b16 %v962, %v962
        %v971 = vpack.c.b16 %v963, %v963
        %v972 = vpack.c.b16 %v964, %v964
        %v973 = vpack.c.b16 %v965, %v965
        %v1110 = vunpack.c.l.b16 %v814
        %v1111 = vunpack.c.h.b16 %v814
        %v1112 = vunpack.c.l.b16 %v815
        %v1113 = vunpack.c.h.b16 %v815
        %v1114 = vunpack.c.l.b16 %v816
        %v1115 = vunpack.c.h.b16 %v816
        %v1116 = vunpack.c.l.b16 %v817
        %v1117 = vunpack.c.h.b16 %v817
        %v1118 = vunpack.c.l.b16 %v818
        %v1119 = vunpack.c.h.b16 %v818
        %v1120 = vunpack.c.l.b16 %v819
        %v1121 = vunpack.c.h.b16 %v819
        %v1122 = vunpack.c.l.b16 %v820
        %v1123 = vunpack.c.h.b16 %v820
        %v1124 = vunpack.c.l.b16 %v821
        %v1125 = vunpack.c.h.b16 %v821
        %v1126 = vunpack.c.l.b16 %v822
        %v1127 = vunpack.c.h.b16 %v822
        %v1128 = vunpack.c.l.b16 %v823
        %v1129 = vunpack.c.h.b16 %v823
        %v1130 = vunpack.c.l.b16 %v824
        %v1131 = vunpack.c.h.b16 %v824
        %v1132 = vunpack.c.l.b16 %v825
        %v1133 = vunpack.c.h.b16 %v825
        %v1134 = vunpack.c.l.b16 %v826
        %v1135 = vunpack.c.h.b16 %v826
        %v1136 = vunpack.c.l.b16 %v827
        %v1137 = vunpack.c.h.b16 %v827
        %v1138 = vunpack.c.l.b16 %v828
        %v1139 = vunpack.c.h.b16 %v828
        %v1140 = vunpack.c.l.b16 %v829
        %v1141 = vunpack.c.h.b16 %v829
        %v1142 = vunpack.c.l.b16 %v830
        %v1143 = vunpack.c.h.b16 %v830
        %v1144 = vunpack.c.l.b16 %v831
        %v1145 = vunpack.c.h.b16 %v831
        %v1146 = vunpack.c.l.b16 %v832
        %v1147 = vunpack.c.h.b16 %v832
        %v1148 = vunpack.c.l.b16 %v833
        %v1149 = vunpack.c.h.b16 %v833
        %v1150 = vunpack.c.l.b16 %v834
        %v1151 = vunpack.c.h.b16 %v834
        %v1152 = vunpack.c.l.b16 %v835
        %v1153 = vunpack.c.h.b16 %v835
        %v1154 = vunpack.c.l.b16 %v836
        %v1155 = vunpack.c.h.b16 %v836
        %v1156 = vunpack.c.l.b16 %v837
        %v1157 = vunpack.c.h.b16 %v837
        %v1158 = vunpack.c.l.b16 %v838
        %v1159 = vunpack.c.h.b16 %v838
        %v1160 = vunpack.c.l.b16 %v839
        %v1161 = vunpack.c.h.b16 %v839
        %v1162 = vunpack.c.l.b16 %v840
        %v1163 = vunpack.c.h.b16 %v840
        %v1164 = vunpack.c.l.b16 %v841
        %v1165 = vunpack.c.h.b16 %v841
        %v1166 = vunpack.c.l.b16 %v842
        %v1167 = vunpack.c.h.b16 %v842
        %v1168 = vunpack.c.l.b16 %v843
        %v1169 = vunpack.c.h.b16 %v843
        %v1170 = vunpack.c.l.b16 %v844
        %v1171 = vunpack.c.h.b16 %v844
        %v1172 = vunpack.c.l.b16 %v845
        %v1173 = vunpack.c.h.b16 %v845
        %v1174 = vunpack.c.l.b16 %v846
        %v1175 = vunpack.c.h.b16 %v846
        %v1176 = vunpack.c.l.b16 %v847
        %v1177 = vunpack.c.h.b16 %v847
        %v1178 = vunpack.c.l.b16 %v848
        %v1179 = vunpack.c.h.b16 %v848
        %v1180 = vunpack.c.l.b16 %v849
        %v1181 = vunpack.c.h.b16 %v849
        %v1182 = vunpack.c.l.b16 %v850
        %v1183 = vunpack.c.h.b16 %v850
        %v1184 = vunpack.c.l.b16 %v851
        %v1185 = vunpack.c.h.b16 %v851
        %v1186 = vunpack.c.l.b16 %v852
        %v1187 = vunpack.c.h.b16 %v852
        %v1188 = vunpack.c.l.b16 %v853
        %v1189 = vunpack.c.h.b16 %v853
        %v1190 = vunpack.c.l.b16 %v854
        %v1191 = vunpack.c.h.b16 %v854
        %v1192 = vunpack.c.l.b16 %v855
        %v1193 = vunpack.c.h.b16 %v855
        %v1194 = vunpack.c.l.b16 %v856
        %v1195 = vunpack.c.h.b16 %v856
        %v1196 = vunpack.c.l.b16 %v857
        %v1197 = vunpack.c.h.b16 %v857
        %v1198 = vunpack.c.l.b16 %v858
        %v1199 = vunpack.c.h.b16 %v858
        %v1200 = vunpack.c.l.b16 %v859
        %v1201 = vunpack.c.h.b16 %v859
        %v1202 = vunpack.c.l.b16 %v860
        %v1203 = vunpack.c.h.b16 %v860
        %v1204 = vunpack.c.l.b16 %v861
        %v1205 = vunpack.c.h.b16 %v861
        %v1206 = vunpack.c.l.b16 %v862
        %v1207 = vunpack.c.h.b16 %v862
        %v1208 = vunpack.c.l.b16 %v863
        %v1209 = vunpack.c.h.b16 %v863
        %v1210 = vunpack.c.l.b16 %v864
        %v1211 = vunpack.c.h.b16 %v864
        %v1212 = vunpack.c.l.b16 %v865
        %v1213 = vunpack.c.h.b16 %v865
        %v1214 = vunpack.c.l.b16 %v866
        %v1215 = vunpack.c.h.b16 %v866
        %v1216 = vunpack.c.l.b16 %v867
        %v1217 = vunpack.c.h.b16 %v867
        %v1218 = vunpack.c.l.b16 %v868
        %v1219 = vunpack.c.h.b16 %v868
        %v1220 = vunpack.c.l.b16 %v869
        %v1221 = vunpack.c.h.b16 %v869
        %v1222 = vunpack.c.l.b16 %v870
        %v1223 = vunpack.c.h.b16 %v870
        %v1224 = vunpack.c.l.b16 %v871
        %v1225 = vunpack.c.h.b16 %v871
        %v1226 = vunpack.c.l.b16 %v872
        %v1227 = vunpack.c.h.b16 %v872
        %v1228 = vunpack.c.l.b16 %v873
        %v1229 = vunpack.c.h.b16 %v873
        %v1230 = vunpack.c.l.b16 %v874
        %v1231 = vunpack.c.h.b16 %v874
        %v1232 = vunpack.c.l.b16 %v875
        %v1233 = vunpack.c.h.b16 %v875
        %v1234 = vunpack.c.l.b16 %v876
        %v1235 = vunpack.c.h.b16 %v876
        %v1236 = vunpack.c.l.b16 %v877
        %v1237 = vunpack.c.h.b16 %v877
        %v1238 = vunpack.c.l.b16 %v878
        %v1239 = vunpack.c.h.b16 %v878
        %v1240 = vunpack.c.l.b16 %v879
        %v1241 = vunpack.c.h.b16 %v879
        %v1242 = vunpack.c.l.b16 %v880
        %v1243 = vunpack.c.h.b16 %v880
        %v1244 = vunpack.c.l.b16 %v881
        %v1245 = vunpack.c.h.b16 %v881
        %v1246 = vunpack.c.l.b16 %v882
        %v1247 = vunpack.c.h.b16 %v882
        %v1248 = vunpack.c.l.b16 %v883
        %v1249 = vunpack.c.h.b16 %v883
        %v1250 = vunpack.c.l.b16 %v884
        %v1251 = vunpack.c.h.b16 %v884
        %v1252 = vunpack.c.l.b16 %v885
        %v1253 = vunpack.c.h.b16 %v885
        %v1254 = vunpack.c.l.b16 %v886
        %v1255 = vunpack.c.h.b16 %v886
        %v1256 = vunpack.c.l.b16 %v887
        %v1257 = vunpack.c.h.b16 %v887
        %v1258 = vunpack.c.l.b16 %v888
        %v1259 = vunpack.c.h.b16 %v888
        %v1260 = vunpack.c.l.b16 %v889
        %v1261 = vunpack.c.h.b16 %v889
        %v1262 = vunpack.c.l.b16 %v890
        %v1263 = vunpack.c.h.b16 %v890
        %v1264 = vunpack.c.l.b16 %v891
        %v1265 = vunpack.c.h.b16 %v891
        %v1266 = vunpack.c.l.b16 %v892
        %v1267 = vunpack.c.h.b16 %v892
        %v1268 = vunpack.c.l.b16 %v893
        %v1269 = vunpack.c.h.b16 %v893
        %v1270 = vunpack.c.l.b16 %v894
        %v1271 = vunpack.c.h.b16 %v894
        %v1272 = vunpack.c.l.b16 %v895
        %v1273 = vunpack.c.h.b16 %v895
        %v1274 = vunpack.c.l.b16 %v896
        %v1275 = vunpack.c.h.b16 %v896
        %v1276 = vunpack.c.l.b16 %v897
        %v1277 = vunpack.c.h.b16 %v897
        %v1278 = vunpack.c.l.b16 %v898
        %v1279 = vunpack.c.h.b16 %v898
        %v1280 = vunpack.c.l.b16 %v899
        %v1281 = vunpack.c.h.b16 %v899
        %v1282 = vunpack.c.l.b16 %v900
        %v1283 = vunpack.c.h.b16 %v900
        %v1284 = vunpack.c.l.b16 %v901
        %v1285 = vunpack.c.h.b16 %v901
        %v1286 = vunpack.c.l.b16 %v902
        %v1287 = vunpack.c.h.b16 %v902
        %v1288 = vunpack.c.l.b16 %v903
        %v1289 = vunpack.c.h.b16 %v903
        %v1290 = vunpack.c.l.b16 %v904
        %v1291 = vunpack.c.h.b16 %v904
        %v1292 = vunpack.c.l.b16 %v905
        %v1293 = vunpack.c.h.b16 %v905
        %v1294 = vunpack.c.l.b16 %v906
        %v1295 = vunpack.c.h.b16 %v906
        %v1296 = vunpack.c.l.b16 %v907
        %v1297 = vunpack.c.h.b16 %v907
        %v1298 = vunpack.c.l.b16 %v908
        %v1299 = vunpack.c.h.b16 %v908
        %v1300 = vunpack.c.l.b16 %v909
        %v1301 = vunpack.c.h.b16 %v909
        %v1302 = vunpack.c.l.b16 %v910
        %v1303 = vunpack.c.h.b16 %v910
        %v1304 = vunpack.c.l.b16 %v911
        %v1305 = vunpack.c.h.b16 %v911
        %v1306 = vunpack.c.l.b16 %v912
        %v1307 = vunpack.c.h.b16 %v912
        %v1308 = vunpack.c.l.b16 %v913
        %v1309 = vunpack.c.h.b16 %v913
        %v1310 = vunpack.c.l.b16 %v914
        %v1311 = vunpack.c.h.b16 %v914
        %v1312 = vunpack.c.l.b16 %v915
        %v1313 = vunpack.c.h.b16 %v915
        %v1314 = vunpack.c.l.b16 %v916
        %v1315 = vunpack.c.h.b16 %v916
        %v1316 = vunpack.c.l.b16 %v917
        %v1317 = vunpack.c.h.b16 %v917
        %v1318 = vunpack.c.l.b16 %v918
        %v1319 = vunpack.c.h.b16 %v918
        %v1320 = vunpack.c.l.b16 %v919
        %v1321 = vunpack.c.h.b16 %v919
        %v1322 = vunpack.c.l.b16 %v920
        %v1323 = vunpack.c.h.b16 %v920
        %v1324 = vunpack.c.l.b16 %v921
        %v1325 = vunpack.c.h.b16 %v921
        %v1326 = vunpack.c.l.b16 %v922
        %v1327 = vunpack.c.h.b16 %v922
        %v1328 = vunpack.c.l.b16 %v923
        %v1329 = vunpack.c.h.b16 %v923
        %v1330 = vunpack.c.l.b16 %v924
        %v1331 = vunpack.c.h.b16 %v924
        %v1332 = vunpack.c.l.b16 %v925
        %v1333 = vunpack.c.h.b16 %v925
        %v1334 = vunpack.c.l.b16 %v926
        %v1335 = vunpack.c.h.b16 %v926
        %v1336 = vunpack.c.l.b16 %v927
        %v1337 = vunpack.c.h.b16 %v927
        %v1338 = vunpack.c.l.b16 %v928
        %v1339 = vunpack.c.h.b16 %v928
        %v1340 = vunpack.c.l.b16 %v929
        %v1341 = vunpack.c.h.b16 %v929
        %v1342 = vunpack.c.l.b16 %v930
        %v1343 = vunpack.c.h.b16 %v930
        %v1344 = vunpack.c.l.b16 %v931
        %v1345 = vunpack.c.h.b16 %v931
        %v1346 = vunpack.c.l.b16 %v932
        %v1347 = vunpack.c.h.b16 %v932
        %v1348 = vunpack.c.l.b16 %v933
        %v1349 = vunpack.c.h.b16 %v933
        %v1350 = vunpack.c.l.b16 %v934
        %v1351 = vunpack.c.h.b16 %v934
        %v1352 = vunpack.c.l.b16 %v935
        %v1353 = vunpack.c.h.b16 %v935
        %v1354 = vunpack.c.l.b16 %v936
        %v1355 = vunpack.c.h.b16 %v936
        %v1356 = vunpack.c.l.b16 %v937
        %v1357 = vunpack.c.h.b16 %v937
        %v1358 = vunpack.c.l.b16 %v938
        %v1359 = vunpack.c.h.b16 %v938
        %v1360 = vunpack.c.l.b16 %v939
        %v1361 = vunpack.c.h.b16 %v939
        %v1362 = vunpack.c.l.b16 %v940
        %v1363 = vunpack.c.h.b16 %v940
        %v1364 = vunpack.c.l.b16 %v941
        %v1365 = vunpack.c.h.b16 %v941
        %v1366 = vpack.c.b16 %v1112, %v1110
        %v1367 = vpack.c.b16 %v1113, %v1111
        %v1368 = vpack.c.b16 %v1116, %v1114
        %v1369 = vpack.c.b16 %v1117, %v1115
        %v1370 = vpack.c.b16 %v1120, %v1118
        %v1371 = vpack.c.b16 %v1121, %v1119
        %v1372 = vpack.c.b16 %v1124, %v1122
        %v1373 = vpack.c.b16 %v1125, %v1123
        %v1374 = vpack.c.b16 %v1128, %v1126
        %v1375 = vpack.c.b16 %v1129, %v1127
        %v1376 = vpack.c.b16 %v1132, %v1130
        %v1377 = vpack.c.b16 %v1133, %v1131
        %v1378 = vpack.c.b16 %v1136, %v1134
        %v1379 = vpack.c.b16 %v1137, %v1135
        %v1380 = vpack.c.b16 %v1140, %v1138
        %v1381 = vpack.c.b16 %v1141, %v1139
        %v1382 = vpack.c.b16 %v1144, %v1142
        %v1383 = vpack.c.b16 %v1145, %v1143
        %v1384 = vpack.c.b16 %v1148, %v1146
        %v1385 = vpack.c.b16 %v1149, %v1147
        %v1386 = vpack.c.b16 %v1152, %v1150
        %v1387 = vpack.c.b16 %v1153, %v1151
        %v1388 = vpack.c.b16 %v1156, %v1154
        %v1389 = vpack.c.b16 %v1157, %v1155
        %v1390 = vpack.c.b16 %v1160, %v1158
        %v1391 = vpack.c.b16 %v1161, %v1159
        %v1392 = vpack.c.b16 %v1164, %v1162
        %v1393 = vpack.c.b16 %v1165, %v1163
        %v1394 = vpack.c.b16 %v1168, %v1166
        %v1395 = vpack.c.b16 %v1169, %v1167
        %v1396 = vpack.c.b16 %v1172, %v1170
        %v1397 = vpack.c.b16 %v1173, %v1171
        %v1398 = vpack.c.b16 %v1176, %v1174
        %v1399 = vpack.c.b16 %v1177, %v1175
        %v1400 = vpack.c.b16 %v1180, %v1178
        %v1401 = vpack.c.b16 %v1181, %v1179
        %v1402 = vpack.c.b16 %v1184, %v1182
        %v1403 = vpack.c.b16 %v1185, %v1183
        %v1404 = vpack.c.b16 %v1188, %v1186
        %v1405 = vpack.c.b16 %v1189, %v1187
        %v1406 = vpack.c.b16 %v1192, %v1190
        %v1407 = vpack.c.b16 %v1193, %v1191
        %v1408 = vpack.c.b16 %v1196, %v1194
        %v1409 = vpack.c.b16 %v1197, %v1195
        %v1410 = vpack.c.b16 %v1200, %v1198
        %v1411 = vpack.c.b16 %v1201, %v1199
        %v1412 = vpack.c.b16 %v1204, %v1202
        %v1413 = vpack.c.b16 %v1205, %v1203
        %v1414 = vpack.c.b16 %v1208, %v1206
        %v1415 = vpack.c.b16 %v1209, %v1207
        %v1416 = vpack.c.b16 %v1212, %v1210
        %v1417 = vpack.c.b16 %v1213, %v1211
        %v1418 = vpack.c.b16 %v1216, %v1214
        %v1419 = vpack.c.b16 %v1217, %v1215
        %v1420 = vpack.c.b16 %v1220, %v1218
        %v1421 = vpack.c.b16 %v1221, %v1219
        %v1422 = vpack.c.b16 %v1224, %v1222
        %v1423 = vpack.c.b16 %v1225, %v1223
        %v1424 = vpack.c.b16 %v1228, %v1226
        %v1425 = vpack.c.b16 %v1229, %v1227
        %v1426 = vpack.c.b16 %v1232, %v1230
        %v1427 = vpack.c.b16 %v1233, %v1231
        %v1428 = vpack.c.b16 %v1236, %v1234
        %v1429 = vpack.c.b16 %v1237, %v1235
        %v1430 = vpack.c.b16 %v1240, %v1238
        %v1431 = vpack.c.b16 %v1241, %v1239
        %v1432 = vpack.c.b16 %v1244, %v1242
        %v1433 = vpack.c.b16 %v1245, %v1243
        %v1434 = vpack.c.b16 %v1248, %v1246
        %v1435 = vpack.c.b16 %v1249, %v1247
        %v1436 = vpack.c.b16 %v1252, %v1250
        %v1437 = vpack.c.b16 %v1253, %v1251
        %v1438 = vpack.c.b16 %v1256, %v1254
        %v1439 = vpack.c.b16 %v1257, %v1255
        %v1440 = vpack.c.b16 %v1260, %v1258
        %v1441 = vpack.c.b16 %v1261, %v1259
        %v1442 = vpack.c.b16 %v1264, %v1262
        %v1443 = vpack.c.b16 %v1265, %v1263
        %v1444 = vpack.c.b16 %v1268, %v1266
        %v1445 = vpack.c.b16 %v1269, %v1267
        %v1446 = vpack.c.b16 %v1272, %v1270
        %v1447 = vpack.c.b16 %v1273, %v1271
        %v1448 = vpack.c.b16 %v1276, %v1274
        %v1449 = vpack.c.b16 %v1277, %v1275
        %v1450 = vpack.c.b16 %v1280, %v1278
        %v1451 = vpack.c.b16 %v1281, %v1279
        %v1452 = vpack.c.b16 %v1284, %v1282
        %v1453 = vpack.c.b16 %v1285, %v1283
        %v1454 = vpack.c.b16 %v1288, %v1286
        %v1455 = vpack.c.b16 %v1289, %v1287
        %v1456 = vpack.c.b16 %v1292, %v1290
        %v1457 = vpack.c.b16 %v1293, %v1291
        %v1458 = vpack.c.b16 %v1296, %v1294
        %v1459 = vpack.c.b16 %v1297, %v1295
        %v1460 = vpack.c.b16 %v1300, %v1298
        %v1461 = vpack.c.b16 %v1301, %v1299
        %v1462 = vpack.c.b16 %v1304, %v1302
        %v1463 = vpack.c.b16 %v1305, %v1303
        %v1464 = vpack.c.b16 %v1308, %v1306
        %v1465 = vpack.c.b16 %v1309, %v1307
        %v1466 = vpack.c.b16 %v1312, %v1310
        %v1467 = vpack.c.b16 %v1313, %v1311
        %v1468 = vpack.c.b16 %v1316, %v1314
        %v1469 = vpack.c.b16 %v1317, %v1315
        %v1470 = vpack.c.b16 %v1320, %v1318
        %v1471 = vpack.c.b16 %v1321, %v1319
        %v1472 = vpack.c.b16 %v1324, %v1322
        %v1473 = vpack.c.b16 %v1325, %v1323
        %v1474 = vpack.c.b16 %v1328, %v1326
        %v1475 = vpack.c.b16 %v1329, %v1327
        %v1476 = vpack.c.b16 %v1332, %v1330
        %v1477 = vpack.c.b16 %v1333, %v1331
        %v1478 = vpack.c.b16 %v1336, %v1334
        %v1479 = vpack.c.b16 %v1337, %v1335
        %v1480 = vpack.c.b16 %v1340, %v1338
        %v1481 = vpack.c.b16 %v1341, %v1339
        %v1482 = vpack.c.b16 %v1344, %v1342
        %v1483 = vpack.c.b16 %v1345, %v1343
        %v1484 = vpack.c.b16 %v1348, %v1346
        %v1485 = vpack.c.b16 %v1349, %v1347
        %v1486 = vpack.c.b16 %v1352, %v1350
        %v1487 = vpack.c.b16 %v1353, %v1351
        %v1488 = vpack.c.b16 %v1356, %v1354
        %v1489 = vpack.c.b16 %v1357, %v1355
        %v1490 = vpack.c.b16 %v1360, %v1358
        %v1491 = vpack.c.b16 %v1361, %v1359
        %v1492 = vpack.c.b16 %v1364, %v1362
        %v1493 = vpack.c.b16 %v1365, %v1363
        %1622 = vmatprep.subr.bf16.mxu0 %v1367
        %1623 = vmatpush1.bf16.msra.mxu0 %v1366
        %1624 = vmatprep.subr.bf16.mxu0 %v1369
        %1625 = vmatpush1.bf16.msra.mxu0 %v1368
        %1626 = vmatprep.subr.bf16.mxu0 %v1371
        %1627 = vmatpush1.bf16.msra.mxu0 %v1370
        %1628 = vmatprep.subr.bf16.mxu0 %v1373
        %1629 = vmatpush1.bf16.msra.mxu0 %v1372
        %1630 = vmatprep.subr.bf16.mxu0 %v1375
        %1631 = vmatpush1.bf16.msra.mxu0 %v1374
        %1632 = vmatprep.subr.bf16.mxu0 %v1377
        %1633 = vmatpush1.bf16.msra.mxu0 %v1376
        %1634 = vmatprep.subr.bf16.mxu0 %v1379
        %1635 = vmatpush1.bf16.msra.mxu0 %v1378
        %1636 = vmatprep.subr.bf16.mxu0 %v1381
        %1637 = vmatpush1.bf16.msra.mxu0 %v1380
        %1638 = vmatprep.subr.bf16.mxu0 %v1383
        %1639 = vmatpush1.bf16.msra.mxu0 %v1382
        %1640 = vmatprep.subr.bf16.mxu0 %v1385
        %1641 = vmatpush1.bf16.msra.mxu0 %v1384
        %1642 = vmatprep.subr.bf16.mxu0 %v1387
        %1643 = vmatpush1.bf16.msra.mxu0 %v1386
        %1644 = vmatprep.subr.bf16.mxu0 %v1389
        %1645 = vmatpush1.bf16.msra.mxu0 %v1388
        %1646 = vmatprep.subr.bf16.mxu0 %v1391
        %1647 = vmatpush1.bf16.msra.mxu0 %v1390
        %1648 = vmatprep.subr.bf16.mxu0 %v1393
        %1649 = vmatpush1.bf16.msra.mxu0 %v1392
        %1650 = vmatprep.subr.bf16.mxu0 %v1395
        %1651 = vmatpush1.bf16.msra.mxu0 %v1394
        %1652 = vmatprep.subr.bf16.mxu0 %v1397
        %1653 = vmatpush1.bf16.msra.mxu0 %v1396
        %1654 = vmatprep.mubr.bf16.mxu0 %v967
        %1655 = vmatmul.mubr.bf16.gmra.mrb[0].mxu0 %v966
        %v1656 = vpop.f32.mrb[0].mxu0
        %v1657 = vadd.f32 %v947, %v1656
        %v1658 = vpop.f32.mrb[0].mxu0
        %v1659 = vadd.f32 %v951, %v1658
        %v1660 = vpop.f32.mrb[0].mxu0
        %v1661 = vpop.f32.mrb[0].mxu0
        %1662 = vdwg.mxu0
        %1663 = vmatprep.subr.bf16.mxu0 %v1399
        %1664 = vmatpush1.bf16.msra.mxu0 %v1398
        %1665 = vmatprep.subr.bf16.mxu0 %v1401
        %1666 = vmatpush1.bf16.msra.mxu0 %v1400
        %1667 = vmatprep.subr.bf16.mxu0 %v1403
        %1668 = vmatpush1.bf16.msra.mxu0 %v1402
        %1669 = vmatprep.subr.bf16.mxu0 %v1405
        %1670 = vmatpush1.bf16.msra.mxu0 %v1404
        %1671 = vmatprep.subr.bf16.mxu0 %v1407
        %1672 = vmatpush1.bf16.msra.mxu0 %v1406
        %1673 = vmatprep.subr.bf16.mxu0 %v1409
        %1674 = vmatpush1.bf16.msra.mxu0 %v1408
        %1675 = vmatprep.subr.bf16.mxu0 %v1411
        %1676 = vmatpush1.bf16.msra.mxu0 %v1410
        %1677 = vmatprep.subr.bf16.mxu0 %v1413
        %1678 = vmatpush1.bf16.msra.mxu0 %v1412
        %1679 = vmatprep.subr.bf16.mxu0 %v1415
        %1680 = vmatpush1.bf16.msra.mxu0 %v1414
        %1681 = vmatprep.subr.bf16.mxu0 %v1417
        %1682 = vmatpush1.bf16.msra.mxu0 %v1416
        %1683 = vmatprep.subr.bf16.mxu0 %v1419
        %1684 = vmatpush1.bf16.msra.mxu0 %v1418
        %1685 = vmatprep.subr.bf16.mxu0 %v1421
        %1686 = vmatpush1.bf16.msra.mxu0 %v1420
        %1687 = vmatprep.subr.bf16.mxu0 %v1423
        %1688 = vmatpush1.bf16.msra.mxu0 %v1422
        %1689 = vmatprep.subr.bf16.mxu0 %v1425
        %1690 = vmatpush1.bf16.msra.mxu0 %v1424
        %1691 = vmatprep.subr.bf16.mxu0 %v1427
        %1692 = vmatpush1.bf16.msra.mxu0 %v1426
        %1693 = vmatprep.subr.bf16.mxu0 %v1429
        %1694 = vmatpush1.bf16.msra.mxu0 %v1428
        %1695 = vmatprep.mubr.bf16.mxu0 %v969
        %1696 = vmatmul.mubr.bf16.gmra.mrb[0].mxu0 %v968
        %v1697 = vpop.f32.mrb[0].mxu0
        %v1698 = vadd.f32 %v1657, %v1697
        %v1699 = vpop.f32.mrb[0].mxu0
        %v1700 = vadd.f32 %v1659, %v1699
        %v1701 = vpop.f32.mrb[0].mxu0
        %v1702 = vpop.f32.mrb[0].mxu0
        %1703 = vdwg.mxu0
        %1704 = vmatprep.subr.bf16.mxu0 %v1431
        %1705 = vmatpush1.bf16.msra.mxu0 %v1430
        %1706 = vmatprep.subr.bf16.mxu0 %v1433
        %1707 = vmatpush1.bf16.msra.mxu0 %v1432
        %1708 = vmatprep.subr.bf16.mxu0 %v1435
        %1709 = vmatpush1.bf16.msra.mxu0 %v1434
        %1710 = vmatprep.subr.bf16.mxu0 %v1437
        %1711 = vmatpush1.bf16.msra.mxu0 %v1436
        %1712 = vmatprep.subr.bf16.mxu0 %v1439
        %1713 = vmatpush1.bf16.msra.mxu0 %v1438
        %1714 = vmatprep.subr.bf16.mxu0 %v1441
        %1715 = vmatpush1.bf16.msra.mxu0 %v1440
        %1716 = vmatprep.subr.bf16.mxu0 %v1443
        %1717 = vmatpush1.bf16.msra.mxu0 %v1442
        %1718 = vmatprep.subr.bf16.mxu0 %v1445
        %1719 = vmatpush1.bf16.msra.mxu0 %v1444
        %1720 = vmatprep.subr.bf16.mxu0 %v1447
        %1721 = vmatpush1.bf16.msra.mxu0 %v1446
        %1722 = vmatprep.subr.bf16.mxu0 %v1449
        %1723 = vmatpush1.bf16.msra.mxu0 %v1448
        %1724 = vmatprep.subr.bf16.mxu0 %v1451
        %1725 = vmatpush1.bf16.msra.mxu0 %v1450
        %1726 = vmatprep.subr.bf16.mxu0 %v1453
        %1727 = vmatpush1.bf16.msra.mxu0 %v1452
        %1728 = vmatprep.subr.bf16.mxu0 %v1455
        %1729 = vmatpush1.bf16.msra.mxu0 %v1454
        %1730 = vmatprep.subr.bf16.mxu0 %v1457
        %1731 = vmatpush1.bf16.msra.mxu0 %v1456
        %1732 = vmatprep.subr.bf16.mxu0 %v1459
        %1733 = vmatpush1.bf16.msra.mxu0 %v1458
        %1734 = vmatprep.subr.bf16.mxu0 %v1461
        %1735 = vmatpush1.bf16.msra.mxu0 %v1460
        %1736 = vmatprep.mubr.bf16.mxu0 %v971
        %1737 = vmatmul.mubr.bf16.gmra.mrb[0].mxu0 %v970
        %v1738 = vpop.f32.mrb[0].mxu0
        %v1739 = vadd.f32 %v1698, %v1738
        %v1740 = vpop.f32.mrb[0].mxu0
        %v1741 = vadd.f32 %v1700, %v1740
        %v1742 = vpop.f32.mrb[0].mxu0
        %v1743 = vpop.f32.mrb[0].mxu0
        %1744 = vdwg.mxu0
        %1745 = vmatprep.subr.bf16.mxu0 %v1463
        %1746 = vmatpush1.bf16.msra.mxu0 %v1462
        %1747 = vmatprep.subr.bf16.mxu0 %v1465
        %1748 = vmatpush1.bf16.msra.mxu0 %v1464
        %1749 = vmatprep.subr.bf16.mxu0 %v1467
        %1750 = vmatpush1.bf16.msra.mxu0 %v1466
        %1751 = vmatprep.subr.bf16.mxu0 %v1469
        %1752 = vmatpush1.bf16.msra.mxu0 %v1468
        %1753 = vmatprep.subr.bf16.mxu0 %v1471
        %1754 = vmatpush1.bf16.msra.mxu0 %v1470
        %1755 = vmatprep.subr.bf16.mxu0 %v1473
        %1756 = vmatpush1.bf16.msra.mxu0 %v1472
        %1757 = vmatprep.subr.bf16.mxu0 %v1475
        %1758 = vmatpush1.bf16.msra.mxu0 %v1474
        %1759 = vmatprep.subr.bf16.mxu0 %v1477
        %1760 = vmatpush1.bf16.msra.mxu0 %v1476
        %1761 = vmatprep.subr.bf16.mxu0 %v1479
        %1762 = vmatpush1.bf16.msra.mxu0 %v1478
        %1763 = vmatprep.subr.bf16.mxu0 %v1481
        %1764 = vmatpush1.bf16.msra.mxu0 %v1480
        %1765 = vmatprep.subr.bf16.mxu0 %v1483
        %1766 = vmatpush1.bf16.msra.mxu0 %v1482
        %1767 = vmatprep.subr.bf16.mxu0 %v1485
        %1768 = vmatpush1.bf16.msra.mxu0 %v1484
        %1769 = vmatprep.subr.bf16.mxu0 %v1487
        %1770 = vmatpush1.bf16.msra.mxu0 %v1486
        %1771 = vmatprep.subr.bf16.mxu0 %v1489
        %1772 = vmatpush1.bf16.msra.mxu0 %v1488
        %1773 = vmatprep.subr.bf16.mxu0 %v1491
        %1774 = vmatpush1.bf16.msra.mxu0 %v1490
        %1775 = vmatprep.subr.bf16.mxu0 %v1493
        %1776 = vmatpush1.bf16.msra.mxu0 %v1492
        %1777 = vmatprep.mubr.bf16.mxu0 %v973
        %1778 = vmatmul.mubr.bf16.gmra.mrb[0].mxu0 %v972
        %v1779 = vpop.f32.mrb[0].mxu0
        %v1780 = vadd.f32 %v1739, %v1779
        %v1781 = vpop.f32.mrb[0].mxu0
        %v1782 = vadd.f32 %v1741, %v1781
        %v1783 = vpop.f32.mrb[0].mxu0
        %v1784 = vpop.f32.mrb[0].mxu0
        %1785 = vdwg.mxu0
        %v1786 = vmax.f32 %v1780, 0.0
        %v1787 = vmax.f32 %v1782, 0.0
        %v1788 = vpack.c.bf16 %v1786, %v1786
        %v1789 = vpack.c.bf16 %v1787, %v1787
        %v1790 = vld [vmem:[#allocation2] sm:$0xff]
        %v1791 = vld [vmem:[#allocation2 + $0x8] sm:$0xff]
        %v1792 = vld [vmem:[#allocation2 + $0x10] sm:$0xff]
        %v1793 = vld [vmem:[#allocation2 + $0x18] sm:$0xff]
        %v1794 = vld [vmem:[#allocation2 + $0x20] sm:$0xff]
        %v1795 = vld [vmem:[#allocation2 + $0x28] sm:$0xff]
        %v1796 = vld [vmem:[#allocation2 + $0x30] sm:$0xff]
        %v1797 = vld [vmem:[#allocation2 + $0x38] sm:$0xff]
        %v1798 = vld [vmem:[%s796] sm:$0xff]
        %v1799 = vld [vmem:[%s796 + $0x8] sm:$0xff]
        %v1800 = vld [vmem:[%s796 + $0x10] sm:$0xff]
        %v1801 = vld [vmem:[%s796 + $0x18] sm:$0xff]
        %v1802 = vld [vmem:[%s796 + $0x20] sm:$0xff]
        %v1803 = vld [vmem:[%s796 + $0x28] sm:$0xff]
        %v1804 = vld [vmem:[%s796 + $0x30] sm:$0xff]
        %v1805 = vld [vmem:[%s796 + $0x38] sm:$0xff]
        %v1806 = vld [vmem:[%s796 + $0x40] sm:$0xff]
        %v1807 = vld [vmem:[%s796 + $0x48] sm:$0xff]
        %v1808 = vld [vmem:[%s796 + $0x50] sm:$0xff]
        %v1809 = vld [vmem:[%s796 + $0x58] sm:$0xff]
        %v1810 = vld [vmem:[%s796 + $0x60] sm:$0xff]
        %v1811 = vld [vmem:[%s796 + $0x68] sm:$0xff]
        %v1812 = vld [vmem:[%s796 + $0x70] sm:$0xff]
        %v1813 = vld [vmem:[%s796 + $0x78] sm:$0xff]
        %v1814 = vld [vmem:[%s796 + $0x80] sm:$0xff]
        %v1815 = vld [vmem:[%s796 + $0x88] sm:$0xff]
        %v1816 = vld [vmem:[%s796 + $0x90] sm:$0xff]
        %v1817 = vld [vmem:[%s796 + $0x98] sm:$0xff]
        %v1818 = vld [vmem:[%s796 + $0xa0] sm:$0xff]
        %v1819 = vld [vmem:[%s796 + $0xa8] sm:$0xff]
        %v1820 = vld [vmem:[%s796 + $0xb0] sm:$0xff]
        %v1821 = vld [vmem:[%s796 + $0xb8] sm:$0xff]
        %v1822 = vld [vmem:[%s796 + $0xc0] sm:$0xff]
        %v1823 = vld [vmem:[%s796 + $0xc8] sm:$0xff]
        %v1824 = vld [vmem:[%s796 + $0xd0] sm:$0xff]
        %v1825 = vld [vmem:[%s796 + $0xd8] sm:$0xff]
        %v1826 = vld [vmem:[%s796 + $0xe0] sm:$0xff]
        %v1827 = vld [vmem:[%s796 + $0xe8] sm:$0xff]
        %v1828 = vld [vmem:[%s796 + $0xf0] sm:$0xff]
        %v1829 = vld [vmem:[%s796 + $0xf8] sm:$0xff]
        %v1830 = vld [vmem:[%s796 + $0x100] sm:$0xff]
        %v1831 = vld [vmem:[%s796 + $0x108] sm:$0xff]
        %v1832 = vld [vmem:[%s796 + $0x110] sm:$0xff]
        %v1833 = vld [vmem:[%s796 + $0x118] sm:$0xff]
        %v1834 = vld [vmem:[%s796 + $0x120] sm:$0xff]
        %v1835 = vld [vmem:[%s796 + $0x128] sm:$0xff]
        %v1836 = vld [vmem:[%s796 + $0x130] sm:$0xff]
        %v1837 = vld [vmem:[%s796 + $0x138] sm:$0xff]
        %v1838 = vld [vmem:[%s796 + $0x140] sm:$0xff]
        %v1839 = vld [vmem:[%s796 + $0x148] sm:$0xff]
        %v1840 = vld [vmem:[%s796 + $0x150] sm:$0xff]
        %v1841 = vld [vmem:[%s796 + $0x158] sm:$0xff]
        %v1842 = vld [vmem:[%s796 + $0x160] sm:$0xff]
        %v1843 = vld [vmem:[%s796 + $0x168] sm:$0xff]
        %v1844 = vld [vmem:[%s796 + $0x170] sm:$0xff]
        %v1845 = vld [vmem:[%s796 + $0x178] sm:$0xff]
        %v1846 = vld [vmem:[%s796 + $0x180] sm:$0xff]
        %v1847 = vld [vmem:[%s796 + $0x188] sm:$0xff]
        %v1848 = vld [vmem:[%s796 + $0x190] sm:$0xff]
        %v1849 = vld [vmem:[%s796 + $0x198] sm:$0xff]
        %v1850 = vld [vmem:[%s796 + $0x1a0] sm:$0xff]
        %v1851 = vld [vmem:[%s796 + $0x1a8] sm:$0xff]
        %v1852 = vld [vmem:[%s796 + $0x1b0] sm:$0xff]
        %v1853 = vld [vmem:[%s796 + $0x1b8] sm:$0xff]
        %v1854 = vld [vmem:[%s796 + $0x1c0] sm:$0xff]
        %v1855 = vld [vmem:[%s796 + $0x1c8] sm:$0xff]
        %v1856 = vld [vmem:[%s796 + $0x1d0] sm:$0xff]
        %v1857 = vld [vmem:[%s796 + $0x1d8] sm:$0xff]
        %v1858 = vld [vmem:[%s796 + $0x1e0] sm:$0xff]
        %v1859 = vld [vmem:[%s796 + $0x1e8] sm:$0xff]
        %v1860 = vld [vmem:[%s796 + $0x1f0] sm:$0xff]
        %v1861 = vld [vmem:[%s796 + $0x1f8] sm:$0xff]
        %v1862 = vld [vmem:[%s796 + $0x200] sm:$0xff]
        %v1863 = vld [vmem:[%s796 + $0x208] sm:$0xff]
        %v1864 = vld [vmem:[%s796 + $0x210] sm:$0xff]
        %v1865 = vld [vmem:[%s796 + $0x218] sm:$0xff]
        %v1866 = vld [vmem:[%s796 + $0x220] sm:$0xff]
        %v1867 = vld [vmem:[%s796 + $0x228] sm:$0xff]
        %v1868 = vld [vmem:[%s796 + $0x230] sm:$0xff]
        %v1869 = vld [vmem:[%s796 + $0x238] sm:$0xff]
        %v1870 = vld [vmem:[%s796 + $0x240] sm:$0xff]
        %v1871 = vld [vmem:[%s796 + $0x248] sm:$0xff]
        %v1872 = vld [vmem:[%s796 + $0x250] sm:$0xff]
        %v1873 = vld [vmem:[%s796 + $0x258] sm:$0xff]
        %v1874 = vld [vmem:[%s796 + $0x260] sm:$0xff]
        %v1875 = vld [vmem:[%s796 + $0x268] sm:$0xff]
        %v1876 = vld [vmem:[%s796 + $0x270] sm:$0xff]
        %v1877 = vld [vmem:[%s796 + $0x278] sm:$0xff]
        %v1878 = vld [vmem:[%s796 + $0x280] sm:$0xff]
        %v1879 = vld [vmem:[%s796 + $0x288] sm:$0xff]
        %v1880 = vld [vmem:[%s796 + $0x290] sm:$0xff]
        %v1881 = vld [vmem:[%s796 + $0x298] sm:$0xff]
        %v1882 = vld [vmem:[%s796 + $0x2a0] sm:$0xff]
        %v1883 = vld [vmem:[%s796 + $0x2a8] sm:$0xff]
        %v1884 = vld [vmem:[%s796 + $0x2b0] sm:$0xff]
        %v1885 = vld [vmem:[%s796 + $0x2b8] sm:$0xff]
        %v1886 = vld [vmem:[%s796 + $0x2c0] sm:$0xff]
        %v1887 = vld [vmem:[%s796 + $0x2c8] sm:$0xff]
        %v1888 = vld [vmem:[%s796 + $0x2d0] sm:$0xff]
        %v1889 = vld [vmem:[%s796 + $0x2d8] sm:$0xff]
        %v1890 = vld [vmem:[%s796 + $0x2e0] sm:$0xff]
        %v1891 = vld [vmem:[%s796 + $0x2e8] sm:$0xff]
        %v1892 = vld [vmem:[%s796 + $0x2f0] sm:$0xff]
        %v1893 = vld [vmem:[%s796 + $0x2f8] sm:$0xff]
        %v1894 = vld [vmem:[%s796 + $0x300] sm:$0xff]
        %v1895 = vld [vmem:[%s796 + $0x308] sm:$0xff]
        %v1896 = vld [vmem:[%s796 + $0x310] sm:$0xff]
        %v1897 = vld [vmem:[%s796 + $0x318] sm:$0xff]
        %v1898 = vld [vmem:[%s796 + $0x320] sm:$0xff]
        %v1899 = vld [vmem:[%s796 + $0x328] sm:$0xff]
        %v1900 = vld [vmem:[%s796 + $0x330] sm:$0xff]
        %v1901 = vld [vmem:[%s796 + $0x338] sm:$0xff]
        %v1902 = vld [vmem:[%s796 + $0x340] sm:$0xff]
        %v1903 = vld [vmem:[%s796 + $0x348] sm:$0xff]
        %v1904 = vld [vmem:[%s796 + $0x350] sm:$0xff]
        %v1905 = vld [vmem:[%s796 + $0x358] sm:$0xff]
        %v1906 = vld [vmem:[%s796 + $0x360] sm:$0xff]
        %v1907 = vld [vmem:[%s796 + $0x368] sm:$0xff]
        %v1908 = vld [vmem:[%s796 + $0x370] sm:$0xff]
        %v1909 = vld [vmem:[%s796 + $0x378] sm:$0xff]
        %v1910 = vld [vmem:[%s796 + $0x380] sm:$0xff]
        %v1911 = vld [vmem:[%s796 + $0x388] sm:$0xff]
        %v1912 = vld [vmem:[%s796 + $0x390] sm:$0xff]
        %v1913 = vld [vmem:[%s796 + $0x398] sm:$0xff]
        %v1914 = vld [vmem:[%s796 + $0x3a0] sm:$0xff]
        %v1915 = vld [vmem:[%s796 + $0x3a8] sm:$0xff]
        %v1916 = vld [vmem:[%s796 + $0x3b0] sm:$0xff]
        %v1917 = vld [vmem:[%s796 + $0x3b8] sm:$0xff]
        %v1918 = vld [vmem:[%s796 + $0x3c0] sm:$0xff]
        %v1919 = vld [vmem:[%s796 + $0x3c8] sm:$0xff]
        %v1920 = vld [vmem:[%s796 + $0x3d0] sm:$0xff]
        %v1921 = vld [vmem:[%s796 + $0x3d8] sm:$0xff]
        %v1922 = vld [vmem:[%s796 + $0x3e0] sm:$0xff]
        %v1923 = vld [vmem:[%s796 + $0x3e8] sm:$0xff]
        %v1924 = vld [vmem:[%s796 + $0x3f0] sm:$0xff]
        %v1925 = vld [vmem:[%s796 + $0x3f8] sm:$0xff]
        %v2054 = vunpack.c.l.b16 %v1798
        %v2055 = vunpack.c.h.b16 %v1798
        %v2056 = vunpack.c.l.b16 %v1799
        %v2057 = vunpack.c.h.b16 %v1799
        %v2058 = vunpack.c.l.b16 %v1800
        %v2059 = vunpack.c.h.b16 %v1800
        %v2060 = vunpack.c.l.b16 %v1801
        %v2061 = vunpack.c.h.b16 %v1801
        %v2062 = vunpack.c.l.b16 %v1802
        %v2063 = vunpack.c.h.b16 %v1802
        %v2064 = vunpack.c.l.b16 %v1803
        %v2065 = vunpack.c.h.b16 %v1803
        %v2066 = vunpack.c.l.b16 %v1804
        %v2067 = vunpack.c.h.b16 %v1804
        %v2068 = vunpack.c.l.b16 %v1805
        %v2069 = vunpack.c.h.b16 %v1805
        %v2070 = vunpack.c.l.b16 %v1806
        %v2071 = vunpack.c.h.b16 %v1806
        %v2072 = vunpack.c.l.b16 %v1807
        %v2073 = vunpack.c.h.b16 %v1807
        %v2074 = vunpack.c.l.b16 %v1808
        %v2075 = vunpack.c.h.b16 %v1808
        %v2076 = vunpack.c.l.b16 %v1809
        %v2077 = vunpack.c.h.b16 %v1809
        %v2078 = vunpack.c.l.b16 %v1810
        %v2079 = vunpack.c.h.b16 %v1810
        %v2080 = vunpack.c.l.b16 %v1811
        %v2081 = vunpack.c.h.b16 %v1811
        %v2082 = vunpack.c.l.b16 %v1812
        %v2083 = vunpack.c.h.b16 %v1812
        %v2084 = vunpack.c.l.b16 %v1813
        %v2085 = vunpack.c.h.b16 %v1813
        %v2086 = vunpack.c.l.b16 %v1814
        %v2087 = vunpack.c.h.b16 %v1814
        %v2088 = vunpack.c.l.b16 %v1815
        %v2089 = vunpack.c.h.b16 %v1815
        %v2090 = vunpack.c.l.b16 %v1816
        %v2091 = vunpack.c.h.b16 %v1816
        %v2092 = vunpack.c.l.b16 %v1817
        %v2093 = vunpack.c.h.b16 %v1817
        %v2094 = vunpack.c.l.b16 %v1818
        %v2095 = vunpack.c.h.b16 %v1818
        %v2096 = vunpack.c.l.b16 %v1819
        %v2097 = vunpack.c.h.b16 %v1819
        %v2098 = vunpack.c.l.b16 %v1820
        %v2099 = vunpack.c.h.b16 %v1820
        %v2100 = vunpack.c.l.b16 %v1821
        %v2101 = vunpack.c.h.b16 %v1821
        %v2102 = vunpack.c.l.b16 %v1822
        %v2103 = vunpack.c.h.b16 %v1822
        %v2104 = vunpack.c.l.b16 %v1823
        %v2105 = vunpack.c.h.b16 %v1823
        %v2106 = vunpack.c.l.b16 %v1824
        %v2107 = vunpack.c.h.b16 %v1824
        %v2108 = vunpack.c.l.b16 %v1825
        %v2109 = vunpack.c.h.b16 %v1825
        %v2110 = vunpack.c.l.b16 %v1826
        %v2111 = vunpack.c.h.b16 %v1826
        %v2112 = vunpack.c.l.b16 %v1827
        %v2113 = vunpack.c.h.b16 %v1827
        %v2114 = vunpack.c.l.b16 %v1828
        %v2115 = vunpack.c.h.b16 %v1828
        %v2116 = vunpack.c.l.b16 %v1829
        %v2117 = vunpack.c.h.b16 %v1829
        %v2118 = vunpack.c.l.b16 %v1830
        %v2119 = vunpack.c.h.b16 %v1830
        %v2120 = vunpack.c.l.b16 %v1831
        %v2121 = vunpack.c.h.b16 %v1831
        %v2122 = vunpack.c.l.b16 %v1832
        %v2123 = vunpack.c.h.b16 %v1832
        %v2124 = vunpack.c.l.b16 %v1833
        %v2125 = vunpack.c.h.b16 %v1833
        %v2126 = vunpack.c.l.b16 %v1834
        %v2127 = vunpack.c.h.b16 %v1834
        %v2128 = vunpack.c.l.b16 %v1835
        %v2129 = vunpack.c.h.b16 %v1835
        %v2130 = vunpack.c.l.b16 %v1836
        %v2131 = vunpack.c.h.b16 %v1836
        %v2132 = vunpack.c.l.b16 %v1837
        %v2133 = vunpack.c.h.b16 %v1837
        %v2134 = vunpack.c.l.b16 %v1838
        %v2135 = vunpack.c.h.b16 %v1838
        %v2136 = vunpack.c.l.b16 %v1839
        %v2137 = vunpack.c.h.b16 %v1839
        %v2138 = vunpack.c.l.b16 %v1840
        %v2139 = vunpack.c.h.b16 %v1840
        %v2140 = vunpack.c.l.b16 %v1841
        %v2141 = vunpack.c.h.b16 %v1841
        %v2142 = vunpack.c.l.b16 %v1842
        %v2143 = vunpack.c.h.b16 %v1842
        %v2144 = vunpack.c.l.b16 %v1843
        %v2145 = vunpack.c.h.b16 %v1843
        %v2146 = vunpack.c.l.b16 %v1844
        %v2147 = vunpack.c.h.b16 %v1844
        %v2148 = vunpack.c.l.b16 %v1845
        %v2149 = vunpack.c.h.b16 %v1845
        %v2150 = vunpack.c.l.b16 %v1846
        %v2151 = vunpack.c.h.b16 %v1846
        %v2152 = vunpack.c.l.b16 %v1847
        %v2153 = vunpack.c.h.b16 %v1847
        %v2154 = vunpack.c.l.b16 %v1848
        %v2155 = vunpack.c.h.b16 %v1848
        %v2156 = vunpack.c.l.b16 %v1849
        %v2157 = vunpack.c.h.b16 %v1849
        %v2158 = vunpack.c.l.b16 %v1850
        %v2159 = vunpack.c.h.b16 %v1850
        %v2160 = vunpack.c.l.b16 %v1851
        %v2161 = vunpack.c.h.b16 %v1851
        %v2162 = vunpack.c.l.b16 %v1852
        %v2163 = vunpack.c.h.b16 %v1852
        %v2164 = vunpack.c.l.b16 %v1853
        %v2165 = vunpack.c.h.b16 %v1853
        %v2166 = vunpack.c.l.b16 %v1854
        %v2167 = vunpack.c.h.b16 %v1854
        %v2168 = vunpack.c.l.b16 %v1855
        %v2169 = vunpack.c.h.b16 %v1855
        %v2170 = vunpack.c.l.b16 %v1856
        %v2171 = vunpack.c.h.b16 %v1856
        %v2172 = vunpack.c.l.b16 %v1857
        %v2173 = vunpack.c.h.b16 %v1857
        %v2174 = vunpack.c.l.b16 %v1858
        %v2175 = vunpack.c.h.b16 %v1858
        %v2176 = vunpack.c.l.b16 %v1859
        %v2177 = vunpack.c.h.b16 %v1859
        %v2178 = vunpack.c.l.b16 %v1860
        %v2179 = vunpack.c.h.b16 %v1860
        %v2180 = vunpack.c.l.b16 %v1861
        %v2181 = vunpack.c.h.b16 %v1861
        %v2182 = vunpack.c.l.b16 %v1862
        %v2183 = vunpack.c.h.b16 %v1862
        %v2184 = vunpack.c.l.b16 %v1863
        %v2185 = vunpack.c.h.b16 %v1863
        %v2186 = vunpack.c.l.b16 %v1864
        %v2187 = vunpack.c.h.b16 %v1864
        %v2188 = vunpack.c.l.b16 %v1865
        %v2189 = vunpack.c.h.b16 %v1865
        %v2190 = vunpack.c.l.b16 %v1866
        %v2191 = vunpack.c.h.b16 %v1866
        %v2192 = vunpack.c.l.b16 %v1867
        %v2193 = vunpack.c.h.b16 %v1867
        %v2194 = vunpack.c.l.b16 %v1868
        %v2195 = vunpack.c.h.b16 %v1868
        %v2196 = vunpack.c.l.b16 %v1869
        %v2197 = vunpack.c.h.b16 %v1869
        %v2198 = vunpack.c.l.b16 %v1870
        %v2199 = vunpack.c.h.b16 %v1870
        %v2200 = vunpack.c.l.b16 %v1871
        %v2201 = vunpack.c.h.b16 %v1871
        %v2202 = vunpack.c.l.b16 %v1872
        %v2203 = vunpack.c.h.b16 %v1872
        %v2204 = vunpack.c.l.b16 %v1873
        %v2205 = vunpack.c.h.b16 %v1873
        %v2206 = vunpack.c.l.b16 %v1874
        %v2207 = vunpack.c.h.b16 %v1874
        %v2208 = vunpack.c.l.b16 %v1875
        %v2209 = vunpack.c.h.b16 %v1875
        %v2210 = vunpack.c.l.b16 %v1876
        %v2211 = vunpack.c.h.b16 %v1876
        %v2212 = vunpack.c.l.b16 %v1877
        %v2213 = vunpack.c.h.b16 %v1877
        %v2214 = vunpack.c.l.b16 %v1878
        %v2215 = vunpack.c.h.b16 %v1878
        %v2216 = vunpack.c.l.b16 %v1879
        %v2217 = vunpack.c.h.b16 %v1879
        %v2218 = vunpack.c.l.b16 %v1880
        %v2219 = vunpack.c.h.b16 %v1880
        %v2220 = vunpack.c.l.b16 %v1881
        %v2221 = vunpack.c.h.b16 %v1881
        %v2222 = vunpack.c.l.b16 %v1882
        %v2223 = vunpack.c.h.b16 %v1882
        %v2224 = vunpack.c.l.b16 %v1883
        %v2225 = vunpack.c.h.b16 %v1883
        %v2226 = vunpack.c.l.b16 %v1884
        %v2227 = vunpack.c.h.b16 %v1884
        %v2228 = vunpack.c.l.b16 %v1885
        %v2229 = vunpack.c.h.b16 %v1885
        %v2230 = vunpack.c.l.b16 %v1886
        %v2231 = vunpack.c.h.b16 %v1886
        %v2232 = vunpack.c.l.b16 %v1887
        %v2233 = vunpack.c.h.b16 %v1887
        %v2234 = vunpack.c.l.b16 %v1888
        %v2235 = vunpack.c.h.b16 %v1888
        %v2236 = vunpack.c.l.b16 %v1889
        %v2237 = vunpack.c.h.b16 %v1889
        %v2238 = vunpack.c.l.b16 %v1890
        %v2239 = vunpack.c.h.b16 %v1890
        %v2240 = vunpack.c.l.b16 %v1891
        %v2241 = vunpack.c.h.b16 %v1891
        %v2242 = vunpack.c.l.b16 %v1892
        %v2243 = vunpack.c.h.b16 %v1892
        %v2244 = vunpack.c.l.b16 %v1893
        %v2245 = vunpack.c.h.b16 %v1893
        %v2246 = vunpack.c.l.b16 %v1894
        %v2247 = vunpack.c.h.b16 %v1894
        %v2248 = vunpack.c.l.b16 %v1895
        %v2249 = vunpack.c.h.b16 %v1895
        %v2250 = vunpack.c.l.b16 %v1896
        %v2251 = vunpack.c.h.b16 %v1896
        %v2252 = vunpack.c.l.b16 %v1897
        %v2253 = vunpack.c.h.b16 %v1897
        %v2254 = vunpack.c.l.b16 %v1898
        %v2255 = vunpack.c.h.b16 %v1898
        %v2256 = vunpack.c.l.b16 %v1899
        %v2257 = vunpack.c.h.b16 %v1899
        %v2258 = vunpack.c.l.b16 %v1900
        %v2259 = vunpack.c.h.b16 %v1900
        %v2260 = vunpack.c.l.b16 %v1901
        %v2261 = vunpack.c.h.b16 %v1901
        %v2262 = vunpack.c.l.b16 %v1902
        %v2263 = vunpack.c.h.b16 %v1902
        %v2264 = vunpack.c.l.b16 %v1903
        %v2265 = vunpack.c.h.b16 %v1903
        %v2266 = vunpack.c.l.b16 %v1904
        %v2267 = vunpack.c.h.b16 %v1904
        %v2268 = vunpack.c.l.b16 %v1905
        %v2269 = vunpack.c.h.b16 %v1905
        %v2270 = vunpack.c.l.b16 %v1906
        %v2271 = vunpack.c.h.b16 %v1906
        %v2272 = vunpack.c.l.b16 %v1907
        %v2273 = vunpack.c.h.b16 %v1907
        %v2274 = vunpack.c.l.b16 %v1908
        %v2275 = vunpack.c.h.b16 %v1908
        %v2276 = vunpack.c.l.b16 %v1909
        %v2277 = vunpack.c.h.b16 %v1909
        %v2278 = vunpack.c.l.b16 %v1910
        %v2279 = vunpack.c.h.b16 %v1910
        %v2280 = vunpack.c.l.b16 %v1911
        %v2281 = vunpack.c.h.b16 %v1911
        %v2282 = vunpack.c.l.b16 %v1912
        %v2283 = vunpack.c.h.b16 %v1912
        %v2284 = vunpack.c.l.b16 %v1913
        %v2285 = vunpack.c.h.b16 %v1913
        %v2286 = vunpack.c.l.b16 %v1914
        %v2287 = vunpack.c.h.b16 %v1914
        %v2288 = vunpack.c.l.b16 %v1915
        %v2289 = vunpack.c.h.b16 %v1915
        %v2290 = vunpack.c.l.b16 %v1916
        %v2291 = vunpack.c.h.b16 %v1916
        %v2292 = vunpack.c.l.b16 %v1917
        %v2293 = vunpack.c.h.b16 %v1917
        %v2294 = vunpack.c.l.b16 %v1918
        %v2295 = vunpack.c.h.b16 %v1918
        %v2296 = vunpack.c.l.b16 %v1919
        %v2297 = vunpack.c.h.b16 %v1919
        %v2298 = vunpack.c.l.b16 %v1920
        %v2299 = vunpack.c.h.b16 %v1920
        %v2300 = vunpack.c.l.b16 %v1921
        %v2301 = vunpack.c.h.b16 %v1921
        %v2302 = vunpack.c.l.b16 %v1922
        %v2303 = vunpack.c.h.b16 %v1922
        %v2304 = vunpack.c.l.b16 %v1923
        %v2305 = vunpack.c.h.b16 %v1923
        %v2306 = vunpack.c.l.b16 %v1924
        %v2307 = vunpack.c.h.b16 %v1924
        %v2308 = vunpack.c.l.b16 %v1925
        %v2309 = vunpack.c.h.b16 %v1925
        %v2310 = vpack.c.b16 %v2062, %v2054
        %v2311 = vpack.c.b16 %v2063, %v2055
        %v2312 = vpack.c.b16 %v2064, %v2056
        %v2313 = vpack.c.b16 %v2065, %v2057
        %v2314 = vpack.c.b16 %v2066, %v2058
        %v2315 = vpack.c.b16 %v2067, %v2059
        %v2316 = vpack.c.b16 %v2068, %v2060
        %v2317 = vpack.c.b16 %v2069, %v2061
        %v2318 = vpack.c.b16 %v2078, %v2070
        %v2319 = vpack.c.b16 %v2079, %v2071
        %v2320 = vpack.c.b16 %v2080, %v2072
        %v2321 = vpack.c.b16 %v2081, %v2073
        %v2322 = vpack.c.b16 %v2082, %v2074
        %v2323 = vpack.c.b16 %v2083, %v2075
        %v2324 = vpack.c.b16 %v2084, %v2076
        %v2325 = vpack.c.b16 %v2085, %v2077
        %v2326 = vpack.c.b16 %v2094, %v2086
        %v2327 = vpack.c.b16 %v2095, %v2087
        %v2328 = vpack.c.b16 %v2096, %v2088
        %v2329 = vpack.c.b16 %v2097, %v2089
        %v2330 = vpack.c.b16 %v2098, %v2090
        %v2331 = vpack.c.b16 %v2099, %v2091
        %v2332 = vpack.c.b16 %v2100, %v2092
        %v2333 = vpack.c.b16 %v2101, %v2093
        %v2334 = vpack.c.b16 %v2110, %v2102
        %v2335 = vpack.c.b16 %v2111, %v2103
        %v2336 = vpack.c.b16 %v2112, %v2104
        %v2337 = vpack.c.b16 %v2113, %v2105
        %v2338 = vpack.c.b16 %v2114, %v2106
        %v2339 = vpack.c.b16 %v2115, %v2107
        %v2340 = vpack.c.b16 %v2116, %v2108
        %v2341 = vpack.c.b16 %v2117, %v2109
        %v2342 = vpack.c.b16 %v2126, %v2118
        %v2343 = vpack.c.b16 %v2127, %v2119
        %v2344 = vpack.c.b16 %v2128, %v2120
        %v2345 = vpack.c.b16 %v2129, %v2121
        %v2346 = vpack.c.b16 %v2130, %v2122
        %v2347 = vpack.c.b16 %v2131, %v2123
        %v2348 = vpack.c.b16 %v2132, %v2124
        %v2349 = vpack.c.b16 %v2133, %v2125
        %v2350 = vpack.c.b16 %v2142, %v2134
        %v2351 = vpack.c.b16 %v2143, %v2135
        %v2352 = vpack.c.b16 %v2144, %v2136
        %v2353 = vpack.c.b16 %v2145, %v2137
        %v2354 = vpack.c.b16 %v2146, %v2138
        %v2355 = vpack.c.b16 %v2147, %v2139
        %v2356 = vpack.c.b16 %v2148, %v2140
        %v2357 = vpack.c.b16 %v2149, %v2141
        %v2358 = vpack.c.b16 %v2158, %v2150
        %v2359 = vpack.c.b16 %v2159, %v2151
        %v2360 = vpack.c.b16 %v2160, %v2152
        %v2361 = vpack.c.b16 %v2161, %v2153
        %v2362 = vpack.c.b16 %v2162, %v2154
        %v2363 = vpack.c.b16 %v2163, %v2155
        %v2364 = vpack.c.b16 %v2164, %v2156
        %v2365 = vpack.c.b16 %v2165, %v2157
        %v2366 = vpack.c.b16 %v2174, %v2166
        %v2367 = vpack.c.b16 %v2175, %v2167
        %v2368 = vpack.c.b16 %v2176, %v2168
        %v2369 = vpack.c.b16 %v2177, %v2169
        %v2370 = vpack.c.b16 %v2178, %v2170
        %v2371 = vpack.c.b16 %v2179, %v2171
        %v2372 = vpack.c.b16 %v2180, %v2172
        %v2373 = vpack.c.b16 %v2181, %v2173
        %v2374 = vpack.c.b16 %v2190, %v2182
        %v2375 = vpack.c.b16 %v2191, %v2183
        %v2376 = vpack.c.b16 %v2192, %v2184
        %v2377 = vpack.c.b16 %v2193, %v2185
        %v2378 = vpack.c.b16 %v2194, %v2186
        %v2379 = vpack.c.b16 %v2195, %v2187
        %v2380 = vpack.c.b16 %v2196, %v2188
        %v2381 = vpack.c.b16 %v2197, %v2189
        %v2382 = vpack.c.b16 %v2206, %v2198
        %v2383 = vpack.c.b16 %v2207, %v2199
        %v2384 = vpack.c.b16 %v2208, %v2200
        %v2385 = vpack.c.b16 %v2209, %v2201
        %v2386 = vpack.c.b16 %v2210, %v2202
        %v2387 = vpack.c.b16 %v2211, %v2203
        %v2388 = vpack.c.b16 %v2212, %v2204
        %v2389 = vpack.c.b16 %v2213, %v2205
        %v2390 = vpack.c.b16 %v2222, %v2214
        %v2391 = vpack.c.b16 %v2223, %v2215
        %v2392 = vpack.c.b16 %v2224, %v2216
        %v2393 = vpack.c.b16 %v2225, %v2217
        %v2394 = vpack.c.b16 %v2226, %v2218
        %v2395 = vpack.c.b16 %v2227, %v2219
        %v2396 = vpack.c.b16 %v2228, %v2220
        %v2397 = vpack.c.b16 %v2229, %v2221
        %v2398 = vpack.c.b16 %v2238, %v2230
        %v2399 = vpack.c.b16 %v2239, %v2231
        %v2400 = vpack.c.b16 %v2240, %v2232
        %v2401 = vpack.c.b16 %v2241, %v2233
        %v2402 = vpack.c.b16 %v2242, %v2234
        %v2403 = vpack.c.b16 %v2243, %v2235
        %v2404 = vpack.c.b16 %v2244, %v2236
        %v2405 = vpack.c.b16 %v2245, %v2237
        %v2406 = vpack.c.b16 %v2254, %v2246
        %v2407 = vpack.c.b16 %v2255, %v2247
        %v2408 = vpack.c.b16 %v2256, %v2248
        %v2409 = vpack.c.b16 %v2257, %v2249
        %v2410 = vpack.c.b16 %v2258, %v2250
        %v2411 = vpack.c.b16 %v2259, %v2251
        %v2412 = vpack.c.b16 %v2260, %v2252
        %v2413 = vpack.c.b16 %v2261, %v2253
        %v2414 = vpack.c.b16 %v2270, %v2262
        %v2415 = vpack.c.b16 %v2271, %v2263
        %v2416 = vpack.c.b16 %v2272, %v2264
        %v2417 = vpack.c.b16 %v2273, %v2265
        %v2418 = vpack.c.b16 %v2274, %v2266
        %v2419 = vpack.c.b16 %v2275, %v2267
        %v2420 = vpack.c.b16 %v2276, %v2268
        %v2421 = vpack.c.b16 %v2277, %v2269
        %v2422 = vpack.c.b16 %v2286, %v2278
        %v2423 = vpack.c.b16 %v2287, %v2279
        %v2424 = vpack.c.b16 %v2288, %v2280
        %v2425 = vpack.c.b16 %v2289, %v2281
        %v2426 = vpack.c.b16 %v2290, %v2282
        %v2427 = vpack.c.b16 %v2291, %v2283
        %v2428 = vpack.c.b16 %v2292, %v2284
        %v2429 = vpack.c.b16 %v2293, %v2285
        %v2430 = vpack.c.b16 %v2302, %v2294
        %v2431 = vpack.c.b16 %v2303, %v2295
        %v2432 = vpack.c.b16 %v2304, %v2296
        %v2433 = vpack.c.b16 %v2305, %v2297
        %v2434 = vpack.c.b16 %v2306, %v2298
        %v2435 = vpack.c.b16 %v2307, %v2299
        %v2436 = vpack.c.b16 %v2308, %v2300
        %v2437 = vpack.c.b16 %v2309, %v2301
        %2566 = vmatprep.subr.bf16.mxu0 %v2311
        %2567 = vmatpush1.bf16.msra.mxu0 %v2310
        %2568 = vmatprep.subr.bf16.mxu0 %v2319
        %2569 = vmatpush1.bf16.msra.mxu0 %v2318
        %2570 = vmatprep.subr.bf16.mxu0 %v2327
        %2571 = vmatpush1.bf16.msra.mxu0 %v2326
        %2572 = vmatprep.subr.bf16.mxu0 %v2335
        %2573 = vmatpush1.bf16.msra.mxu0 %v2334
        %2574 = vmatprep.subr.bf16.mxu0 %v2343
        %2575 = vmatpush1.bf16.msra.mxu0 %v2342
        %2576 = vmatprep.subr.bf16.mxu0 %v2351
        %2577 = vmatpush1.bf16.msra.mxu0 %v2350
        %2578 = vmatprep.subr.bf16.mxu0 %v2359
        %2579 = vmatpush1.bf16.msra.mxu0 %v2358
        %2580 = vmatprep.subr.bf16.mxu0 %v2367
        %2581 = vmatpush1.bf16.msra.mxu0 %v2366
        %2582 = vmatprep.subr.bf16.mxu0 %v2375
        %2583 = vmatpush1.bf16.msra.mxu0 %v2374
        %2584 = vmatprep.subr.bf16.mxu0 %v2383
        %2585 = vmatpush1.bf16.msra.mxu0 %v2382
        %2586 = vmatprep.subr.bf16.mxu0 %v2391
        %2587 = vmatpush1.bf16.msra.mxu0 %v2390
        %2588 = vmatprep.subr.bf16.mxu0 %v2399
        %2589 = vmatpush1.bf16.msra.mxu0 %v2398
        %2590 = vmatprep.subr.bf16.mxu0 %v2407
        %2591 = vmatpush1.bf16.msra.mxu0 %v2406
        %2592 = vmatprep.subr.bf16.mxu0 %v2415
        %2593 = vmatpush1.bf16.msra.mxu0 %v2414
        %2594 = vmatprep.subr.bf16.mxu0 %v2423
        %2595 = vmatpush1.bf16.msra.mxu0 %v2422
        %2596 = vmatprep.subr.bf16.mxu0 %v2431
        %2597 = vmatpush1.bf16.msra.mxu0 %v2430
        %2598 = vmatprep.mubr.bf16.mxu0 %v1789
        %2599 = vmatmul.mubr.bf16.gmra.mrb[0].mxu0 %v1788
        %v2600 = vpop.f32.mrb[0].mxu0
        %v2601 = vadd.f32 0.0, %v2600
        %v2602 = vpop.f32.mrb[0].mxu0
        %v2603 = vadd.f32 0.0, %v2602
        %v2604 = vpop.f32.mrb[0].mxu0
        %v2605 = vpop.f32.mrb[0].mxu0
        %2606 = vdwg.mxu0
        %2607 = vmatprep.subr.bf16.mxu0 %v2313
        %2608 = vmatpush1.bf16.msra.mxu0 %v2312
        %2609 = vmatprep.subr.bf16.mxu0 %v2321
        %2610 = vmatpush1.bf16.msra.mxu0 %v2320
        %2611 = vmatprep.subr.bf16.mxu0 %v2329
        %2612 = vmatpush1.bf16.msra.mxu0 %v2328
        %2613 = vmatprep.subr.bf16.mxu0 %v2337
        %2614 = vmatpush1.bf16.msra.mxu0 %v2336
        %2615 = vmatprep.subr.bf16.mxu0 %v2345
        %2616 = vmatpush1.bf16.msra.mxu0 %v2344
        %2617 = vmatprep.subr.bf16.mxu0 %v2353
        %2618 = vmatpush1.bf16.msra.mxu0 %v2352
        %2619 = vmatprep.subr.bf16.mxu0 %v2361
        %2620 = vmatpush1.bf16.msra.mxu0 %v2360
        %2621 = vmatprep.subr.bf16.mxu0 %v2369
        %2622 = vmatpush1.bf16.msra.mxu0 %v2368
        %2623 = vmatprep.subr.bf16.mxu0 %v2377
        %2624 = vmatpush1.bf16.msra.mxu0 %v2376
        %2625 = vmatprep.subr.bf16.mxu0 %v2385
        %2626 = vmatpush1.bf16.msra.mxu0 %v2384
        %2627 = vmatprep.subr.bf16.mxu0 %v2393
        %2628 = vmatpush1.bf16.msra.mxu0 %v2392
        %2629 = vmatprep.subr.bf16.mxu0 %v2401
        %2630 = vmatpush1.bf16.msra.mxu0 %v2400
        %2631 = vmatprep.subr.bf16.mxu0 %v2409
        %2632 = vmatpush1.bf16.msra.mxu0 %v2408
        %2633 = vmatprep.subr.bf16.mxu0 %v2417
        %2634 = vmatpush1.bf16.msra.mxu0 %v2416
        %2635 = vmatprep.subr.bf16.mxu0 %v2425
        %2636 = vmatpush1.bf16.msra.mxu0 %v2424
        %2637 = vmatprep.subr.bf16.mxu0 %v2433
        %2638 = vmatpush1.bf16.msra.mxu0 %v2432
        %2639 = vmatprep.mubr.bf16.mxu0 %v1789
        %2640 = vmatmul.mubr.bf16.gmra.mrb[0].mxu0 %v1788
        %v2641 = vpop.f32.mrb[0].mxu0
        %v2642 = vadd.f32 0.0, %v2641
        %v2643 = vpop.f32.mrb[0].mxu0
        %v2644 = vadd.f32 0.0, %v2643
        %v2645 = vpop.f32.mrb[0].mxu0
        %v2646 = vpop.f32.mrb[0].mxu0
        %2647 = vdwg.mxu0
        %2648 = vmatprep.subr.bf16.mxu0 %v2315
        %2649 = vmatpush1.bf16.msra.mxu0 %v2314
        %2650 = vmatprep.subr.bf16.mxu0 %v2323
        %2651 = vmatpush1.bf16.msra.mxu0 %v2322
        %2652 = vmatprep.subr.bf16.mxu0 %v2331
        %2653 = vmatpush1.bf16.msra.mxu0 %v2330
        %2654 = vmatprep.subr.bf16.mxu0 %v2339
        %2655 = vmatpush1.bf16.msra.mxu0 %v2338
        %2656 = vmatprep.subr.bf16.mxu0 %v2347
        %2657 = vmatpush1.bf16.msra.mxu0 %v2346
        %2658 = vmatprep.subr.bf16.mxu0 %v2355
        %2659 = vmatpush1.bf16.msra.mxu0 %v2354
        %2660 = vmatprep.subr.bf16.mxu0 %v2363
        %2661 = vmatpush1.bf16.msra.mxu0 %v2362
        %2662 = vmatprep.subr.bf16.mxu0 %v2371
        %2663 = vmatpush1.bf16.msra.mxu0 %v2370
        %2664 = vmatprep.subr.bf16.mxu0 %v2379
        %2665 = vmatpush1.bf16.msra.mxu0 %v2378
        %2666 = vmatprep.subr.bf16.mxu0 %v2387
        %2667 = vmatpush1.bf16.msra.mxu0 %v2386
        %2668 = vmatprep.subr.bf16.mxu0 %v2395
        %2669 = vmatpush1.bf16.msra.mxu0 %v2394
        %2670 = vmatprep.subr.bf16.mxu0 %v2403
        %2671 = vmatpush1.bf16.msra.mxu0 %v2402
        %2672 = vmatprep.subr.bf16.mxu0 %v2411
        %2673 = vmatpush1.bf16.msra.mxu0 %v2410
        %2674 = vmatprep.subr.bf16.mxu0 %v2419
        %2675 = vmatpush1.bf16.msra.mxu0 %v2418
        %2676 = vmatprep.subr.bf16.mxu0 %v2427
        %2677 = vmatpush1.bf16.msra.mxu0 %v2426
        %2678 = vmatprep.subr.bf16.mxu0 %v2435
        %2679 = vmatpush1.bf16.msra.mxu0 %v2434
        %2680 = vmatprep.mubr.bf16.mxu0 %v1789
        %2681 = vmatmul.mubr.bf16.gmra.mrb[0].mxu0 %v1788
        %v2682 = vpop.f32.mrb[0].mxu0
        %v2683 = vadd.f32 0.0, %v2682
        %v2684 = vpop.f32.mrb[0].mxu0
        %v2685 = vadd.f32 0.0, %v2684
        %v2686 = vpop.f32.mrb[0].mxu0
        %v2687 = vpop.f32.mrb[0].mxu0
        %2688 = vdwg.mxu0
        %2689 = vmatprep.subr.bf16.mxu0 %v2317
        %2690 = vmatpush1.bf16.msra.mxu0 %v2316
        %2691 = vmatprep.subr.bf16.mxu0 %v2325
        %2692 = vmatpush1.bf16.msra.mxu0 %v2324
        %2693 = vmatprep.subr.bf16.mxu0 %v2333
        %2694 = vmatpush1.bf16.msra.mxu0 %v2332
        %2695 = vmatprep.subr.bf16.mxu0 %v2341
        %2696 = vmatpush1.bf16.msra.mxu0 %v2340
        %2697 = vmatprep.subr.bf16.mxu0 %v2349
        %2698 = vmatpush1.bf16.msra.mxu0 %v2348
        %2699 = vmatprep.subr.bf16.mxu0 %v2357
        %2700 = vmatpush1.bf16.msra.mxu0 %v2356
        %2701 = vmatprep.subr.bf16.mxu0 %v2365
        %2702 = vmatpush1.bf16.msra.mxu0 %v2364
        %2703 = vmatprep.subr.bf16.mxu0 %v2373
        %2704 = vmatpush1.bf16.msra.mxu0 %v2372
        %2705 = vmatprep.subr.bf16.mxu0 %v2381
        %2706 = vmatpush1.bf16.msra.mxu0 %v2380
        %2707 = vmatprep.subr.bf16.mxu0 %v2389
        %2708 = vmatpush1.bf16.msra.mxu0 %v2388
        %2709 = vmatprep.subr.bf16.mxu0 %v2397
        %2710 = vmatpush1.bf16.msra.mxu0 %v2396
        %2711 = vmatprep.subr.bf16.mxu0 %v2405
        %2712 = vmatpush1.bf16.msra.mxu0 %v2404
        %2713 = vmatprep.subr.bf16.mxu0 %v2413
        %2714 = vmatpush1.bf16.msra.mxu0 %v2412
        %2715 = vmatprep.subr.bf16.mxu0 %v2421
        %2716 = vmatpush1.bf16.msra.mxu0 %v2420
        %2717 = vmatprep.subr.bf16.mxu0 %v2429
        %2718 = vmatpush1.bf16.msra.mxu0 %v2428
        %2719 = vmatprep.subr.bf16.mxu0 %v2437
        %2720 = vmatpush1.bf16.msra.mxu0 %v2436
        %2721 = vmatprep.mubr.bf16.mxu0 %v1789
        %2722 = vmatmul.mubr.bf16.gmra.mrb[0].mxu0 %v1788
        %v2723 = vpop.f32.mrb[0].mxu0
        %v2724 = vadd.f32 0.0, %v2723
        %v2725 = vpop.f32.mrb[0].mxu0
        %v2726 = vadd.f32 0.0, %v2725
        %v2727 = vpop.f32.mrb[0].mxu0
        %v2728 = vpop.f32.mrb[0].mxu0
        %2729 = vdwg.mxu0
        %v2730 = vadd.f32 %v1790, %v2601
        %v2731 = vadd.f32 %v1791, %v2603
        %v2732 = vadd.f32 %v1792, %v2642
        %v2733 = vadd.f32 %v1793, %v2644
        %v2734 = vadd.f32 %v1794, %v2683
        %v2735 = vadd.f32 %v1795, %v2685
        %v2736 = vadd.f32 %v1796, %v2724
        %v2737 = vadd.f32 %v1797, %v2726
        %2738 = vst [vmem:[#allocation2] sm:$0xff] %v2730
        %2739 = vst [vmem:[#allocation2 + $0x8] sm:$0xff] %v2731
        %2740 = vst [vmem:[#allocation2 + $0x10] sm:$0xff] %v2732
        %2741 = vst [vmem:[#allocation2 + $0x18] sm:$0xff] %v2733
        %2742 = vst [vmem:[#allocation2 + $0x20] sm:$0xff] %v2734
        %2743 = vst [vmem:[#allocation2 + $0x28] sm:$0xff] %v2735
        %2744 = vst [vmem:[#allocation2 + $0x30] sm:$0xff] %v2736
        %2745 = vst [vmem:[#allocation2 + $0x38] sm:$0xff] %v2737
        %p2746 = scmp.eq.s32.totalorder %s16, 7
        // Predicated region
        $region83: #{net_forward.13} parent=73 // pred_check
          %p2747 = pneg %p2746
        $region84: #{net_forward.13} parent=73 // pred_check_branch
          %2749 = sbr.rel (%p2747) target = $region86
        $region85: #{net_forward.13} parent=73 // pred_region
          %v2750 = vld [vmem:[#allocation2] sm:$0xff]
          %v2751 = vld [vmem:[#allocation2 + $0x8] sm:$0xff]
          %v2752 = vld [vmem:[#allocation2 + $0x10] sm:$0xff]
          %v2753 = vld [vmem:[#allocation2 + $0x18] sm:$0xff]
          %v2754 = vld [vmem:[#allocation2 + $0x20] sm:$0xff]
          %v2755 = vld [vmem:[#allocation2 + $0x28] sm:$0xff]
          %v2756 = vld [vmem:[#allocation2 + $0x30] sm:$0xff]
          %v2757 = vld [vmem:[#allocation2 + $0x38] sm:$0xff]
          %v2758 = vld [vmem:[%s4] sm:$0xff]
          %v2760 = vlaneseq
          %v2761 = vshrl.u32 %v2760, 7
          %v2762 = vsub.s32 0, %v2761
          %v2763 = vrot.slane %v2758, %v2762
          %v2764 = vlaneseq
          %v2765 = vshrl.u32 %v2764, 7
          %v2766 = vsub.s32 1, %v2765
          %v2767 = vrot.slane %v2758, %v2766
          %v2768 = vlaneseq
          %v2769 = vshrl.u32 %v2768, 7
          %v2770 = vsub.s32 2, %v2769
          %v2771 = vrot.slane %v2758, %v2770
          %v2772 = vlaneseq
          %v2773 = vshrl.u32 %v2772, 7
          %v2774 = vsub.s32 3, %v2773
          %v2775 = vrot.slane %v2758, %v2774
          %v2776 = vlaneseq
          %v2777 = vshrl.u32 %v2776, 7
          %v2778 = vsub.s32 4, %v2777
          %v2779 = vrot.slane %v2758, %v2778
          %v2780 = vlaneseq
          %v2781 = vshrl.u32 %v2780, 7
          %v2782 = vsub.s32 5, %v2781
          %v2783 = vrot.slane %v2758, %v2782
          %v2784 = vlaneseq
          %v2785 = vshrl.u32 %v2784, 7
          %v2786 = vsub.s32 6, %v2785
          %v2787 = vrot.slane %v2758, %v2786
          %v2788 = vlaneseq
          %v2789 = vshrl.u32 %v2788, 7
          %v2790 = vsub.s32 7, %v2789
          %v2791 = vrot.slane %v2758, %v2790
          %v2800 = vadd.f32 %v2750, %v2763
          %v2801 = vadd.f32 %v2751, %v2767
          %v2802 = vadd.f32 %v2752, %v2771
          %v2803 = vadd.f32 %v2753, %v2775
          %v2804 = vadd.f32 %v2754, %v2779
          %v2805 = vadd.f32 %v2755, %v2783
          %v2806 = vadd.f32 %v2756, %v2787
          %v2807 = vadd.f32 %v2757, %v2791
          %v2808 = vmax.f32 %v2800, 0.0
          %v2809 = vmax.f32 %v2801, 0.0
          %v2810 = vmax.f32 %v2802, 0.0
          %v2811 = vmax.f32 %v2803, 0.0
          %v2812 = vmax.f32 %v2804, 0.0
          %v2813 = vmax.f32 %v2805, 0.0
          %v2814 = vmax.f32 %v2806, 0.0
          %v2815 = vmax.f32 %v2807, 0.0
          %2816 = vst [vmem:[%s5] sm:$0xff] %v2808
          %2817 = vst [vmem:[%s5 + $0x8] sm:$0xff] %v2809
          %2818 = vst [vmem:[%s5 + $0x10] sm:$0xff] %v2810
          %2819 = vst [vmem:[%s5 + $0x18] sm:$0xff] %v2811
          %2820 = vst [vmem:[%s5 + $0x20] sm:$0xff] %v2812
          %2821 = vst [vmem:[%s5 + $0x28] sm:$0xff] %v2813
          %2822 = vst [vmem:[%s5 + $0x30] sm:$0xff] %v2814
          %2823 = vst [vmem:[%s5 + $0x38] sm:$0xff] %v2815
        $region86: #{net_forward.13} parent=73 // pred_fallthru
          _
        // Predicated region
        $region87: #{net_forward.13} parent=73 // pred_check
          %p2824 = pneg %p149
        $region88: #{net_forward.13} parent=73 // pred_check_branch
          %2826 = sbr.rel (%p2824) target = $region90
        $region89: #{net_forward.13} parent=73 // pred_region
          _
        $region90: #{net_forward.13} parent=73 // pred_fallthru
          _
        // Predicated region
        $region91: #{net_forward.13} parent=73 // pred_check
          %p2827 = pneg %p149
        $region92: #{net_forward.13} parent=73 // pred_check_branch
          %2829 = sbr.rel (%p2827) target = $region94
        $region93: #{net_forward.13} parent=73 // pred_region
          _
        $region94: #{net_forward.13} parent=73 // pred_fallthru
          _
      $region74: #{net_forward.13} parent=5 // pred_fallthru
        _
      %p2830 = scmp.le.s32.totalorder 2, %s11
      // Predicated region
      $region95: #{net_forward.13} parent=5 // pred_check
        %p2831 = pneg %p2830
      $region96: #{net_forward.13} parent=5 // pred_check_branch
        %2833 = sbr.rel (%p2831) target = $region98
      $region97: #{net_forward.13} parent=5 // pred_region
        %s2834 = ssub.s32 %s11, 2
      $region98: #{net_forward.13} parent=5 // pred_fallthru
        _
    $region6: #{net_forward.13} parent=1 // loop_footer
      %s15 = sadd.s32 1, %s11
    $region7: #{net_forward.13} parent=1 // loop_footer_branch
      %10 = sbr.rel target = $region3
    $region8: #{net_forward.13} parent=1 // loop_exit
      _

</llo_original>
